<compile_context>
chip_gen: v5e
topology: v5e:2x2
jax: 0.10.0
libtpu: 0.0.40
codegen_flags: <defaults>
</compile_context>

<pallas_src>
import functools
import jax
import jax.numpy as jnp
from jax.experimental import pallas as pl
from jax.experimental.pallas import tpu as pltpu

NZ = 100
NC = 1
BN_EPS = 1e-5
VMEM_LIMIT = 48 * 1024 * 1024   # <= 64 MiB physical VMEM on v7x; ample on v5e/v6e.


def _round_up(x, m):
    return (x + m - 1) // m * m


# ----------------------------------------------------------------------------
# Pallas kernels
# ----------------------------------------------------------------------------
def _matmul_kernel(a_ref, b_ref, o_ref, *, tanh):
    acc = jnp.dot(a_ref[...], b_ref[...], preferred_element_type=jnp.float32)
    if tanh:
        acc = jnp.tanh(acc)          # fused epilogue (EUP slot, free vs extra HBM pass)
    o_ref[...] = acc


def _bn_stats_kernel(x_ref, sum_ref, sq_ref):
    @pl.when(pl.program_id(0) == 0)
    def _():
        sum_ref[...] = jnp.zeros_like(sum_ref)
        sq_ref[...] = jnp.zeros_like(sq_ref)

    x = x_ref[...]
    sum_ref[...] += jnp.sum(x, axis=0, keepdims=True)
    sq_ref[...] += jnp.sum(x * x, axis=0, keepdims=True)


def _scale_shift_relu_kernel(x_ref, s_ref, b_ref, o_ref):
    y = x_ref[...] * s_ref[...] + b_ref[...]
    o_ref[...] = jnp.maximum(y, 0.0).astype(o_ref.dtype)


# ----------------------------------------------------------------------------
# Pallas wrappers
# ----------------------------------------------------------------------------
def matmul2d_pallas(a, b, *, tanh=False, tm=512, tn=512):
    """(M, K) @ (K, N); bf16 operands, f32 MXU accumulation."""
    M, K = a.shape
    _, N = b.shape
    a = a.astype(jnp.bfloat16)
    b = b.astype(jnp.bfloat16)
    bm = M if M <= tm else tm
    bn = N if N <= tn else tn
    Mp, Np = _round_up(M, bm), _round_up(N, bn)
    if Mp != M:
        a = jnp.pad(a, ((0, Mp - M), (0, 0)))
    if Np != N:
        b = jnp.pad(b, ((0, 0), (0, Np - N)))
    out = pl.pallas_call(
        functools.partial(_matmul_kernel, tanh=tanh),
        out_shape=jax.ShapeDtypeStruct((Mp, Np), jnp.float32),
        grid=(Mp // bm, Np // bn),
        in_specs=[
            pl.BlockSpec((bm, K), lambda i, j: (i, 0)),
            pl.BlockSpec((K, bn), lambda i, j: (0, j)),
        ],
        out_specs=pl.BlockSpec((bm, bn), lambda i, j: (i, j)),
        compiler_params=pltpu.CompilerParams(
            dimension_semantics=("parallel", "parallel"),
            vmem_limit_bytes=VMEM_LIMIT,
        ),
    )(a, b)
    if Mp != M or Np != N:
        out = out[:M, :N]
    return out


def phase_matmul_pallas(a, b, *, tanh=False, tm=512, tn=512):
    """Batched (P, M, K) @ (P, K, N); every grid axis is independent ('parallel')."""
    P, M, K = a.shape
    _, _, N = b.shape
    a = a.astype(jnp.bfloat16)
    b = b.astype(jnp.bfloat16)
    bm = M if M <= tm else tm
    bn = N if N <= tn else tn
    Mp, Np = _round_up(M, bm), _round_up(N, bn)
    if Mp != M:
        a = jnp.pad(a, ((0, 0), (0, Mp - M), (0, 0)))
    if Np != N:
        b = jnp.pad(b, ((0, 0), (0, 0), (0, Np - N)))
    out = pl.pallas_call(
        functools.partial(_matmul_kernel, tanh=tanh),
        out_shape=jax.ShapeDtypeStruct((P, Mp, Np), jnp.float32),
        grid=(P, Mp // bm, Np // bn),
        in_specs=[
            pl.BlockSpec((None, bm, K), lambda p, i, j: (p, i, 0)),
            pl.BlockSpec((None, K, bn), lambda p, i, j: (p, 0, j)),
        ],
        out_specs=pl.BlockSpec((None, bm, bn), lambda p, i, j: (p, i, j)),
        compiler_params=pltpu.CompilerParams(
            dimension_semantics=("parallel", "parallel", "parallel"),
            vmem_limit_bytes=VMEM_LIMIT,
        ),
    )(a, b)
    if Mp != M or Np != N:
        out = out[:, :M, :N]
    return out


def batchnorm_relu(x2d, gamma, beta, *, out_dtype=jnp.bfloat16):
    """Training-mode BatchNorm (batch statistics, biased variance) + ReLU.

    x2d: (rows = all N*H*W positions, C) float32.  Pass 1 accumulates per-channel
    sum / sum-of-squares over row tiles; pass 2 applies scale*x+shift with ReLU.
    """
    R, C = x2d.shape
    tr = min(R, 1024)
    assert R % tr == 0, (R, tr)
    s, sq = pl.pallas_call(
        _bn_stats_kernel,
        out_shape=(jax.ShapeDtypeStruct((1, C), jnp.float32),
                   jax.ShapeDtypeStruct((1, C), jnp.float32)),
        grid=(R // tr,),
        in_specs=[pl.BlockSpec((tr, C), lambda i: (i, 0))],
        out_specs=(pl.BlockSpec((1, C), lambda i: (0, 0)),
                   pl.BlockSpec((1, C), lambda i: (0, 0))),
        compiler_params=pltpu.CompilerParams(
            dimension_semantics=("arbitrary",),
            vmem_limit_bytes=VMEM_LIMIT,
        ),
    )(x2d)
    mean = s / R
    var = sq / R - mean * mean                 # biased variance == PyTorch training BN
    inv = jax.lax.rsqrt(var + BN_EPS)
    g = gamma.reshape(1, C)
    scale = g * inv
    shift = beta.reshape(1, C) - mean * g * inv
    return pl.pallas_call(
        _scale_shift_relu_kernel,
        out_shape=jax.ShapeDtypeStruct((R, C), out_dtype),
        grid=(R // tr,),
        in_specs=[
            pl.BlockSpec((tr, C), lambda i: (i, 0)),
            pl.BlockSpec((1, C), lambda i: (0, 0)),
            pl.BlockSpec((1, C), lambda i: (0, 0)),
        ],
        out_specs=pl.BlockSpec((tr, C), lambda i: (i, 0)),
        compiler_params=pltpu.CompilerParams(
            dimension_semantics=("parallel",),
            vmem_limit_bytes=VMEM_LIMIT,
        ),
    )(x2d, scale, shift)


# ----------------------------------------------------------------------------
# ConvTranspose2d(k=4, s=2, p=1, bias=False) via sub-pixel phase decomposition
# ----------------------------------------------------------------------------
def deconv_s2_phases(x_nhwc, w, *, tanh=False):
    """Returns (y_phases, (N, H, W, Cout)); y_phases is (4, N*H*W, Cout) float32.

    Output pixel (2*qh+ph, 2*qw+pw) = sum_{a,b in {0,1}} x[qh+ph-1+a, qw+pw-1+b] *
    w[:, :, 3-ph-2a, 3-pw-2b]; phase index p = 2*ph + pw.
    """
    # TODO(synk): gather the 2x2 taps inside the matmul kernel (manual DMA from
    # memory_space=pl.ANY) instead of materializing the phase im2col slab in HBM.
    N, H, W, Cin = x_nhwc.shape
    Cout = w.shape[1]
    xpad = jnp.pad(x_nhwc, ((0, 0), (1, 1), (1, 1), (0, 0)))
    a_phases, b_phases = [], []
    for ph in range(2):
        for pw in range(2):
            taps = [xpad[:, ph + a:ph + a + H, pw + b:pw + b + W, :]
                    for a in range(2) for b in range(2)]
            A = jnp.stack(taps, axis=3).reshape(N * H * W, 4 * Cin)
            Wm = jnp.stack([w[:, :, 3 - ph - 2 * a, 3 - pw - 2 * b]
                            for a in range(2) for b in range(2)],
                           axis=0).reshape(4 * Cin, Cout)
            a_phases.append(A)
            b_phases.append(Wm)
    y = phase_matmul_pallas(jnp.stack(a_phases), jnp.stack(b_phases), tanh=tanh)
    return y, (N, H, W, Cout)


def assemble_phases(y_phases, dims, dtype):
    """(4, N*H*W, Cout) phase-major result -> (N, 2H, 2W, Cout) NHWC."""
    N, H, W, Cout = dims
    y = y_phases.astype(dtype).reshape(2, 2, N, H, W, Cout)
    y = jnp.transpose(y, (2, 3, 0, 4, 1, 5))     # (N, H, ph, W, pw, Cout)
    return y.reshape(N, 2 * H, 2 * W, Cout)


# ----------------------------------------------------------------------------
# Generator forward
# ----------------------------------------------------------------------------
def init_params(key):
    specs = [(NZ, 512), (512, 256), (256, 128), (128, 64), (64, NC)]
    params = []
    for i, (cin, cout) in enumerate(specs):
        key, wk = jax.random.split(key)
        w = 0.02 * jax.random.normal(wk, (cin, cout, 4, 4), dtype=jnp.float32)
        if i < 4:   # BatchNorm follows the first four deconvs (fresh nn.BatchNorm2d)
            params.append((w, jnp.ones((cout,), jnp.float32),
                           jnp.zeros((cout,), jnp.float32)))
        else:
            params.append((w, None, None))
    return params


@jax.jit
def generator_forward(x_nchw, params):
    """x_nchw: (N, nz, 1, 1) float32 -> (N, nc, 64, 64) float32."""
    (w1, g1, b1), (w2, g2, b2), (w3, g3, b3), (w4, g4, b4), (w5, _, _) = params
    N = x_nchw.shape[0]

    # Layer 1: ConvTranspose2d(nz, 512, 4, 1, 0) on a 1x1 input == plain matmul.
    z = x_nchw.reshape(N, NZ)
    w1m = jnp.transpose(w1, (0, 2, 3, 1)).reshape(NZ, 16 * 512)     # (cin, kh*kw*cout)
    y = matmul2d_pallas(z, w1m)                                     # (N, 16*512) f32
    y = batchnorm_relu(y.reshape(N * 16, 512), g1, b1)              # bf16
    x = y.reshape(N, 4, 4, 512)

    # Layers 2-4: stride-2 deconv + BatchNorm + ReLU (BN runs on the phase-stacked slab).
    for w, g, b in ((w2, g2, b2), (w3, g3, b3), (w4, g4, b4)):
        yp, dims = deconv_s2_phases(x, w)                           # (4, N*H*W, Cout) f32
        P, M, C = yp.shape
        yb = batchnorm_relu(yp.reshape(P * M, C), g, b)             # bf16
        x = assemble_phases(yb.reshape(P, M, C), dims, jnp.bfloat16)

    # Layer 5: stride-2 deconv with Tanh fused into the matmul epilogue.
    yp, dims = deconv_s2_phases(x, w5, tanh=True)                   # (4, N*H*W, 1) f32
    out = assemble_phases(yp, dims, jnp.float32)                    # (N, 64, 64, 1)
    return jnp.transpose(out, (0, 3, 1, 2))                         # NHWC -> NCHW


if __name__ == "__main__":
    key = jax.random.PRNGKey(0)
    pkey, zkey = jax.random.split(key)
    params = init_params(pkey)
    batch = 2
    z = jax.random.normal(zkey, (batch, NZ, 1, 1), dtype=jnp.float32)

    out = jax.block_until_ready(generator_forward(z, params))

    assert out.shape == (batch, NC, 64, 64), out.shape
    assert out.dtype == jnp.float32
    assert bool(jnp.all(jnp.isfinite(out)))
    assert bool(jnp.all(jnp.abs(out) <= 1.0 + 1e-6))    # tanh range
    print("KERNEL_OK")
</pallas_src>

<mosaic_0001>
module attributes {stable_mosaic.version = 11 : i64} {
  func.func @_matmul_kernel(%arg0: i32, %arg1: i32, %arg2: memref<2x100xbf16, #tpu.memory_space<vmem>>, %arg3: memref<100x512xbf16, #tpu.memory_space<vmem>>, %arg4: memref<2x512xf32, #tpu.memory_space<vmem>>) attributes {dimension_semantics = [#tpu.dimension_semantics<parallel>, #tpu.dimension_semantics<parallel>], iteration_bounds = array<i64: 1, 16>, scalar_prefetch = 0 : i64, scratch_operands = 0 : i64, tpu.core_type = #tpu.core_type<tc>, window_params = [{transform_indices = @transform_0, window_bounds = array<i64: 2, 100>}, {transform_indices = @transform_1, window_bounds = array<i64: 100, 512>}, {transform_indices = @transform_2, window_bounds = array<i64: 2, 512>}]} {
    %c0 = arith.constant 0 : index
    %c0_0 = arith.constant 0 : index
    %0 = vector.load %arg2[%c0, %c0_0] : memref<2x100xbf16, #tpu.memory_space<vmem>>, vector<2x100xbf16>
    %c0_1 = arith.constant 0 : index
    %c0_2 = arith.constant 0 : index
    %1 = vector.load %arg3[%c0_1, %c0_2] : memref<100x512xbf16, #tpu.memory_space<vmem>>, vector<100x512xbf16>
    %cst = arith.constant dense<0.000000e+00> : vector<2x512xf32>
    %2 = tpu.matmul %0, %1, %cst {dimension_numbers = #tpu.dot_dimension_numbers<[1], [0], [0], [1], [0, 0, 1, 1], [], []>} : vector<2x100xbf16>, vector<100x512xbf16>, vector<2x512xf32> -> vector<2x512xf32>
    %c0_3 = arith.constant 0 : index
    %c0_4 = arith.constant 0 : index
    %3 = vector.load %arg4[%c0_3, %c0_4] : memref<2x512xf32, #tpu.memory_space<vmem>>, vector<2x512xf32>
    tpu.vector_store %arg4[%c0_3, %c0_4], %2 {strides = array<i32>} : memref<2x512xf32, #tpu.memory_space<vmem>>, vector<2x512xf32>,
    return
  }
  func.func @transform_0(%arg0: i32, %arg1: i32) -> (i32, i32) {
    %c0_i32 = arith.constant 0 : i32
    %c0_i32_0 = arith.constant 0 : i32
    return %arg0, %c0_i32 : i32, i32
  }
  func.func @transform_1(%arg0: i32, %arg1: i32) -> (i32, i32) {
    %c0_i32 = arith.constant 0 : i32
    %c0_i32_0 = arith.constant 0 : i32
    return %c0_i32, %arg1 : i32, i32
  }
  func.func @transform_2(%arg0: i32, %arg1: i32) -> (i32, i32) {
    %c0_i32 = arith.constant 0 : i32
    return %arg0, %arg1 : i32, i32
  }
}

module attributes {stable_mosaic.version = 11 : i64} {
  func.func @_bn_stats_kernel(%arg0: i32, %arg1: memref<32x512xf32, #tpu.memory_space<vmem>>, %arg2: memref<1x512xf32, #tpu.memory_space<vmem>>, %arg3: memref<1x512xf32, #tpu.memory_space<vmem>>) attributes {dimension_semantics = [#tpu.dimension_semantics<arbitrary>], iteration_bounds = array<i64: 1>, scalar_prefetch = 0 : i64, scratch_operands = 0 : i64, tpu.core_type = #tpu.core_type<tc>, window_params = [{transform_indices = @transform_0, window_bounds = array<i64: 32, 512>}, {pipeline_mode = #tpu.pipeline_mode<synchronous>, transform_indices = @transform_1, window_bounds = array<i64: 1, 512>}, {pipeline_mode = #tpu.pipeline_mode<synchronous>, transform_indices = @transform_2, window_bounds = array<i64: 1, 512>}]} {
    %c0_i32 = arith.constant 0 : i32
    %0 = arith.cmpi eq, %arg0, %c0_i32 : i32
    %1 = arith.extui %0 : i1 to i32
    %c0_i32_0 = arith.constant 0 : i32
    %2 = arith.cmpi ne, %1, %c0_i32_0 : i32
    scf.if %2 {
      %cst_11 = arith.constant 0.000000e+00 : f32
      %15 = vector.broadcast %cst_11 : f32 to vector<1x512xf32>
      %c0_12 = arith.constant 0 : index
      %c0_13 = arith.constant 0 : index
      %16 = vector.load %arg2[%c0_12, %c0_13] : memref<1x512xf32, #tpu.memory_space<vmem>>, vector<1x512xf32>
      tpu.vector_store %arg2[%c0_12, %c0_13], %15 {strides = array<i32>} : memref<1x512xf32, #tpu.memory_space<vmem>>, vector<1x512xf32>,
      %cst_14 = arith.constant 0.000000e+00 : f32
      %17 = vector.broadcast %cst_14 : f32 to vector<1x512xf32>
      %c0_15 = arith.constant 0 : index
      %c0_16 = arith.constant 0 : index
      %18 = vector.load %arg3[%c0_15, %c0_16] : memref<1x512xf32, #tpu.memory_space<vmem>>, vector<1x512xf32>
      tpu.vector_store %arg3[%c0_15, %c0_16], %17 {strides = array<i32>} : memref<1x512xf32, #tpu.memory_space<vmem>>, vector<1x512xf32>,
    } else {
    }
    %c0 = arith.constant 0 : index
    %c0_1 = arith.constant 0 : index
    %3 = vector.load %arg1[%c0, %c0_1] : memref<32x512xf32, #tpu.memory_space<vmem>>, vector<32x512xf32>
    %c0_2 = arith.constant 0 : index
    %c0_3 = arith.constant 0 : index
    %4 = vector.load %arg2[%c0_2, %c0_3] : memref<1x512xf32, #tpu.memory_space<vmem>>, vector<1x512xf32>
    %cst = arith.constant dense<0.000000e+00> : vector<512xf32>
    %5 = vector.multi_reduction <add>, %3, %cst [0] : vector<32x512xf32> to vector<512xf32>
    %6 = vector.shape_cast %5 : vector<512xf32> to vector<1x512xf32>
    %7 = arith.addf %4, %6 : vector<1x512xf32>
    %c0_4 = arith.constant 0 : index
    %c0_5 = arith.constant 0 : index
    %8 = vector.load %arg2[%c0_4, %c0_5] : memref<1x512xf32, #tpu.memory_space<vmem>>, vector<1x512xf32>
    tpu.vector_store %arg2[%c0_4, %c0_5], %7 {strides = array<i32>} : memref<1x512xf32, #tpu.memory_space<vmem>>, vector<1x512xf32>,
    %c0_6 = arith.constant 0 : index
    %c0_7 = arith.constant 0 : index
    %9 = vector.load %arg3[%c0_6, %c0_7] : memref<1x512xf32, #tpu.memory_space<vmem>>, vector<1x512xf32>
    %10 = arith.mulf %3, %3 : vector<32x512xf32>
    %cst_8 = arith.constant dense<0.000000e+00> : vector<512xf32>
    %11 = vector.multi_reduction <add>, %10, %cst_8 [0] : vector<32x512xf32> to vector<512xf32>
    %12 = vector.shape_cast %11 : vector<512xf32> to vector<1x512xf32>
    %13 = arith.addf %9, %12 : vector<1x512xf32>
    %c0_9 = arith.constant 0 : index
    %c0_10 = arith.constant 0 : index
    %14 = vector.load %arg3[%c0_9, %c0_10] : memref<1x512xf32, #tpu.memory_space<vmem>>, vector<1x512xf32>
    tpu.vector_store %arg3[%c0_9, %c0_10], %13 {strides = array<i32>} : memref<1x512xf32, #tpu.memory_space<vmem>>, vector<1x512xf32>,
    return
  }
  func.func @transform_0(%arg0: i32) -> (i32, i32) {
    %c0_i32 = arith.constant 0 : i32
    %c0_i32_0 = arith.constant 0 : i32
    return %arg0, %c0_i32 : i32, i32
  }
  func.func @transform_1(%arg0: i32) -> (i32, i32) {
    %c0_i32 = arith.constant 0 : i32
    %c0_i32_0 = arith.constant 0 : i32
    %c0_i32_1 = arith.constant 0 : i32
    return %c0_i32, %c0_i32_0 : i32, i32
  }
  func.func @transform_2(%arg0: i32) -> (i32, i32) {
    %c0_i32 = arith.constant 0 : i32
    %c0_i32_0 = arith.constant 0 : i32
    %c0_i32_1 = arith.constant 0 : i32
    return %c0_i32, %c0_i32_0 : i32, i32
  }
}

module attributes {stable_mosaic.version = 11 : i64} {
  func.func @_scale_shift_relu_kernel(%arg0: i32, %arg1: memref<32x512xf32, #tpu.memory_space<vmem>>, %arg2: memref<1x512xf32, #tpu.memory_space<vmem>>, %arg3: memref<1x512xf32, #tpu.memory_space<vmem>>, %arg4: memref<32x512xbf16, #tpu.memory_space<vmem>>) attributes {dimension_semantics = [#tpu.dimension_semantics<parallel>], iteration_bounds = array<i64: 1>, scalar_prefetch = 0 : i64, scratch_operands = 0 : i64, tpu.core_type = #tpu.core_type<tc>, window_params = [{transform_indices = @transform_0, window_bounds = array<i64: 32, 512>}, {pipeline_mode = #tpu.pipeline_mode<synchronous>, transform_indices = @transform_1, window_bounds = array<i64: 1, 512>}, {pipeline_mode = #tpu.pipeline_mode<synchronous>, transform_indices = @transform_2, window_bounds = array<i64: 1, 512>}, {transform_indices = @transform_3, window_bounds = array<i64: 32, 512>}]} {
    %c0 = arith.constant 0 : index
    %c0_0 = arith.constant 0 : index
    %0 = vector.load %arg1[%c0, %c0_0] : memref<32x512xf32, #tpu.memory_space<vmem>>, vector<32x512xf32>
    %c0_1 = arith.constant 0 : index
    %c0_2 = arith.constant 0 : index
    %1 = vector.load %arg2[%c0_1, %c0_2] : memref<1x512xf32, #tpu.memory_space<vmem>>, vector<1x512xf32>
    %2 = vector.broadcast %1 : vector<1x512xf32> to vector<32x512xf32>
    %3 = arith.mulf %0, %2 : vector<32x512xf32>
    %c0_3 = arith.constant 0 : index
    %c0_4 = arith.constant 0 : index
    %4 = vector.load %arg3[%c0_3, %c0_4] : memref<1x512xf32, #tpu.memory_space<vmem>>, vector<1x512xf32>
    %5 = vector.broadcast %4 : vector<1x512xf32> to vector<32x512xf32>
    %6 = arith.addf %3, %5 : vector<32x512xf32>
    %cst = arith.constant 0.000000e+00 : f32
    %7 = vector.broadcast %cst : f32 to vector<32x512xf32>
    %8 = arith.maximumf %6, %7 : vector<32x512xf32>
    %9 = arith.truncf %8 : vector<32x512xf32> to vector<32x512xbf16>
    %c0_5 = arith.constant 0 : index
    %c0_6 = arith.constant 0 : index
    %10 = vector.load %arg4[%c0_5, %c0_6] : memref<32x512xbf16, #tpu.memory_space<vmem>>, vector<32x512xbf16>
    tpu.vector_store %arg4[%c0_5, %c0_6], %9 {strides = array<i32>} : memref<32x512xbf16, #tpu.memory_space<vmem>>, vector<32x512xbf16>,
    return
  }
  func.func @transform_0(%arg0: i32) -> (i32, i32) {
    %c0_i32 = arith.constant 0 : i32
    %c0_i32_0 = arith.constant 0 : i32
    return %arg0, %c0_i32 : i32, i32
  }
  func.func @transform_1(%arg0: i32) -> (i32, i32) {
    %c0_i32 = arith.constant 0 : i32
    %c0_i32_0 = arith.constant 0 : i32
    %c0_i32_1 = arith.constant 0 : i32
    return %c0_i32, %c0_i32_0 : i32, i32
  }
  func.func @transform_2(%arg0: i32) -> (i32, i32) {
    %c0_i32 = arith.constant 0 : i32
    %c0_i32_0 = arith.constant 0 : i32
    %c0_i32_1 = arith.constant 0 : i32
    return %c0_i32, %c0_i32_0 : i32, i32
  }
  func.func @transform_3(%arg0: i32) -> (i32, i32) {
    %c0_i32 = arith.constant 0 : i32
    %c0_i32_0 = arith.constant 0 : i32
    return %arg0, %c0_i32 : i32, i32
  }
}

module attributes {stable_mosaic.version = 11 : i64} {
  func.func @_matmul_kernel(%arg0: i32, %arg1: i32, %arg2: i32, %arg3: memref<1x32x2048xbf16, #tpu.memory_space<vmem>>, %arg4: memref<1x2048x256xbf16, #tpu.memory_space<vmem>>, %arg5: memref<1x32x256xf32, #tpu.memory_space<vmem>>) attributes {dimension_semantics = [#tpu.dimension_semantics<parallel>, #tpu.dimension_semantics<parallel>, #tpu.dimension_semantics<parallel>], iteration_bounds = array<i64: 4, 1, 1>, scalar_prefetch = 0 : i64, scratch_operands = 0 : i64, tpu.core_type = #tpu.core_type<tc>, window_params = [{transform_indices = @transform_0, window_bounds = array<i64: 1, 32, 2048>}, {transform_indices = @transform_1, window_bounds = array<i64: 1, 2048, 256>}, {transform_indices = @transform_2, window_bounds = array<i64: 1, 32, 256>}]} {
    %c0 = arith.constant 0 : index
    %c0_0 = arith.constant 0 : index
    %c0_1 = arith.constant 0 : index
    %0 = vector.load %arg3[%c0, %c0_0, %c0_1] : memref<1x32x2048xbf16, #tpu.memory_space<vmem>>, vector<1x32x2048xbf16>
    %1 = vector.shape_cast %0 : vector<1x32x2048xbf16> to vector<32x2048xbf16>
    %c0_2 = arith.constant 0 : index
    %c0_3 = arith.constant 0 : index
    %c0_4 = arith.constant 0 : index
    %2 = vector.load %arg4[%c0_2, %c0_3, %c0_4] : memref<1x2048x256xbf16, #tpu.memory_space<vmem>>, vector<1x2048x256xbf16>
    %3 = vector.shape_cast %2 : vector<1x2048x256xbf16> to vector<2048x256xbf16>
    %cst = arith.constant dense<0.000000e+00> : vector<32x256xf32>
    %4 = tpu.matmul %1, %3, %cst {dimension_numbers = #tpu.dot_dimension_numbers<[1], [0], [0], [1], [0, 0, 1, 1], [], []>} : vector<32x2048xbf16>, vector<2048x256xbf16>, vector<32x256xf32> -> vector<32x256xf32>
    %c0_5 = arith.constant 0 : index
    %c0_6 = arith.constant 0 : index
    %c0_7 = arith.constant 0 : index
    %5 = vector.load %arg5[%c0_5, %c0_6, %c0_7] : memref<1x32x256xf32, #tpu.memory_space<vmem>>, vector<1x32x256xf32>
    %6 = vector.shape_cast %5 : vector<1x32x256xf32> to vector<32x256xf32>
    %7 = vector.shape_cast %4 : vector<32x256xf32> to vector<1x32x256xf32>
    tpu.vector_store %arg5[%c0_5, %c0_6, %c0_7], %7 {strides = array<i32>} : memref<1x32x256xf32, #tpu.memory_space<vmem>>, vector<1x32x256xf32>,
    return
  }
  func.func @transform_0(%arg0: i32, %arg1: i32, %arg2: i32) -> (i32, i32, i32) {
    %c0_i32 = arith.constant 0 : i32
    %c0_i32_0 = arith.constant 0 : i32
    return %arg0, %arg1, %c0_i32 : i32, i32, i32
  }
  func.func @transform_1(%arg0: i32, %arg1: i32, %arg2: i32) -> (i32, i32, i32) {
    %c0_i32 = arith.constant 0 : i32
    %c0_i32_0 = arith.constant 0 : i32
    return %arg0, %c0_i32, %arg2 : i32, i32, i32
  }
  func.func @transform_2(%arg0: i32, %arg1: i32, %arg2: i32) -> (i32, i32, i32) {
    %c0_i32 = arith.constant 0 : i32
    return %arg0, %arg1, %arg2 : i32, i32, i32
  }
}

module attributes {stable_mosaic.version = 11 : i64} {
  func.func @_bn_stats_kernel(%arg0: i32, %arg1: memref<128x256xf32, #tpu.memory_space<vmem>>, %arg2: memref<1x256xf32, #tpu.memory_space<vmem>>, %arg3: memref<1x256xf32, #tpu.memory_space<vmem>>) attributes {dimension_semantics = [#tpu.dimension_semantics<arbitrary>], iteration_bounds = array<i64: 1>, scalar_prefetch = 0 : i64, scratch_operands = 0 : i64, tpu.core_type = #tpu.core_type<tc>, window_params = [{transform_indices = @transform_0, window_bounds = array<i64: 128, 256>}, {pipeline_mode = #tpu.pipeline_mode<synchronous>, transform_indices = @transform_1, window_bounds = array<i64: 1, 256>}, {pipeline_mode = #tpu.pipeline_mode<synchronous>, transform_indices = @transform_2, window_bounds = array<i64: 1, 256>}]} {
    %c0_i32 = arith.constant 0 : i32
    %0 = arith.cmpi eq, %arg0, %c0_i32 : i32
    %1 = arith.extui %0 : i1 to i32
    %c0_i32_0 = arith.constant 0 : i32
    %2 = arith.cmpi ne, %1, %c0_i32_0 : i32
    scf.if %2 {
      %cst_11 = arith.constant 0.000000e+00 : f32
      %15 = vector.broadcast %cst_11 : f32 to vector<1x256xf32>
      %c0_12 = arith.constant 0 : index
      %c0_13 = arith.constant 0 : index
      %16 = vector.load %arg2[%c0_12, %c0_13] : memref<1x256xf32, #tpu.memory_space<vmem>>, vector<1x256xf32>
      tpu.vector_store %arg2[%c0_12, %c0_13], %15 {strides = array<i32>} : memref<1x256xf32, #tpu.memory_space<vmem>>, vector<1x256xf32>,
      %cst_14 = arith.constant 0.000000e+00 : f32
      %17 = vector.broadcast %cst_14 : f32 to vector<1x256xf32>
      %c0_15 = arith.constant 0 : index
      %c0_16 = arith.constant 0 : index
      %18 = vector.load %arg3[%c0_15, %c0_16] : memref<1x256xf32, #tpu.memory_space<vmem>>, vector<1x256xf32>
      tpu.vector_store %arg3[%c0_15, %c0_16], %17 {strides = array<i32>} : memref<1x256xf32, #tpu.memory_space<vmem>>, vector<1x256xf32>,
    } else {
    }
    %c0 = arith.constant 0 : index
    %c0_1 = arith.constant 0 : index
    %3 = vector.load %arg1[%c0, %c0_1] : memref<128x256xf32, #tpu.memory_space<vmem>>, vector<128x256xf32>
    %c0_2 = arith.constant 0 : index
    %c0_3 = arith.constant 0 : index
    %4 = vector.load %arg2[%c0_2, %c0_3] : memref<1x256xf32, #tpu.memory_space<vmem>>, vector<1x256xf32>
    %cst = arith.constant dense<0.000000e+00> : vector<256xf32>
    %5 = vector.multi_reduction <add>, %3, %cst [0] : vector<128x256xf32> to vector<256xf32>
    %6 = vector.shape_cast %5 : vector<256xf32> to vector<1x256xf32>
    %7 = arith.addf %4, %6 : vector<1x256xf32>
    %c0_4 = arith.constant 0 : index
    %c0_5 = arith.constant 0 : index
    %8 = vector.load %arg2[%c0_4, %c0_5] : memref<1x256xf32, #tpu.memory_space<vmem>>, vector<1x256xf32>
    tpu.vector_store %arg2[%c0_4, %c0_5], %7 {strides = array<i32>} : memref<1x256xf32, #tpu.memory_space<vmem>>, vector<1x256xf32>,
    %c0_6 = arith.constant 0 : index
    %c0_7 = arith.constant 0 : index
    %9 = vector.load %arg3[%c0_6, %c0_7] : memref<1x256xf32, #tpu.memory_space<vmem>>, vector<1x256xf32>
    %10 = arith.mulf %3, %3 : vector<128x256xf32>
    %cst_8 = arith.constant dense<0.000000e+00> : vector<256xf32>
    %11 = vector.multi_reduction <add>, %10, %cst_8 [0] : vector<128x256xf32> to vector<256xf32>
    %12 = vector.shape_cast %11 : vector<256xf32> to vector<1x256xf32>
    %13 = arith.addf %9, %12 : vector<1x256xf32>
    %c0_9 = arith.constant 0 : index
    %c0_10 = arith.constant 0 : index
    %14 = vector.load %arg3[%c0_9, %c0_10] : memref<1x256xf32, #tpu.memory_space<vmem>>, vector<1x256xf32>
    tpu.vector_store %arg3[%c0_9, %c0_10], %13 {strides = array<i32>} : memref<1x256xf32, #tpu.memory_space<vmem>>, vector<1x256xf32>,
    return
  }
  func.func @transform_0(%arg0: i32) -> (i32, i32) {
    %c0_i32 = arith.constant 0 : i32
    %c0_i32_0 = arith.constant 0 : i32
    return %arg0, %c0_i32 : i32, i32
  }
  func.func @transform_1(%arg0: i32) -> (i32, i32) {
    %c0_i32 = arith.constant 0 : i32
    %c0_i32_0 = arith.constant 0 : i32
    %c0_i32_1 = arith.constant 0 : i32
    return %c0_i32, %c0_i32_0 : i32, i32
  }
  func.func @transform_2(%arg0: i32) -> (i32, i32) {
    %c0_i32 = arith.constant 0 : i32
    %c0_i32_0 = arith.constant 0 : i32
    %c0_i32_1 = arith.constant 0 : i32
    return %c0_i32, %c0_i32_0 : i32, i32
  }
}

module attributes {stable_mosaic.version = 11 : i64} {
  func.func @_scale_shift_relu_kernel(%arg0: i32, %arg1: memref<128x256xf32, #tpu.memory_space<vmem>>, %arg2: memref<1x256xf32, #tpu.memory_space<vmem>>, %arg3: memref<1x256xf32, #tpu.memory_space<vmem>>, %arg4: memref<128x256xbf16, #tpu.memory_space<vmem>>) attributes {dimension_semantics = [#tpu.dimension_semantics<parallel>], iteration_bounds = array<i64: 1>, scalar_prefetch = 0 : i64, scratch_operands = 0 : i64, tpu.core_type = #tpu.core_type<tc>, window_params = [{transform_indices = @transform_0, window_bounds = array<i64: 128, 256>}, {pipeline_mode = #tpu.pipeline_mode<synchronous>, transform_indices = @transform_1, window_bounds = array<i64: 1, 256>}, {pipeline_mode = #tpu.pipeline_mode<synchronous>, transform_indices = @transform_2, window_bounds = array<i64: 1, 256>}, {transform_indices = @transform_3, window_bounds = array<i64: 128, 256>}]} {
    %c0 = arith.constant 0 : index
    %c0_0 = arith.constant 0 : index
    %0 = vector.load %arg1[%c0, %c0_0] : memref<128x256xf32, #tpu.memory_space<vmem>>, vector<128x256xf32>
    %c0_1 = arith.constant 0 : index
    %c0_2 = arith.constant 0 : index
    %1 = vector.load %arg2[%c0_1, %c0_2] : memref<1x256xf32, #tpu.memory_space<vmem>>, vector<1x256xf32>
    %2 = vector.broadcast %1 : vector<1x256xf32> to vector<128x256xf32>
    %3 = arith.mulf %0, %2 : vector<128x256xf32>
    %c0_3 = arith.constant 0 : index
    %c0_4 = arith.constant 0 : index
    %4 = vector.load %arg3[%c0_3, %c0_4] : memref<1x256xf32, #tpu.memory_space<vmem>>, vector<1x256xf32>
    %5 = vector.broadcast %4 : vector<1x256xf32> to vector<128x256xf32>
    %6 = arith.addf %3, %5 : vector<128x256xf32>
    %cst = arith.constant 0.000000e+00 : f32
    %7 = vector.broadcast %cst : f32 to vector<128x256xf32>
    %8 = arith.maximumf %6, %7 : vector<128x256xf32>
    %9 = arith.truncf %8 : vector<128x256xf32> to vector<128x256xbf16>
    %c0_5 = arith.constant 0 : index
    %c0_6 = arith.constant 0 : index
    %10 = vector.load %arg4[%c0_5, %c0_6] : memref<128x256xbf16, #tpu.memory_space<vmem>>, vector<128x256xbf16>
    tpu.vector_store %arg4[%c0_5, %c0_6], %9 {strides = array<i32>} : memref<128x256xbf16, #tpu.memory_space<vmem>>, vector<128x256xbf16>,
    return
  }
  func.func @transform_0(%arg0: i32) -> (i32, i32) {
    %c0_i32 = arith.constant 0 : i32
    %c0_i32_0 = arith.constant 0 : i32
    return %arg0, %c0_i32 : i32, i32
  }
  func.func @transform_1(%arg0: i32) -> (i32, i32) {
    %c0_i32 = arith.constant 0 : i32
    %c0_i32_0 = arith.constant 0 : i32
    %c0_i32_1 = arith.constant 0 : i32
    return %c0_i32, %c0_i32_0 : i32, i32
  }
  func.func @transform_2(%arg0: i32) -> (i32, i32) {
    %c0_i32 = arith.constant 0 : i32
    %c0_i32_0 = arith.constant 0 : i32
    %c0_i32_1 = arith.constant 0 : i32
    return %c0_i32, %c0_i32_0 : i32, i32
  }
  func.func @transform_3(%arg0: i32) -> (i32, i32) {
    %c0_i32 = arith.constant 0 : i32
    %c0_i32_0 = arith.constant 0 : i32
    return %arg0, %c0_i32 : i32, i32
  }
}

module attributes {stable_mosaic.version = 11 : i64} {
  func.func @_matmul_kernel(%arg0: i32, %arg1: i32, %arg2: i32, %arg3: memref<1x128x1024xbf16, #tpu.memory_space<vmem>>, %arg4: memref<1x1024x128xbf16, #tpu.memory_space<vmem>>, %arg5: memref<1x128x128xf32, #tpu.memory_space<vmem>>) attributes {dimension_semantics = [#tpu.dimension_semantics<parallel>, #tpu.dimension_semantics<parallel>, #tpu.dimension_semantics<parallel>], iteration_bounds = array<i64: 4, 1, 1>, scalar_prefetch = 0 : i64, scratch_operands = 0 : i64, tpu.core_type = #tpu.core_type<tc>, window_params = [{transform_indices = @transform_0, window_bounds = array<i64: 1, 128, 1024>}, {transform_indices = @transform_1, window_bounds = array<i64: 1, 1024, 128>}, {transform_indices = @transform_2, window_bounds = array<i64: 1, 128, 128>}]} {
    %c0 = arith.constant 0 : index
    %c0_0 = arith.constant 0 : index
    %c0_1 = arith.constant 0 : index
    %0 = vector.load %arg3[%c0, %c0_0, %c0_1] : memref<1x128x1024xbf16, #tpu.memory_space<vmem>>, vector<1x128x1024xbf16>
    %1 = vector.shape_cast %0 : vector<1x128x1024xbf16> to vector<128x1024xbf16>
    %c0_2 = arith.constant 0 : index
    %c0_3 = arith.constant 0 : index
    %c0_4 = arith.constant 0 : index
    %2 = vector.load %arg4[%c0_2, %c0_3, %c0_4] : memref<1x1024x128xbf16, #tpu.memory_space<vmem>>, vector<1x1024x128xbf16>
    %3 = vector.shape_cast %2 : vector<1x1024x128xbf16> to vector<1024x128xbf16>
    %cst = arith.constant dense<0.000000e+00> : vector<128x128xf32>
    %4 = tpu.matmul %1, %3, %cst {dimension_numbers = #tpu.dot_dimension_numbers<[1], [0], [0], [1], [0, 0, 1, 1], [], []>} : vector<128x1024xbf16>, vector<1024x128xbf16>, vector<128x128xf32> -> vector<128x128xf32>
    %c0_5 = arith.constant 0 : index
    %c0_6 = arith.constant 0 : index
    %c0_7 = arith.constant 0 : index
    %5 = vector.load %arg5[%c0_5, %c0_6, %c0_7] : memref<1x128x128xf32, #tpu.memory_space<vmem>>, vector<1x128x128xf32>
    %6 = vector.shape_cast %5 : vector<1x128x128xf32> to vector<128x128xf32>
    %7 = vector.shape_cast %4 : vector<128x128xf32> to vector<1x128x128xf32>
    tpu.vector_store %arg5[%c0_5, %c0_6, %c0_7], %7 {strides = array<i32>} : memref<1x128x128xf32, #tpu.memory_space<vmem>>, vector<1x128x128xf32>,
    return
  }
  func.func @transform_0(%arg0: i32, %arg1: i32, %arg2: i32) -> (i32, i32, i32) {
    %c0_i32 = arith.constant 0 : i32
    %c0_i32_0 = arith.constant 0 : i32
    return %arg0, %arg1, %c0_i32 : i32, i32, i32
  }
  func.func @transform_1(%arg0: i32, %arg1: i32, %arg2: i32) -> (i32, i32, i32) {
    %c0_i32 = arith.constant 0 : i32
    %c0_i32_0 = arith.constant 0 : i32
    return %arg0, %c0_i32, %arg2 : i32, i32, i32
  }
  func.func @transform_2(%arg0: i32, %arg1: i32, %arg2: i32) -> (i32, i32, i32) {
    %c0_i32 = arith.constant 0 : i32
    return %arg0, %arg1, %arg2 : i32, i32, i32
  }
}

module attributes {stable_mosaic.version = 11 : i64} {
  func.func @_bn_stats_kernel(%arg0: i32, %arg1: memref<512x128xf32, #tpu.memory_space<vmem>>, %arg2: memref<1x128xf32, #tpu.memory_space<vmem>>, %arg3: memref<1x128xf32, #tpu.memory_space<vmem>>) attributes {dimension_semantics = [#tpu.dimension_semantics<arbitrary>], iteration_bounds = array<i64: 1>, scalar_prefetch = 0 : i64, scratch_operands = 0 : i64, tpu.core_type = #tpu.core_type<tc>, window_params = [{transform_indices = @transform_0, window_bounds = array<i64: 512, 128>}, {pipeline_mode = #tpu.pipeline_mode<synchronous>, transform_indices = @transform_1, window_bounds = array<i64: 1, 128>}, {pipeline_mode = #tpu.pipeline_mode<synchronous>, transform_indices = @transform_2, window_bounds = array<i64: 1, 128>}]} {
    %c0_i32 = arith.constant 0 : i32
    %0 = arith.cmpi eq, %arg0, %c0_i32 : i32
    %1 = arith.extui %0 : i1 to i32
    %c0_i32_0 = arith.constant 0 : i32
    %2 = arith.cmpi ne, %1, %c0_i32_0 : i32
    scf.if %2 {
      %cst_11 = arith.constant 0.000000e+00 : f32
      %15 = vector.broadcast %cst_11 : f32 to vector<1x128xf32>
      %c0_12 = arith.constant 0 : index
      %c0_13 = arith.constant 0 : index
      %16 = vector.load %arg2[%c0_12, %c0_13] : memref<1x128xf32, #tpu.memory_space<vmem>>, vector<1x128xf32>
      tpu.vector_store %arg2[%c0_12, %c0_13], %15 {strides = array<i32>} : memref<1x128xf32, #tpu.memory_space<vmem>>, vector<1x128xf32>,
      %cst_14 = arith.constant 0.000000e+00 : f32
      %17 = vector.broadcast %cst_14 : f32 to vector<1x128xf32>
      %c0_15 = arith.constant 0 : index
      %c0_16 = arith.constant 0 : index
      %18 = vector.load %arg3[%c0_15, %c0_16] : memref<1x128xf32, #tpu.memory_space<vmem>>, vector<1x128xf32>
      tpu.vector_store %arg3[%c0_15, %c0_16], %17 {strides = array<i32>} : memref<1x128xf32, #tpu.memory_space<vmem>>, vector<1x128xf32>,
    } else {
    }
    %c0 = arith.constant 0 : index
    %c0_1 = arith.constant 0 : index
    %3 = vector.load %arg1[%c0, %c0_1] : memref<512x128xf32, #tpu.memory_space<vmem>>, vector<512x128xf32>
    %c0_2 = arith.constant 0 : index
    %c0_3 = arith.constant 0 : index
    %4 = vector.load %arg2[%c0_2, %c0_3] : memref<1x128xf32, #tpu.memory_space<vmem>>, vector<1x128xf32>
    %cst = arith.constant dense<0.000000e+00> : vector<128xf32>
    %5 = vector.multi_reduction <add>, %3, %cst [0] : vector<512x128xf32> to vector<128xf32>
    %6 = vector.shape_cast %5 : vector<128xf32> to vector<1x128xf32>
    %7 = arith.addf %4, %6 : vector<1x128xf32>
    %c0_4 = arith.constant 0 : index
    %c0_5 = arith.constant 0 : index
    %8 = vector.load %arg2[%c0_4, %c0_5] : memref<1x128xf32, #tpu.memory_space<vmem>>, vector<1x128xf32>
    tpu.vector_store %arg2[%c0_4, %c0_5], %7 {strides = array<i32>} : memref<1x128xf32, #tpu.memory_space<vmem>>, vector<1x128xf32>,
    %c0_6 = arith.constant 0 : index
    %c0_7 = arith.constant 0 : index
    %9 = vector.load %arg3[%c0_6, %c0_7] : memref<1x128xf32, #tpu.memory_space<vmem>>, vector<1x128xf32>
    %10 = arith.mulf %3, %3 : vector<512x128xf32>
    %cst_8 = arith.constant dense<0.000000e+00> : vector<128xf32>
    %11 = vector.multi_reduction <add>, %10, %cst_8 [0] : vector<512x128xf32> to vector<128xf32>
    %12 = vector.shape_cast %11 : vector<128xf32> to vector<1x128xf32>
    %13 = arith.addf %9, %12 : vector<1x128xf32>
    %c0_9 = arith.constant 0 : index
    %c0_10 = arith.constant 0 : index
    %14 = vector.load %arg3[%c0_9, %c0_10] : memref<1x128xf32, #tpu.memory_space<vmem>>, vector<1x128xf32>
    tpu.vector_store %arg3[%c0_9, %c0_10], %13 {strides = array<i32>} : memref<1x128xf32, #tpu.memory_space<vmem>>, vector<1x128xf32>,
    return
  }
  func.func @transform_0(%arg0: i32) -> (i32, i32) {
    %c0_i32 = arith.constant 0 : i32
    %c0_i32_0 = arith.constant 0 : i32
    return %arg0, %c0_i32 : i32, i32
  }
  func.func @transform_1(%arg0: i32) -> (i32, i32) {
    %c0_i32 = arith.constant 0 : i32
    %c0_i32_0 = arith.constant 0 : i32
    %c0_i32_1 = arith.constant 0 : i32
    return %c0_i32, %c0_i32_0 : i32, i32
  }
  func.func @transform_2(%arg0: i32) -> (i32, i32) {
    %c0_i32 = arith.constant 0 : i32
    %c0_i32_0 = arith.constant 0 : i32
    %c0_i32_1 = arith.constant 0 : i32
    return %c0_i32, %c0_i32_0 : i32, i32
  }
}

module attributes {stable_mosaic.version = 11 : i64} {
  func.func @_scale_shift_relu_kernel(%arg0: i32, %arg1: memref<512x128xf32, #tpu.memory_space<vmem>>, %arg2: memref<1x128xf32, #tpu.memory_space<vmem>>, %arg3: memref<1x128xf32, #tpu.memory_space<vmem>>, %arg4: memref<512x128xbf16, #tpu.memory_space<vmem>>) attributes {dimension_semantics = [#tpu.dimension_semantics<parallel>], iteration_bounds = array<i64: 1>, scalar_prefetch = 0 : i64, scratch_operands = 0 : i64, tpu.core_type = #tpu.core_type<tc>, window_params = [{transform_indices = @transform_0, window_bounds = array<i64: 512, 128>}, {pipeline_mode = #tpu.pipeline_mode<synchronous>, transform_indices = @transform_1, window_bounds = array<i64: 1, 128>}, {pipeline_mode = #tpu.pipeline_mode<synchronous>, transform_indices = @transform_2, window_bounds = array<i64: 1, 128>}, {transform_indices = @transform_3, window_bounds = array<i64: 512, 128>}]} {
    %c0 = arith.constant 0 : index
    %c0_0 = arith.constant 0 : index
    %0 = vector.load %arg1[%c0, %c0_0] : memref<512x128xf32, #tpu.memory_space<vmem>>, vector<512x128xf32>
    %c0_1 = arith.constant 0 : index
    %c0_2 = arith.constant 0 : index
    %1 = vector.load %arg2[%c0_1, %c0_2] : memref<1x128xf32, #tpu.memory_space<vmem>>, vector<1x128xf32>
    %2 = vector.broadcast %1 : vector<1x128xf32> to vector<512x128xf32>
    %3 = arith.mulf %0, %2 : vector<512x128xf32>
    %c0_3 = arith.constant 0 : index
    %c0_4 = arith.constant 0 : index
    %4 = vector.load %arg3[%c0_3, %c0_4] : memref<1x128xf32, #tpu.memory_space<vmem>>, vector<1x128xf32>
    %5 = vector.broadcast %4 : vector<1x128xf32> to vector<512x128xf32>
    %6 = arith.addf %3, %5 : vector<512x128xf32>
    %cst = arith.constant 0.000000e+00 : f32
    %7 = vector.broadcast %cst : f32 to vector<512x128xf32>
    %8 = arith.maximumf %6, %7 : vector<512x128xf32>
    %9 = arith.truncf %8 : vector<512x128xf32> to vector<512x128xbf16>
    %c0_5 = arith.constant 0 : index
    %c0_6 = arith.constant 0 : index
    %10 = vector.load %arg4[%c0_5, %c0_6] : memref<512x128xbf16, #tpu.memory_space<vmem>>, vector<512x128xbf16>
    tpu.vector_store %arg4[%c0_5, %c0_6], %9 {strides = array<i32>} : memref<512x128xbf16, #tpu.memory_space<vmem>>, vector<512x128xbf16>,
    return
  }
  func.func @transform_0(%arg0: i32) -> (i32, i32) {
    %c0_i32 = arith.constant 0 : i32
    %c0_i32_0 = arith.constant 0 : i32
    return %arg0, %c0_i32 : i32, i32
  }
  func.func @transform_1(%arg0: i32) -> (i32, i32) {
    %c0_i32 = arith.constant 0 : i32
    %c0_i32_0 = arith.constant 0 : i32
    %c0_i32_1 = arith.constant 0 : i32
    return %c0_i32, %c0_i32_0 : i32, i32
  }
  func.func @transform_2(%arg0: i32) -> (i32, i32) {
    %c0_i32 = arith.constant 0 : i32
    %c0_i32_0 = arith.constant 0 : i32
    %c0_i32_1 = arith.constant 0 : i32
    return %c0_i32, %c0_i32_0 : i32, i32
  }
  func.func @transform_3(%arg0: i32) -> (i32, i32) {
    %c0_i32 = arith.constant 0 : i32
    %c0_i32_0 = arith.constant 0 : i32
    return %arg0, %c0_i32 : i32, i32
  }
}

module attributes {stable_mosaic.version = 11 : i64} {
  func.func @_matmul_kernel(%arg0: i32, %arg1: i32, %arg2: i32, %arg3: memref<1x512x512xbf16, #tpu.memory_space<vmem>>, %arg4: memref<1x512x64xbf16, #tpu.memory_space<vmem>>, %arg5: memref<1x512x64xf32, #tpu.memory_space<vmem>>) attributes {dimension_semantics = [#tpu.dimension_semantics<parallel>, #tpu.dimension_semantics<parallel>, #tpu.dimension_semantics<parallel>], iteration_bounds = array<i64: 4, 1, 1>, scalar_prefetch = 0 : i64, scratch_operands = 0 : i64, tpu.core_type = #tpu.core_type<tc>, window_params = [{transform_indices = @transform_0, window_bounds = array<i64: 1, 512, 512>}, {transform_indices = @transform_1, window_bounds = array<i64: 1, 512, 64>}, {transform_indices = @transform_2, window_bounds = array<i64: 1, 512, 64>}]} {
    %c0 = arith.constant 0 : index
    %c0_0 = arith.constant 0 : index
    %c0_1 = arith.constant 0 : index
    %0 = vector.load %arg3[%c0, %c0_0, %c0_1] : memref<1x512x512xbf16, #tpu.memory_space<vmem>>, vector<1x512x512xbf16>
    %1 = vector.shape_cast %0 : vector<1x512x512xbf16> to vector<512x512xbf16>
    %c0_2 = arith.constant 0 : index
    %c0_3 = arith.constant 0 : index
    %c0_4 = arith.constant 0 : index
    %2 = vector.load %arg4[%c0_2, %c0_3, %c0_4] : memref<1x512x64xbf16, #tpu.memory_space<vmem>>, vector<1x512x64xbf16>
    %3 = vector.shape_cast %2 : vector<1x512x64xbf16> to vector<512x64xbf16>
    %cst = arith.constant dense<0.000000e+00> : vector<512x64xf32>
    %4 = tpu.matmul %1, %3, %cst {dimension_numbers = #tpu.dot_dimension_numbers<[1], [0], [0], [1], [0, 0, 1, 1], [], []>} : vector<512x512xbf16>, vector<512x64xbf16>, vector<512x64xf32> -> vector<512x64xf32>
    %c0_5 = arith.constant 0 : index
    %c0_6 = arith.constant 0 : index
    %c0_7 = arith.constant 0 : index
    %5 = vector.load %arg5[%c0_5, %c0_6, %c0_7] : memref<1x512x64xf32, #tpu.memory_space<vmem>>, vector<1x512x64xf32>
    %6 = vector.shape_cast %5 : vector<1x512x64xf32> to vector<512x64xf32>
    %7 = vector.shape_cast %4 : vector<512x64xf32> to vector<1x512x64xf32>
    tpu.vector_store %arg5[%c0_5, %c0_6, %c0_7], %7 {strides = array<i32>} : memref<1x512x64xf32, #tpu.memory_space<vmem>>, vector<1x512x64xf32>,
    return
  }
  func.func @transform_0(%arg0: i32, %arg1: i32, %arg2: i32) -> (i32, i32, i32) {
    %c0_i32 = arith.constant 0 : i32
    %c0_i32_0 = arith.constant 0 : i32
    return %arg0, %arg1, %c0_i32 : i32, i32, i32
  }
  func.func @transform_1(%arg0: i32, %arg1: i32, %arg2: i32) -> (i32, i32, i32) {
    %c0_i32 = arith.constant 0 : i32
    %c0_i32_0 = arith.constant 0 : i32
    return %arg0, %c0_i32, %arg2 : i32, i32, i32
  }
  func.func @transform_2(%arg0: i32, %arg1: i32, %arg2: i32) -> (i32, i32, i32) {
    %c0_i32 = arith.constant 0 : i32
    return %arg0, %arg1, %arg2 : i32, i32, i32
  }
}

module attributes {stable_mosaic.version = 11 : i64} {
  func.func @_bn_stats_kernel(%arg0: i32, %arg1: memref<1024x64xf32, #tpu.memory_space<vmem>>, %arg2: memref<1x64xf32, #tpu.memory_space<vmem>>, %arg3: memref<1x64xf32, #tpu.memory_space<vmem>>) attributes {dimension_semantics = [#tpu.dimension_semantics<arbitrary>], iteration_bounds = array<i64: 2>, scalar_prefetch = 0 : i64, scratch_operands = 0 : i64, tpu.core_type = #tpu.core_type<tc>, window_params = [{transform_indices = @transform_0, window_bounds = array<i64: 1024, 64>}, {pipeline_mode = #tpu.pipeline_mode<synchronous>, transform_indices = @transform_1, window_bounds = array<i64: 1, 64>}, {pipeline_mode = #tpu.pipeline_mode<synchronous>, transform_indices = @transform_2, window_bounds = array<i64: 1, 64>}]} {
    %c0_i32 = arith.constant 0 : i32
    %0 = arith.cmpi eq, %arg0, %c0_i32 : i32
    %1 = arith.extui %0 : i1 to i32
    %c0_i32_0 = arith.constant 0 : i32
    %2 = arith.cmpi ne, %1, %c0_i32_0 : i32
    scf.if %2 {
      %cst_11 = arith.constant 0.000000e+00 : f32
      %15 = vector.broadcast %cst_11 : f32 to vector<1x64xf32>
      %c0_12 = arith.constant 0 : index
      %c0_13 = arith.constant 0 : index
      %16 = vector.load %arg2[%c0_12, %c0_13] : memref<1x64xf32, #tpu.memory_space<vmem>>, vector<1x64xf32>
      tpu.vector_store %arg2[%c0_12, %c0_13], %15 {strides = array<i32>} : memref<1x64xf32, #tpu.memory_space<vmem>>, vector<1x64xf32>,
      %cst_14 = arith.constant 0.000000e+00 : f32
      %17 = vector.broadcast %cst_14 : f32 to vector<1x64xf32>
      %c0_15 = arith.constant 0 : index
      %c0_16 = arith.constant 0 : index
      %18 = vector.load %arg3[%c0_15, %c0_16] : memref<1x64xf32, #tpu.memory_space<vmem>>, vector<1x64xf32>
      tpu.vector_store %arg3[%c0_15, %c0_16], %17 {strides = array<i32>} : memref<1x64xf32, #tpu.memory_space<vmem>>, vector<1x64xf32>,
    } else {
    }
    %c0 = arith.constant 0 : index
    %c0_1 = arith.constant 0 : index
    %3 = vector.load %arg1[%c0, %c0_1] : memref<1024x64xf32, #tpu.memory_space<vmem>>, vector<1024x64xf32>
    %c0_2 = arith.constant 0 : index
    %c0_3 = arith.constant 0 : index
    %4 = vector.load %arg2[%c0_2, %c0_3] : memref<1x64xf32, #tpu.memory_space<vmem>>, vector<1x64xf32>
    %cst = arith.constant dense<0.000000e+00> : vector<64xf32>
    %5 = vector.multi_reduction <add>, %3, %cst [0] : vector<1024x64xf32> to vector<64xf32>
    %6 = vector.shape_cast %5 : vector<64xf32> to vector<1x64xf32>
    %7 = arith.addf %4, %6 : vector<1x64xf32>
    %c0_4 = arith.constant 0 : index
    %c0_5 = arith.constant 0 : index
    %8 = vector.load %arg2[%c0_4, %c0_5] : memref<1x64xf32, #tpu.memory_space<vmem>>, vector<1x64xf32>
    tpu.vector_store %arg2[%c0_4, %c0_5], %7 {strides = array<i32>} : memref<1x64xf32, #tpu.memory_space<vmem>>, vector<1x64xf32>,
    %c0_6 = arith.constant 0 : index
    %c0_7 = arith.constant 0 : index
    %9 = vector.load %arg3[%c0_6, %c0_7] : memref<1x64xf32, #tpu.memory_space<vmem>>, vector<1x64xf32>
    %10 = arith.mulf %3, %3 : vector<1024x64xf32>
    %cst_8 = arith.constant dense<0.000000e+00> : vector<64xf32>
    %11 = vector.multi_reduction <add>, %10, %cst_8 [0] : vector<1024x64xf32> to vector<64xf32>
    %12 = vector.shape_cast %11 : vector<64xf32> to vector<1x64xf32>
    %13 = arith.addf %9, %12 : vector<1x64xf32>
    %c0_9 = arith.constant 0 : index
    %c0_10 = arith.constant 0 : index
    %14 = vector.load %arg3[%c0_9, %c0_10] : memref<1x64xf32, #tpu.memory_space<vmem>>, vector<1x64xf32>
    tpu.vector_store %arg3[%c0_9, %c0_10], %13 {strides = array<i32>} : memref<1x64xf32, #tpu.memory_space<vmem>>, vector<1x64xf32>,
    return
  }
  func.func @transform_0(%arg0: i32) -> (i32, i32) {
    %c0_i32 = arith.constant 0 : i32
    %c0_i32_0 = arith.constant 0 : i32
    return %arg0, %c0_i32 : i32, i32
  }
  func.func @transform_1(%arg0: i32) -> (i32, i32) {
    %c0_i32 = arith.constant 0 : i32
    %c0_i32_0 = arith.constant 0 : i32
    %c0_i32_1 = arith.constant 0 : i32
    return %c0_i32, %c0_i32_0 : i32, i32
  }
  func.func @transform_2(%arg0: i32) -> (i32, i32) {
    %c0_i32 = arith.constant 0 : i32
    %c0_i32_0 = arith.constant 0 : i32
    %c0_i32_1 = arith.constant 0 : i32
    return %c0_i32, %c0_i32_0 : i32, i32
  }
}

module attributes {stable_mosaic.version = 11 : i64} {
  func.func @_scale_shift_relu_kernel(%arg0: i32, %arg1: memref<1024x64xf32, #tpu.memory_space<vmem>>, %arg2: memref<1x64xf32, #tpu.memory_space<vmem>>, %arg3: memref<1x64xf32, #tpu.memory_space<vmem>>, %arg4: memref<1024x64xbf16, #tpu.memory_space<vmem>>) attributes {dimension_semantics = [#tpu.dimension_semantics<parallel>], iteration_bounds = array<i64: 2>, scalar_prefetch = 0 : i64, scratch_operands = 0 : i64, tpu.core_type = #tpu.core_type<tc>, window_params = [{transform_indices = @transform_0, window_bounds = array<i64: 1024, 64>}, {pipeline_mode = #tpu.pipeline_mode<synchronous>, transform_indices = @transform_1, window_bounds = array<i64: 1, 64>}, {pipeline_mode = #tpu.pipeline_mode<synchronous>, transform_indices = @transform_2, window_bounds = array<i64: 1, 64>}, {transform_indices = @transform_3, window_bounds = array<i64: 1024, 64>}]} {
    %c0 = arith.constant 0 : index
    %c0_0 = arith.constant 0 : index
    %0 = vector.load %arg1[%c0, %c0_0] : memref<1024x64xf32, #tpu.memory_space<vmem>>, vector<1024x64xf32>
    %c0_1 = arith.constant 0 : index
    %c0_2 = arith.constant 0 : index
    %1 = vector.load %arg2[%c0_1, %c0_2] : memref<1x64xf32, #tpu.memory_space<vmem>>, vector<1x64xf32>
    %2 = vector.broadcast %1 : vector<1x64xf32> to vector<1024x64xf32>
    %3 = arith.mulf %0, %2 : vector<1024x64xf32>
    %c0_3 = arith.constant 0 : index
    %c0_4 = arith.constant 0 : index
    %4 = vector.load %arg3[%c0_3, %c0_4] : memref<1x64xf32, #tpu.memory_space<vmem>>, vector<1x64xf32>
    %5 = vector.broadcast %4 : vector<1x64xf32> to vector<1024x64xf32>
    %6 = arith.addf %3, %5 : vector<1024x64xf32>
    %cst = arith.constant 0.000000e+00 : f32
    %7 = vector.broadcast %cst : f32 to vector<1024x64xf32>
    %8 = arith.maximumf %6, %7 : vector<1024x64xf32>
    %9 = arith.truncf %8 : vector<1024x64xf32> to vector<1024x64xbf16>
    %c0_5 = arith.constant 0 : index
    %c0_6 = arith.constant 0 : index
    %10 = vector.load %arg4[%c0_5, %c0_6] : memref<1024x64xbf16, #tpu.memory_space<vmem>>, vector<1024x64xbf16>
    tpu.vector_store %arg4[%c0_5, %c0_6], %9 {strides = array<i32>} : memref<1024x64xbf16, #tpu.memory_space<vmem>>, vector<1024x64xbf16>,
    return
  }
  func.func @transform_0(%arg0: i32) -> (i32, i32) {
    %c0_i32 = arith.constant 0 : i32
    %c0_i32_0 = arith.constant 0 : i32
    return %arg0, %c0_i32 : i32, i32
  }
  func.func @transform_1(%arg0: i32) -> (i32, i32) {
    %c0_i32 = arith.constant 0 : i32
    %c0_i32_0 = arith.constant 0 : i32
    %c0_i32_1 = arith.constant 0 : i32
    return %c0_i32, %c0_i32_0 : i32, i32
  }
  func.func @transform_2(%arg0: i32) -> (i32, i32) {
    %c0_i32 = arith.constant 0 : i32
    %c0_i32_0 = arith.constant 0 : i32
    %c0_i32_1 = arith.constant 0 : i32
    return %c0_i32, %c0_i32_0 : i32, i32
  }
  func.func @transform_3(%arg0: i32) -> (i32, i32) {
    %c0_i32 = arith.constant 0 : i32
    %c0_i32_0 = arith.constant 0 : i32
    return %arg0, %c0_i32 : i32, i32
  }
}

module attributes {stable_mosaic.version = 11 : i64} {
  func.func @_matmul_kernel(%arg0: i32, %arg1: i32, %arg2: i32, %arg3: memref<1x512x256xbf16, #tpu.memory_space<vmem>>, %arg4: memref<1x256x1xbf16, #tpu.memory_space<vmem>>, %arg5: memref<1x512x1xf32, #tpu.memory_space<vmem>>) attributes {dimension_semantics = [#tpu.dimension_semantics<parallel>, #tpu.dimension_semantics<parallel>, #tpu.dimension_semantics<parallel>], iteration_bounds = array<i64: 4, 4, 1>, scalar_prefetch = 0 : i64, scratch_operands = 0 : i64, tpu.core_type = #tpu.core_type<tc>, window_params = [{transform_indices = @transform_0, window_bounds = array<i64: 1, 512, 256>}, {transform_indices = @transform_1, window_bounds = array<i64: 1, 256, 1>}, {transform_indices = @transform_2, window_bounds = array<i64: 1, 512, 1>}]} {
    %c0 = arith.constant 0 : index
    %c0_0 = arith.constant 0 : index
    %c0_1 = arith.constant 0 : index
    %0 = vector.load %arg3[%c0, %c0_0, %c0_1] : memref<1x512x256xbf16, #tpu.memory_space<vmem>>, vector<1x512x256xbf16>
    %1 = vector.shape_cast %0 : vector<1x512x256xbf16> to vector<512x256xbf16>
    %c0_2 = arith.constant 0 : index
    %c0_3 = arith.constant 0 : index
    %c0_4 = arith.constant 0 : index
    %2 = vector.load %arg4[%c0_2, %c0_3, %c0_4] : memref<1x256x1xbf16, #tpu.memory_space<vmem>>, vector<1x256x1xbf16>
    %3 = vector.shape_cast %2 : vector<1x256x1xbf16> to vector<256x1xbf16>
    %cst = arith.constant dense<0.000000e+00> : vector<512x1xf32>
    %4 = tpu.matmul %1, %3, %cst {dimension_numbers = #tpu.dot_dimension_numbers<[1], [0], [0], [1], [0, 0, 1, 1], [], []>} : vector<512x256xbf16>, vector<256x1xbf16>, vector<512x1xf32> -> vector<512x1xf32>
    %5 = math.tanh %4 : vector<512x1xf32>
    %c0_5 = arith.constant 0 : index
    %c0_6 = arith.constant 0 : index
    %c0_7 = arith.constant 0 : index
    %6 = vector.load %arg5[%c0_5, %c0_6, %c0_7] : memref<1x512x1xf32, #tpu.memory_space<vmem>>, vector<1x512x1xf32>
    %7 = vector.shape_cast %6 : vector<1x512x1xf32> to vector<512x1xf32>
    %8 = vector.shape_cast %5 : vector<512x1xf32> to vector<1x512x1xf32>
    tpu.vector_store %arg5[%c0_5, %c0_6, %c0_7], %8 {strides = array<i32>} : memref<1x512x1xf32, #tpu.memory_space<vmem>>, vector<1x512x1xf32>,
    return
  }
  func.func @transform_0(%arg0: i32, %arg1: i32, %arg2: i32) -> (i32, i32, i32) {
    %c0_i32 = arith.constant 0 : i32
    %c0_i32_0 = arith.constant 0 : i32
    return %arg0, %arg1, %c0_i32 : i32, i32, i32
  }
  func.func @transform_1(%arg0: i32, %arg1: i32, %arg2: i32) -> (i32, i32, i32) {
    %c0_i32 = arith.constant 0 : i32
    %c0_i32_0 = arith.constant 0 : i32
    return %arg0, %c0_i32, %arg2 : i32, i32, i32
  }
  func.func @transform_2(%arg0: i32, %arg1: i32, %arg2: i32) -> (i32, i32, i32) {
    %c0_i32 = arith.constant 0 : i32
    return %arg0, %arg1, %arg2 : i32, i32, i32
  }
}

</mosaic_0001>

<llo_original>
// kernel: generator_forward.13
$region0: #{generator_forward.13}
  #allocation0 [shape = 'u32[]', space=smem, size = 0x4, offset = 0x4, fixed_abs, tag = 'smem constant byte address 0x4 - core index']
  #allocation1 [shape = 'u32[72,128]{1,0:T(1,128)}', space=vmem, size = 0x9000, scoped, tag = 'internal scratch']
  %s0 = inlined_call_operand.vmem [shape: bf16[2,100], index: 0, kind: input, shape index: {}]
  %s1 = inlined_call_operand.vmem [shape: bf16[100,8192], index: 1, kind: input, shape index: {}]
  %s2 = inlined_call_operand.vmem [shape: f32[2,8192], index: 2, kind: output, shape index: {}]
  %s3 = sld [smem:[#allocation0]]
  $region64: #{generator_forward.13} parent=0
    _
  %s5 = ssub.s32 1, %s3
  %s6 = scalar_select 0, %s5, %s3
  $region1: #{generator_forward.13} parent=0
    #allocation2 [shape = 'u8[212992]{0}', space=vmem, size = 0x34000, scoped, tag = 'input window, operand 1']
    loop: start=0, step=1, limit=18
    $region2: #{generator_forward.13} parent=1 // loop_pre_header
      _
    $region3: #{generator_forward.13} parent=1 // loop_header
      %s8 = sphi 0, %s12
      %p9 = scmp.ge.s32.totalorder %s8, 18
      %s15 = sphi 0, %s27
      %s16 = sphi 0, %s23
      %s17 = sphi 0, %s15
      %s18 = sphi 0, %s16
      %s19 = sphi 0, %s17
      %s20 = sphi 0, %s18
      %s30 = sphi 0, %s32
      %s33 = sphi 0, %s30
      %s34 = sphi 0, %s33
      %s50 = sphi 0, %s34
      %s56 = sphi 0, %s58
      %s59 = sphi 0, %s56
      %s60 = sphi 0, %s59
      %s76 = sphi 0, %s60
      %s84 = sphi 0, %s86
      %s87 = sphi 0, %s84
      %s88 = sphi 0, %s87
      %s104 = sphi 0, %s88
    $region4: #{generator_forward.13} parent=1 // loop_header_branch
      %11 = sbr.rel (%p9) target = $region8
    $region5: #{generator_forward.13} parent=1 // loop_body
      %s13 = ssub.s32 %s8, 1
      %s14 = ssub.s32 %s8, 2
      %s21 = sadd.s32 1, %s16
      %p22 = scmp.ge.s32.totalorder %s21, 16
      %s23 = scalar_select %p22, 0, %s21
      %s24 = sadd.s32 1, %s15
      %s25 = scalar_select %p22, %s24, %s15
      %p26 = scmp.ge.s32.totalorder %s25, 1
      %s27 = scalar_select %p26, 0, %s25
      %s28 = ssub.s32 %s15, %s27
      %p29 = scmp.eq.s32.totalorder %s28, 0
      %s31 = sadd.s32 %s30, 1
      %s32 = scalar_select %p29, %s30, %s31
      %p35 = pneg %p29
      %p36 = scmp.eq.s32.totalorder %s8, 15
      %p37 = por %p35, %p36
      %p38 = scmp.ne.s32.totalorder %s30, %s33
      %p39 = scmp.eq.s32.totalorder %s8, 0
      %p40 = por %p38, %p39
      %p41 = scmp.ne.s32.totalorder %s30, %s33
      %p42 = scmp.eq.s32.totalorder %s13, 15
      %p43 = por %p41, %p42
      %p44 = scmp.ne.s32.totalorder %s33, %s34
      %p45 = scmp.eq.s32.totalorder %s13, 0
      %p46 = por %p44, %p45
      %p47 = scmp.ne.s32.totalorder %s33, %s34
      %p48 = scmp.eq.s32.totalorder %s14, 15
      %p49 = por %p47, %p48
      %p51 = scmp.ne.s32.totalorder %s34, %s50
      %p52 = scmp.eq.s32.totalorder %s14, 0
      %p53 = por %p51, %p52
      %s54 = ssub.s32 %s16, %s23
      %p55 = scmp.eq.s32.totalorder %s54, 0
      %s57 = sadd.s32 %s56, 1
      %s58 = scalar_select %p55, %s56, %s57
      %p61 = pneg %p55
      %p62 = scmp.eq.s32.totalorder %s8, 15
      %p63 = por %p61, %p62
      %p64 = scmp.ne.s32.totalorder %s56, %s59
      %p65 = scmp.eq.s32.totalorder %s8, 0
      %p66 = por %p64, %p65
      %p67 = scmp.ne.s32.totalorder %s56, %s59
      %p68 = scmp.eq.s32.totalorder %s13, 15
      %p69 = por %p67, %p68
      %p70 = scmp.ne.s32.totalorder %s59, %s60
      %p71 = scmp.eq.s32.totalorder %s13, 0
      %p72 = por %p70, %p71
      %p73 = scmp.ne.s32.totalorder %s59, %s60
      %p74 = scmp.eq.s32.totalorder %s14, 15
      %p75 = por %p73, %p74
      %p77 = scmp.ne.s32.totalorder %s60, %s76
      %p78 = scmp.eq.s32.totalorder %s14, 0
      %p79 = por %p77, %p78
      %s80 = ssub.s32 %s15, %s27
      %s81 = ssub.s32 %s16, %s23
      %s82 = sor.u32 %s80, %s81
      %p83 = scmp.eq.s32.totalorder %s82, 0
      %s85 = sadd.s32 %s84, 1
      %s86 = scalar_select %p83, %s84, %s85
      %p89 = pneg %p83
      %p90 = scmp.eq.s32.totalorder %s8, 15
      %p91 = por %p89, %p90
      %p92 = scmp.ne.s32.totalorder %s84, %s87
      %p93 = scmp.eq.s32.totalorder %s8, 0
      %p94 = por %p92, %p93
      %p95 = scmp.ne.s32.totalorder %s84, %s87
      %p96 = scmp.eq.s32.totalorder %s13, 15
      %p97 = por %p95, %p96
      %p98 = scmp.ne.s32.totalorder %s87, %s88
      %p99 = scmp.eq.s32.totalorder %s13, 0
      %p100 = por %p98, %p99
      %p101 = scmp.ne.s32.totalorder %s87, %s88
      %p102 = scmp.eq.s32.totalorder %s14, 15
      %p103 = por %p101, %p102
      %p105 = scmp.ne.s32.totalorder %s88, %s104
      %p106 = scmp.eq.s32.totalorder %s14, 0
      %p107 = por %p105, %p106
      %p108 = scmp.le.s32.totalorder 1, %s8
      %p109 = scmp.lt.s32.totalorder %s8, 17
      %p110 = pnand %p108, %p109
      %p111 = pneg %p110
      // Predicated region
      $region9: #{generator_forward.13} parent=5 // pred_check
        _
      $region10: #{generator_forward.13} parent=5 // pred_check_branch
        %113 = sbr.rel (%p110) target = $region12
      $region11: #{generator_forward.13} parent=5 // pred_region
        %s114 = ssub.s32 %s8, 1
        // Predicated region
        $region13: #{generator_forward.13} parent=11 // pred_check
          %p115 = pneg %p46
        $region14: #{generator_forward.13} parent=11 // pred_check_branch
          %117 = sbr.rel (%p115) target = $region16
        $region15: #{generator_forward.13} parent=11 // pred_region
          %p118 = scmp.lt.s32.totalorder %s17, 0
          %s119 = scalar_select %p118, %s17, 0
          %s120 = scalar_lea.vmem %s0, %s119
        $region16: #{generator_forward.13} parent=11 // pred_fallthru
          _
      $region12: #{generator_forward.13} parent=5 // pred_fallthru
        _
      %p121 = scmp.lt.s32.totalorder %s8, 16
      // Predicated region
      $region17: #{generator_forward.13} parent=5 // pred_check
        %p122 = pneg %p121
      $region18: #{generator_forward.13} parent=5 // pred_check_branch
        %124 = sbr.rel (%p122) target = $region20
      $region19: #{generator_forward.13} parent=5 // pred_region
        // Predicated region
        $region21: #{generator_forward.13} parent=19 // pred_check
          %p125 = pneg %p66
        $region22: #{generator_forward.13} parent=19 // pred_check_branch
          %127 = sbr.rel (%p125) target = $region24
        $region23: #{generator_forward.13} parent=19 // pred_region
          %s128 = sand.u32 %s56, 1
          %s129 = sand.u32 %s56, 1
          %s130 = smul.addr %s129, 208
          %s131 = scalar_lea.vmem [#allocation2], %s130
          %s132 = smul.u32 4, %s16
          %s133 = smul.addr %s132, 4
          %s134 = scalar_lea.vmem %s1, %s133
          // Predicated region
          $region25: #{generator_forward.13} parent=23 // pred_check
            _
          $region26: #{generator_forward.13} parent=23 // pred_check_branch
            %136 = sbr.rel (0) target = $region28
          $region27: #{generator_forward.13} parent=23 // pred_region
            // Predicated region
            $region29: #{generator_forward.13} parent=27 // pred_check
              _
            $region30: #{generator_forward.13} parent=27 // pred_check_branch
              %138 = sbr.rel (0) target = $region32
            $region31: #{generator_forward.13} parent=27 // pred_region
              loop: start=0, step=1, limit=1
              $region33: #{generator_forward.13} parent=31 // loop_pre_header
                _
              $region34: #{generator_forward.13} parent=31 // loop_header
                %s140 = sphi 0, %s144
                %p141 = scmp.ge.s32.totalorder %s140, 1
                %s145 = sphi %s134, %s134
                %s146 = sphi %s131, %s131
              $region35: #{generator_forward.13} parent=31 // loop_header_branch
                %143 = sbr.rel (%p141) target = $region39
              $region36: #{generator_forward.13} parent=31 // loop_body
                %v147 = vld [vmem:[%s145] sm:$0xff]
                %148 = vst [vmem:[%s146] sm:$0xff] %v147
                %v149 = vld [vmem:[%s145 + $0x8] sm:$0xff]
                %150 = vst [vmem:[%s146 + $0x8] sm:$0xff] %v149
                %v151 = vld [vmem:[%s145 + $0x100] sm:$0xff]
                %152 = vst [vmem:[%s146 + $0x10] sm:$0xff] %v151
                %v153 = vld [vmem:[%s145 + $0x108] sm:$0xff]
                %154 = vst [vmem:[%s146 + $0x18] sm:$0xff] %v153
                %v155 = vld [vmem:[%s145 + $0x200] sm:$0xff]
                %156 = vst [vmem:[%s146 + $0x20] sm:$0xff] %v155
                %v157 = vld [vmem:[%s145 + $0x208] sm:$0xff]
                %158 = vst [vmem:[%s146 + $0x28] sm:$0xff] %v157
                %v159 = vld [vmem:[%s145 + $0x300] sm:$0xff]
                %160 = vst [vmem:[%s146 + $0x30] sm:$0xff] %v159
                %v161 = vld [vmem:[%s145 + $0x308] sm:$0xff]
                %162 = vst [vmem:[%s146 + $0x38] sm:$0xff] %v161
                %v163 = vld [vmem:[%s145 + $0x400] sm:$0xff]
                %164 = vst [vmem:[%s146 + $0x40] sm:$0xff] %v163
                %v165 = vld [vmem:[%s145 + $0x408] sm:$0xff]
                %166 = vst [vmem:[%s146 + $0x48] sm:$0xff] %v165
                %v167 = vld [vmem:[%s145 + $0x500] sm:$0xff]
                %168 = vst [vmem:[%s146 + $0x50] sm:$0xff] %v167
                %v169 = vld [vmem:[%s145 + $0x508] sm:$0xff]
                %170 = vst [vmem:[%s146 + $0x58] sm:$0xff] %v169
                %v171 = vld [vmem:[%s145 + $0x600] sm:$0xff]
                %172 = vst [vmem:[%s146 + $0x60] sm:$0xff] %v171
                %v173 = vld [vmem:[%s145 + $0x608] sm:$0xff]
                %174 = vst [vmem:[%s146 + $0x68] sm:$0xff] %v173
                %v175 = vld [vmem:[%s145 + $0x700] sm:$0xff]
                %176 = vst [vmem:[%s146 + $0x70] sm:$0xff] %v175
                %v177 = vld [vmem:[%s145 + $0x708] sm:$0xff]
                %178 = vst [vmem:[%s146 + $0x78] sm:$0xff] %v177
                %v179 = vld [vmem:[%s145 + $0x800] sm:$0xff]
                %180 = vst [vmem:[%s146 + $0x80] sm:$0xff] %v179
                %v181 = vld [vmem:[%s145 + $0x808] sm:$0xff]
                %182 = vst [vmem:[%s146 + $0x88] sm:$0xff] %v181
                %v183 = vld [vmem:[%s145 + $0x900] sm:$0xff]
                %184 = vst [vmem:[%s146 + $0x90] sm:$0xff] %v183
                %v185 = vld [vmem:[%s145 + $0x908] sm:$0xff]
                %186 = vst [vmem:[%s146 + $0x98] sm:$0xff] %v185
                %v187 = vld [vmem:[%s145 + $0xa00] sm:$0xff]
                %188 = vst [vmem:[%s146 + $0xa0] sm:$0xff] %v187
                %v189 = vld [vmem:[%s145 + $0xa08] sm:$0xff]
                %190 = vst [vmem:[%s146 + $0xa8] sm:$0xff] %v189
                %v191 = vld [vmem:[%s145 + $0xb00] sm:$0xff]
                %192 = vst [vmem:[%s146 + $0xb0] sm:$0xff] %v191
                %v193 = vld [vmem:[%s145 + $0xb08] sm:$0xff]
                %194 = vst [vmem:[%s146 + $0xb8] sm:$0xff] %v193
                %v195 = vld [vmem:[%s145 + $0xc00] sm:$0xff]
                %196 = vst [vmem:[%s146 + $0xc0] sm:$0xff] %v195
                %v197 = vld [vmem:[%s145 + $0xc08] sm:$0xff]
                %198 = vst [vmem:[%s146 + $0xc8] sm:$0xff] %v197
              $region37: #{generator_forward.13} parent=31 // loop_footer
                %s144 = sadd.s32 1, %s140
              $region38: #{generator_forward.13} parent=31 // loop_footer_branch
                %139 = sbr.rel target = $region34
              $region39: #{generator_forward.13} parent=31 // loop_exit
                _
            $region32: #{generator_forward.13} parent=27 // pred_fallthru
              _
            // Predicated region
            $region40: #{generator_forward.13} parent=27 // pred_check
              _
            $region41: #{generator_forward.13} parent=27 // pred_check_branch
              %200 = sbr.rel target = $region43
            $region42: #{generator_forward.13} parent=27 // pred_region
              _
            $region43: #{generator_forward.13} parent=27 // pred_fallthru
              _
          $region28: #{generator_forward.13} parent=23 // pred_fallthru
            _
          %201 = vnop
        $region24: #{generator_forward.13} parent=19 // pred_fallthru
          _
      $region20: #{generator_forward.13} parent=5 // pred_fallthru
        _
      %p202 = scmp.le.s32.totalorder 1, %s8
      %p203 = scmp.lt.s32.totalorder %s8, 17
      %p204 = pnand %p202, %p203
      %p205 = pneg %p204
      // Predicated region
      $region44: #{generator_forward.13} parent=5 // pred_check
        _
      $region45: #{generator_forward.13} parent=5 // pred_check_branch
        %207 = sbr.rel (%p204) target = $region47
      $region46: #{generator_forward.13} parent=5 // pred_region
        %s208 = ssub.s32 %s8, 1
        %s209 = sand.u32 %s59, 1
        %s210 = sand.u32 %s59, 1
        %s211 = smul.addr %s210, 208
        %s212 = scalar_lea.vmem [#allocation2], %s211
        // Predicated region
        $region48: #{generator_forward.13} parent=46 // pred_check
          %p213 = pneg %p72
        $region49: #{generator_forward.13} parent=46 // pred_check_branch
          %215 = sbr.rel (%p213) target = $region51
        $region50: #{generator_forward.13} parent=46 // pred_region
          _
        $region51: #{generator_forward.13} parent=46 // pred_fallthru
          _
        %p216 = scmp.lt.s32.totalorder %s17, 0
        %s217 = scalar_select %p216, %s17, 0
        %s218 = scalar_lea.vmem %s0, %s217
        %p219 = pneg %p46
        %p220 = pneg %p43
        %s221 = sand.u32 %s59, 1
        %s222 = sand.u32 %s59, 1
        %s223 = smul.addr %s222, 208
        %s224 = scalar_lea.vmem [#allocation2], %s223
        %p225 = pneg %p72
        %p226 = pneg %p69
        %p227 = pneg %p100
        %p228 = pneg %p97
        %s229 = smul.u32 4, %s18
        %p230 = scmp.lt.s32.totalorder %s17, 0
        %s231 = scalar_select %p230, %s17, 0
        %p232 = scmp.lt.s32.totalorder %s229, 63
        %s233 = scalar_select %p232, %s229, 63
        %s234 = smul.addr %s231, 64
        %s235 = sadd.s32 %s233, %s234
        %s236 = smul.addr %s235, 2
        %s237 = scalar_lea.vmem %s2, %s236
        %p238 = scmp.lt.s32.totalorder %s17, 0
        %s239 = scalar_select %p238, %s17, 0
        %s240 = scalar_lea.vmem %s0, %s239
        %s241 = smul.u32 4, %s18
        %s242 = smul.u32 4, %s18
        %p243 = scmp.lt.s32.totalorder %s17, 0
        %s244 = scalar_select %p243, %s17, 0
        %p245 = scmp.lt.s32.totalorder %s242, 63
        %s246 = scalar_select %p245, %s242, 63
        %s247 = smul.addr %s244, 64
        %s248 = sadd.s32 %s246, %s247
        %s249 = smul.addr %s248, 2
        %s250 = scalar_lea.vmem %s2, %s249
        %s251 = smul.u32 4, %s18
        %v253 = vld [vmem:[%s240] sm:$0x1]
        %v254 = vld [vmem:[%s212] sm:$0xff]
        %v255 = vld [vmem:[%s212 + $0x8] sm:$0xff]
        %v256 = vld [vmem:[%s212 + $0x10] sm:$0xff]
        %v257 = vld [vmem:[%s212 + $0x18] sm:$0xff]
        %v258 = vld [vmem:[%s212 + $0x20] sm:$0xff]
        %v259 = vld [vmem:[%s212 + $0x28] sm:$0xff]
        %v260 = vld [vmem:[%s212 + $0x30] sm:$0xff]
        %v261 = vld [vmem:[%s212 + $0x38] sm:$0xff]
        %v262 = vld [vmem:[%s212 + $0x40] sm:$0xff]
        %v263 = vld [vmem:[%s212 + $0x48] sm:$0xff]
        %v264 = vld [vmem:[%s212 + $0x50] sm:$0xff]
        %v265 = vld [vmem:[%s212 + $0x58] sm:$0xff]
        %v266 = vld [vmem:[%s212 + $0x60] sm:$0xff]
        %v267 = vld [vmem:[%s212 + $0x68] sm:$0xff]
        %v268 = vld [vmem:[%s212 + $0x70] sm:$0xff]
        %v269 = vld [vmem:[%s212 + $0x78] sm:$0xff]
        %v270 = vld [vmem:[%s212 + $0x80] sm:$0xff]
        %v271 = vld [vmem:[%s212 + $0x88] sm:$0xff]
        %v272 = vld [vmem:[%s212 + $0x90] sm:$0xff]
        %v273 = vld [vmem:[%s212 + $0x98] sm:$0xff]
        %v274 = vld [vmem:[%s212 + $0xa0] sm:$0xff]
        %v275 = vld [vmem:[%s212 + $0xa8] sm:$0xff]
        %v276 = vld [vmem:[%s212 + $0xb0] sm:$0xff]
        %v277 = vld [vmem:[%s212 + $0xb8] sm:$0xff]
        %v278 = vld [vmem:[%s212 + $0xc0] sm:$0x33]
        %v279 = vld [vmem:[%s212 + $0xc8] sm:$0x33]
        %v306 = vunpack.c.l.b16 %v254
        %v307 = vunpack.c.h.b16 %v254
        %v308 = vunpack.c.l.b16 %v255
        %v309 = vunpack.c.h.b16 %v255
        %v310 = vunpack.c.l.b16 %v256
        %v311 = vunpack.c.h.b16 %v256
        %v312 = vunpack.c.l.b16 %v257
        %v313 = vunpack.c.h.b16 %v257
        %v314 = vunpack.c.l.b16 %v258
        %v315 = vunpack.c.h.b16 %v258
        %v316 = vunpack.c.l.b16 %v259
        %v317 = vunpack.c.h.b16 %v259
        %v318 = vunpack.c.l.b16 %v260
        %v319 = vunpack.c.h.b16 %v260
        %v320 = vunpack.c.l.b16 %v261
        %v321 = vunpack.c.h.b16 %v261
        %v322 = vunpack.c.l.b16 %v262
        %v323 = vunpack.c.h.b16 %v262
        %v324 = vunpack.c.l.b16 %v263
        %v325 = vunpack.c.h.b16 %v263
        %v326 = vunpack.c.l.b16 %v264
        %v327 = vunpack.c.h.b16 %v264
        %v328 = vunpack.c.l.b16 %v265
        %v329 = vunpack.c.h.b16 %v265
        %v330 = vunpack.c.l.b16 %v266
        %v331 = vunpack.c.h.b16 %v266
        %v332 = vunpack.c.l.b16 %v267
        %v333 = vunpack.c.h.b16 %v267
        %v334 = vunpack.c.l.b16 %v268
        %v335 = vunpack.c.h.b16 %v268
        %v336 = vunpack.c.l.b16 %v269
        %v337 = vunpack.c.h.b16 %v269
        %v338 = vunpack.c.l.b16 %v270
        %v339 = vunpack.c.h.b16 %v270
        %v340 = vunpack.c.l.b16 %v271
        %v341 = vunpack.c.h.b16 %v271
        %v342 = vunpack.c.l.b16 %v272
        %v343 = vunpack.c.h.b16 %v272
        %v344 = vunpack.c.l.b16 %v273
        %v345 = vunpack.c.h.b16 %v273
        %v346 = vunpack.c.l.b16 %v274
        %v347 = vunpack.c.h.b16 %v274
        %v348 = vunpack.c.l.b16 %v275
        %v349 = vunpack.c.h.b16 %v275
        %v350 = vunpack.c.l.b16 %v276
        %v351 = vunpack.c.h.b16 %v276
        %v352 = vunpack.c.l.b16 %v277
        %v353 = vunpack.c.h.b16 %v277
        %v354 = vunpack.c.l.b16 %v278
        %v355 = vunpack.c.h.b16 %v278
        %v356 = vunpack.c.l.b16 %v279
        %v357 = vunpack.c.h.b16 %v279
        %v358 = vpack.c.b16 %v310, %v306
        %v359 = vpack.c.b16 %v311, %v307
        %v360 = vpack.c.b16 %v312, %v308
        %v361 = vpack.c.b16 %v313, %v309
        %v362 = vpack.c.b16 %v318, %v314
        %v363 = vpack.c.b16 %v319, %v315
        %v364 = vpack.c.b16 %v320, %v316
        %v365 = vpack.c.b16 %v321, %v317
        %v366 = vpack.c.b16 %v326, %v322
        %v367 = vpack.c.b16 %v327, %v323
        %v368 = vpack.c.b16 %v328, %v324
        %v369 = vpack.c.b16 %v329, %v325
        %v370 = vpack.c.b16 %v334, %v330
        %v371 = vpack.c.b16 %v335, %v331
        %v372 = vpack.c.b16 %v336, %v332
        %v373 = vpack.c.b16 %v337, %v333
        %v374 = vpack.c.b16 %v342, %v338
        %v375 = vpack.c.b16 %v343, %v339
        %v376 = vpack.c.b16 %v344, %v340
        %v377 = vpack.c.b16 %v345, %v341
        %v378 = vpack.c.b16 %v350, %v346
        %v379 = vpack.c.b16 %v351, %v347
        %v380 = vpack.c.b16 %v352, %v348
        %v381 = vpack.c.b16 %v353, %v349
        %v382 = vpack.c.b16 %v354, %v354
        %v383 = vpack.c.b16 %v355, %v355
        %v384 = vpack.c.b16 %v356, %v356
        %v385 = vpack.c.b16 %v357, %v357
        %vm410 = vcmask 818176
        %v412 = vsel %vm410, %v253, 0
        %vm414 = vcmask 1041408
        %v416 = vsel %vm414, %v382, 0
        %v419 = vsel %vm414, %v383, 0
        %v422 = vsel %vm414, %v384, 0
        %v425 = vsel %vm414, %v385, 0
        %427 = vmatpush.bf16.msra.mxu0 0
        %428 = vmatpush.bf16.msra.mxu0 %v416
        %429 = vmatpush.bf16.msra.mxu0 %v378
        %430 = vmatpush.bf16.msra.mxu0 %v374
        %431 = vmatpush.bf16.msra.mxu0 %v370
        %432 = vmatpush.bf16.msra.mxu0 %v366
        %433 = vmatpush.bf16.msra.mxu0 %v362
        %434 = vmatpush.bf16.msra.mxu0 %v358
        %435 = vmatmul.bf16.gmra.mxu0 %v412
        %v436 = vpop.f32.mrf.mxu0
        %v437 = vadd.f32 0.0, %v436
        %v438 = vpop.f32.mrf.mxu0
        %439 = vdwg.mxu0
        %440 = vmatpush.bf16.msra.mxu0 0
        %441 = vmatpush.bf16.msra.mxu0 %v419
        %442 = vmatpush.bf16.msra.mxu0 %v379
        %443 = vmatpush.bf16.msra.mxu0 %v375
        %444 = vmatpush.bf16.msra.mxu0 %v371
        %445 = vmatpush.bf16.msra.mxu0 %v367
        %446 = vmatpush.bf16.msra.mxu0 %v363
        %447 = vmatpush.bf16.msra.mxu0 %v359
        %448 = vmatmul.bf16.gmra.mxu0 %v412
        %v449 = vpop.f32.mrf.mxu0
        %v450 = vadd.f32 0.0, %v449
        %v451 = vpop.f32.mrf.mxu0
        %452 = vdwg.mxu0
        %453 = vmatpush.bf16.msra.mxu0 0
        %454 = vmatpush.bf16.msra.mxu0 %v422
        %455 = vmatpush.bf16.msra.mxu0 %v380
        %456 = vmatpush.bf16.msra.mxu0 %v376
        %457 = vmatpush.bf16.msra.mxu0 %v372
        %458 = vmatpush.bf16.msra.mxu0 %v368
        %459 = vmatpush.bf16.msra.mxu0 %v364
        %460 = vmatpush.bf16.msra.mxu0 %v360
        %461 = vmatmul.bf16.gmra.mxu0 %v412
        %v462 = vpop.f32.mrf.mxu0
        %v463 = vadd.f32 0.0, %v462
        %v464 = vpop.f32.mrf.mxu0
        %465 = vdwg.mxu0
        %466 = vmatpush.bf16.msra.mxu0 0
        %467 = vmatpush.bf16.msra.mxu0 %v425
        %468 = vmatpush.bf16.msra.mxu0 %v381
        %469 = vmatpush.bf16.msra.mxu0 %v377
        %470 = vmatpush.bf16.msra.mxu0 %v373
        %471 = vmatpush.bf16.msra.mxu0 %v369
        %472 = vmatpush.bf16.msra.mxu0 %v365
        %473 = vmatpush.bf16.msra.mxu0 %v361
        %474 = vmatmul.bf16.gmra.mxu0 %v412
        %v475 = vpop.f32.mrf.mxu0
        %v476 = vadd.f32 0.0, %v475
        %v477 = vpop.f32.mrf.mxu0
        %478 = vdwg.mxu0
        %v483 = vrot.slane %v450, 6
        %v484 = vrot.slane %v463, 4
        %v485 = vrot.slane %v476, 2
        %v486 = vsel %vm414, %v437, %v483
        %vm487 = vcmask 1045508
        %v488 = vsel %vm487, %v484, %v485
        %vm489 = vcmask 1043456
        %v490 = vsel %vm489, %v486, %v488
        %492 = vst [vmem:[%s250] sm:$0xff] %v490
        %s493 = smul.u32 4, %s18
        %p494 = scmp.lt.s32.totalorder %s17, 0
        %s495 = scalar_select %p494, %s17, 0
        %p496 = scmp.lt.s32.totalorder %s493, 63
        %s497 = scalar_select %p496, %s493, 63
        %s498 = smul.addr %s495, 64
        %s499 = sadd.s32 %s497, %s498
        %s500 = smul.addr %s499, 2
        %s501 = scalar_lea.vmem %s2, %s500
        // Predicated region
        $region52: #{generator_forward.13} parent=46 // pred_check
          %p502 = pneg %p97
        $region53: #{generator_forward.13} parent=46 // pred_check_branch
          %504 = sbr.rel (%p502) target = $region55
        $region54: #{generator_forward.13} parent=46 // pred_region
          %s505 = smul.u32 4, %s18
        $region55: #{generator_forward.13} parent=46 // pred_fallthru
          _
      $region47: #{generator_forward.13} parent=5 // pred_fallthru
        _
      %p506 = scmp.le.s32.totalorder 2, %s8
      // Predicated region
      $region56: #{generator_forward.13} parent=5 // pred_check
        %p507 = pneg %p506
      $region57: #{generator_forward.13} parent=5 // pred_check_branch
        %509 = sbr.rel (%p507) target = $region59
      $region58: #{generator_forward.13} parent=5 // pred_region
        %s510 = ssub.s32 %s8, 2
        // Predicated region
        $region60: #{generator_forward.13} parent=58 // pred_check
          %p511 = pneg %p103
        $region61: #{generator_forward.13} parent=58 // pred_check_branch
          %513 = sbr.rel (%p511) target = $region63
        $region62: #{generator_forward.13} parent=58 // pred_region
          %s514 = smul.u32 4, %s20
          %p515 = scmp.lt.s32.totalorder %s19, 0
          %s516 = scalar_select %p515, %s19, 0
          %p517 = scmp.lt.s32.totalorder %s514, 63
          %s518 = scalar_select %p517, %s514, 63
          %s519 = smul.addr %s516, 64
          %s520 = sadd.s32 %s518, %s519
          %s521 = smul.addr %s520, 2
          %s522 = scalar_lea.vmem %s2, %s521
        $region63: #{generator_forward.13} parent=58 // pred_fallthru
          _
      $region59: #{generator_forward.13} parent=5 // pred_fallthru
        _
    $region6: #{generator_forward.13} parent=1 // loop_footer
      %s12 = sadd.s32 1, %s8
    $region7: #{generator_forward.13} parent=1 // loop_footer_branch
      %7 = sbr.rel target = $region3
    $region8: #{generator_forward.13} parent=1 // loop_exit
      _

// kernel: generator_forward.15
$region0: #{generator_forward.15}
  #allocation0 [shape = 'u32[]', space=smem, size = 0x4, offset = 0x4, fixed_abs, tag = 'smem constant byte address 0x4 - core index']
  #allocation1 [shape = 'u32[72,128]{1,0:T(1,128)}', space=vmem, size = 0x9000, scoped, tag = 'internal scratch']
  %s0 = inlined_call_operand.vmem [shape: f32[32,512], index: 0, kind: input, shape index: {}]
  %s1 = inlined_call_operand.vmem [shape: f32[1,512], index: 1, kind: input, shape index: {}]
  %s2 = inlined_call_operand.vmem [shape: f32[1,512], index: 2, kind: input, shape index: {}]
  %s3 = inlined_call_operand.vmem [shape: bf16[32,512], index: 3, kind: output, shape index: {}]
  %s4 = sld [smem:[#allocation0]]
  $region22: #{generator_forward.15} parent=0
    _
  %s6 = ssub.s32 1, %s4
  %s7 = scalar_select 0, %s6, %s4
  // Predicated region
  $region2: #{generator_forward.15} parent=0 // pred_check
    _
  $region3: #{generator_forward.15} parent=0 // pred_check_branch
    %9 = sbr.rel (0) target = $region5
  $region4: #{generator_forward.15} parent=0 // pred_region
    _
  $region5: #{generator_forward.15} parent=0 // pred_fallthru
    _
  // Predicated region
  $region6: #{generator_forward.15} parent=0 // pred_check
    _
  $region7: #{generator_forward.15} parent=0 // pred_check_branch
    %11 = sbr.rel (0) target = $region9
  $region8: #{generator_forward.15} parent=0 // pred_region
    _
  $region9: #{generator_forward.15} parent=0 // pred_fallthru
    _
  // Predicated region
  $region10: #{generator_forward.15} parent=0 // pred_check
    _
  $region11: #{generator_forward.15} parent=0 // pred_check_branch
    %13 = sbr.rel (0) target = $region13
  $region12: #{generator_forward.15} parent=0 // pred_region
    _
  $region13: #{generator_forward.15} parent=0 // pred_fallthru
    _
  %v14 = vld [vmem:[%s0] sm:$0xff]
  %v15 = vld [vmem:[%s0 + $0x8] sm:$0xff]
  %v16 = vld [vmem:[%s0 + $0x10] sm:$0xff]
  %v17 = vld [vmem:[%s0 + $0x18] sm:$0xff]
  %v18 = vld [vmem:[%s0 + $0x20] sm:$0xff]
  %v19 = vld [vmem:[%s0 + $0x28] sm:$0xff]
  %v20 = vld [vmem:[%s0 + $0x30] sm:$0xff]
  %v21 = vld [vmem:[%s0 + $0x38] sm:$0xff]
  %v22 = vld [vmem:[%s0 + $0x40] sm:$0xff]
  %v23 = vld [vmem:[%s0 + $0x48] sm:$0xff]
  %v24 = vld [vmem:[%s0 + $0x50] sm:$0xff]
  %v25 = vld [vmem:[%s0 + $0x58] sm:$0xff]
  %v26 = vld [vmem:[%s0 + $0x60] sm:$0xff]
  %v27 = vld [vmem:[%s0 + $0x68] sm:$0xff]
  %v28 = vld [vmem:[%s0 + $0x70] sm:$0xff]
  %v29 = vld [vmem:[%s0 + $0x78] sm:$0xff]
  %v30 = vld [vmem:[%s1] sm:$0xf]
  %v32 = vperm.slane %v30, 0
  %v33 = vperm.slane %v30, 1
  %v34 = vperm.slane %v30, 2
  %v35 = vperm.slane %v30, 3
  %v40 = vmul.f32 %v14, %v32
  %v41 = vmul.f32 %v15, %v33
  %v42 = vmul.f32 %v16, %v34
  %v43 = vmul.f32 %v17, %v35
  %v44 = vmul.f32 %v18, %v32
  %v45 = vmul.f32 %v19, %v33
  %v46 = vmul.f32 %v20, %v34
  %v47 = vmul.f32 %v21, %v35
  %v48 = vmul.f32 %v22, %v32
  %v49 = vmul.f32 %v23, %v33
  %v50 = vmul.f32 %v24, %v34
  %v51 = vmul.f32 %v25, %v35
  %v52 = vmul.f32 %v26, %v32
  %v53 = vmul.f32 %v27, %v33
  %v54 = vmul.f32 %v28, %v34
  %v55 = vmul.f32 %v29, %v35
  %v56 = vld [vmem:[%s2] sm:$0xf]
  %v58 = vperm.slane %v56, 0
  %v59 = vperm.slane %v56, 1
  %v60 = vperm.slane %v56, 2
  %v61 = vperm.slane %v56, 3
  %v66 = vadd.f32 %v40, %v58
  %v67 = vadd.f32 %v41, %v59
  %v68 = vadd.f32 %v42, %v60
  %v69 = vadd.f32 %v43, %v61
  %v70 = vadd.f32 %v44, %v58
  %v71 = vadd.f32 %v45, %v59
  %v72 = vadd.f32 %v46, %v60
  %v73 = vadd.f32 %v47, %v61
  %v74 = vadd.f32 %v48, %v58
  %v75 = vadd.f32 %v49, %v59
  %v76 = vadd.f32 %v50, %v60
  %v77 = vadd.f32 %v51, %v61
  %v78 = vadd.f32 %v52, %v58
  %v79 = vadd.f32 %v53, %v59
  %v80 = vadd.f32 %v54, %v60
  %v81 = vadd.f32 %v55, %v61
  %v82 = vmax.f32 %v66, 0.0
  %v83 = vmax.f32 %v67, 0.0
  %v84 = vmax.f32 %v68, 0.0
  %v85 = vmax.f32 %v69, 0.0
  %v86 = vmax.f32 %v70, 0.0
  %v87 = vmax.f32 %v71, 0.0
  %v88 = vmax.f32 %v72, 0.0
  %v89 = vmax.f32 %v73, 0.0
  %v90 = vmax.f32 %v74, 0.0
  %v91 = vmax.f32 %v75, 0.0
  %v92 = vmax.f32 %v76, 0.0
  %v93 = vmax.f32 %v77, 0.0
  %v94 = vmax.f32 %v78, 0.0
  %v95 = vmax.f32 %v79, 0.0
  %v96 = vmax.f32 %v80, 0.0
  %v97 = vmax.f32 %v81, 0.0
  %v98 = vpack.c.bf16 %v83, %v82
  %v99 = vpack.c.bf16 %v85, %v84
  %v100 = vpack.c.bf16 %v87, %v86
  %v101 = vpack.c.bf16 %v89, %v88
  %v102 = vpack.c.bf16 %v91, %v90
  %v103 = vpack.c.bf16 %v93, %v92
  %v104 = vpack.c.bf16 %v95, %v94
  %v105 = vpack.c.bf16 %v97, %v96
  %106 = vst [vmem:[%s3] sm:$0xff] %v98
  %107 = vst [vmem:[%s3 + $0x8] sm:$0xff] %v99
  %108 = vst [vmem:[%s3 + $0x10] sm:$0xff] %v100
  %109 = vst [vmem:[%s3 + $0x18] sm:$0xff] %v101
  %110 = vst [vmem:[%s3 + $0x20] sm:$0xff] %v102
  %111 = vst [vmem:[%s3 + $0x28] sm:$0xff] %v103
  %112 = vst [vmem:[%s3 + $0x30] sm:$0xff] %v104
  %113 = vst [vmem:[%s3 + $0x38] sm:$0xff] %v105
  // Predicated region
  $region14: #{generator_forward.15} parent=0 // pred_check
    _
  $region15: #{generator_forward.15} parent=0 // pred_check_branch
    %115 = sbr.rel (0) target = $region17
  $region16: #{generator_forward.15} parent=0 // pred_region
    _
  $region17: #{generator_forward.15} parent=0 // pred_fallthru
    _
  // Predicated region
  $region18: #{generator_forward.15} parent=0 // pred_check
    _
  $region19: #{generator_forward.15} parent=0 // pred_check_branch
    %117 = sbr.rel (0) target = $region21
  $region20: #{generator_forward.15} parent=0 // pred_region
    _
  $region21: #{generator_forward.15} parent=0 // pred_fallthru
    _

// kernel: generator_forward.14
$region0: #{generator_forward.14}
  #allocation0 [shape = 'u32[]', space=smem, size = 0x4, offset = 0x4, fixed_abs, tag = 'smem constant byte address 0x4 - core index']
  #allocation1 [shape = 'u32[72,128]{1,0:T(1,128)}', space=vmem, size = 0x9000, scoped, tag = 'internal scratch']
  %s0 = inlined_call_operand.vmem [shape: f32[32,512], index: 0, kind: input, shape index: {}]
  %s1 = inlined_call_operand.vmem [shape: f32[1,512], index: 1, kind: output, shape index: {0}]
  %s2 = inlined_call_operand.vmem [shape: f32[1,512], index: 2, kind: output, shape index: {1}]
  %3 = xla_tuple %s1, %s2
  %s4 = sld [smem:[#allocation0]]
  $region26: #{generator_forward.14} parent=0
    _
  %s6 = ssub.s32 1, %s4
  %s7 = scalar_select 0, %s6, %s4
  // Predicated region
  $region2: #{generator_forward.14} parent=0 // pred_check
    _
  $region3: #{generator_forward.14} parent=0 // pred_check_branch
    %9 = sbr.rel (0) target = $region5
  $region4: #{generator_forward.14} parent=0 // pred_region
    _
  $region5: #{generator_forward.14} parent=0 // pred_fallthru
    _
  %p10 = scmp.eq.s32.totalorder 0, 0
  // Predicated region
  $region6: #{generator_forward.14} parent=0 // pred_check
    %p11 = pneg %p10
  $region7: #{generator_forward.14} parent=0 // pred_check_branch
    %13 = sbr.rel (%p11) target = $region9
  $region8: #{generator_forward.14} parent=0 // pred_region
    %v14 = vlaneseq
    %vm15 = vcmp.ge.s32.totalorder %v14, 0
    %vm16 = vcmp.lt.s32.totalorder %v14, 512
    %vm17 = vmand %vm15, %vm16
    %18 = vst.msk [vmem:[%s1] sm:$0xf] %vm17, 0.0
    %19 = vst.msk [vmem:[%s2] sm:$0xf] %vm17, 0.0
  $region9: #{generator_forward.14} parent=0 // pred_fallthru
    _
  %v20 = vld [vmem:[%s0] sm:$0xff]
  %v21 = vld [vmem:[%s0 + $0x8] sm:$0xff]
  %v22 = vld [vmem:[%s0 + $0x10] sm:$0xff]
  %v23 = vld [vmem:[%s0 + $0x18] sm:$0xff]
  %v24 = vld [vmem:[%s0 + $0x20] sm:$0xff]
  %v25 = vld [vmem:[%s0 + $0x28] sm:$0xff]
  %v26 = vld [vmem:[%s0 + $0x30] sm:$0xff]
  %v27 = vld [vmem:[%s0 + $0x38] sm:$0xff]
  %v28 = vld [vmem:[%s0 + $0x40] sm:$0xff]
  %v29 = vld [vmem:[%s0 + $0x48] sm:$0xff]
  %v30 = vld [vmem:[%s0 + $0x50] sm:$0xff]
  %v31 = vld [vmem:[%s0 + $0x58] sm:$0xff]
  %v32 = vld [vmem:[%s0 + $0x60] sm:$0xff]
  %v33 = vld [vmem:[%s0 + $0x68] sm:$0xff]
  %v34 = vld [vmem:[%s0 + $0x70] sm:$0xff]
  %v35 = vld [vmem:[%s0 + $0x78] sm:$0xff]
  %v36 = vld [vmem:[%s1] sm:$0xf]
  %v37 = vadd.f32 %v20, %v24
  %v38 = vadd.f32 %v37, %v28
  %v39 = vadd.f32 %v38, %v32
  %v40 = vrot.slane %v39, 4
  %v41 = vadd.f32 %v39, %v40
  %v42 = vrot.slane %v41, 2
  %v43 = vadd.f32 %v41, %v42
  %v44 = vrot.slane %v43, 1
  %v45 = vadd.f32 %v43, %v44
  %v46 = vadd.f32 %v21, %v25
  %v47 = vadd.f32 %v46, %v29
  %v48 = vadd.f32 %v47, %v33
  %v49 = vrot.slane %v48, 4
  %v50 = vadd.f32 %v48, %v49
  %v51 = vrot.slane %v50, 2
  %v52 = vadd.f32 %v50, %v51
  %v53 = vrot.slane %v52, 1
  %v54 = vadd.f32 %v52, %v53
  %v55 = vadd.f32 %v22, %v26
  %v56 = vadd.f32 %v55, %v30
  %v57 = vadd.f32 %v56, %v34
  %v58 = vrot.slane %v57, 4
  %v59 = vadd.f32 %v57, %v58
  %v60 = vrot.slane %v59, 2
  %v61 = vadd.f32 %v59, %v60
  %v62 = vrot.slane %v61, 1
  %v63 = vadd.f32 %v61, %v62
  %v64 = vadd.f32 %v23, %v27
  %v65 = vadd.f32 %v64, %v31
  %v66 = vadd.f32 %v65, %v35
  %v67 = vrot.slane %v66, 4
  %v68 = vadd.f32 %v66, %v67
  %v69 = vrot.slane %v68, 2
  %v70 = vadd.f32 %v68, %v69
  %v71 = vrot.slane %v70, 1
  %v72 = vadd.f32 %v70, %v71
  %v77 = vrot.slane %v54, 7
  %v78 = vrot.slane %v63, 6
  %v79 = vrot.slane %v72, 5
  %vm80 = vcmask 1040384
  %v81 = vsel %vm80, %v45, %v77
  %vm82 = vcmask 1042434
  %v83 = vsel %vm82, %v78, %v79
  %vm84 = vcmask 1041408
  %v85 = vsel %vm84, %v81, %v83
  %v87 = vadd.f32 %v36, %v85
  %v88 = vlaneseq
  %vm89 = vcmp.ge.s32.totalorder %v88, 0
  %vm90 = vcmp.lt.s32.totalorder %v88, 512
  %vm91 = vmand %vm89, %vm90
  %92 = vst.msk [vmem:[%s1] sm:$0xf] %vm91, %v87
  %v93 = vld [vmem:[%s2] sm:$0xf]
  %v94 = vmul.f32 %v20, %v20
  %v95 = vmul.f32 %v21, %v21
  %v96 = vmul.f32 %v22, %v22
  %v97 = vmul.f32 %v23, %v23
  %v98 = vmul.f32 %v24, %v24
  %v99 = vmul.f32 %v25, %v25
  %v100 = vmul.f32 %v26, %v26
  %v101 = vmul.f32 %v27, %v27
  %v102 = vmul.f32 %v28, %v28
  %v103 = vmul.f32 %v29, %v29
  %v104 = vmul.f32 %v30, %v30
  %v105 = vmul.f32 %v31, %v31
  %v106 = vmul.f32 %v32, %v32
  %v107 = vmul.f32 %v33, %v33
  %v108 = vmul.f32 %v34, %v34
  %v109 = vmul.f32 %v35, %v35
  %v110 = vadd.f32 %v94, %v98
  %v111 = vadd.f32 %v110, %v102
  %v112 = vadd.f32 %v111, %v106
  %v113 = vrot.slane %v112, 4
  %v114 = vadd.f32 %v112, %v113
  %v115 = vrot.slane %v114, 2
  %v116 = vadd.f32 %v114, %v115
  %v117 = vrot.slane %v116, 1
  %v118 = vadd.f32 %v116, %v117
  %v119 = vadd.f32 %v95, %v99
  %v120 = vadd.f32 %v119, %v103
  %v121 = vadd.f32 %v120, %v107
  %v122 = vrot.slane %v121, 4
  %v123 = vadd.f32 %v121, %v122
  %v124 = vrot.slane %v123, 2
  %v125 = vadd.f32 %v123, %v124
  %v126 = vrot.slane %v125, 1
  %v127 = vadd.f32 %v125, %v126
  %v128 = vadd.f32 %v96, %v100
  %v129 = vadd.f32 %v128, %v104
  %v130 = vadd.f32 %v129, %v108
  %v131 = vrot.slane %v130, 4
  %v132 = vadd.f32 %v130, %v131
  %v133 = vrot.slane %v132, 2
  %v134 = vadd.f32 %v132, %v133
  %v135 = vrot.slane %v134, 1
  %v136 = vadd.f32 %v134, %v135
  %v137 = vadd.f32 %v97, %v101
  %v138 = vadd.f32 %v137, %v105
  %v139 = vadd.f32 %v138, %v109
  %v140 = vrot.slane %v139, 4
  %v141 = vadd.f32 %v139, %v140
  %v142 = vrot.slane %v141, 2
  %v143 = vadd.f32 %v141, %v142
  %v144 = vrot.slane %v143, 1
  %v145 = vadd.f32 %v143, %v144
  %v150 = vrot.slane %v127, 7
  %v151 = vrot.slane %v136, 6
  %v152 = vrot.slane %v145, 5
  %v153 = vsel %vm80, %v118, %v150
  %v154 = vsel %vm82, %v151, %v152
  %v155 = vsel %vm84, %v153, %v154
  %v157 = vadd.f32 %v93, %v155
  %158 = vst.msk [vmem:[%s2] sm:$0xf] %vm91, %v157
  // Predicated region
  $region10: #{generator_forward.14} parent=0 // pred_check
    _
  $region11: #{generator_forward.14} parent=0 // pred_check_branch
    %160 = sbr.rel (0) target = $region13
  $region12: #{generator_forward.14} parent=0 // pred_region
    _
  $region13: #{generator_forward.14} parent=0 // pred_fallthru
    _
  // Predicated region
  $region14: #{generator_forward.14} parent=0 // pred_check
    _
  $region15: #{generator_forward.14} parent=0 // pred_check_branch
    %162 = sbr.rel (0) target = $region17
  $region16: #{generator_forward.14} parent=0 // pred_region
    _
  $region17: #{generator_forward.14} parent=0 // pred_fallthru
    _
  // Predicated region
  $region18: #{generator_forward.14} parent=0 // pred_check
    _
  $region19: #{generator_forward.14} parent=0 // pred_check_branch
    %164 = sbr.rel (0) target = $region21
  $region20: #{generator_forward.14} parent=0 // pred_region
    _
  $region21: #{generator_forward.14} parent=0 // pred_fallthru
    _
  // Predicated region
  $region22: #{generator_forward.14} parent=0 // pred_check
    _
  $region23: #{generator_forward.14} parent=0 // pred_check_branch
    %166 = sbr.rel (0) target = $region25
  $region24: #{generator_forward.14} parent=0 // pred_region
    _
  $region25: #{generator_forward.14} parent=0 // pred_fallthru
    _

// kernel: generator_forward.17
$region0: #{generator_forward.17}
  #allocation0 [shape = 'u32[]', space=smem, size = 0x4, offset = 0x4, fixed_abs, tag = 'smem constant byte address 0x4 - core index']
  #allocation1 [shape = 'u32[72,128]{1,0:T(1,128)}', space=vmem, size = 0x9000, scoped, tag = 'internal scratch']
  %s0 = inlined_call_operand.vmem [shape: f32[128,256], index: 0, kind: input, shape index: {}]
  %s1 = inlined_call_operand.vmem [shape: f32[1,256], index: 1, kind: output, shape index: {0}]
  %s2 = inlined_call_operand.vmem [shape: f32[1,256], index: 2, kind: output, shape index: {1}]
  %3 = xla_tuple %s1, %s2
  %s4 = sld [smem:[#allocation0]]
  $region26: #{generator_forward.17} parent=0
    _
  %s6 = ssub.s32 1, %s4
  %s7 = scalar_select 0, %s6, %s4
  // Predicated region
  $region2: #{generator_forward.17} parent=0 // pred_check
    _
  $region3: #{generator_forward.17} parent=0 // pred_check_branch
    %9 = sbr.rel (0) target = $region5
  $region4: #{generator_forward.17} parent=0 // pred_region
    _
  $region5: #{generator_forward.17} parent=0 // pred_fallthru
    _
  %p10 = scmp.eq.s32.totalorder 0, 0
  // Predicated region
  $region6: #{generator_forward.17} parent=0 // pred_check
    %p11 = pneg %p10
  $region7: #{generator_forward.17} parent=0 // pred_check_branch
    %13 = sbr.rel (%p11) target = $region9
  $region8: #{generator_forward.17} parent=0 // pred_region
    %v14 = vlaneseq
    %vm15 = vcmp.ge.s32.totalorder %v14, 0
    %vm16 = vcmp.lt.s32.totalorder %v14, 256
    %vm17 = vmand %vm15, %vm16
    %18 = vst.msk [vmem:[%s1] sm:$0x3] %vm17, 0.0
    %19 = vst.msk [vmem:[%s2] sm:$0x3] %vm17, 0.0
  $region9: #{generator_forward.17} parent=0 // pred_fallthru
    _
  %v20 = vld [vmem:[%s0] sm:$0xff]
  %v21 = vld [vmem:[%s0 + $0x8] sm:$0xff]
  %v22 = vld [vmem:[%s0 + $0x10] sm:$0xff]
  %v23 = vld [vmem:[%s0 + $0x18] sm:$0xff]
  %v24 = vld [vmem:[%s0 + $0x20] sm:$0xff]
  %v25 = vld [vmem:[%s0 + $0x28] sm:$0xff]
  %v26 = vld [vmem:[%s0 + $0x30] sm:$0xff]
  %v27 = vld [vmem:[%s0 + $0x38] sm:$0xff]
  %v28 = vld [vmem:[%s0 + $0x40] sm:$0xff]
  %v29 = vld [vmem:[%s0 + $0x48] sm:$0xff]
  %v30 = vld [vmem:[%s0 + $0x50] sm:$0xff]
  %v31 = vld [vmem:[%s0 + $0x58] sm:$0xff]
  %v32 = vld [vmem:[%s0 + $0x60] sm:$0xff]
  %v33 = vld [vmem:[%s0 + $0x68] sm:$0xff]
  %v34 = vld [vmem:[%s0 + $0x70] sm:$0xff]
  %v35 = vld [vmem:[%s0 + $0x78] sm:$0xff]
  %v36 = vld [vmem:[%s0 + $0x80] sm:$0xff]
  %v37 = vld [vmem:[%s0 + $0x88] sm:$0xff]
  %v38 = vld [vmem:[%s0 + $0x90] sm:$0xff]
  %v39 = vld [vmem:[%s0 + $0x98] sm:$0xff]
  %v40 = vld [vmem:[%s0 + $0xa0] sm:$0xff]
  %v41 = vld [vmem:[%s0 + $0xa8] sm:$0xff]
  %v42 = vld [vmem:[%s0 + $0xb0] sm:$0xff]
  %v43 = vld [vmem:[%s0 + $0xb8] sm:$0xff]
  %v44 = vld [vmem:[%s0 + $0xc0] sm:$0xff]
  %v45 = vld [vmem:[%s0 + $0xc8] sm:$0xff]
  %v46 = vld [vmem:[%s0 + $0xd0] sm:$0xff]
  %v47 = vld [vmem:[%s0 + $0xd8] sm:$0xff]
  %v48 = vld [vmem:[%s0 + $0xe0] sm:$0xff]
  %v49 = vld [vmem:[%s0 + $0xe8] sm:$0xff]
  %v50 = vld [vmem:[%s0 + $0xf0] sm:$0xff]
  %v51 = vld [vmem:[%s0 + $0xf8] sm:$0xff]
  %v52 = vld [vmem:[%s1] sm:$0x3]
  %v53 = vadd.f32 %v20, %v22
  %v54 = vadd.f32 %v53, %v24
  %v55 = vadd.f32 %v54, %v26
  %v56 = vadd.f32 %v55, %v28
  %v57 = vadd.f32 %v56, %v30
  %v58 = vadd.f32 %v57, %v32
  %v59 = vadd.f32 %v58, %v34
  %v60 = vadd.f32 %v59, %v36
  %v61 = vadd.f32 %v60, %v38
  %v62 = vadd.f32 %v61, %v40
  %v63 = vadd.f32 %v62, %v42
  %v64 = vadd.f32 %v63, %v44
  %v65 = vadd.f32 %v64, %v46
  %v66 = vadd.f32 %v65, %v48
  %v67 = vadd.f32 %v66, %v50
  %v68 = vrot.slane %v67, 4
  %v69 = vadd.f32 %v67, %v68
  %v70 = vrot.slane %v69, 2
  %v71 = vadd.f32 %v69, %v70
  %v72 = vrot.slane %v71, 1
  %v73 = vadd.f32 %v71, %v72
  %v74 = vadd.f32 %v21, %v23
  %v75 = vadd.f32 %v74, %v25
  %v76 = vadd.f32 %v75, %v27
  %v77 = vadd.f32 %v76, %v29
  %v78 = vadd.f32 %v77, %v31
  %v79 = vadd.f32 %v78, %v33
  %v80 = vadd.f32 %v79, %v35
  %v81 = vadd.f32 %v80, %v37
  %v82 = vadd.f32 %v81, %v39
  %v83 = vadd.f32 %v82, %v41
  %v84 = vadd.f32 %v83, %v43
  %v85 = vadd.f32 %v84, %v45
  %v86 = vadd.f32 %v85, %v47
  %v87 = vadd.f32 %v86, %v49
  %v88 = vadd.f32 %v87, %v51
  %v89 = vrot.slane %v88, 4
  %v90 = vadd.f32 %v88, %v89
  %v91 = vrot.slane %v90, 2
  %v92 = vadd.f32 %v90, %v91
  %v93 = vrot.slane %v92, 1
  %v94 = vadd.f32 %v92, %v93
  %v97 = vrot.slane %v94, 7
  %vm98 = vcmask 1040384
  %v99 = vsel %vm98, %v73, %v97
  %v101 = vadd.f32 %v52, %v99
  %v102 = vlaneseq
  %vm103 = vcmp.ge.s32.totalorder %v102, 0
  %vm104 = vcmp.lt.s32.totalorder %v102, 256
  %vm105 = vmand %vm103, %vm104
  %106 = vst.msk [vmem:[%s1] sm:$0x3] %vm105, %v101
  %v107 = vld [vmem:[%s2] sm:$0x3]
  %v108 = vmul.f32 %v20, %v20
  %v109 = vmul.f32 %v21, %v21
  %v110 = vmul.f32 %v22, %v22
  %v111 = vmul.f32 %v23, %v23
  %v112 = vmul.f32 %v24, %v24
  %v113 = vmul.f32 %v25, %v25
  %v114 = vmul.f32 %v26, %v26
  %v115 = vmul.f32 %v27, %v27
  %v116 = vmul.f32 %v28, %v28
  %v117 = vmul.f32 %v29, %v29
  %v118 = vmul.f32 %v30, %v30
  %v119 = vmul.f32 %v31, %v31
  %v120 = vmul.f32 %v32, %v32
  %v121 = vmul.f32 %v33, %v33
  %v122 = vmul.f32 %v34, %v34
  %v123 = vmul.f32 %v35, %v35
  %v124 = vmul.f32 %v36, %v36
  %v125 = vmul.f32 %v37, %v37
  %v126 = vmul.f32 %v38, %v38
  %v127 = vmul.f32 %v39, %v39
  %v128 = vmul.f32 %v40, %v40
  %v129 = vmul.f32 %v41, %v41
  %v130 = vmul.f32 %v42, %v42
  %v131 = vmul.f32 %v43, %v43
  %v132 = vmul.f32 %v44, %v44
  %v133 = vmul.f32 %v45, %v45
  %v134 = vmul.f32 %v46, %v46
  %v135 = vmul.f32 %v47, %v47
  %v136 = vmul.f32 %v48, %v48
  %v137 = vmul.f32 %v49, %v49
  %v138 = vmul.f32 %v50, %v50
  %v139 = vmul.f32 %v51, %v51
  %v140 = vadd.f32 %v108, %v110
  %v141 = vadd.f32 %v140, %v112
  %v142 = vadd.f32 %v141, %v114
  %v143 = vadd.f32 %v142, %v116
  %v144 = vadd.f32 %v143, %v118
  %v145 = vadd.f32 %v144, %v120
  %v146 = vadd.f32 %v145, %v122
  %v147 = vadd.f32 %v146, %v124
  %v148 = vadd.f32 %v147, %v126
  %v149 = vadd.f32 %v148, %v128
  %v150 = vadd.f32 %v149, %v130
  %v151 = vadd.f32 %v150, %v132
  %v152 = vadd.f32 %v151, %v134
  %v153 = vadd.f32 %v152, %v136
  %v154 = vadd.f32 %v153, %v138
  %v155 = vrot.slane %v154, 4
  %v156 = vadd.f32 %v154, %v155
  %v157 = vrot.slane %v156, 2
  %v158 = vadd.f32 %v156, %v157
  %v159 = vrot.slane %v158, 1
  %v160 = vadd.f32 %v158, %v159
  %v161 = vadd.f32 %v109, %v111
  %v162 = vadd.f32 %v161, %v113
  %v163 = vadd.f32 %v162, %v115
  %v164 = vadd.f32 %v163, %v117
  %v165 = vadd.f32 %v164, %v119
  %v166 = vadd.f32 %v165, %v121
  %v167 = vadd.f32 %v166, %v123
  %v168 = vadd.f32 %v167, %v125
  %v169 = vadd.f32 %v168, %v127
  %v170 = vadd.f32 %v169, %v129
  %v171 = vadd.f32 %v170, %v131
  %v172 = vadd.f32 %v171, %v133
  %v173 = vadd.f32 %v172, %v135
  %v174 = vadd.f32 %v173, %v137
  %v175 = vadd.f32 %v174, %v139
  %v176 = vrot.slane %v175, 4
  %v177 = vadd.f32 %v175, %v176
  %v178 = vrot.slane %v177, 2
  %v179 = vadd.f32 %v177, %v178
  %v180 = vrot.slane %v179, 1
  %v181 = vadd.f32 %v179, %v180
  %v184 = vrot.slane %v181, 7
  %v185 = vsel %vm98, %v160, %v184
  %v187 = vadd.f32 %v107, %v185
  %188 = vst.msk [vmem:[%s2] sm:$0x3] %vm105, %v187
  // Predicated region
  $region10: #{generator_forward.17} parent=0 // pred_check
    _
  $region11: #{generator_forward.17} parent=0 // pred_check_branch
    %190 = sbr.rel (0) target = $region13
  $region12: #{generator_forward.17} parent=0 // pred_region
    _
  $region13: #{generator_forward.17} parent=0 // pred_fallthru
    _
  // Predicated region
  $region14: #{generator_forward.17} parent=0 // pred_check
    _
  $region15: #{generator_forward.17} parent=0 // pred_check_branch
    %192 = sbr.rel (0) target = $region17
  $region16: #{generator_forward.17} parent=0 // pred_region
    _
  $region17: #{generator_forward.17} parent=0 // pred_fallthru
    _
  // Predicated region
  $region18: #{generator_forward.17} parent=0 // pred_check
    _
  $region19: #{generator_forward.17} parent=0 // pred_check_branch
    %194 = sbr.rel (0) target = $region21
  $region20: #{generator_forward.17} parent=0 // pred_region
    _
  $region21: #{generator_forward.17} parent=0 // pred_fallthru
    _
  // Predicated region
  $region22: #{generator_forward.17} parent=0 // pred_check
    _
  $region23: #{generator_forward.17} parent=0 // pred_check_branch
    %196 = sbr.rel (0) target = $region25
  $region24: #{generator_forward.17} parent=0 // pred_region
    _
  $region25: #{generator_forward.17} parent=0 // pred_fallthru
    _

// kernel: generator_forward.18
$region0: #{generator_forward.18}
  #allocation0 [shape = 'u32[]', space=smem, size = 0x4, offset = 0x4, fixed_abs, tag = 'smem constant byte address 0x4 - core index']
  #allocation1 [shape = 'u32[72,128]{1,0:T(1,128)}', space=vmem, size = 0x9000, scoped, tag = 'internal scratch']
  %s0 = inlined_call_operand.vmem [shape: f32[128,256], index: 0, kind: input, shape index: {}]
  %s1 = inlined_call_operand.vmem [shape: f32[1,256], index: 1, kind: input, shape index: {}]
  %s2 = inlined_call_operand.vmem [shape: f32[1,256], index: 2, kind: input, shape index: {}]
  %s3 = inlined_call_operand.vmem [shape: bf16[128,256], index: 3, kind: output, shape index: {}]
  %s4 = sld [smem:[#allocation0]]
  $region22: #{generator_forward.18} parent=0
    _
  %s6 = ssub.s32 1, %s4
  %s7 = scalar_select 0, %s6, %s4
  // Predicated region
  $region2: #{generator_forward.18} parent=0 // pred_check
    _
  $region3: #{generator_forward.18} parent=0 // pred_check_branch
    %9 = sbr.rel (0) target = $region5
  $region4: #{generator_forward.18} parent=0 // pred_region
    _
  $region5: #{generator_forward.18} parent=0 // pred_fallthru
    _
  // Predicated region
  $region6: #{generator_forward.18} parent=0 // pred_check
    _
  $region7: #{generator_forward.18} parent=0 // pred_check_branch
    %11 = sbr.rel (0) target = $region9
  $region8: #{generator_forward.18} parent=0 // pred_region
    _
  $region9: #{generator_forward.18} parent=0 // pred_fallthru
    _
  // Predicated region
  $region10: #{generator_forward.18} parent=0 // pred_check
    _
  $region11: #{generator_forward.18} parent=0 // pred_check_branch
    %13 = sbr.rel (0) target = $region13
  $region12: #{generator_forward.18} parent=0 // pred_region
    _
  $region13: #{generator_forward.18} parent=0 // pred_fallthru
    _
  %v14 = vld [vmem:[%s0] sm:$0xff]
  %v15 = vld [vmem:[%s0 + $0x8] sm:$0xff]
  %v16 = vld [vmem:[%s0 + $0x10] sm:$0xff]
  %v17 = vld [vmem:[%s0 + $0x18] sm:$0xff]
  %v18 = vld [vmem:[%s0 + $0x20] sm:$0xff]
  %v19 = vld [vmem:[%s0 + $0x28] sm:$0xff]
  %v20 = vld [vmem:[%s0 + $0x30] sm:$0xff]
  %v21 = vld [vmem:[%s0 + $0x38] sm:$0xff]
  %v22 = vld [vmem:[%s0 + $0x40] sm:$0xff]
  %v23 = vld [vmem:[%s0 + $0x48] sm:$0xff]
  %v24 = vld [vmem:[%s0 + $0x50] sm:$0xff]
  %v25 = vld [vmem:[%s0 + $0x58] sm:$0xff]
  %v26 = vld [vmem:[%s0 + $0x60] sm:$0xff]
  %v27 = vld [vmem:[%s0 + $0x68] sm:$0xff]
  %v28 = vld [vmem:[%s0 + $0x70] sm:$0xff]
  %v29 = vld [vmem:[%s0 + $0x78] sm:$0xff]
  %v30 = vld [vmem:[%s0 + $0x80] sm:$0xff]
  %v31 = vld [vmem:[%s0 + $0x88] sm:$0xff]
  %v32 = vld [vmem:[%s0 + $0x90] sm:$0xff]
  %v33 = vld [vmem:[%s0 + $0x98] sm:$0xff]
  %v34 = vld [vmem:[%s0 + $0xa0] sm:$0xff]
  %v35 = vld [vmem:[%s0 + $0xa8] sm:$0xff]
  %v36 = vld [vmem:[%s0 + $0xb0] sm:$0xff]
  %v37 = vld [vmem:[%s0 + $0xb8] sm:$0xff]
  %v38 = vld [vmem:[%s0 + $0xc0] sm:$0xff]
  %v39 = vld [vmem:[%s0 + $0xc8] sm:$0xff]
  %v40 = vld [vmem:[%s0 + $0xd0] sm:$0xff]
  %v41 = vld [vmem:[%s0 + $0xd8] sm:$0xff]
  %v42 = vld [vmem:[%s0 + $0xe0] sm:$0xff]
  %v43 = vld [vmem:[%s0 + $0xe8] sm:$0xff]
  %v44 = vld [vmem:[%s0 + $0xf0] sm:$0xff]
  %v45 = vld [vmem:[%s0 + $0xf8] sm:$0xff]
  %v46 = vld [vmem:[%s1] sm:$0x3]
  %v48 = vperm.slane %v46, 0
  %v49 = vperm.slane %v46, 1
  %v52 = vmul.f32 %v14, %v48
  %v53 = vmul.f32 %v15, %v49
  %v54 = vmul.f32 %v16, %v48
  %v55 = vmul.f32 %v17, %v49
  %v56 = vmul.f32 %v18, %v48
  %v57 = vmul.f32 %v19, %v49
  %v58 = vmul.f32 %v20, %v48
  %v59 = vmul.f32 %v21, %v49
  %v60 = vmul.f32 %v22, %v48
  %v61 = vmul.f32 %v23, %v49
  %v62 = vmul.f32 %v24, %v48
  %v63 = vmul.f32 %v25, %v49
  %v64 = vmul.f32 %v26, %v48
  %v65 = vmul.f32 %v27, %v49
  %v66 = vmul.f32 %v28, %v48
  %v67 = vmul.f32 %v29, %v49
  %v68 = vmul.f32 %v30, %v48
  %v69 = vmul.f32 %v31, %v49
  %v70 = vmul.f32 %v32, %v48
  %v71 = vmul.f32 %v33, %v49
  %v72 = vmul.f32 %v34, %v48
  %v73 = vmul.f32 %v35, %v49
  %v74 = vmul.f32 %v36, %v48
  %v75 = vmul.f32 %v37, %v49
  %v76 = vmul.f32 %v38, %v48
  %v77 = vmul.f32 %v39, %v49
  %v78 = vmul.f32 %v40, %v48
  %v79 = vmul.f32 %v41, %v49
  %v80 = vmul.f32 %v42, %v48
  %v81 = vmul.f32 %v43, %v49
  %v82 = vmul.f32 %v44, %v48
  %v83 = vmul.f32 %v45, %v49
  %v84 = vld [vmem:[%s2] sm:$0x3]
  %v86 = vperm.slane %v84, 0
  %v87 = vperm.slane %v84, 1
  %v90 = vadd.f32 %v52, %v86
  %v91 = vadd.f32 %v53, %v87
  %v92 = vadd.f32 %v54, %v86
  %v93 = vadd.f32 %v55, %v87
  %v94 = vadd.f32 %v56, %v86
  %v95 = vadd.f32 %v57, %v87
  %v96 = vadd.f32 %v58, %v86
  %v97 = vadd.f32 %v59, %v87
  %v98 = vadd.f32 %v60, %v86
  %v99 = vadd.f32 %v61, %v87
  %v100 = vadd.f32 %v62, %v86
  %v101 = vadd.f32 %v63, %v87
  %v102 = vadd.f32 %v64, %v86
  %v103 = vadd.f32 %v65, %v87
  %v104 = vadd.f32 %v66, %v86
  %v105 = vadd.f32 %v67, %v87
  %v106 = vadd.f32 %v68, %v86
  %v107 = vadd.f32 %v69, %v87
  %v108 = vadd.f32 %v70, %v86
  %v109 = vadd.f32 %v71, %v87
  %v110 = vadd.f32 %v72, %v86
  %v111 = vadd.f32 %v73, %v87
  %v112 = vadd.f32 %v74, %v86
  %v113 = vadd.f32 %v75, %v87
  %v114 = vadd.f32 %v76, %v86
  %v115 = vadd.f32 %v77, %v87
  %v116 = vadd.f32 %v78, %v86
  %v117 = vadd.f32 %v79, %v87
  %v118 = vadd.f32 %v80, %v86
  %v119 = vadd.f32 %v81, %v87
  %v120 = vadd.f32 %v82, %v86
  %v121 = vadd.f32 %v83, %v87
  %v122 = vmax.f32 %v90, 0.0
  %v123 = vmax.f32 %v91, 0.0
  %v124 = vmax.f32 %v92, 0.0
  %v125 = vmax.f32 %v93, 0.0
  %v126 = vmax.f32 %v94, 0.0
  %v127 = vmax.f32 %v95, 0.0
  %v128 = vmax.f32 %v96, 0.0
  %v129 = vmax.f32 %v97, 0.0
  %v130 = vmax.f32 %v98, 0.0
  %v131 = vmax.f32 %v99, 0.0
  %v132 = vmax.f32 %v100, 0.0
  %v133 = vmax.f32 %v101, 0.0
  %v134 = vmax.f32 %v102, 0.0
  %v135 = vmax.f32 %v103, 0.0
  %v136 = vmax.f32 %v104, 0.0
  %v137 = vmax.f32 %v105, 0.0
  %v138 = vmax.f32 %v106, 0.0
  %v139 = vmax.f32 %v107, 0.0
  %v140 = vmax.f32 %v108, 0.0
  %v141 = vmax.f32 %v109, 0.0
  %v142 = vmax.f32 %v110, 0.0
  %v143 = vmax.f32 %v111, 0.0
  %v144 = vmax.f32 %v112, 0.0
  %v145 = vmax.f32 %v113, 0.0
  %v146 = vmax.f32 %v114, 0.0
  %v147 = vmax.f32 %v115, 0.0
  %v148 = vmax.f32 %v116, 0.0
  %v149 = vmax.f32 %v117, 0.0
  %v150 = vmax.f32 %v118, 0.0
  %v151 = vmax.f32 %v119, 0.0
  %v152 = vmax.f32 %v120, 0.0
  %v153 = vmax.f32 %v121, 0.0
  %v154 = vpack.c.bf16 %v123, %v122
  %v155 = vpack.c.bf16 %v125, %v124
  %v156 = vpack.c.bf16 %v127, %v126
  %v157 = vpack.c.bf16 %v129, %v128
  %v158 = vpack.c.bf16 %v131, %v130
  %v159 = vpack.c.bf16 %v133, %v132
  %v160 = vpack.c.bf16 %v135, %v134
  %v161 = vpack.c.bf16 %v137, %v136
  %v162 = vpack.c.bf16 %v139, %v138
  %v163 = vpack.c.bf16 %v141, %v140
  %v164 = vpack.c.bf16 %v143, %v142
  %v165 = vpack.c.bf16 %v145, %v144
  %v166 = vpack.c.bf16 %v147, %v146
  %v167 = vpack.c.bf16 %v149, %v148
  %v168 = vpack.c.bf16 %v151, %v150
  %v169 = vpack.c.bf16 %v153, %v152
  %170 = vst [vmem:[%s3] sm:$0xff] %v154
  %171 = vst [vmem:[%s3 + $0x8] sm:$0xff] %v155
  %172 = vst [vmem:[%s3 + $0x10] sm:$0xff] %v156
  %173 = vst [vmem:[%s3 + $0x18] sm:$0xff] %v157
  %174 = vst [vmem:[%s3 + $0x20] sm:$0xff] %v158
  %175 = vst [vmem:[%s3 + $0x28] sm:$0xff] %v159
  %176 = vst [vmem:[%s3 + $0x30] sm:$0xff] %v160
  %177 = vst [vmem:[%s3 + $0x38] sm:$0xff] %v161
  %178 = vst [vmem:[%s3 + $0x40] sm:$0xff] %v162
  %179 = vst [vmem:[%s3 + $0x48] sm:$0xff] %v163
  %180 = vst [vmem:[%s3 + $0x50] sm:$0xff] %v164
  %181 = vst [vmem:[%s3 + $0x58] sm:$0xff] %v165
  %182 = vst [vmem:[%s3 + $0x60] sm:$0xff] %v166
  %183 = vst [vmem:[%s3 + $0x68] sm:$0xff] %v167
  %184 = vst [vmem:[%s3 + $0x70] sm:$0xff] %v168
  %185 = vst [vmem:[%s3 + $0x78] sm:$0xff] %v169
  // Predicated region
  $region14: #{generator_forward.18} parent=0 // pred_check
    _
  $region15: #{generator_forward.18} parent=0 // pred_check_branch
    %187 = sbr.rel (0) target = $region17
  $region16: #{generator_forward.18} parent=0 // pred_region
    _
  $region17: #{generator_forward.18} parent=0 // pred_fallthru
    _
  // Predicated region
  $region18: #{generator_forward.18} parent=0 // pred_check
    _
  $region19: #{generator_forward.18} parent=0 // pred_check_branch
    %189 = sbr.rel (0) target = $region21
  $region20: #{generator_forward.18} parent=0 // pred_region
    _
  $region21: #{generator_forward.18} parent=0 // pred_fallthru
    _

// kernel: generator_forward.16
$region0: #{generator_forward.16}
  #allocation0 [shape = 'u32[]', space=smem, size = 0x4, offset = 0x4, fixed_abs, tag = 'smem constant byte address 0x4 - core index']
  #allocation1 [shape = 'u32[72,128]{1,0:T(1,128)}', space=vmem, size = 0x9000, scoped, tag = 'internal scratch']
  %s0 = inlined_call_operand.vmem [shape: bf16[4,32,2048], index: 0, kind: input, shape index: {}]
  %s1 = inlined_call_operand.vmem [shape: bf16[4,2048,256], index: 1, kind: input, shape index: {}]
  %s2 = inlined_call_operand.vmem [shape: f32[4,32,256], index: 2, kind: output, shape index: {}]
  %s3 = sld [smem:[#allocation0]]
  $region41: #{generator_forward.16} parent=0
    _
  %s5 = ssub.s32 1, %s3
  %s6 = scalar_select 0, %s5, %s3
  loop: start=0, step=1, limit=6
  $region2: #{generator_forward.16} parent=0 // loop_pre_header
    _
  $region3: #{generator_forward.16} parent=0 // loop_header
    %s8 = sphi 0, %s12
    %p9 = scmp.ge.s32.totalorder %s8, 6
    %s15 = sphi 0, %s34
    %s16 = sphi 0, %s30
    %s17 = sphi 0, %s26
    %s18 = sphi 0, %s15
    %s19 = sphi 0, %s16
    %s20 = sphi 0, %s17
    %s21 = sphi 0, %s18
    %s22 = sphi 0, %s19
    %s23 = sphi 0, %s20
    %s39 = sphi 0, %s41
    %s42 = sphi 0, %s39
    %s43 = sphi 0, %s42
    %s59 = sphi 0, %s43
    %s67 = sphi 0, %s69
    %s70 = sphi 0, %s67
    %s71 = sphi 0, %s70
    %s87 = sphi 0, %s71
    %s97 = sphi 0, %s99
    %s100 = sphi 0, %s97
    %s101 = sphi 0, %s100
    %s117 = sphi 0, %s101
  $region4: #{generator_forward.16} parent=0 // loop_header_branch
    %11 = sbr.rel (%p9) target = $region8
  $region5: #{generator_forward.16} parent=0 // loop_body
    %s13 = ssub.s32 %s8, 1
    %s14 = ssub.s32 %s8, 2
    %s24 = sadd.s32 1, %s17
    %p25 = scmp.ge.s32.totalorder %s24, 1
    %s26 = scalar_select %p25, 0, %s24
    %s27 = sadd.s32 1, %s16
    %s28 = scalar_select %p25, %s27, %s16
    %p29 = scmp.ge.s32.totalorder %s28, 1
    %s30 = scalar_select %p29, 0, %s28
    %s31 = sadd.s32 1, %s15
    %s32 = scalar_select %p29, %s31, %s15
    %p33 = scmp.ge.s32.totalorder %s32, 4
    %s34 = scalar_select %p33, 0, %s32
    %s35 = ssub.s32 %s15, %s34
    %s36 = ssub.s32 %s16, %s30
    %s37 = sor.u32 %s35, %s36
    %p38 = scmp.eq.s32.totalorder %s37, 0
    %s40 = sadd.s32 %s39, 1
    %s41 = scalar_select %p38, %s39, %s40
    %p44 = pneg %p38
    %p45 = scmp.eq.s32.totalorder %s8, 3
    %p46 = por %p44, %p45
    %p47 = scmp.ne.s32.totalorder %s39, %s42
    %p48 = scmp.eq.s32.totalorder %s8, 0
    %p49 = por %p47, %p48
    %p50 = scmp.ne.s32.totalorder %s39, %s42
    %p51 = scmp.eq.s32.totalorder %s13, 3
    %p52 = por %p50, %p51
    %p53 = scmp.ne.s32.totalorder %s42, %s43
    %p54 = scmp.eq.s32.totalorder %s13, 0
    %p55 = por %p53, %p54
    %p56 = scmp.ne.s32.totalorder %s42, %s43
    %p57 = scmp.eq.s32.totalorder %s14, 3
    %p58 = por %p56, %p57
    %p60 = scmp.ne.s32.totalorder %s43, %s59
    %p61 = scmp.eq.s32.totalorder %s14, 0
    %p62 = por %p60, %p61
    %s63 = ssub.s32 %s15, %s34
    %s64 = ssub.s32 %s17, %s26
    %s65 = sor.u32 %s63, %s64
    %p66 = scmp.eq.s32.totalorder %s65, 0
    %s68 = sadd.s32 %s67, 1
    %s69 = scalar_select %p66, %s67, %s68
    %p72 = pneg %p66
    %p73 = scmp.eq.s32.totalorder %s8, 3
    %p74 = por %p72, %p73
    %p75 = scmp.ne.s32.totalorder %s67, %s70
    %p76 = scmp.eq.s32.totalorder %s8, 0
    %p77 = por %p75, %p76
    %p78 = scmp.ne.s32.totalorder %s67, %s70
    %p79 = scmp.eq.s32.totalorder %s13, 3
    %p80 = por %p78, %p79
    %p81 = scmp.ne.s32.totalorder %s70, %s71
    %p82 = scmp.eq.s32.totalorder %s13, 0
    %p83 = por %p81, %p82
    %p84 = scmp.ne.s32.totalorder %s70, %s71
    %p85 = scmp.eq.s32.totalorder %s14, 3
    %p86 = por %p84, %p85
    %p88 = scmp.ne.s32.totalorder %s71, %s87
    %p89 = scmp.eq.s32.totalorder %s14, 0
    %p90 = por %p88, %p89
    %s91 = ssub.s32 %s15, %s34
    %s92 = ssub.s32 %s16, %s30
    %s93 = sor.u32 %s91, %s92
    %s94 = ssub.s32 %s17, %s26
    %s95 = sor.u32 %s93, %s94
    %p96 = scmp.eq.s32.totalorder %s95, 0
    %s98 = sadd.s32 %s97, 1
    %s99 = scalar_select %p96, %s97, %s98
    %p102 = pneg %p96
    %p103 = scmp.eq.s32.totalorder %s8, 3
    %p104 = por %p102, %p103
    %p105 = scmp.ne.s32.totalorder %s97, %s100
    %p106 = scmp.eq.s32.totalorder %s8, 0
    %p107 = por %p105, %p106
    %p108 = scmp.ne.s32.totalorder %s97, %s100
    %p109 = scmp.eq.s32.totalorder %s13, 3
    %p110 = por %p108, %p109
    %p111 = scmp.ne.s32.totalorder %s100, %s101
    %p112 = scmp.eq.s32.totalorder %s13, 0
    %p113 = por %p111, %p112
    %p114 = scmp.ne.s32.totalorder %s100, %s101
    %p115 = scmp.eq.s32.totalorder %s14, 3
    %p116 = por %p114, %p115
    %p118 = scmp.ne.s32.totalorder %s101, %s117
    %p119 = scmp.eq.s32.totalorder %s14, 0
    %p120 = por %p118, %p119
    %p121 = scmp.le.s32.totalorder 1, %s8
    %p122 = scmp.lt.s32.totalorder %s8, 5
    %p123 = pnand %p121, %p122
    %p124 = pneg %p123
    // Predicated region
    $region9: #{generator_forward.16} parent=5 // pred_check
      _
    $region10: #{generator_forward.16} parent=5 // pred_check_branch
      %126 = sbr.rel (%p123) target = $region12
    $region11: #{generator_forward.16} parent=5 // pred_region
      %s127 = ssub.s32 %s8, 1
    $region12: #{generator_forward.16} parent=5 // pred_fallthru
      _
    %p128 = scmp.lt.s32.totalorder %s8, 4
    // Predicated region
    $region13: #{generator_forward.16} parent=5 // pred_check
      %p129 = pneg %p128
    $region14: #{generator_forward.16} parent=5 // pred_check_branch
      %131 = sbr.rel (%p129) target = $region16
    $region15: #{generator_forward.16} parent=5 // pred_region
      // Predicated region
      $region17: #{generator_forward.16} parent=15 // pred_check
        %p132 = pneg %p49
      $region18: #{generator_forward.16} parent=15 // pred_check_branch
        %134 = sbr.rel (%p132) target = $region20
      $region19: #{generator_forward.16} parent=15 // pred_region
        %s135 = smul.u32 4, %s16
        %p136 = scmp.lt.s32.totalorder %s15, 3
        %s137 = scalar_select %p136, %s15, 3
        %p138 = scmp.lt.s32.totalorder %s135, 3
        %s139 = scalar_select %p138, %s135, 3
        %s140 = smul.addr %s139, 16
        %s141 = smul.addr %s137, 64
        %s142 = sadd.s32 %s140, %s141
        %s143 = smul.addr %s142, 4
        %s144 = scalar_lea.vmem %s0, %s143
        %s145 = smul.u32 4, %s16
      $region20: #{generator_forward.16} parent=15 // pred_fallthru
        _
      // Predicated region
      $region21: #{generator_forward.16} parent=15 // pred_check
        %p146 = pneg %p77
      $region22: #{generator_forward.16} parent=15 // pred_check_branch
        %148 = sbr.rel (%p146) target = $region24
      $region23: #{generator_forward.16} parent=15 // pred_region
        %s149 = smul.u32 2, %s17
        %p150 = scmp.lt.s32.totalorder %s15, 3
        %s151 = scalar_select %p150, %s15, 3
        %p152 = scmp.lt.s32.totalorder %s149, 1
        %s153 = scalar_select %p152, %s149, 1
        %s154 = smul.addr %s151, 512
        %s155 = sadd.s32 %s153, %s154
        %s156 = smul.addr %s155, 4
        %s157 = scalar_lea.vmem %s1, %s156
        %s158 = smul.u32 2, %s17
      $region24: #{generator_forward.16} parent=15 // pred_fallthru
        _
    $region16: #{generator_forward.16} parent=5 // pred_fallthru
      _
    %p159 = scmp.le.s32.totalorder 1, %s8
    %p160 = scmp.lt.s32.totalorder %s8, 5
    %p161 = pnand %p159, %p160
    %p162 = pneg %p161
    // Predicated region
    $region25: #{generator_forward.16} parent=5 // pred_check
      _
    $region26: #{generator_forward.16} parent=5 // pred_check_branch
      %164 = sbr.rel (%p161) target = $region28
    $region27: #{generator_forward.16} parent=5 // pred_region
      %s165 = ssub.s32 %s8, 1
      %s166 = smul.u32 4, %s19
      %p167 = scmp.lt.s32.totalorder %s18, 3
      %s168 = scalar_select %p167, %s18, 3
      %p169 = scmp.lt.s32.totalorder %s166, 3
      %s170 = scalar_select %p169, %s166, 3
      %s171 = smul.addr %s170, 16
      %s172 = smul.addr %s168, 64
      %s173 = sadd.s32 %s171, %s172
      %s174 = smul.addr %s173, 4
      %s175 = scalar_lea.vmem %s0, %s174
      %p176 = pneg %p55
      %p177 = pneg %p52
      %s178 = smul.u32 2, %s20
      %p179 = scmp.lt.s32.totalorder %s18, 3
      %s180 = scalar_select %p179, %s18, 3
      %p181 = scmp.lt.s32.totalorder %s178, 1
      %s182 = scalar_select %p181, %s178, 1
      %s183 = smul.addr %s180, 512
      %s184 = sadd.s32 %s182, %s183
      %s185 = smul.addr %s184, 4
      %s186 = scalar_lea.vmem %s1, %s185
      %p187 = pneg %p83
      %p188 = pneg %p80
      %p189 = pneg %p113
      %p190 = pneg %p110
      %s191 = smul.u32 4, %s19
      %s192 = smul.u32 2, %s20
      %p193 = scmp.lt.s32.totalorder %s18, 3
      %s194 = scalar_select %p193, %s18, 3
      %p195 = scmp.lt.s32.totalorder %s191, 3
      %s196 = scalar_select %p195, %s191, 3
      %p197 = scmp.lt.s32.totalorder %s192, 1
      %s198 = scalar_select %p197, %s192, 1
      %s199 = smul.addr %s196, 2
      %s200 = sadd.s32 %s198, %s199
      %s201 = smul.addr %s194, 8
      %s202 = sadd.s32 %s200, %s201
      %s203 = smul.addr %s202, 8
      %s204 = scalar_lea.vmem %s2, %s203
      %s205 = smul.u32 4, %s19
      %p206 = scmp.lt.s32.totalorder %s18, 3
      %s207 = scalar_select %p206, %s18, 3
      %p208 = scmp.lt.s32.totalorder %s205, 3
      %s209 = scalar_select %p208, %s205, 3
      %s210 = smul.addr %s209, 16
      %s211 = smul.addr %s207, 64
      %s212 = sadd.s32 %s210, %s211
      %s213 = smul.addr %s212, 4
      %s214 = scalar_lea.vmem %s0, %s213
      %s215 = smul.u32 4, %s19
      %s216 = smul.u32 2, %s20
      %p217 = scmp.lt.s32.totalorder %s18, 3
      %s218 = scalar_select %p217, %s18, 3
      %p219 = scmp.lt.s32.totalorder %s216, 1
      %s220 = scalar_select %p219, %s216, 1
      %s221 = smul.addr %s218, 512
      %s222 = sadd.s32 %s220, %s221
      %s223 = smul.addr %s222, 4
      %s224 = scalar_lea.vmem %s1, %s223
      %s225 = smul.u32 2, %s20
      %s226 = smul.u32 4, %s19
      %s227 = smul.u32 2, %s20
      %p228 = scmp.lt.s32.totalorder %s18, 3
      %s229 = scalar_select %p228, %s18, 3
      %p230 = scmp.lt.s32.totalorder %s226, 3
      %s231 = scalar_select %p230, %s226, 3
      %p232 = scmp.lt.s32.totalorder %s227, 1
      %s233 = scalar_select %p232, %s227, 1
      %s234 = smul.addr %s231, 2
      %s235 = sadd.s32 %s233, %s234
      %s236 = smul.addr %s229, 8
      %s237 = sadd.s32 %s235, %s236
      %s238 = smul.addr %s237, 8
      %s239 = scalar_lea.vmem %s2, %s238
      %s240 = smul.u32 4, %s19
      %s241 = smul.u32 2, %s20
      %v242 = vld [vmem:[%s214] sm:$0xff]
      %v243 = vld [vmem:[%s214 + $0x8] sm:$0xff]
      %v244 = vld [vmem:[%s214 + $0x10] sm:$0xff]
      %v245 = vld [vmem:[%s214 + $0x18] sm:$0xff]
      %v246 = vld [vmem:[%s214 + $0x20] sm:$0xff]
      %v247 = vld [vmem:[%s214 + $0x28] sm:$0xff]
      %v248 = vld [vmem:[%s214 + $0x30] sm:$0xff]
      %v249 = vld [vmem:[%s214 + $0x38] sm:$0xff]
      %v250 = vld [vmem:[%s214 + $0x40] sm:$0xff]
      %v251 = vld [vmem:[%s214 + $0x48] sm:$0xff]
      %v252 = vld [vmem:[%s214 + $0x50] sm:$0xff]
      %v253 = vld [vmem:[%s214 + $0x58] sm:$0xff]
      %v254 = vld [vmem:[%s214 + $0x60] sm:$0xff]
      %v255 = vld [vmem:[%s214 + $0x68] sm:$0xff]
      %v256 = vld [vmem:[%s214 + $0x70] sm:$0xff]
      %v257 = vld [vmem:[%s214 + $0x78] sm:$0xff]
      %v258 = vld [vmem:[%s214 + $0x80] sm:$0xff]
      %v259 = vld [vmem:[%s214 + $0x88] sm:$0xff]
      %v260 = vld [vmem:[%s214 + $0x90] sm:$0xff]
      %v261 = vld [vmem:[%s214 + $0x98] sm:$0xff]
      %v262 = vld [vmem:[%s214 + $0xa0] sm:$0xff]
      %v263 = vld [vmem:[%s214 + $0xa8] sm:$0xff]
      %v264 = vld [vmem:[%s214 + $0xb0] sm:$0xff]
      %v265 = vld [vmem:[%s214 + $0xb8] sm:$0xff]
      %v266 = vld [vmem:[%s214 + $0xc0] sm:$0xff]
      %v267 = vld [vmem:[%s214 + $0xc8] sm:$0xff]
      %v268 = vld [vmem:[%s214 + $0xd0] sm:$0xff]
      %v269 = vld [vmem:[%s214 + $0xd8] sm:$0xff]
      %v270 = vld [vmem:[%s214 + $0xe0] sm:$0xff]
      %v271 = vld [vmem:[%s214 + $0xe8] sm:$0xff]
      %v272 = vld [vmem:[%s214 + $0xf0] sm:$0xff]
      %v273 = vld [vmem:[%s214 + $0xf8] sm:$0xff]
      %v274 = vld [vmem:[%s224] sm:$0xff]
      %v275 = vld [vmem:[%s224 + $0x8] sm:$0xff]
      %v276 = vld [vmem:[%s224 + $0x10] sm:$0xff]
      %v277 = vld [vmem:[%s224 + $0x18] sm:$0xff]
      %v278 = vld [vmem:[%s224 + $0x20] sm:$0xff]
      %v279 = vld [vmem:[%s224 + $0x28] sm:$0xff]
      %v280 = vld [vmem:[%s224 + $0x30] sm:$0xff]
      %v281 = vld [vmem:[%s224 + $0x38] sm:$0xff]
      %v282 = vld [vmem:[%s224 + $0x40] sm:$0xff]
      %v283 = vld [vmem:[%s224 + $0x48] sm:$0xff]
      %v284 = vld [vmem:[%s224 + $0x50] sm:$0xff]
      %v285 = vld [vmem:[%s224 + $0x58] sm:$0xff]
      %v286 = vld [vmem:[%s224 + $0x60] sm:$0xff]
      %v287 = vld [vmem:[%s224 + $0x68] sm:$0xff]
      %v288 = vld [vmem:[%s224 + $0x70] sm:$0xff]
      %v289 = vld [vmem:[%s224 + $0x78] sm:$0xff]
      %v290 = vld [vmem:[%s224 + $0x80] sm:$0xff]
      %v291 = vld [vmem:[%s224 + $0x88] sm:$0xff]
      %v292 = vld [vmem:[%s224 + $0x90] sm:$0xff]
      %v293 = vld [vmem:[%s224 + $0x98] sm:$0xff]
      %v294 = vld [vmem:[%s224 + $0xa0] sm:$0xff]
      %v295 = vld [vmem:[%s224 + $0xa8] sm:$0xff]
      %v296 = vld [vmem:[%s224 + $0xb0] sm:$0xff]
      %v297 = vld [vmem:[%s224 + $0xb8] sm:$0xff]
      %v298 = vld [vmem:[%s224 + $0xc0] sm:$0xff]
      %v299 = vld [vmem:[%s224 + $0xc8] sm:$0xff]
      %v300 = vld [vmem:[%s224 + $0xd0] sm:$0xff]
      %v301 = vld [vmem:[%s224 + $0xd8] sm:$0xff]
      %v302 = vld [vmem:[%s224 + $0xe0] sm:$0xff]
      %v303 = vld [vmem:[%s224 + $0xe8] sm:$0xff]
      %v304 = vld [vmem:[%s224 + $0xf0] sm:$0xff]
      %v305 = vld [vmem:[%s224 + $0xf8] sm:$0xff]
      %v306 = vld [vmem:[%s224 + $0x100] sm:$0xff]
      %v307 = vld [vmem:[%s224 + $0x108] sm:$0xff]
      %v308 = vld [vmem:[%s224 + $0x110] sm:$0xff]
      %v309 = vld [vmem:[%s224 + $0x118] sm:$0xff]
      %v310 = vld [vmem:[%s224 + $0x120] sm:$0xff]
      %v311 = vld [vmem:[%s224 + $0x128] sm:$0xff]
      %v312 = vld [vmem:[%s224 + $0x130] sm:$0xff]
      %v313 = vld [vmem:[%s224 + $0x138] sm:$0xff]
      %v314 = vld [vmem:[%s224 + $0x140] sm:$0xff]
      %v315 = vld [vmem:[%s224 + $0x148] sm:$0xff]
      %v316 = vld [vmem:[%s224 + $0x150] sm:$0xff]
      %v317 = vld [vmem:[%s224 + $0x158] sm:$0xff]
      %v318 = vld [vmem:[%s224 + $0x160] sm:$0xff]
      %v319 = vld [vmem:[%s224 + $0x168] sm:$0xff]
      %v320 = vld [vmem:[%s224 + $0x170] sm:$0xff]
      %v321 = vld [vmem:[%s224 + $0x178] sm:$0xff]
      %v322 = vld [vmem:[%s224 + $0x180] sm:$0xff]
      %v323 = vld [vmem:[%s224 + $0x188] sm:$0xff]
      %v324 = vld [vmem:[%s224 + $0x190] sm:$0xff]
      %v325 = vld [vmem:[%s224 + $0x198] sm:$0xff]
      %v326 = vld [vmem:[%s224 + $0x1a0] sm:$0xff]
      %v327 = vld [vmem:[%s224 + $0x1a8] sm:$0xff]
      %v328 = vld [vmem:[%s224 + $0x1b0] sm:$0xff]
      %v329 = vld [vmem:[%s224 + $0x1b8] sm:$0xff]
      %v330 = vld [vmem:[%s224 + $0x1c0] sm:$0xff]
      %v331 = vld [vmem:[%s224 + $0x1c8] sm:$0xff]
      %v332 = vld [vmem:[%s224 + $0x1d0] sm:$0xff]
      %v333 = vld [vmem:[%s224 + $0x1d8] sm:$0xff]
      %v334 = vld [vmem:[%s224 + $0x1e0] sm:$0xff]
      %v335 = vld [vmem:[%s224 + $0x1e8] sm:$0xff]
      %v336 = vld [vmem:[%s224 + $0x1f0] sm:$0xff]
      %v337 = vld [vmem:[%s224 + $0x1f8] sm:$0xff]
      %v338 = vld [vmem:[%s224 + $0x200] sm:$0xff]
      %v339 = vld [vmem:[%s224 + $0x208] sm:$0xff]
      %v340 = vld [vmem:[%s224 + $0x210] sm:$0xff]
      %v341 = vld [vmem:[%s224 + $0x218] sm:$0xff]
      %v342 = vld [vmem:[%s224 + $0x220] sm:$0xff]
      %v343 = vld [vmem:[%s224 + $0x228] sm:$0xff]
      %v344 = vld [vmem:[%s224 + $0x230] sm:$0xff]
      %v345 = vld [vmem:[%s224 + $0x238] sm:$0xff]
      %v346 = vld [vmem:[%s224 + $0x240] sm:$0xff]
      %v347 = vld [vmem:[%s224 + $0x248] sm:$0xff]
      %v348 = vld [vmem:[%s224 + $0x250] sm:$0xff]
      %v349 = vld [vmem:[%s224 + $0x258] sm:$0xff]
      %v350 = vld [vmem:[%s224 + $0x260] sm:$0xff]
      %v351 = vld [vmem:[%s224 + $0x268] sm:$0xff]
      %v352 = vld [vmem:[%s224 + $0x270] sm:$0xff]
      %v353 = vld [vmem:[%s224 + $0x278] sm:$0xff]
      %v354 = vld [vmem:[%s224 + $0x280] sm:$0xff]
      %v355 = vld [vmem:[%s224 + $0x288] sm:$0xff]
      %v356 = vld [vmem:[%s224 + $0x290] sm:$0xff]
      %v357 = vld [vmem:[%s224 + $0x298] sm:$0xff]
      %v358 = vld [vmem:[%s224 + $0x2a0] sm:$0xff]
      %v359 = vld [vmem:[%s224 + $0x2a8] sm:$0xff]
      %v360 = vld [vmem:[%s224 + $0x2b0] sm:$0xff]
      %v361 = vld [vmem:[%s224 + $0x2b8] sm:$0xff]
      %v362 = vld [vmem:[%s224 + $0x2c0] sm:$0xff]
      %v363 = vld [vmem:[%s224 + $0x2c8] sm:$0xff]
      %v364 = vld [vmem:[%s224 + $0x2d0] sm:$0xff]
      %v365 = vld [vmem:[%s224 + $0x2d8] sm:$0xff]
      %v366 = vld [vmem:[%s224 + $0x2e0] sm:$0xff]
      %v367 = vld [vmem:[%s224 + $0x2e8] sm:$0xff]
      %v368 = vld [vmem:[%s224 + $0x2f0] sm:$0xff]
      %v369 = vld [vmem:[%s224 + $0x2f8] sm:$0xff]
      %v370 = vld [vmem:[%s224 + $0x300] sm:$0xff]
      %v371 = vld [vmem:[%s224 + $0x308] sm:$0xff]
      %v372 = vld [vmem:[%s224 + $0x310] sm:$0xff]
      %v373 = vld [vmem:[%s224 + $0x318] sm:$0xff]
      %v374 = vld [vmem:[%s224 + $0x320] sm:$0xff]
      %v375 = vld [vmem:[%s224 + $0x328] sm:$0xff]
      %v376 = vld [vmem:[%s224 + $0x330] sm:$0xff]
      %v377 = vld [vmem:[%s224 + $0x338] sm:$0xff]
      %v378 = vld [vmem:[%s224 + $0x340] sm:$0xff]
      %v379 = vld [vmem:[%s224 + $0x348] sm:$0xff]
      %v380 = vld [vmem:[%s224 + $0x350] sm:$0xff]
      %v381 = vld [vmem:[%s224 + $0x358] sm:$0xff]
      %v382 = vld [vmem:[%s224 + $0x360] sm:$0xff]
      %v383 = vld [vmem:[%s224 + $0x368] sm:$0xff]
      %v384 = vld [vmem:[%s224 + $0x370] sm:$0xff]
      %v385 = vld [vmem:[%s224 + $0x378] sm:$0xff]
      %v386 = vld [vmem:[%s224 + $0x380] sm:$0xff]
      %v387 = vld [vmem:[%s224 + $0x388] sm:$0xff]
      %v388 = vld [vmem:[%s224 + $0x390] sm:$0xff]
      %v389 = vld [vmem:[%s224 + $0x398] sm:$0xff]
      %v390 = vld [vmem:[%s224 + $0x3a0] sm:$0xff]
      %v391 = vld [vmem:[%s224 + $0x3a8] sm:$0xff]
      %v392 = vld [vmem:[%s224 + $0x3b0] sm:$0xff]
      %v393 = vld [vmem:[%s224 + $0x3b8] sm:$0xff]
      %v394 = vld [vmem:[%s224 + $0x3c0] sm:$0xff]
      %v395 = vld [vmem:[%s224 + $0x3c8] sm:$0xff]
      %v396 = vld [vmem:[%s224 + $0x3d0] sm:$0xff]
      %v397 = vld [vmem:[%s224 + $0x3d8] sm:$0xff]
      %v398 = vld [vmem:[%s224 + $0x3e0] sm:$0xff]
      %v399 = vld [vmem:[%s224 + $0x3e8] sm:$0xff]
      %v400 = vld [vmem:[%s224 + $0x3f0] sm:$0xff]
      %v401 = vld [vmem:[%s224 + $0x3f8] sm:$0xff]
      %v402 = vld [vmem:[%s224 + $0x400] sm:$0xff]
      %v403 = vld [vmem:[%s224 + $0x408] sm:$0xff]
      %v404 = vld [vmem:[%s224 + $0x410] sm:$0xff]
      %v405 = vld [vmem:[%s224 + $0x418] sm:$0xff]
      %v406 = vld [vmem:[%s224 + $0x420] sm:$0xff]
      %v407 = vld [vmem:[%s224 + $0x428] sm:$0xff]
      %v408 = vld [vmem:[%s224 + $0x430] sm:$0xff]
      %v409 = vld [vmem:[%s224 + $0x438] sm:$0xff]
      %v410 = vld [vmem:[%s224 + $0x440] sm:$0xff]
      %v411 = vld [vmem:[%s224 + $0x448] sm:$0xff]
      %v412 = vld [vmem:[%s224 + $0x450] sm:$0xff]
      %v413 = vld [vmem:[%s224 + $0x458] sm:$0xff]
      %v414 = vld [vmem:[%s224 + $0x460] sm:$0xff]
      %v415 = vld [vmem:[%s224 + $0x468] sm:$0xff]
      %v416 = vld [vmem:[%s224 + $0x470] sm:$0xff]
      %v417 = vld [vmem:[%s224 + $0x478] sm:$0xff]
      %v418 = vld [vmem:[%s224 + $0x480] sm:$0xff]
      %v419 = vld [vmem:[%s224 + $0x488] sm:$0xff]
      %v420 = vld [vmem:[%s224 + $0x490] sm:$0xff]
      %v421 = vld [vmem:[%s224 + $0x498] sm:$0xff]
      %v422 = vld [vmem:[%s224 + $0x4a0] sm:$0xff]
      %v423 = vld [vmem:[%s224 + $0x4a8] sm:$0xff]
      %v424 = vld [vmem:[%s224 + $0x4b0] sm:$0xff]
      %v425 = vld [vmem:[%s224 + $0x4b8] sm:$0xff]
      %v426 = vld [vmem:[%s224 + $0x4c0] sm:$0xff]
      %v427 = vld [vmem:[%s224 + $0x4c8] sm:$0xff]
      %v428 = vld [vmem:[%s224 + $0x4d0] sm:$0xff]
      %v429 = vld [vmem:[%s224 + $0x4d8] sm:$0xff]
      %v430 = vld [vmem:[%s224 + $0x4e0] sm:$0xff]
      %v431 = vld [vmem:[%s224 + $0x4e8] sm:$0xff]
      %v432 = vld [vmem:[%s224 + $0x4f0] sm:$0xff]
      %v433 = vld [vmem:[%s224 + $0x4f8] sm:$0xff]
      %v434 = vld [vmem:[%s224 + $0x500] sm:$0xff]
      %v435 = vld [vmem:[%s224 + $0x508] sm:$0xff]
      %v436 = vld [vmem:[%s224 + $0x510] sm:$0xff]
      %v437 = vld [vmem:[%s224 + $0x518] sm:$0xff]
      %v438 = vld [vmem:[%s224 + $0x520] sm:$0xff]
      %v439 = vld [vmem:[%s224 + $0x528] sm:$0xff]
      %v440 = vld [vmem:[%s224 + $0x530] sm:$0xff]
      %v441 = vld [vmem:[%s224 + $0x538] sm:$0xff]
      %v442 = vld [vmem:[%s224 + $0x540] sm:$0xff]
      %v443 = vld [vmem:[%s224 + $0x548] sm:$0xff]
      %v444 = vld [vmem:[%s224 + $0x550] sm:$0xff]
      %v445 = vld [vmem:[%s224 + $0x558] sm:$0xff]
      %v446 = vld [vmem:[%s224 + $0x560] sm:$0xff]
      %v447 = vld [vmem:[%s224 + $0x568] sm:$0xff]
      %v448 = vld [vmem:[%s224 + $0x570] sm:$0xff]
      %v449 = vld [vmem:[%s224 + $0x578] sm:$0xff]
      %v450 = vld [vmem:[%s224 + $0x580] sm:$0xff]
      %v451 = vld [vmem:[%s224 + $0x588] sm:$0xff]
      %v452 = vld [vmem:[%s224 + $0x590] sm:$0xff]
      %v453 = vld [vmem:[%s224 + $0x598] sm:$0xff]
      %v454 = vld [vmem:[%s224 + $0x5a0] sm:$0xff]
      %v455 = vld [vmem:[%s224 + $0x5a8] sm:$0xff]
      %v456 = vld [vmem:[%s224 + $0x5b0] sm:$0xff]
      %v457 = vld [vmem:[%s224 + $0x5b8] sm:$0xff]
      %v458 = vld [vmem:[%s224 + $0x5c0] sm:$0xff]
      %v459 = vld [vmem:[%s224 + $0x5c8] sm:$0xff]
      %v460 = vld [vmem:[%s224 + $0x5d0] sm:$0xff]
      %v461 = vld [vmem:[%s224 + $0x5d8] sm:$0xff]
      %v462 = vld [vmem:[%s224 + $0x5e0] sm:$0xff]
      %v463 = vld [vmem:[%s224 + $0x5e8] sm:$0xff]
      %v464 = vld [vmem:[%s224 + $0x5f0] sm:$0xff]
      %v465 = vld [vmem:[%s224 + $0x5f8] sm:$0xff]
      %v466 = vld [vmem:[%s224 + $0x600] sm:$0xff]
      %v467 = vld [vmem:[%s224 + $0x608] sm:$0xff]
      %v468 = vld [vmem:[%s224 + $0x610] sm:$0xff]
      %v469 = vld [vmem:[%s224 + $0x618] sm:$0xff]
      %v470 = vld [vmem:[%s224 + $0x620] sm:$0xff]
      %v471 = vld [vmem:[%s224 + $0x628] sm:$0xff]
      %v472 = vld [vmem:[%s224 + $0x630] sm:$0xff]
      %v473 = vld [vmem:[%s224 + $0x638] sm:$0xff]
      %v474 = vld [vmem:[%s224 + $0x640] sm:$0xff]
      %v475 = vld [vmem:[%s224 + $0x648] sm:$0xff]
      %v476 = vld [vmem:[%s224 + $0x650] sm:$0xff]
      %v477 = vld [vmem:[%s224 + $0x658] sm:$0xff]
      %v478 = vld [vmem:[%s224 + $0x660] sm:$0xff]
      %v479 = vld [vmem:[%s224 + $0x668] sm:$0xff]
      %v480 = vld [vmem:[%s224 + $0x670] sm:$0xff]
      %v481 = vld [vmem:[%s224 + $0x678] sm:$0xff]
      %v482 = vld [vmem:[%s224 + $0x680] sm:$0xff]
      %v483 = vld [vmem:[%s224 + $0x688] sm:$0xff]
      %v484 = vld [vmem:[%s224 + $0x690] sm:$0xff]
      %v485 = vld [vmem:[%s224 + $0x698] sm:$0xff]
      %v486 = vld [vmem:[%s224 + $0x6a0] sm:$0xff]
      %v487 = vld [vmem:[%s224 + $0x6a8] sm:$0xff]
      %v488 = vld [vmem:[%s224 + $0x6b0] sm:$0xff]
      %v489 = vld [vmem:[%s224 + $0x6b8] sm:$0xff]
      %v490 = vld [vmem:[%s224 + $0x6c0] sm:$0xff]
      %v491 = vld [vmem:[%s224 + $0x6c8] sm:$0xff]
      %v492 = vld [vmem:[%s224 + $0x6d0] sm:$0xff]
      %v493 = vld [vmem:[%s224 + $0x6d8] sm:$0xff]
      %v494 = vld [vmem:[%s224 + $0x6e0] sm:$0xff]
      %v495 = vld [vmem:[%s224 + $0x6e8] sm:$0xff]
      %v496 = vld [vmem:[%s224 + $0x6f0] sm:$0xff]
      %v497 = vld [vmem:[%s224 + $0x6f8] sm:$0xff]
      %v498 = vld [vmem:[%s224 + $0x700] sm:$0xff]
      %v499 = vld [vmem:[%s224 + $0x708] sm:$0xff]
      %v500 = vld [vmem:[%s224 + $0x710] sm:$0xff]
      %v501 = vld [vmem:[%s224 + $0x718] sm:$0xff]
      %v502 = vld [vmem:[%s224 + $0x720] sm:$0xff]
      %v503 = vld [vmem:[%s224 + $0x728] sm:$0xff]
      %v504 = vld [vmem:[%s224 + $0x730] sm:$0xff]
      %v505 = vld [vmem:[%s224 + $0x738] sm:$0xff]
      %v506 = vld [vmem:[%s224 + $0x740] sm:$0xff]
      %v507 = vld [vmem:[%s224 + $0x748] sm:$0xff]
      %v508 = vld [vmem:[%s224 + $0x750] sm:$0xff]
      %v509 = vld [vmem:[%s224 + $0x758] sm:$0xff]
      %v510 = vld [vmem:[%s224 + $0x760] sm:$0xff]
      %v511 = vld [vmem:[%s224 + $0x768] sm:$0xff]
      %v512 = vld [vmem:[%s224 + $0x770] sm:$0xff]
      %v513 = vld [vmem:[%s224 + $0x778] sm:$0xff]
      %v514 = vld [vmem:[%s224 + $0x780] sm:$0xff]
      %v515 = vld [vmem:[%s224 + $0x788] sm:$0xff]
      %v516 = vld [vmem:[%s224 + $0x790] sm:$0xff]
      %v517 = vld [vmem:[%s224 + $0x798] sm:$0xff]
      %v518 = vld [vmem:[%s224 + $0x7a0] sm:$0xff]
      %v519 = vld [vmem:[%s224 + $0x7a8] sm:$0xff]
      %v520 = vld [vmem:[%s224 + $0x7b0] sm:$0xff]
      %v521 = vld [vmem:[%s224 + $0x7b8] sm:$0xff]
      %v522 = vld [vmem:[%s224 + $0x7c0] sm:$0xff]
      %v523 = vld [vmem:[%s224 + $0x7c8] sm:$0xff]
      %v524 = vld [vmem:[%s224 + $0x7d0] sm:$0xff]
      %v525 = vld [vmem:[%s224 + $0x7d8] sm:$0xff]
      %v526 = vld [vmem:[%s224 + $0x7e0] sm:$0xff]
      %v527 = vld [vmem:[%s224 + $0x7e8] sm:$0xff]
      %v528 = vld [vmem:[%s224 + $0x7f0] sm:$0xff]
      %v529 = vld [vmem:[%s224 + $0x7f8] sm:$0xff]
      %v562 = vunpack.c.l.b16 %v242
      %v563 = vunpack.c.h.b16 %v242
      %v564 = vunpack.c.l.b16 %v243
      %v565 = vunpack.c.h.b16 %v243
      %v566 = vunpack.c.l.b16 %v244
      %v567 = vunpack.c.h.b16 %v244
      %v568 = vunpack.c.l.b16 %v245
      %v569 = vunpack.c.h.b16 %v245
      %v570 = vunpack.c.l.b16 %v246
      %v571 = vunpack.c.h.b16 %v246
      %v572 = vunpack.c.l.b16 %v247
      %v573 = vunpack.c.h.b16 %v247
      %v574 = vunpack.c.l.b16 %v248
      %v575 = vunpack.c.h.b16 %v248
      %v576 = vunpack.c.l.b16 %v249
      %v577 = vunpack.c.h.b16 %v249
      %v578 = vunpack.c.l.b16 %v250
      %v579 = vunpack.c.h.b16 %v250
      %v580 = vunpack.c.l.b16 %v251
      %v581 = vunpack.c.h.b16 %v251
      %v582 = vunpack.c.l.b16 %v252
      %v583 = vunpack.c.h.b16 %v252
      %v584 = vunpack.c.l.b16 %v253
      %v585 = vunpack.c.h.b16 %v253
      %v586 = vunpack.c.l.b16 %v254
      %v587 = vunpack.c.h.b16 %v254
      %v588 = vunpack.c.l.b16 %v255
      %v589 = vunpack.c.h.b16 %v255
      %v590 = vunpack.c.l.b16 %v256
      %v591 = vunpack.c.h.b16 %v256
      %v592 = vunpack.c.l.b16 %v257
      %v593 = vunpack.c.h.b16 %v257
      %v594 = vunpack.c.l.b16 %v258
      %v595 = vunpack.c.h.b16 %v258
      %v596 = vunpack.c.l.b16 %v259
      %v597 = vunpack.c.h.b16 %v259
      %v598 = vunpack.c.l.b16 %v260
      %v599 = vunpack.c.h.b16 %v260
      %v600 = vunpack.c.l.b16 %v261
      %v601 = vunpack.c.h.b16 %v261
      %v602 = vunpack.c.l.b16 %v262
      %v603 = vunpack.c.h.b16 %v262
      %v604 = vunpack.c.l.b16 %v263
      %v605 = vunpack.c.h.b16 %v263
      %v606 = vunpack.c.l.b16 %v264
      %v607 = vunpack.c.h.b16 %v264
      %v608 = vunpack.c.l.b16 %v265
      %v609 = vunpack.c.h.b16 %v265
      %v610 = vunpack.c.l.b16 %v266
      %v611 = vunpack.c.h.b16 %v266
      %v612 = vunpack.c.l.b16 %v267
      %v613 = vunpack.c.h.b16 %v267
      %v614 = vunpack.c.l.b16 %v268
      %v615 = vunpack.c.h.b16 %v268
      %v616 = vunpack.c.l.b16 %v269
      %v617 = vunpack.c.h.b16 %v269
      %v618 = vunpack.c.l.b16 %v270
      %v619 = vunpack.c.h.b16 %v270
      %v620 = vunpack.c.l.b16 %v271
      %v621 = vunpack.c.h.b16 %v271
      %v622 = vunpack.c.l.b16 %v272
      %v623 = vunpack.c.h.b16 %v272
      %v624 = vunpack.c.l.b16 %v273
      %v625 = vunpack.c.h.b16 %v273
      %v626 = vpack.c.b16 %v578, %v562
      %v627 = vpack.c.b16 %v579, %v563
      %v628 = vpack.c.b16 %v580, %v564
      %v629 = vpack.c.b16 %v581, %v565
      %v630 = vpack.c.b16 %v582, %v566
      %v631 = vpack.c.b16 %v583, %v567
      %v632 = vpack.c.b16 %v584, %v568
      %v633 = vpack.c.b16 %v585, %v569
      %v634 = vpack.c.b16 %v586, %v570
      %v635 = vpack.c.b16 %v587, %v571
      %v636 = vpack.c.b16 %v588, %v572
      %v637 = vpack.c.b16 %v589, %v573
      %v638 = vpack.c.b16 %v590, %v574
      %v639 = vpack.c.b16 %v591, %v575
      %v640 = vpack.c.b16 %v592, %v576
      %v641 = vpack.c.b16 %v593, %v577
      %v642 = vpack.c.b16 %v610, %v594
      %v643 = vpack.c.b16 %v611, %v595
      %v644 = vpack.c.b16 %v612, %v596
      %v645 = vpack.c.b16 %v613, %v597
      %v646 = vpack.c.b16 %v614, %v598
      %v647 = vpack.c.b16 %v615, %v599
      %v648 = vpack.c.b16 %v616, %v600
      %v649 = vpack.c.b16 %v617, %v601
      %v650 = vpack.c.b16 %v618, %v602
      %v651 = vpack.c.b16 %v619, %v603
      %v652 = vpack.c.b16 %v620, %v604
      %v653 = vpack.c.b16 %v621, %v605
      %v654 = vpack.c.b16 %v622, %v606
      %v655 = vpack.c.b16 %v623, %v607
      %v656 = vpack.c.b16 %v624, %v608
      %v657 = vpack.c.b16 %v625, %v609
      %v946 = vunpack.c.l.b16 %v274
      %v947 = vunpack.c.h.b16 %v274
      %v948 = vunpack.c.l.b16 %v275
      %v949 = vunpack.c.h.b16 %v275
      %v950 = vunpack.c.l.b16 %v276
      %v951 = vunpack.c.h.b16 %v276
      %v952 = vunpack.c.l.b16 %v277
      %v953 = vunpack.c.h.b16 %v277
      %v954 = vunpack.c.l.b16 %v278
      %v955 = vunpack.c.h.b16 %v278
      %v956 = vunpack.c.l.b16 %v279
      %v957 = vunpack.c.h.b16 %v279
      %v958 = vunpack.c.l.b16 %v280
      %v959 = vunpack.c.h.b16 %v280
      %v960 = vunpack.c.l.b16 %v281
      %v961 = vunpack.c.h.b16 %v281
      %v962 = vunpack.c.l.b16 %v282
      %v963 = vunpack.c.h.b16 %v282
      %v964 = vunpack.c.l.b16 %v283
      %v965 = vunpack.c.h.b16 %v283
      %v966 = vunpack.c.l.b16 %v284
      %v967 = vunpack.c.h.b16 %v284
      %v968 = vunpack.c.l.b16 %v285
      %v969 = vunpack.c.h.b16 %v285
      %v970 = vunpack.c.l.b16 %v286
      %v971 = vunpack.c.h.b16 %v286
      %v972 = vunpack.c.l.b16 %v287
      %v973 = vunpack.c.h.b16 %v287
      %v974 = vunpack.c.l.b16 %v288
      %v975 = vunpack.c.h.b16 %v288
      %v976 = vunpack.c.l.b16 %v289
      %v977 = vunpack.c.h.b16 %v289
      %v978 = vunpack.c.l.b16 %v290
      %v979 = vunpack.c.h.b16 %v290
      %v980 = vunpack.c.l.b16 %v291
      %v981 = vunpack.c.h.b16 %v291
      %v982 = vunpack.c.l.b16 %v292
      %v983 = vunpack.c.h.b16 %v292
      %v984 = vunpack.c.l.b16 %v293
      %v985 = vunpack.c.h.b16 %v293
      %v986 = vunpack.c.l.b16 %v294
      %v987 = vunpack.c.h.b16 %v294
      %v988 = vunpack.c.l.b16 %v295
      %v989 = vunpack.c.h.b16 %v295
      %v990 = vunpack.c.l.b16 %v296
      %v991 = vunpack.c.h.b16 %v296
      %v992 = vunpack.c.l.b16 %v297
      %v993 = vunpack.c.h.b16 %v297
      %v994 = vunpack.c.l.b16 %v298
      %v995 = vunpack.c.h.b16 %v298
      %v996 = vunpack.c.l.b16 %v299
      %v997 = vunpack.c.h.b16 %v299
      %v998 = vunpack.c.l.b16 %v300
      %v999 = vunpack.c.h.b16 %v300
      %v1000 = vunpack.c.l.b16 %v301
      %v1001 = vunpack.c.h.b16 %v301
      %v1002 = vunpack.c.l.b16 %v302
      %v1003 = vunpack.c.h.b16 %v302
      %v1004 = vunpack.c.l.b16 %v303
      %v1005 = vunpack.c.h.b16 %v303
      %v1006 = vunpack.c.l.b16 %v304
      %v1007 = vunpack.c.h.b16 %v304
      %v1008 = vunpack.c.l.b16 %v305
      %v1009 = vunpack.c.h.b16 %v305
      %v1010 = vunpack.c.l.b16 %v306
      %v1011 = vunpack.c.h.b16 %v306
      %v1012 = vunpack.c.l.b16 %v307
      %v1013 = vunpack.c.h.b16 %v307
      %v1014 = vunpack.c.l.b16 %v308
      %v1015 = vunpack.c.h.b16 %v308
      %v1016 = vunpack.c.l.b16 %v309
      %v1017 = vunpack.c.h.b16 %v309
      %v1018 = vunpack.c.l.b16 %v310
      %v1019 = vunpack.c.h.b16 %v310
      %v1020 = vunpack.c.l.b16 %v311
      %v1021 = vunpack.c.h.b16 %v311
      %v1022 = vunpack.c.l.b16 %v312
      %v1023 = vunpack.c.h.b16 %v312
      %v1024 = vunpack.c.l.b16 %v313
      %v1025 = vunpack.c.h.b16 %v313
      %v1026 = vunpack.c.l.b16 %v314
      %v1027 = vunpack.c.h.b16 %v314
      %v1028 = vunpack.c.l.b16 %v315
      %v1029 = vunpack.c.h.b16 %v315
      %v1030 = vunpack.c.l.b16 %v316
      %v1031 = vunpack.c.h.b16 %v316
      %v1032 = vunpack.c.l.b16 %v317
      %v1033 = vunpack.c.h.b16 %v317
      %v1034 = vunpack.c.l.b16 %v318
      %v1035 = vunpack.c.h.b16 %v318
      %v1036 = vunpack.c.l.b16 %v319
      %v1037 = vunpack.c.h.b16 %v319
      %v1038 = vunpack.c.l.b16 %v320
      %v1039 = vunpack.c.h.b16 %v320
      %v1040 = vunpack.c.l.b16 %v321
      %v1041 = vunpack.c.h.b16 %v321
      %v1042 = vunpack.c.l.b16 %v322
      %v1043 = vunpack.c.h.b16 %v322
      %v1044 = vunpack.c.l.b16 %v323
      %v1045 = vunpack.c.h.b16 %v323
      %v1046 = vunpack.c.l.b16 %v324
      %v1047 = vunpack.c.h.b16 %v324
      %v1048 = vunpack.c.l.b16 %v325
      %v1049 = vunpack.c.h.b16 %v325
      %v1050 = vunpack.c.l.b16 %v326
      %v1051 = vunpack.c.h.b16 %v326
      %v1052 = vunpack.c.l.b16 %v327
      %v1053 = vunpack.c.h.b16 %v327
      %v1054 = vunpack.c.l.b16 %v328
      %v1055 = vunpack.c.h.b16 %v328
      %v1056 = vunpack.c.l.b16 %v329
      %v1057 = vunpack.c.h.b16 %v329
      %v1058 = vunpack.c.l.b16 %v330
      %v1059 = vunpack.c.h.b16 %v330
      %v1060 = vunpack.c.l.b16 %v331
      %v1061 = vunpack.c.h.b16 %v331
      %v1062 = vunpack.c.l.b16 %v332
      %v1063 = vunpack.c.h.b16 %v332
      %v1064 = vunpack.c.l.b16 %v333
      %v1065 = vunpack.c.h.b16 %v333
      %v1066 = vunpack.c.l.b16 %v334
      %v1067 = vunpack.c.h.b16 %v334
      %v1068 = vunpack.c.l.b16 %v335
      %v1069 = vunpack.c.h.b16 %v335
      %v1070 = vunpack.c.l.b16 %v336
      %v1071 = vunpack.c.h.b16 %v336
      %v1072 = vunpack.c.l.b16 %v337
      %v1073 = vunpack.c.h.b16 %v337
      %v1074 = vunpack.c.l.b16 %v338
      %v1075 = vunpack.c.h.b16 %v338
      %v1076 = vunpack.c.l.b16 %v339
      %v1077 = vunpack.c.h.b16 %v339
      %v1078 = vunpack.c.l.b16 %v340
      %v1079 = vunpack.c.h.b16 %v340
      %v1080 = vunpack.c.l.b16 %v341
      %v1081 = vunpack.c.h.b16 %v341
      %v1082 = vunpack.c.l.b16 %v342
      %v1083 = vunpack.c.h.b16 %v342
      %v1084 = vunpack.c.l.b16 %v343
      %v1085 = vunpack.c.h.b16 %v343
      %v1086 = vunpack.c.l.b16 %v344
      %v1087 = vunpack.c.h.b16 %v344
      %v1088 = vunpack.c.l.b16 %v345
      %v1089 = vunpack.c.h.b16 %v345
      %v1090 = vunpack.c.l.b16 %v346
      %v1091 = vunpack.c.h.b16 %v346
      %v1092 = vunpack.c.l.b16 %v347
      %v1093 = vunpack.c.h.b16 %v347
      %v1094 = vunpack.c.l.b16 %v348
      %v1095 = vunpack.c.h.b16 %v348
      %v1096 = vunpack.c.l.b16 %v349
      %v1097 = vunpack.c.h.b16 %v349
      %v1098 = vunpack.c.l.b16 %v350
      %v1099 = vunpack.c.h.b16 %v350
      %v1100 = vunpack.c.l.b16 %v351
      %v1101 = vunpack.c.h.b16 %v351
      %v1102 = vunpack.c.l.b16 %v352
      %v1103 = vunpack.c.h.b16 %v352
      %v1104 = vunpack.c.l.b16 %v353
      %v1105 = vunpack.c.h.b16 %v353
      %v1106 = vunpack.c.l.b16 %v354
      %v1107 = vunpack.c.h.b16 %v354
      %v1108 = vunpack.c.l.b16 %v355
      %v1109 = vunpack.c.h.b16 %v355
      %v1110 = vunpack.c.l.b16 %v356
      %v1111 = vunpack.c.h.b16 %v356
      %v1112 = vunpack.c.l.b16 %v357
      %v1113 = vunpack.c.h.b16 %v357
      %v1114 = vunpack.c.l.b16 %v358
      %v1115 = vunpack.c.h.b16 %v358
      %v1116 = vunpack.c.l.b16 %v359
      %v1117 = vunpack.c.h.b16 %v359
      %v1118 = vunpack.c.l.b16 %v360
      %v1119 = vunpack.c.h.b16 %v360
      %v1120 = vunpack.c.l.b16 %v361
      %v1121 = vunpack.c.h.b16 %v361
      %v1122 = vunpack.c.l.b16 %v362
      %v1123 = vunpack.c.h.b16 %v362
      %v1124 = vunpack.c.l.b16 %v363
      %v1125 = vunpack.c.h.b16 %v363
      %v1126 = vunpack.c.l.b16 %v364
      %v1127 = vunpack.c.h.b16 %v364
      %v1128 = vunpack.c.l.b16 %v365
      %v1129 = vunpack.c.h.b16 %v365
      %v1130 = vunpack.c.l.b16 %v366
      %v1131 = vunpack.c.h.b16 %v366
      %v1132 = vunpack.c.l.b16 %v367
      %v1133 = vunpack.c.h.b16 %v367
      %v1134 = vunpack.c.l.b16 %v368
      %v1135 = vunpack.c.h.b16 %v368
      %v1136 = vunpack.c.l.b16 %v369
      %v1137 = vunpack.c.h.b16 %v369
      %v1138 = vunpack.c.l.b16 %v370
      %v1139 = vunpack.c.h.b16 %v370
      %v1140 = vunpack.c.l.b16 %v371
      %v1141 = vunpack.c.h.b16 %v371
      %v1142 = vunpack.c.l.b16 %v372
      %v1143 = vunpack.c.h.b16 %v372
      %v1144 = vunpack.c.l.b16 %v373
      %v1145 = vunpack.c.h.b16 %v373
      %v1146 = vunpack.c.l.b16 %v374
      %v1147 = vunpack.c.h.b16 %v374
      %v1148 = vunpack.c.l.b16 %v375
      %v1149 = vunpack.c.h.b16 %v375
      %v1150 = vunpack.c.l.b16 %v376
      %v1151 = vunpack.c.h.b16 %v376
      %v1152 = vunpack.c.l.b16 %v377
      %v1153 = vunpack.c.h.b16 %v377
      %v1154 = vunpack.c.l.b16 %v378
      %v1155 = vunpack.c.h.b16 %v378
      %v1156 = vunpack.c.l.b16 %v379
      %v1157 = vunpack.c.h.b16 %v379
      %v1158 = vunpack.c.l.b16 %v380
      %v1159 = vunpack.c.h.b16 %v380
      %v1160 = vunpack.c.l.b16 %v381
      %v1161 = vunpack.c.h.b16 %v381
      %v1162 = vunpack.c.l.b16 %v382
      %v1163 = vunpack.c.h.b16 %v382
      %v1164 = vunpack.c.l.b16 %v383
      %v1165 = vunpack.c.h.b16 %v383
      %v1166 = vunpack.c.l.b16 %v384
      %v1167 = vunpack.c.h.b16 %v384
      %v1168 = vunpack.c.l.b16 %v385
      %v1169 = vunpack.c.h.b16 %v385
      %v1170 = vunpack.c.l.b16 %v386
      %v1171 = vunpack.c.h.b16 %v386
      %v1172 = vunpack.c.l.b16 %v387
      %v1173 = vunpack.c.h.b16 %v387
      %v1174 = vunpack.c.l.b16 %v388
      %v1175 = vunpack.c.h.b16 %v388
      %v1176 = vunpack.c.l.b16 %v389
      %v1177 = vunpack.c.h.b16 %v389
      %v1178 = vunpack.c.l.b16 %v390
      %v1179 = vunpack.c.h.b16 %v390
      %v1180 = vunpack.c.l.b16 %v391
      %v1181 = vunpack.c.h.b16 %v391
      %v1182 = vunpack.c.l.b16 %v392
      %v1183 = vunpack.c.h.b16 %v392
      %v1184 = vunpack.c.l.b16 %v393
      %v1185 = vunpack.c.h.b16 %v393
      %v1186 = vunpack.c.l.b16 %v394
      %v1187 = vunpack.c.h.b16 %v394
      %v1188 = vunpack.c.l.b16 %v395
      %v1189 = vunpack.c.h.b16 %v395
      %v1190 = vunpack.c.l.b16 %v396
      %v1191 = vunpack.c.h.b16 %v396
      %v1192 = vunpack.c.l.b16 %v397
      %v1193 = vunpack.c.h.b16 %v397
      %v1194 = vunpack.c.l.b16 %v398
      %v1195 = vunpack.c.h.b16 %v398
      %v1196 = vunpack.c.l.b16 %v399
      %v1197 = vunpack.c.h.b16 %v399
      %v1198 = vunpack.c.l.b16 %v400
      %v1199 = vunpack.c.h.b16 %v400
      %v1200 = vunpack.c.l.b16 %v401
      %v1201 = vunpack.c.h.b16 %v401
      %v1202 = vunpack.c.l.b16 %v402
      %v1203 = vunpack.c.h.b16 %v402
      %v1204 = vunpack.c.l.b16 %v403
      %v1205 = vunpack.c.h.b16 %v403
      %v1206 = vunpack.c.l.b16 %v404
      %v1207 = vunpack.c.h.b16 %v404
      %v1208 = vunpack.c.l.b16 %v405
      %v1209 = vunpack.c.h.b16 %v405
      %v1210 = vunpack.c.l.b16 %v406
      %v1211 = vunpack.c.h.b16 %v406
      %v1212 = vunpack.c.l.b16 %v407
      %v1213 = vunpack.c.h.b16 %v407
      %v1214 = vunpack.c.l.b16 %v408
      %v1215 = vunpack.c.h.b16 %v408
      %v1216 = vunpack.c.l.b16 %v409
      %v1217 = vunpack.c.h.b16 %v409
      %v1218 = vunpack.c.l.b16 %v410
      %v1219 = vunpack.c.h.b16 %v410
      %v1220 = vunpack.c.l.b16 %v411
      %v1221 = vunpack.c.h.b16 %v411
      %v1222 = vunpack.c.l.b16 %v412
      %v1223 = vunpack.c.h.b16 %v412
      %v1224 = vunpack.c.l.b16 %v413
      %v1225 = vunpack.c.h.b16 %v413
      %v1226 = vunpack.c.l.b16 %v414
      %v1227 = vunpack.c.h.b16 %v414
      %v1228 = vunpack.c.l.b16 %v415
      %v1229 = vunpack.c.h.b16 %v415
      %v1230 = vunpack.c.l.b16 %v416
      %v1231 = vunpack.c.h.b16 %v416
      %v1232 = vunpack.c.l.b16 %v417
      %v1233 = vunpack.c.h.b16 %v417
      %v1234 = vunpack.c.l.b16 %v418
      %v1235 = vunpack.c.h.b16 %v418
      %v1236 = vunpack.c.l.b16 %v419
      %v1237 = vunpack.c.h.b16 %v419
      %v1238 = vunpack.c.l.b16 %v420
      %v1239 = vunpack.c.h.b16 %v420
      %v1240 = vunpack.c.l.b16 %v421
      %v1241 = vunpack.c.h.b16 %v421
      %v1242 = vunpack.c.l.b16 %v422
      %v1243 = vunpack.c.h.b16 %v422
      %v1244 = vunpack.c.l.b16 %v423
      %v1245 = vunpack.c.h.b16 %v423
      %v1246 = vunpack.c.l.b16 %v424
      %v1247 = vunpack.c.h.b16 %v424
      %v1248 = vunpack.c.l.b16 %v425
      %v1249 = vunpack.c.h.b16 %v425
      %v1250 = vunpack.c.l.b16 %v426
      %v1251 = vunpack.c.h.b16 %v426
      %v1252 = vunpack.c.l.b16 %v427
      %v1253 = vunpack.c.h.b16 %v427
      %v1254 = vunpack.c.l.b16 %v428
      %v1255 = vunpack.c.h.b16 %v428
      %v1256 = vunpack.c.l.b16 %v429
      %v1257 = vunpack.c.h.b16 %v429
      %v1258 = vunpack.c.l.b16 %v430
      %v1259 = vunpack.c.h.b16 %v430
      %v1260 = vunpack.c.l.b16 %v431
      %v1261 = vunpack.c.h.b16 %v431
      %v1262 = vunpack.c.l.b16 %v432
      %v1263 = vunpack.c.h.b16 %v432
      %v1264 = vunpack.c.l.b16 %v433
      %v1265 = vunpack.c.h.b16 %v433
      %v1266 = vunpack.c.l.b16 %v434
      %v1267 = vunpack.c.h.b16 %v434
      %v1268 = vunpack.c.l.b16 %v435
      %v1269 = vunpack.c.h.b16 %v435
      %v1270 = vunpack.c.l.b16 %v436
      %v1271 = vunpack.c.h.b16 %v436
      %v1272 = vunpack.c.l.b16 %v437
      %v1273 = vunpack.c.h.b16 %v437
      %v1274 = vunpack.c.l.b16 %v438
      %v1275 = vunpack.c.h.b16 %v438
      %v1276 = vunpack.c.l.b16 %v439
      %v1277 = vunpack.c.h.b16 %v439
      %v1278 = vunpack.c.l.b16 %v440
      %v1279 = vunpack.c.h.b16 %v440
      %v1280 = vunpack.c.l.b16 %v441
      %v1281 = vunpack.c.h.b16 %v441
      %v1282 = vunpack.c.l.b16 %v442
      %v1283 = vunpack.c.h.b16 %v442
      %v1284 = vunpack.c.l.b16 %v443
      %v1285 = vunpack.c.h.b16 %v443
      %v1286 = vunpack.c.l.b16 %v444
      %v1287 = vunpack.c.h.b16 %v444
      %v1288 = vunpack.c.l.b16 %v445
      %v1289 = vunpack.c.h.b16 %v445
      %v1290 = vunpack.c.l.b16 %v446
      %v1291 = vunpack.c.h.b16 %v446
      %v1292 = vunpack.c.l.b16 %v447
      %v1293 = vunpack.c.h.b16 %v447
      %v1294 = vunpack.c.l.b16 %v448
      %v1295 = vunpack.c.h.b16 %v448
      %v1296 = vunpack.c.l.b16 %v449
      %v1297 = vunpack.c.h.b16 %v449
      %v1298 = vunpack.c.l.b16 %v450
      %v1299 = vunpack.c.h.b16 %v450
      %v1300 = vunpack.c.l.b16 %v451
      %v1301 = vunpack.c.h.b16 %v451
      %v1302 = vunpack.c.l.b16 %v452
      %v1303 = vunpack.c.h.b16 %v452
      %v1304 = vunpack.c.l.b16 %v453
      %v1305 = vunpack.c.h.b16 %v453
      %v1306 = vunpack.c.l.b16 %v454
      %v1307 = vunpack.c.h.b16 %v454
      %v1308 = vunpack.c.l.b16 %v455
      %v1309 = vunpack.c.h.b16 %v455
      %v1310 = vunpack.c.l.b16 %v456
      %v1311 = vunpack.c.h.b16 %v456
      %v1312 = vunpack.c.l.b16 %v457
      %v1313 = vunpack.c.h.b16 %v457
      %v1314 = vunpack.c.l.b16 %v458
      %v1315 = vunpack.c.h.b16 %v458
      %v1316 = vunpack.c.l.b16 %v459
      %v1317 = vunpack.c.h.b16 %v459
      %v1318 = vunpack.c.l.b16 %v460
      %v1319 = vunpack.c.h.b16 %v460
      %v1320 = vunpack.c.l.b16 %v461
      %v1321 = vunpack.c.h.b16 %v461
      %v1322 = vunpack.c.l.b16 %v462
      %v1323 = vunpack.c.h.b16 %v462
      %v1324 = vunpack.c.l.b16 %v463
      %v1325 = vunpack.c.h.b16 %v463
      %v1326 = vunpack.c.l.b16 %v464
      %v1327 = vunpack.c.h.b16 %v464
      %v1328 = vunpack.c.l.b16 %v465
      %v1329 = vunpack.c.h.b16 %v465
      %v1330 = vunpack.c.l.b16 %v466
      %v1331 = vunpack.c.h.b16 %v466
      %v1332 = vunpack.c.l.b16 %v467
      %v1333 = vunpack.c.h.b16 %v467
      %v1334 = vunpack.c.l.b16 %v468
      %v1335 = vunpack.c.h.b16 %v468
      %v1336 = vunpack.c.l.b16 %v469
      %v1337 = vunpack.c.h.b16 %v469
      %v1338 = vunpack.c.l.b16 %v470
      %v1339 = vunpack.c.h.b16 %v470
      %v1340 = vunpack.c.l.b16 %v471
      %v1341 = vunpack.c.h.b16 %v471
      %v1342 = vunpack.c.l.b16 %v472
      %v1343 = vunpack.c.h.b16 %v472
      %v1344 = vunpack.c.l.b16 %v473
      %v1345 = vunpack.c.h.b16 %v473
      %v1346 = vunpack.c.l.b16 %v474
      %v1347 = vunpack.c.h.b16 %v474
      %v1348 = vunpack.c.l.b16 %v475
      %v1349 = vunpack.c.h.b16 %v475
      %v1350 = vunpack.c.l.b16 %v476
      %v1351 = vunpack.c.h.b16 %v476
      %v1352 = vunpack.c.l.b16 %v477
      %v1353 = vunpack.c.h.b16 %v477
      %v1354 = vunpack.c.l.b16 %v478
      %v1355 = vunpack.c.h.b16 %v478
      %v1356 = vunpack.c.l.b16 %v479
      %v1357 = vunpack.c.h.b16 %v479
      %v1358 = vunpack.c.l.b16 %v480
      %v1359 = vunpack.c.h.b16 %v480
      %v1360 = vunpack.c.l.b16 %v481
      %v1361 = vunpack.c.h.b16 %v481
      %v1362 = vunpack.c.l.b16 %v482
      %v1363 = vunpack.c.h.b16 %v482
      %v1364 = vunpack.c.l.b16 %v483
      %v1365 = vunpack.c.h.b16 %v483
      %v1366 = vunpack.c.l.b16 %v484
      %v1367 = vunpack.c.h.b16 %v484
      %v1368 = vunpack.c.l.b16 %v485
      %v1369 = vunpack.c.h.b16 %v485
      %v1370 = vunpack.c.l.b16 %v486
      %v1371 = vunpack.c.h.b16 %v486
      %v1372 = vunpack.c.l.b16 %v487
      %v1373 = vunpack.c.h.b16 %v487
      %v1374 = vunpack.c.l.b16 %v488
      %v1375 = vunpack.c.h.b16 %v488
      %v1376 = vunpack.c.l.b16 %v489
      %v1377 = vunpack.c.h.b16 %v489
      %v1378 = vunpack.c.l.b16 %v490
      %v1379 = vunpack.c.h.b16 %v490
      %v1380 = vunpack.c.l.b16 %v491
      %v1381 = vunpack.c.h.b16 %v491
      %v1382 = vunpack.c.l.b16 %v492
      %v1383 = vunpack.c.h.b16 %v492
      %v1384 = vunpack.c.l.b16 %v493
      %v1385 = vunpack.c.h.b16 %v493
      %v1386 = vunpack.c.l.b16 %v494
      %v1387 = vunpack.c.h.b16 %v494
      %v1388 = vunpack.c.l.b16 %v495
      %v1389 = vunpack.c.h.b16 %v495
      %v1390 = vunpack.c.l.b16 %v496
      %v1391 = vunpack.c.h.b16 %v496
      %v1392 = vunpack.c.l.b16 %v497
      %v1393 = vunpack.c.h.b16 %v497
      %v1394 = vunpack.c.l.b16 %v498
      %v1395 = vunpack.c.h.b16 %v498
      %v1396 = vunpack.c.l.b16 %v499
      %v1397 = vunpack.c.h.b16 %v499
      %v1398 = vunpack.c.l.b16 %v500
      %v1399 = vunpack.c.h.b16 %v500
      %v1400 = vunpack.c.l.b16 %v501
      %v1401 = vunpack.c.h.b16 %v501
      %v1402 = vunpack.c.l.b16 %v502
      %v1403 = vunpack.c.h.b16 %v502
      %v1404 = vunpack.c.l.b16 %v503
      %v1405 = vunpack.c.h.b16 %v503
      %v1406 = vunpack.c.l.b16 %v504
      %v1407 = vunpack.c.h.b16 %v504
      %v1408 = vunpack.c.l.b16 %v505
      %v1409 = vunpack.c.h.b16 %v505
      %v1410 = vunpack.c.l.b16 %v506
      %v1411 = vunpack.c.h.b16 %v506
      %v1412 = vunpack.c.l.b16 %v507
      %v1413 = vunpack.c.h.b16 %v507
      %v1414 = vunpack.c.l.b16 %v508
      %v1415 = vunpack.c.h.b16 %v508
      %v1416 = vunpack.c.l.b16 %v509
      %v1417 = vunpack.c.h.b16 %v509
      %v1418 = vunpack.c.l.b16 %v510
      %v1419 = vunpack.c.h.b16 %v510
      %v1420 = vunpack.c.l.b16 %v511
      %v1421 = vunpack.c.h.b16 %v511
      %v1422 = vunpack.c.l.b16 %v512
      %v1423 = vunpack.c.h.b16 %v512
      %v1424 = vunpack.c.l.b16 %v513
      %v1425 = vunpack.c.h.b16 %v513
      %v1426 = vunpack.c.l.b16 %v514
      %v1427 = vunpack.c.h.b16 %v514
      %v1428 = vunpack.c.l.b16 %v515
      %v1429 = vunpack.c.h.b16 %v515
      %v1430 = vunpack.c.l.b16 %v516
      %v1431 = vunpack.c.h.b16 %v516
      %v1432 = vunpack.c.l.b16 %v517
      %v1433 = vunpack.c.h.b16 %v517
      %v1434 = vunpack.c.l.b16 %v518
      %v1435 = vunpack.c.h.b16 %v518
      %v1436 = vunpack.c.l.b16 %v519
      %v1437 = vunpack.c.h.b16 %v519
      %v1438 = vunpack.c.l.b16 %v520
      %v1439 = vunpack.c.h.b16 %v520
      %v1440 = vunpack.c.l.b16 %v521
      %v1441 = vunpack.c.h.b16 %v521
      %v1442 = vunpack.c.l.b16 %v522
      %v1443 = vunpack.c.h.b16 %v522
      %v1444 = vunpack.c.l.b16 %v523
      %v1445 = vunpack.c.h.b16 %v523
      %v1446 = vunpack.c.l.b16 %v524
      %v1447 = vunpack.c.h.b16 %v524
      %v1448 = vunpack.c.l.b16 %v525
      %v1449 = vunpack.c.h.b16 %v525
      %v1450 = vunpack.c.l.b16 %v526
      %v1451 = vunpack.c.h.b16 %v526
      %v1452 = vunpack.c.l.b16 %v527
      %v1453 = vunpack.c.h.b16 %v527
      %v1454 = vunpack.c.l.b16 %v528
      %v1455 = vunpack.c.h.b16 %v528
      %v1456 = vunpack.c.l.b16 %v529
      %v1457 = vunpack.c.h.b16 %v529
      %v1458 = vpack.c.b16 %v948, %v946
      %v1459 = vpack.c.b16 %v949, %v947
      %v1460 = vpack.c.b16 %v952, %v950
      %v1461 = vpack.c.b16 %v953, %v951
      %v1462 = vpack.c.b16 %v956, %v954
      %v1463 = vpack.c.b16 %v957, %v955
      %v1464 = vpack.c.b16 %v960, %v958
      %v1465 = vpack.c.b16 %v961, %v959
      %v1466 = vpack.c.b16 %v964, %v962
      %v1467 = vpack.c.b16 %v965, %v963
      %v1468 = vpack.c.b16 %v968, %v966
      %v1469 = vpack.c.b16 %v969, %v967
      %v1470 = vpack.c.b16 %v972, %v970
      %v1471 = vpack.c.b16 %v973, %v971
      %v1472 = vpack.c.b16 %v976, %v974
      %v1473 = vpack.c.b16 %v977, %v975
      %v1474 = vpack.c.b16 %v980, %v978
      %v1475 = vpack.c.b16 %v981, %v979
      %v1476 = vpack.c.b16 %v984, %v982
      %v1477 = vpack.c.b16 %v985, %v983
      %v1478 = vpack.c.b16 %v988, %v986
      %v1479 = vpack.c.b16 %v989, %v987
      %v1480 = vpack.c.b16 %v992, %v990
      %v1481 = vpack.c.b16 %v993, %v991
      %v1482 = vpack.c.b16 %v996, %v994
      %v1483 = vpack.c.b16 %v997, %v995
      %v1484 = vpack.c.b16 %v1000, %v998
      %v1485 = vpack.c.b16 %v1001, %v999
      %v1486 = vpack.c.b16 %v1004, %v1002
      %v1487 = vpack.c.b16 %v1005, %v1003
      %v1488 = vpack.c.b16 %v1008, %v1006
      %v1489 = vpack.c.b16 %v1009, %v1007
      %v1490 = vpack.c.b16 %v1012, %v1010
      %v1491 = vpack.c.b16 %v1013, %v1011
      %v1492 = vpack.c.b16 %v1016, %v1014
      %v1493 = vpack.c.b16 %v1017, %v1015
      %v1494 = vpack.c.b16 %v1020, %v1018
      %v1495 = vpack.c.b16 %v1021, %v1019
      %v1496 = vpack.c.b16 %v1024, %v1022
      %v1497 = vpack.c.b16 %v1025, %v1023
      %v1498 = vpack.c.b16 %v1028, %v1026
      %v1499 = vpack.c.b16 %v1029, %v1027
      %v1500 = vpack.c.b16 %v1032, %v1030
      %v1501 = vpack.c.b16 %v1033, %v1031
      %v1502 = vpack.c.b16 %v1036, %v1034
      %v1503 = vpack.c.b16 %v1037, %v1035
      %v1504 = vpack.c.b16 %v1040, %v1038
      %v1505 = vpack.c.b16 %v1041, %v1039
      %v1506 = vpack.c.b16 %v1044, %v1042
      %v1507 = vpack.c.b16 %v1045, %v1043
      %v1508 = vpack.c.b16 %v1048, %v1046
      %v1509 = vpack.c.b16 %v1049, %v1047
      %v1510 = vpack.c.b16 %v1052, %v1050
      %v1511 = vpack.c.b16 %v1053, %v1051
      %v1512 = vpack.c.b16 %v1056, %v1054
      %v1513 = vpack.c.b16 %v1057, %v1055
      %v1514 = vpack.c.b16 %v1060, %v1058
      %v1515 = vpack.c.b16 %v1061, %v1059
      %v1516 = vpack.c.b16 %v1064, %v1062
      %v1517 = vpack.c.b16 %v1065, %v1063
      %v1518 = vpack.c.b16 %v1068, %v1066
      %v1519 = vpack.c.b16 %v1069, %v1067
      %v1520 = vpack.c.b16 %v1072, %v1070
      %v1521 = vpack.c.b16 %v1073, %v1071
      %v1522 = vpack.c.b16 %v1076, %v1074
      %v1523 = vpack.c.b16 %v1077, %v1075
      %v1524 = vpack.c.b16 %v1080, %v1078
      %v1525 = vpack.c.b16 %v1081, %v1079
      %v1526 = vpack.c.b16 %v1084, %v1082
      %v1527 = vpack.c.b16 %v1085, %v1083
      %v1528 = vpack.c.b16 %v1088, %v1086
      %v1529 = vpack.c.b16 %v1089, %v1087
      %v1530 = vpack.c.b16 %v1092, %v1090
      %v1531 = vpack.c.b16 %v1093, %v1091
      %v1532 = vpack.c.b16 %v1096, %v1094
      %v1533 = vpack.c.b16 %v1097, %v1095
      %v1534 = vpack.c.b16 %v1100, %v1098
      %v1535 = vpack.c.b16 %v1101, %v1099
      %v1536 = vpack.c.b16 %v1104, %v1102
      %v1537 = vpack.c.b16 %v1105, %v1103
      %v1538 = vpack.c.b16 %v1108, %v1106
      %v1539 = vpack.c.b16 %v1109, %v1107
      %v1540 = vpack.c.b16 %v1112, %v1110
      %v1541 = vpack.c.b16 %v1113, %v1111
      %v1542 = vpack.c.b16 %v1116, %v1114
      %v1543 = vpack.c.b16 %v1117, %v1115
      %v1544 = vpack.c.b16 %v1120, %v1118
      %v1545 = vpack.c.b16 %v1121, %v1119
      %v1546 = vpack.c.b16 %v1124, %v1122
      %v1547 = vpack.c.b16 %v1125, %v1123
      %v1548 = vpack.c.b16 %v1128, %v1126
      %v1549 = vpack.c.b16 %v1129, %v1127
      %v1550 = vpack.c.b16 %v1132, %v1130
      %v1551 = vpack.c.b16 %v1133, %v1131
      %v1552 = vpack.c.b16 %v1136, %v1134
      %v1553 = vpack.c.b16 %v1137, %v1135
      %v1554 = vpack.c.b16 %v1140, %v1138
      %v1555 = vpack.c.b16 %v1141, %v1139
      %v1556 = vpack.c.b16 %v1144, %v1142
      %v1557 = vpack.c.b16 %v1145, %v1143
      %v1558 = vpack.c.b16 %v1148, %v1146
      %v1559 = vpack.c.b16 %v1149, %v1147
      %v1560 = vpack.c.b16 %v1152, %v1150
      %v1561 = vpack.c.b16 %v1153, %v1151
      %v1562 = vpack.c.b16 %v1156, %v1154
      %v1563 = vpack.c.b16 %v1157, %v1155
      %v1564 = vpack.c.b16 %v1160, %v1158
      %v1565 = vpack.c.b16 %v1161, %v1159
      %v1566 = vpack.c.b16 %v1164, %v1162
      %v1567 = vpack.c.b16 %v1165, %v1163
      %v1568 = vpack.c.b16 %v1168, %v1166
      %v1569 = vpack.c.b16 %v1169, %v1167
      %v1570 = vpack.c.b16 %v1172, %v1170
      %v1571 = vpack.c.b16 %v1173, %v1171
      %v1572 = vpack.c.b16 %v1176, %v1174
      %v1573 = vpack.c.b16 %v1177, %v1175
      %v1574 = vpack.c.b16 %v1180, %v1178
      %v1575 = vpack.c.b16 %v1181, %v1179
      %v1576 = vpack.c.b16 %v1184, %v1182
      %v1577 = vpack.c.b16 %v1185, %v1183
      %v1578 = vpack.c.b16 %v1188, %v1186
      %v1579 = vpack.c.b16 %v1189, %v1187
      %v1580 = vpack.c.b16 %v1192, %v1190
      %v1581 = vpack.c.b16 %v1193, %v1191
      %v1582 = vpack.c.b16 %v1196, %v1194
      %v1583 = vpack.c.b16 %v1197, %v1195
      %v1584 = vpack.c.b16 %v1200, %v1198
      %v1585 = vpack.c.b16 %v1201, %v1199
      %v1586 = vpack.c.b16 %v1204, %v1202
      %v1587 = vpack.c.b16 %v1205, %v1203
      %v1588 = vpack.c.b16 %v1208, %v1206
      %v1589 = vpack.c.b16 %v1209, %v1207
      %v1590 = vpack.c.b16 %v1212, %v1210
      %v1591 = vpack.c.b16 %v1213, %v1211
      %v1592 = vpack.c.b16 %v1216, %v1214
      %v1593 = vpack.c.b16 %v1217, %v1215
      %v1594 = vpack.c.b16 %v1220, %v1218
      %v1595 = vpack.c.b16 %v1221, %v1219
      %v1596 = vpack.c.b16 %v1224, %v1222
      %v1597 = vpack.c.b16 %v1225, %v1223
      %v1598 = vpack.c.b16 %v1228, %v1226
      %v1599 = vpack.c.b16 %v1229, %v1227
      %v1600 = vpack.c.b16 %v1232, %v1230
      %v1601 = vpack.c.b16 %v1233, %v1231
      %v1602 = vpack.c.b16 %v1236, %v1234
      %v1603 = vpack.c.b16 %v1237, %v1235
      %v1604 = vpack.c.b16 %v1240, %v1238
      %v1605 = vpack.c.b16 %v1241, %v1239
      %v1606 = vpack.c.b16 %v1244, %v1242
      %v1607 = vpack.c.b16 %v1245, %v1243
      %v1608 = vpack.c.b16 %v1248, %v1246
      %v1609 = vpack.c.b16 %v1249, %v1247
      %v1610 = vpack.c.b16 %v1252, %v1250
      %v1611 = vpack.c.b16 %v1253, %v1251
      %v1612 = vpack.c.b16 %v1256, %v1254
      %v1613 = vpack.c.b16 %v1257, %v1255
      %v1614 = vpack.c.b16 %v1260, %v1258
      %v1615 = vpack.c.b16 %v1261, %v1259
      %v1616 = vpack.c.b16 %v1264, %v1262
      %v1617 = vpack.c.b16 %v1265, %v1263
      %v1618 = vpack.c.b16 %v1268, %v1266
      %v1619 = vpack.c.b16 %v1269, %v1267
      %v1620 = vpack.c.b16 %v1272, %v1270
      %v1621 = vpack.c.b16 %v1273, %v1271
      %v1622 = vpack.c.b16 %v1276, %v1274
      %v1623 = vpack.c.b16 %v1277, %v1275
      %v1624 = vpack.c.b16 %v1280, %v1278
      %v1625 = vpack.c.b16 %v1281, %v1279
      %v1626 = vpack.c.b16 %v1284, %v1282
      %v1627 = vpack.c.b16 %v1285, %v1283
      %v1628 = vpack.c.b16 %v1288, %v1286
      %v1629 = vpack.c.b16 %v1289, %v1287
      %v1630 = vpack.c.b16 %v1292, %v1290
      %v1631 = vpack.c.b16 %v1293, %v1291
      %v1632 = vpack.c.b16 %v1296, %v1294
      %v1633 = vpack.c.b16 %v1297, %v1295
      %v1634 = vpack.c.b16 %v1300, %v1298
      %v1635 = vpack.c.b16 %v1301, %v1299
      %v1636 = vpack.c.b16 %v1304, %v1302
      %v1637 = vpack.c.b16 %v1305, %v1303
      %v1638 = vpack.c.b16 %v1308, %v1306
      %v1639 = vpack.c.b16 %v1309, %v1307
      %v1640 = vpack.c.b16 %v1312, %v1310
      %v1641 = vpack.c.b16 %v1313, %v1311
      %v1642 = vpack.c.b16 %v1316, %v1314
      %v1643 = vpack.c.b16 %v1317, %v1315
      %v1644 = vpack.c.b16 %v1320, %v1318
      %v1645 = vpack.c.b16 %v1321, %v1319
      %v1646 = vpack.c.b16 %v1324, %v1322
      %v1647 = vpack.c.b16 %v1325, %v1323
      %v1648 = vpack.c.b16 %v1328, %v1326
      %v1649 = vpack.c.b16 %v1329, %v1327
      %v1650 = vpack.c.b16 %v1332, %v1330
      %v1651 = vpack.c.b16 %v1333, %v1331
      %v1652 = vpack.c.b16 %v1336, %v1334
      %v1653 = vpack.c.b16 %v1337, %v1335
      %v1654 = vpack.c.b16 %v1340, %v1338
      %v1655 = vpack.c.b16 %v1341, %v1339
      %v1656 = vpack.c.b16 %v1344, %v1342
      %v1657 = vpack.c.b16 %v1345, %v1343
      %v1658 = vpack.c.b16 %v1348, %v1346
      %v1659 = vpack.c.b16 %v1349, %v1347
      %v1660 = vpack.c.b16 %v1352, %v1350
      %v1661 = vpack.c.b16 %v1353, %v1351
      %v1662 = vpack.c.b16 %v1356, %v1354
      %v1663 = vpack.c.b16 %v1357, %v1355
      %v1664 = vpack.c.b16 %v1360, %v1358
      %v1665 = vpack.c.b16 %v1361, %v1359
      %v1666 = vpack.c.b16 %v1364, %v1362
      %v1667 = vpack.c.b16 %v1365, %v1363
      %v1668 = vpack.c.b16 %v1368, %v1366
      %v1669 = vpack.c.b16 %v1369, %v1367
      %v1670 = vpack.c.b16 %v1372, %v1370
      %v1671 = vpack.c.b16 %v1373, %v1371
      %v1672 = vpack.c.b16 %v1376, %v1374
      %v1673 = vpack.c.b16 %v1377, %v1375
      %v1674 = vpack.c.b16 %v1380, %v1378
      %v1675 = vpack.c.b16 %v1381, %v1379
      %v1676 = vpack.c.b16 %v1384, %v1382
      %v1677 = vpack.c.b16 %v1385, %v1383
      %v1678 = vpack.c.b16 %v1388, %v1386
      %v1679 = vpack.c.b16 %v1389, %v1387
      %v1680 = vpack.c.b16 %v1392, %v1390
      %v1681 = vpack.c.b16 %v1393, %v1391
      %v1682 = vpack.c.b16 %v1396, %v1394
      %v1683 = vpack.c.b16 %v1397, %v1395
      %v1684 = vpack.c.b16 %v1400, %v1398
      %v1685 = vpack.c.b16 %v1401, %v1399
      %v1686 = vpack.c.b16 %v1404, %v1402
      %v1687 = vpack.c.b16 %v1405, %v1403
      %v1688 = vpack.c.b16 %v1408, %v1406
      %v1689 = vpack.c.b16 %v1409, %v1407
      %v1690 = vpack.c.b16 %v1412, %v1410
      %v1691 = vpack.c.b16 %v1413, %v1411
      %v1692 = vpack.c.b16 %v1416, %v1414
      %v1693 = vpack.c.b16 %v1417, %v1415
      %v1694 = vpack.c.b16 %v1420, %v1418
      %v1695 = vpack.c.b16 %v1421, %v1419
      %v1696 = vpack.c.b16 %v1424, %v1422
      %v1697 = vpack.c.b16 %v1425, %v1423
      %v1698 = vpack.c.b16 %v1428, %v1426
      %v1699 = vpack.c.b16 %v1429, %v1427
      %v1700 = vpack.c.b16 %v1432, %v1430
      %v1701 = vpack.c.b16 %v1433, %v1431
      %v1702 = vpack.c.b16 %v1436, %v1434
      %v1703 = vpack.c.b16 %v1437, %v1435
      %v1704 = vpack.c.b16 %v1440, %v1438
      %v1705 = vpack.c.b16 %v1441, %v1439
      %v1706 = vpack.c.b16 %v1444, %v1442
      %v1707 = vpack.c.b16 %v1445, %v1443
      %v1708 = vpack.c.b16 %v1448, %v1446
      %v1709 = vpack.c.b16 %v1449, %v1447
      %v1710 = vpack.c.b16 %v1452, %v1450
      %v1711 = vpack.c.b16 %v1453, %v1451
      %v1712 = vpack.c.b16 %v1456, %v1454
      %v1713 = vpack.c.b16 %v1457, %v1455
      %1970 = vmatpush.bf16.msra.mxu0 %v1472
      %1971 = vmatpush.bf16.msra.mxu0 %v1470
      %1972 = vmatpush.bf16.msra.mxu0 %v1468
      %1973 = vmatpush.bf16.msra.mxu0 %v1466
      %1974 = vmatpush.bf16.msra.mxu0 %v1464
      %1975 = vmatpush.bf16.msra.mxu0 %v1462
      %1976 = vmatpush.bf16.msra.mxu0 %v1460
      %1977 = vmatpush.bf16.msra.mxu0 %v1458
      %1978 = vmatmul.bf16.gmra.mxu0 %v626
      %v1979 = vpop.f32.mrf.mxu0
      %v1980 = vadd.f32 0.0, %v1979
      %v1981 = vpop.f32.mrf.mxu0
      %v1982 = vadd.f32 0.0, %v1981
      %1983 = vmatmul.bf16.gmra.mxu0 %v642
      %v1984 = vpop.f32.mrf.mxu0
      %v1985 = vadd.f32 0.0, %v1984
      %v1986 = vpop.f32.mrf.mxu0
      %v1987 = vadd.f32 0.0, %v1986
      %1988 = vdwg.mxu0
      %1989 = vmatpush.bf16.msra.mxu0 %v1488
      %1990 = vmatpush.bf16.msra.mxu0 %v1486
      %1991 = vmatpush.bf16.msra.mxu0 %v1484
      %1992 = vmatpush.bf16.msra.mxu0 %v1482
      %1993 = vmatpush.bf16.msra.mxu0 %v1480
      %1994 = vmatpush.bf16.msra.mxu0 %v1478
      %1995 = vmatpush.bf16.msra.mxu0 %v1476
      %1996 = vmatpush.bf16.msra.mxu0 %v1474
      %1997 = vmatmul.bf16.gmra.mxu0 %v627
      %v1998 = vpop.f32.mrf.mxu0
      %v1999 = vadd.f32 %v1980, %v1998
      %v2000 = vpop.f32.mrf.mxu0
      %v2001 = vadd.f32 %v1982, %v2000
      %2002 = vmatmul.bf16.gmra.mxu0 %v643
      %v2003 = vpop.f32.mrf.mxu0
      %v2004 = vadd.f32 %v1985, %v2003
      %v2005 = vpop.f32.mrf.mxu0
      %v2006 = vadd.f32 %v1987, %v2005
      %2007 = vdwg.mxu0
      %2008 = vmatpush.bf16.msra.mxu0 %v1504
      %2009 = vmatpush.bf16.msra.mxu0 %v1502
      %2010 = vmatpush.bf16.msra.mxu0 %v1500
      %2011 = vmatpush.bf16.msra.mxu0 %v1498
      %2012 = vmatpush.bf16.msra.mxu0 %v1496
      %2013 = vmatpush.bf16.msra.mxu0 %v1494
      %2014 = vmatpush.bf16.msra.mxu0 %v1492
      %2015 = vmatpush.bf16.msra.mxu0 %v1490
      %2016 = vmatmul.bf16.gmra.mxu0 %v628
      %v2017 = vpop.f32.mrf.mxu0
      %v2018 = vadd.f32 %v1999, %v2017
      %v2019 = vpop.f32.mrf.mxu0
      %v2020 = vadd.f32 %v2001, %v2019
      %2021 = vmatmul.bf16.gmra.mxu0 %v644
      %v2022 = vpop.f32.mrf.mxu0
      %v2023 = vadd.f32 %v2004, %v2022
      %v2024 = vpop.f32.mrf.mxu0
      %v2025 = vadd.f32 %v2006, %v2024
      %2026 = vdwg.mxu0
      %2027 = vmatpush.bf16.msra.mxu0 %v1520
      %2028 = vmatpush.bf16.msra.mxu0 %v1518
      %2029 = vmatpush.bf16.msra.mxu0 %v1516
      %2030 = vmatpush.bf16.msra.mxu0 %v1514
      %2031 = vmatpush.bf16.msra.mxu0 %v1512
      %2032 = vmatpush.bf16.msra.mxu0 %v1510
      %2033 = vmatpush.bf16.msra.mxu0 %v1508
      %2034 = vmatpush.bf16.msra.mxu0 %v1506
      %2035 = vmatmul.bf16.gmra.mxu0 %v629
      %v2036 = vpop.f32.mrf.mxu0
      %v2037 = vadd.f32 %v2018, %v2036
      %v2038 = vpop.f32.mrf.mxu0
      %v2039 = vadd.f32 %v2020, %v2038
      %2040 = vmatmul.bf16.gmra.mxu0 %v645
      %v2041 = vpop.f32.mrf.mxu0
      %v2042 = vadd.f32 %v2023, %v2041
      %v2043 = vpop.f32.mrf.mxu0
      %v2044 = vadd.f32 %v2025, %v2043
      %2045 = vdwg.mxu0
      %2046 = vmatpush.bf16.msra.mxu0 %v1536
      %2047 = vmatpush.bf16.msra.mxu0 %v1534
      %2048 = vmatpush.bf16.msra.mxu0 %v1532
      %2049 = vmatpush.bf16.msra.mxu0 %v1530
      %2050 = vmatpush.bf16.msra.mxu0 %v1528
      %2051 = vmatpush.bf16.msra.mxu0 %v1526
      %2052 = vmatpush.bf16.msra.mxu0 %v1524
      %2053 = vmatpush.bf16.msra.mxu0 %v1522
      %2054 = vmatmul.bf16.gmra.mxu0 %v630
      %v2055 = vpop.f32.mrf.mxu0
      %v2056 = vadd.f32 %v2037, %v2055
      %v2057 = vpop.f32.mrf.mxu0
      %v2058 = vadd.f32 %v2039, %v2057
      %2059 = vmatmul.bf16.gmra.mxu0 %v646
      %v2060 = vpop.f32.mrf.mxu0
      %v2061 = vadd.f32 %v2042, %v2060
      %v2062 = vpop.f32.mrf.mxu0
      %v2063 = vadd.f32 %v2044, %v2062
      %2064 = vdwg.mxu0
      %2065 = vmatpush.bf16.msra.mxu0 %v1552
      %2066 = vmatpush.bf16.msra.mxu0 %v1550
      %2067 = vmatpush.bf16.msra.mxu0 %v1548
      %2068 = vmatpush.bf16.msra.mxu0 %v1546
      %2069 = vmatpush.bf16.msra.mxu0 %v1544
      %2070 = vmatpush.bf16.msra.mxu0 %v1542
      %2071 = vmatpush.bf16.msra.mxu0 %v1540
      %2072 = vmatpush.bf16.msra.mxu0 %v1538
      %2073 = vmatmul.bf16.gmra.mxu0 %v631
      %v2074 = vpop.f32.mrf.mxu0
      %v2075 = vadd.f32 %v2056, %v2074
      %v2076 = vpop.f32.mrf.mxu0
      %v2077 = vadd.f32 %v2058, %v2076
      %2078 = vmatmul.bf16.gmra.mxu0 %v647
      %v2079 = vpop.f32.mrf.mxu0
      %v2080 = vadd.f32 %v2061, %v2079
      %v2081 = vpop.f32.mrf.mxu0
      %v2082 = vadd.f32 %v2063, %v2081
      %2083 = vdwg.mxu0
      %2084 = vmatpush.bf16.msra.mxu0 %v1568
      %2085 = vmatpush.bf16.msra.mxu0 %v1566
      %2086 = vmatpush.bf16.msra.mxu0 %v1564
      %2087 = vmatpush.bf16.msra.mxu0 %v1562
      %2088 = vmatpush.bf16.msra.mxu0 %v1560
      %2089 = vmatpush.bf16.msra.mxu0 %v1558
      %2090 = vmatpush.bf16.msra.mxu0 %v1556
      %2091 = vmatpush.bf16.msra.mxu0 %v1554
      %2092 = vmatmul.bf16.gmra.mxu0 %v632
      %v2093 = vpop.f32.mrf.mxu0
      %v2094 = vadd.f32 %v2075, %v2093
      %v2095 = vpop.f32.mrf.mxu0
      %v2096 = vadd.f32 %v2077, %v2095
      %2097 = vmatmul.bf16.gmra.mxu0 %v648
      %v2098 = vpop.f32.mrf.mxu0
      %v2099 = vadd.f32 %v2080, %v2098
      %v2100 = vpop.f32.mrf.mxu0
      %v2101 = vadd.f32 %v2082, %v2100
      %2102 = vdwg.mxu0
      %2103 = vmatpush.bf16.msra.mxu0 %v1584
      %2104 = vmatpush.bf16.msra.mxu0 %v1582
      %2105 = vmatpush.bf16.msra.mxu0 %v1580
      %2106 = vmatpush.bf16.msra.mxu0 %v1578
      %2107 = vmatpush.bf16.msra.mxu0 %v1576
      %2108 = vmatpush.bf16.msra.mxu0 %v1574
      %2109 = vmatpush.bf16.msra.mxu0 %v1572
      %2110 = vmatpush.bf16.msra.mxu0 %v1570
      %2111 = vmatmul.bf16.gmra.mxu0 %v633
      %v2112 = vpop.f32.mrf.mxu0
      %v2113 = vadd.f32 %v2094, %v2112
      %v2114 = vpop.f32.mrf.mxu0
      %v2115 = vadd.f32 %v2096, %v2114
      %2116 = vmatmul.bf16.gmra.mxu0 %v649
      %v2117 = vpop.f32.mrf.mxu0
      %v2118 = vadd.f32 %v2099, %v2117
      %v2119 = vpop.f32.mrf.mxu0
      %v2120 = vadd.f32 %v2101, %v2119
      %2121 = vdwg.mxu0
      %2122 = vmatpush.bf16.msra.mxu0 %v1600
      %2123 = vmatpush.bf16.msra.mxu0 %v1598
      %2124 = vmatpush.bf16.msra.mxu0 %v1596
      %2125 = vmatpush.bf16.msra.mxu0 %v1594
      %2126 = vmatpush.bf16.msra.mxu0 %v1592
      %2127 = vmatpush.bf16.msra.mxu0 %v1590
      %2128 = vmatpush.bf16.msra.mxu0 %v1588
      %2129 = vmatpush.bf16.msra.mxu0 %v1586
      %2130 = vmatmul.bf16.gmra.mxu0 %v634
      %v2131 = vpop.f32.mrf.mxu0
      %v2132 = vadd.f32 %v2113, %v2131
      %v2133 = vpop.f32.mrf.mxu0
      %v2134 = vadd.f32 %v2115, %v2133
      %2135 = vmatmul.bf16.gmra.mxu0 %v650
      %v2136 = vpop.f32.mrf.mxu0
      %v2137 = vadd.f32 %v2118, %v2136
      %v2138 = vpop.f32.mrf.mxu0
      %v2139 = vadd.f32 %v2120, %v2138
      %2140 = vdwg.mxu0
      %2141 = vmatpush.bf16.msra.mxu0 %v1616
      %2142 = vmatpush.bf16.msra.mxu0 %v1614
      %2143 = vmatpush.bf16.msra.mxu0 %v1612
      %2144 = vmatpush.bf16.msra.mxu0 %v1610
      %2145 = vmatpush.bf16.msra.mxu0 %v1608
      %2146 = vmatpush.bf16.msra.mxu0 %v1606
      %2147 = vmatpush.bf16.msra.mxu0 %v1604
      %2148 = vmatpush.bf16.msra.mxu0 %v1602
      %2149 = vmatmul.bf16.gmra.mxu0 %v635
      %v2150 = vpop.f32.mrf.mxu0
      %v2151 = vadd.f32 %v2132, %v2150
      %v2152 = vpop.f32.mrf.mxu0
      %v2153 = vadd.f32 %v2134, %v2152
      %2154 = vmatmul.bf16.gmra.mxu0 %v651
      %v2155 = vpop.f32.mrf.mxu0
      %v2156 = vadd.f32 %v2137, %v2155
      %v2157 = vpop.f32.mrf.mxu0
      %v2158 = vadd.f32 %v2139, %v2157
      %2159 = vdwg.mxu0
      %2160 = vmatpush.bf16.msra.mxu0 %v1632
      %2161 = vmatpush.bf16.msra.mxu0 %v1630
      %2162 = vmatpush.bf16.msra.mxu0 %v1628
      %2163 = vmatpush.bf16.msra.mxu0 %v1626
      %2164 = vmatpush.bf16.msra.mxu0 %v1624
      %2165 = vmatpush.bf16.msra.mxu0 %v1622
      %2166 = vmatpush.bf16.msra.mxu0 %v1620
      %2167 = vmatpush.bf16.msra.mxu0 %v1618
      %2168 = vmatmul.bf16.gmra.mxu0 %v636
      %v2169 = vpop.f32.mrf.mxu0
      %v2170 = vadd.f32 %v2151, %v2169
      %v2171 = vpop.f32.mrf.mxu0
      %v2172 = vadd.f32 %v2153, %v2171
      %2173 = vmatmul.bf16.gmra.mxu0 %v652
      %v2174 = vpop.f32.mrf.mxu0
      %v2175 = vadd.f32 %v2156, %v2174
      %v2176 = vpop.f32.mrf.mxu0
      %v2177 = vadd.f32 %v2158, %v2176
      %2178 = vdwg.mxu0
      %2179 = vmatpush.bf16.msra.mxu0 %v1648
      %2180 = vmatpush.bf16.msra.mxu0 %v1646
      %2181 = vmatpush.bf16.msra.mxu0 %v1644
      %2182 = vmatpush.bf16.msra.mxu0 %v1642
      %2183 = vmatpush.bf16.msra.mxu0 %v1640
      %2184 = vmatpush.bf16.msra.mxu0 %v1638
      %2185 = vmatpush.bf16.msra.mxu0 %v1636
      %2186 = vmatpush.bf16.msra.mxu0 %v1634
      %2187 = vmatmul.bf16.gmra.mxu0 %v637
      %v2188 = vpop.f32.mrf.mxu0
      %v2189 = vadd.f32 %v2170, %v2188
      %v2190 = vpop.f32.mrf.mxu0
      %v2191 = vadd.f32 %v2172, %v2190
      %2192 = vmatmul.bf16.gmra.mxu0 %v653
      %v2193 = vpop.f32.mrf.mxu0
      %v2194 = vadd.f32 %v2175, %v2193
      %v2195 = vpop.f32.mrf.mxu0
      %v2196 = vadd.f32 %v2177, %v2195
      %2197 = vdwg.mxu0
      %2198 = vmatpush.bf16.msra.mxu0 %v1664
      %2199 = vmatpush.bf16.msra.mxu0 %v1662
      %2200 = vmatpush.bf16.msra.mxu0 %v1660
      %2201 = vmatpush.bf16.msra.mxu0 %v1658
      %2202 = vmatpush.bf16.msra.mxu0 %v1656
      %2203 = vmatpush.bf16.msra.mxu0 %v1654
      %2204 = vmatpush.bf16.msra.mxu0 %v1652
      %2205 = vmatpush.bf16.msra.mxu0 %v1650
      %2206 = vmatmul.bf16.gmra.mxu0 %v638
      %v2207 = vpop.f32.mrf.mxu0
      %v2208 = vadd.f32 %v2189, %v2207
      %v2209 = vpop.f32.mrf.mxu0
      %v2210 = vadd.f32 %v2191, %v2209
      %2211 = vmatmul.bf16.gmra.mxu0 %v654
      %v2212 = vpop.f32.mrf.mxu0
      %v2213 = vadd.f32 %v2194, %v2212
      %v2214 = vpop.f32.mrf.mxu0
      %v2215 = vadd.f32 %v2196, %v2214
      %2216 = vdwg.mxu0
      %2217 = vmatpush.bf16.msra.mxu0 %v1680
      %2218 = vmatpush.bf16.msra.mxu0 %v1678
      %2219 = vmatpush.bf16.msra.mxu0 %v1676
      %2220 = vmatpush.bf16.msra.mxu0 %v1674
      %2221 = vmatpush.bf16.msra.mxu0 %v1672
      %2222 = vmatpush.bf16.msra.mxu0 %v1670
      %2223 = vmatpush.bf16.msra.mxu0 %v1668
      %2224 = vmatpush.bf16.msra.mxu0 %v1666
      %2225 = vmatmul.bf16.gmra.mxu0 %v639
      %v2226 = vpop.f32.mrf.mxu0
      %v2227 = vadd.f32 %v2208, %v2226
      %v2228 = vpop.f32.mrf.mxu0
      %v2229 = vadd.f32 %v2210, %v2228
      %2230 = vmatmul.bf16.gmra.mxu0 %v655
      %v2231 = vpop.f32.mrf.mxu0
      %v2232 = vadd.f32 %v2213, %v2231
      %v2233 = vpop.f32.mrf.mxu0
      %v2234 = vadd.f32 %v2215, %v2233
      %2235 = vdwg.mxu0
      %2236 = vmatpush.bf16.msra.mxu0 %v1696
      %2237 = vmatpush.bf16.msra.mxu0 %v1694
      %2238 = vmatpush.bf16.msra.mxu0 %v1692
      %2239 = vmatpush.bf16.msra.mxu0 %v1690
      %2240 = vmatpush.bf16.msra.mxu0 %v1688
      %2241 = vmatpush.bf16.msra.mxu0 %v1686
      %2242 = vmatpush.bf16.msra.mxu0 %v1684
      %2243 = vmatpush.bf16.msra.mxu0 %v1682
      %2244 = vmatmul.bf16.gmra.mxu0 %v640
      %v2245 = vpop.f32.mrf.mxu0
      %v2246 = vadd.f32 %v2227, %v2245
      %v2247 = vpop.f32.mrf.mxu0
      %v2248 = vadd.f32 %v2229, %v2247
      %2249 = vmatmul.bf16.gmra.mxu0 %v656
      %v2250 = vpop.f32.mrf.mxu0
      %v2251 = vadd.f32 %v2232, %v2250
      %v2252 = vpop.f32.mrf.mxu0
      %v2253 = vadd.f32 %v2234, %v2252
      %2254 = vdwg.mxu0
      %2255 = vmatpush.bf16.msra.mxu0 %v1712
      %2256 = vmatpush.bf16.msra.mxu0 %v1710
      %2257 = vmatpush.bf16.msra.mxu0 %v1708
      %2258 = vmatpush.bf16.msra.mxu0 %v1706
      %2259 = vmatpush.bf16.msra.mxu0 %v1704
      %2260 = vmatpush.bf16.msra.mxu0 %v1702
      %2261 = vmatpush.bf16.msra.mxu0 %v1700
      %2262 = vmatpush.bf16.msra.mxu0 %v1698
      %2263 = vmatmul.bf16.gmra.mxu0 %v641
      %v2264 = vpop.f32.mrf.mxu0
      %v2265 = vadd.f32 %v2246, %v2264
      %v2266 = vpop.f32.mrf.mxu0
      %v2267 = vadd.f32 %v2248, %v2266
      %2268 = vmatmul.bf16.gmra.mxu0 %v657
      %v2269 = vpop.f32.mrf.mxu0
      %v2270 = vadd.f32 %v2251, %v2269
      %v2271 = vpop.f32.mrf.mxu0
      %v2272 = vadd.f32 %v2253, %v2271
      %2273 = vdwg.mxu0
      %2274 = vmatpush.bf16.msra.mxu0 %v1473
      %2275 = vmatpush.bf16.msra.mxu0 %v1471
      %2276 = vmatpush.bf16.msra.mxu0 %v1469
      %2277 = vmatpush.bf16.msra.mxu0 %v1467
      %2278 = vmatpush.bf16.msra.mxu0 %v1465
      %2279 = vmatpush.bf16.msra.mxu0 %v1463
      %2280 = vmatpush.bf16.msra.mxu0 %v1461
      %2281 = vmatpush.bf16.msra.mxu0 %v1459
      %2282 = vmatmul.bf16.gmra.mxu0 %v626
      %v2283 = vpop.f32.mrf.mxu0
      %v2284 = vadd.f32 0.0, %v2283
      %v2285 = vpop.f32.mrf.mxu0
      %v2286 = vadd.f32 0.0, %v2285
      %2287 = vmatmul.bf16.gmra.mxu0 %v642
      %v2288 = vpop.f32.mrf.mxu0
      %v2289 = vadd.f32 0.0, %v2288
      %v2290 = vpop.f32.mrf.mxu0
      %v2291 = vadd.f32 0.0, %v2290
      %2292 = vdwg.mxu0
      %2293 = vmatpush.bf16.msra.mxu0 %v1489
      %2294 = vmatpush.bf16.msra.mxu0 %v1487
      %2295 = vmatpush.bf16.msra.mxu0 %v1485
      %2296 = vmatpush.bf16.msra.mxu0 %v1483
      %2297 = vmatpush.bf16.msra.mxu0 %v1481
      %2298 = vmatpush.bf16.msra.mxu0 %v1479
      %2299 = vmatpush.bf16.msra.mxu0 %v1477
      %2300 = vmatpush.bf16.msra.mxu0 %v1475
      %2301 = vmatmul.bf16.gmra.mxu0 %v627
      %v2302 = vpop.f32.mrf.mxu0
      %v2303 = vadd.f32 %v2284, %v2302
      %v2304 = vpop.f32.mrf.mxu0
      %v2305 = vadd.f32 %v2286, %v2304
      %2306 = vmatmul.bf16.gmra.mxu0 %v643
      %v2307 = vpop.f32.mrf.mxu0
      %v2308 = vadd.f32 %v2289, %v2307
      %v2309 = vpop.f32.mrf.mxu0
      %v2310 = vadd.f32 %v2291, %v2309
      %2311 = vdwg.mxu0
      %2312 = vmatpush.bf16.msra.mxu0 %v1505
      %2313 = vmatpush.bf16.msra.mxu0 %v1503
      %2314 = vmatpush.bf16.msra.mxu0 %v1501
      %2315 = vmatpush.bf16.msra.mxu0 %v1499
      %2316 = vmatpush.bf16.msra.mxu0 %v1497
      %2317 = vmatpush.bf16.msra.mxu0 %v1495
      %2318 = vmatpush.bf16.msra.mxu0 %v1493
      %2319 = vmatpush.bf16.msra.mxu0 %v1491
      %2320 = vmatmul.bf16.gmra.mxu0 %v628
      %v2321 = vpop.f32.mrf.mxu0
      %v2322 = vadd.f32 %v2303, %v2321
      %v2323 = vpop.f32.mrf.mxu0
      %v2324 = vadd.f32 %v2305, %v2323
      %2325 = vmatmul.bf16.gmra.mxu0 %v644
      %v2326 = vpop.f32.mrf.mxu0
      %v2327 = vadd.f32 %v2308, %v2326
      %v2328 = vpop.f32.mrf.mxu0
      %v2329 = vadd.f32 %v2310, %v2328
      %2330 = vdwg.mxu0
      %2331 = vmatpush.bf16.msra.mxu0 %v1521
      %2332 = vmatpush.bf16.msra.mxu0 %v1519
      %2333 = vmatpush.bf16.msra.mxu0 %v1517
      %2334 = vmatpush.bf16.msra.mxu0 %v1515
      %2335 = vmatpush.bf16.msra.mxu0 %v1513
      %2336 = vmatpush.bf16.msra.mxu0 %v1511
      %2337 = vmatpush.bf16.msra.mxu0 %v1509
      %2338 = vmatpush.bf16.msra.mxu0 %v1507
      %2339 = vmatmul.bf16.gmra.mxu0 %v629
      %v2340 = vpop.f32.mrf.mxu0
      %v2341 = vadd.f32 %v2322, %v2340
      %v2342 = vpop.f32.mrf.mxu0
      %v2343 = vadd.f32 %v2324, %v2342
      %2344 = vmatmul.bf16.gmra.mxu0 %v645
      %v2345 = vpop.f32.mrf.mxu0
      %v2346 = vadd.f32 %v2327, %v2345
      %v2347 = vpop.f32.mrf.mxu0
      %v2348 = vadd.f32 %v2329, %v2347
      %2349 = vdwg.mxu0
      %2350 = vmatpush.bf16.msra.mxu0 %v1537
      %2351 = vmatpush.bf16.msra.mxu0 %v1535
      %2352 = vmatpush.bf16.msra.mxu0 %v1533
      %2353 = vmatpush.bf16.msra.mxu0 %v1531
      %2354 = vmatpush.bf16.msra.mxu0 %v1529
      %2355 = vmatpush.bf16.msra.mxu0 %v1527
      %2356 = vmatpush.bf16.msra.mxu0 %v1525
      %2357 = vmatpush.bf16.msra.mxu0 %v1523
      %2358 = vmatmul.bf16.gmra.mxu0 %v630
      %v2359 = vpop.f32.mrf.mxu0
      %v2360 = vadd.f32 %v2341, %v2359
      %v2361 = vpop.f32.mrf.mxu0
      %v2362 = vadd.f32 %v2343, %v2361
      %2363 = vmatmul.bf16.gmra.mxu0 %v646
      %v2364 = vpop.f32.mrf.mxu0
      %v2365 = vadd.f32 %v2346, %v2364
      %v2366 = vpop.f32.mrf.mxu0
      %v2367 = vadd.f32 %v2348, %v2366
      %2368 = vdwg.mxu0
      %2369 = vmatpush.bf16.msra.mxu0 %v1553
      %2370 = vmatpush.bf16.msra.mxu0 %v1551
      %2371 = vmatpush.bf16.msra.mxu0 %v1549
      %2372 = vmatpush.bf16.msra.mxu0 %v1547
      %2373 = vmatpush.bf16.msra.mxu0 %v1545
      %2374 = vmatpush.bf16.msra.mxu0 %v1543
      %2375 = vmatpush.bf16.msra.mxu0 %v1541
      %2376 = vmatpush.bf16.msra.mxu0 %v1539
      %2377 = vmatmul.bf16.gmra.mxu0 %v631
      %v2378 = vpop.f32.mrf.mxu0
      %v2379 = vadd.f32 %v2360, %v2378
      %v2380 = vpop.f32.mrf.mxu0
      %v2381 = vadd.f32 %v2362, %v2380
      %2382 = vmatmul.bf16.gmra.mxu0 %v647
      %v2383 = vpop.f32.mrf.mxu0
      %v2384 = vadd.f32 %v2365, %v2383
      %v2385 = vpop.f32.mrf.mxu0
      %v2386 = vadd.f32 %v2367, %v2385
      %2387 = vdwg.mxu0
      %2388 = vmatpush.bf16.msra.mxu0 %v1569
      %2389 = vmatpush.bf16.msra.mxu0 %v1567
      %2390 = vmatpush.bf16.msra.mxu0 %v1565
      %2391 = vmatpush.bf16.msra.mxu0 %v1563
      %2392 = vmatpush.bf16.msra.mxu0 %v1561
      %2393 = vmatpush.bf16.msra.mxu0 %v1559
      %2394 = vmatpush.bf16.msra.mxu0 %v1557
      %2395 = vmatpush.bf16.msra.mxu0 %v1555
      %2396 = vmatmul.bf16.gmra.mxu0 %v632
      %v2397 = vpop.f32.mrf.mxu0
      %v2398 = vadd.f32 %v2379, %v2397
      %v2399 = vpop.f32.mrf.mxu0
      %v2400 = vadd.f32 %v2381, %v2399
      %2401 = vmatmul.bf16.gmra.mxu0 %v648
      %v2402 = vpop.f32.mrf.mxu0
      %v2403 = vadd.f32 %v2384, %v2402
      %v2404 = vpop.f32.mrf.mxu0
      %v2405 = vadd.f32 %v2386, %v2404
      %2406 = vdwg.mxu0
      %2407 = vmatpush.bf16.msra.mxu0 %v1585
      %2408 = vmatpush.bf16.msra.mxu0 %v1583
      %2409 = vmatpush.bf16.msra.mxu0 %v1581
      %2410 = vmatpush.bf16.msra.mxu0 %v1579
      %2411 = vmatpush.bf16.msra.mxu0 %v1577
      %2412 = vmatpush.bf16.msra.mxu0 %v1575
      %2413 = vmatpush.bf16.msra.mxu0 %v1573
      %2414 = vmatpush.bf16.msra.mxu0 %v1571
      %2415 = vmatmul.bf16.gmra.mxu0 %v633
      %v2416 = vpop.f32.mrf.mxu0
      %v2417 = vadd.f32 %v2398, %v2416
      %v2418 = vpop.f32.mrf.mxu0
      %v2419 = vadd.f32 %v2400, %v2418
      %2420 = vmatmul.bf16.gmra.mxu0 %v649
      %v2421 = vpop.f32.mrf.mxu0
      %v2422 = vadd.f32 %v2403, %v2421
      %v2423 = vpop.f32.mrf.mxu0
      %v2424 = vadd.f32 %v2405, %v2423
      %2425 = vdwg.mxu0
      %2426 = vmatpush.bf16.msra.mxu0 %v1601
      %2427 = vmatpush.bf16.msra.mxu0 %v1599
      %2428 = vmatpush.bf16.msra.mxu0 %v1597
      %2429 = vmatpush.bf16.msra.mxu0 %v1595
      %2430 = vmatpush.bf16.msra.mxu0 %v1593
      %2431 = vmatpush.bf16.msra.mxu0 %v1591
      %2432 = vmatpush.bf16.msra.mxu0 %v1589
      %2433 = vmatpush.bf16.msra.mxu0 %v1587
      %2434 = vmatmul.bf16.gmra.mxu0 %v634
      %v2435 = vpop.f32.mrf.mxu0
      %v2436 = vadd.f32 %v2417, %v2435
      %v2437 = vpop.f32.mrf.mxu0
      %v2438 = vadd.f32 %v2419, %v2437
      %2439 = vmatmul.bf16.gmra.mxu0 %v650
      %v2440 = vpop.f32.mrf.mxu0
      %v2441 = vadd.f32 %v2422, %v2440
      %v2442 = vpop.f32.mrf.mxu0
      %v2443 = vadd.f32 %v2424, %v2442
      %2444 = vdwg.mxu0
      %2445 = vmatpush.bf16.msra.mxu0 %v1617
      %2446 = vmatpush.bf16.msra.mxu0 %v1615
      %2447 = vmatpush.bf16.msra.mxu0 %v1613
      %2448 = vmatpush.bf16.msra.mxu0 %v1611
      %2449 = vmatpush.bf16.msra.mxu0 %v1609
      %2450 = vmatpush.bf16.msra.mxu0 %v1607
      %2451 = vmatpush.bf16.msra.mxu0 %v1605
      %2452 = vmatpush.bf16.msra.mxu0 %v1603
      %2453 = vmatmul.bf16.gmra.mxu0 %v635
      %v2454 = vpop.f32.mrf.mxu0
      %v2455 = vadd.f32 %v2436, %v2454
      %v2456 = vpop.f32.mrf.mxu0
      %v2457 = vadd.f32 %v2438, %v2456
      %2458 = vmatmul.bf16.gmra.mxu0 %v651
      %v2459 = vpop.f32.mrf.mxu0
      %v2460 = vadd.f32 %v2441, %v2459
      %v2461 = vpop.f32.mrf.mxu0
      %v2462 = vadd.f32 %v2443, %v2461
      %2463 = vdwg.mxu0
      %2464 = vmatpush.bf16.msra.mxu0 %v1633
      %2465 = vmatpush.bf16.msra.mxu0 %v1631
      %2466 = vmatpush.bf16.msra.mxu0 %v1629
      %2467 = vmatpush.bf16.msra.mxu0 %v1627
      %2468 = vmatpush.bf16.msra.mxu0 %v1625
      %2469 = vmatpush.bf16.msra.mxu0 %v1623
      %2470 = vmatpush.bf16.msra.mxu0 %v1621
      %2471 = vmatpush.bf16.msra.mxu0 %v1619
      %2472 = vmatmul.bf16.gmra.mxu0 %v636
      %v2473 = vpop.f32.mrf.mxu0
      %v2474 = vadd.f32 %v2455, %v2473
      %v2475 = vpop.f32.mrf.mxu0
      %v2476 = vadd.f32 %v2457, %v2475
      %2477 = vmatmul.bf16.gmra.mxu0 %v652
      %v2478 = vpop.f32.mrf.mxu0
      %v2479 = vadd.f32 %v2460, %v2478
      %v2480 = vpop.f32.mrf.mxu0
      %v2481 = vadd.f32 %v2462, %v2480
      %2482 = vdwg.mxu0
      %2483 = vmatpush.bf16.msra.mxu0 %v1649
      %2484 = vmatpush.bf16.msra.mxu0 %v1647
      %2485 = vmatpush.bf16.msra.mxu0 %v1645
      %2486 = vmatpush.bf16.msra.mxu0 %v1643
      %2487 = vmatpush.bf16.msra.mxu0 %v1641
      %2488 = vmatpush.bf16.msra.mxu0 %v1639
      %2489 = vmatpush.bf16.msra.mxu0 %v1637
      %2490 = vmatpush.bf16.msra.mxu0 %v1635
      %2491 = vmatmul.bf16.gmra.mxu0 %v637
      %v2492 = vpop.f32.mrf.mxu0
      %v2493 = vadd.f32 %v2474, %v2492
      %v2494 = vpop.f32.mrf.mxu0
      %v2495 = vadd.f32 %v2476, %v2494
      %2496 = vmatmul.bf16.gmra.mxu0 %v653
      %v2497 = vpop.f32.mrf.mxu0
      %v2498 = vadd.f32 %v2479, %v2497
      %v2499 = vpop.f32.mrf.mxu0
      %v2500 = vadd.f32 %v2481, %v2499
      %2501 = vdwg.mxu0
      %2502 = vmatpush.bf16.msra.mxu0 %v1665
      %2503 = vmatpush.bf16.msra.mxu0 %v1663
      %2504 = vmatpush.bf16.msra.mxu0 %v1661
      %2505 = vmatpush.bf16.msra.mxu0 %v1659
      %2506 = vmatpush.bf16.msra.mxu0 %v1657
      %2507 = vmatpush.bf16.msra.mxu0 %v1655
      %2508 = vmatpush.bf16.msra.mxu0 %v1653
      %2509 = vmatpush.bf16.msra.mxu0 %v1651
      %2510 = vmatmul.bf16.gmra.mxu0 %v638
      %v2511 = vpop.f32.mrf.mxu0
      %v2512 = vadd.f32 %v2493, %v2511
      %v2513 = vpop.f32.mrf.mxu0
      %v2514 = vadd.f32 %v2495, %v2513
      %2515 = vmatmul.bf16.gmra.mxu0 %v654
      %v2516 = vpop.f32.mrf.mxu0
      %v2517 = vadd.f32 %v2498, %v2516
      %v2518 = vpop.f32.mrf.mxu0
      %v2519 = vadd.f32 %v2500, %v2518
      %2520 = vdwg.mxu0
      %2521 = vmatpush.bf16.msra.mxu0 %v1681
      %2522 = vmatpush.bf16.msra.mxu0 %v1679
      %2523 = vmatpush.bf16.msra.mxu0 %v1677
      %2524 = vmatpush.bf16.msra.mxu0 %v1675
      %2525 = vmatpush.bf16.msra.mxu0 %v1673
      %2526 = vmatpush.bf16.msra.mxu0 %v1671
      %2527 = vmatpush.bf16.msra.mxu0 %v1669
      %2528 = vmatpush.bf16.msra.mxu0 %v1667
      %2529 = vmatmul.bf16.gmra.mxu0 %v639
      %v2530 = vpop.f32.mrf.mxu0
      %v2531 = vadd.f32 %v2512, %v2530
      %v2532 = vpop.f32.mrf.mxu0
      %v2533 = vadd.f32 %v2514, %v2532
      %2534 = vmatmul.bf16.gmra.mxu0 %v655
      %v2535 = vpop.f32.mrf.mxu0
      %v2536 = vadd.f32 %v2517, %v2535
      %v2537 = vpop.f32.mrf.mxu0
      %v2538 = vadd.f32 %v2519, %v2537
      %2539 = vdwg.mxu0
      %2540 = vmatpush.bf16.msra.mxu0 %v1697
      %2541 = vmatpush.bf16.msra.mxu0 %v1695
      %2542 = vmatpush.bf16.msra.mxu0 %v1693
      %2543 = vmatpush.bf16.msra.mxu0 %v1691
      %2544 = vmatpush.bf16.msra.mxu0 %v1689
      %2545 = vmatpush.bf16.msra.mxu0 %v1687
      %2546 = vmatpush.bf16.msra.mxu0 %v1685
      %2547 = vmatpush.bf16.msra.mxu0 %v1683
      %2548 = vmatmul.bf16.gmra.mxu0 %v640
      %v2549 = vpop.f32.mrf.mxu0
      %v2550 = vadd.f32 %v2531, %v2549
      %v2551 = vpop.f32.mrf.mxu0
      %v2552 = vadd.f32 %v2533, %v2551
      %2553 = vmatmul.bf16.gmra.mxu0 %v656
      %v2554 = vpop.f32.mrf.mxu0
      %v2555 = vadd.f32 %v2536, %v2554
      %v2556 = vpop.f32.mrf.mxu0
      %v2557 = vadd.f32 %v2538, %v2556
      %2558 = vdwg.mxu0
      %2559 = vmatpush.bf16.msra.mxu0 %v1713
      %2560 = vmatpush.bf16.msra.mxu0 %v1711
      %2561 = vmatpush.bf16.msra.mxu0 %v1709
      %2562 = vmatpush.bf16.msra.mxu0 %v1707
      %2563 = vmatpush.bf16.msra.mxu0 %v1705
      %2564 = vmatpush.bf16.msra.mxu0 %v1703
      %2565 = vmatpush.bf16.msra.mxu0 %v1701
      %2566 = vmatpush.bf16.msra.mxu0 %v1699
      %2567 = vmatmul.bf16.gmra.mxu0 %v641
      %v2568 = vpop.f32.mrf.mxu0
      %v2569 = vadd.f32 %v2550, %v2568
      %v2570 = vpop.f32.mrf.mxu0
      %v2571 = vadd.f32 %v2552, %v2570
      %2572 = vmatmul.bf16.gmra.mxu0 %v657
      %v2573 = vpop.f32.mrf.mxu0
      %v2574 = vadd.f32 %v2555, %v2573
      %v2575 = vpop.f32.mrf.mxu0
      %v2576 = vadd.f32 %v2557, %v2575
      %2577 = vdwg.mxu0
      %2578 = vst [vmem:[%s239] sm:$0xff] %v2265
      %2579 = vst [vmem:[%s239 + $0x8] sm:$0xff] %v2569
      %2580 = vst [vmem:[%s239 + $0x10] sm:$0xff] %v2267
      %2581 = vst [vmem:[%s239 + $0x18] sm:$0xff] %v2571
      %2582 = vst [vmem:[%s239 + $0x20] sm:$0xff] %v2270
      %2583 = vst [vmem:[%s239 + $0x28] sm:$0xff] %v2574
      %2584 = vst [vmem:[%s239 + $0x30] sm:$0xff] %v2272
      %2585 = vst [vmem:[%s239 + $0x38] sm:$0xff] %v2576
      %s2586 = smul.u32 4, %s19
      %s2587 = smul.u32 2, %s20
      %p2588 = scmp.lt.s32.totalorder %s18, 3
      %s2589 = scalar_select %p2588, %s18, 3
      %p2590 = scmp.lt.s32.totalorder %s2586, 3
      %s2591 = scalar_select %p2590, %s2586, 3
      %p2592 = scmp.lt.s32.totalorder %s2587, 1
      %s2593 = scalar_select %p2592, %s2587, 1
      %s2594 = smul.addr %s2591, 2
      %s2595 = sadd.s32 %s2593, %s2594
      %s2596 = smul.addr %s2589, 8
      %s2597 = sadd.s32 %s2595, %s2596
      %s2598 = smul.addr %s2597, 8
      %s2599 = scalar_lea.vmem %s2, %s2598
      // Predicated region
      $region29: #{generator_forward.16} parent=27 // pred_check
        %p2600 = pneg %p110
      $region30: #{generator_forward.16} parent=27 // pred_check_branch
        %2602 = sbr.rel (%p2600) target = $region32
      $region31: #{generator_forward.16} parent=27 // pred_region
        %s2603 = smul.u32 4, %s19
        %s2604 = smul.u32 2, %s20
      $region32: #{generator_forward.16} parent=27 // pred_fallthru
        _
    $region28: #{generator_forward.16} parent=5 // pred_fallthru
      _
    %p2605 = scmp.le.s32.totalorder 2, %s8
    // Predicated region
    $region33: #{generator_forward.16} parent=5 // pred_check
      %p2606 = pneg %p2605
    $region34: #{generator_forward.16} parent=5 // pred_check_branch
      %2608 = sbr.rel (%p2606) target = $region36
    $region35: #{generator_forward.16} parent=5 // pred_region
      %s2609 = ssub.s32 %s8, 2
      // Predicated region
      $region37: #{generator_forward.16} parent=35 // pred_check
        %p2610 = pneg %p116
      $region38: #{generator_forward.16} parent=35 // pred_check_branch
        %2612 = sbr.rel (%p2610) target = $region40
      $region39: #{generator_forward.16} parent=35 // pred_region
        %s2613 = smul.u32 4, %s22
        %s2614 = smul.u32 2, %s23
        %p2615 = scmp.lt.s32.totalorder %s21, 3
        %s2616 = scalar_select %p2615, %s21, 3
        %p2617 = scmp.lt.s32.totalorder %s2613, 3
        %s2618 = scalar_select %p2617, %s2613, 3
        %p2619 = scmp.lt.s32.totalorder %s2614, 1
        %s2620 = scalar_select %p2619, %s2614, 1
        %s2621 = smul.addr %s2618, 2
        %s2622 = sadd.s32 %s2620, %s2621
        %s2623 = smul.addr %s2616, 8
        %s2624 = sadd.s32 %s2622, %s2623
        %s2625 = smul.addr %s2624, 8
        %s2626 = scalar_lea.vmem %s2, %s2625
      $region40: #{generator_forward.16} parent=35 // pred_fallthru
        _
    $region36: #{generator_forward.16} parent=5 // pred_fallthru
      _
  $region6: #{generator_forward.16} parent=0 // loop_footer
    %s12 = sadd.s32 1, %s8
  $region7: #{generator_forward.16} parent=0 // loop_footer_branch
    %7 = sbr.rel target = $region3
  $region8: #{generator_forward.16} parent=0 // loop_exit
    _

// kernel: generator_forward.19
$region0: #{generator_forward.19}
  #allocation0 [shape = 'u32[]', space=smem, size = 0x4, offset = 0x4, fixed_abs, tag = 'smem constant byte address 0x4 - core index']
  #allocation1 [shape = 'u32[72,128]{1,0:T(1,128)}', space=vmem, size = 0x9000, scoped, tag = 'internal scratch']
  %s0 = inlined_call_operand.vmem [shape: bf16[4,128,1024], index: 0, kind: input, shape index: {}]
  %s1 = inlined_call_operand.vmem [shape: bf16[4,1024,128], index: 1, kind: input, shape index: {}]
  %s2 = inlined_call_operand.vmem [shape: f32[4,128,128], index: 2, kind: output, shape index: {}]
  %s3 = sld [smem:[#allocation0]]
  $region41: #{generator_forward.19} parent=0
    _
  %s5 = ssub.s32 1, %s3
  %s6 = scalar_select 0, %s5, %s3
  loop: start=0, step=1, limit=6
  $region2: #{generator_forward.19} parent=0 // loop_pre_header
    _
  $region3: #{generator_forward.19} parent=0 // loop_header
    %s8 = sphi 0, %s12
    %p9 = scmp.ge.s32.totalorder %s8, 6
    %s15 = sphi 0, %s34
    %s16 = sphi 0, %s30
    %s17 = sphi 0, %s26
    %s18 = sphi 0, %s15
    %s19 = sphi 0, %s16
    %s20 = sphi 0, %s17
    %s21 = sphi 0, %s18
    %s22 = sphi 0, %s19
    %s23 = sphi 0, %s20
    %s39 = sphi 0, %s41
    %s42 = sphi 0, %s39
    %s43 = sphi 0, %s42
    %s59 = sphi 0, %s43
    %s67 = sphi 0, %s69
    %s70 = sphi 0, %s67
    %s71 = sphi 0, %s70
    %s87 = sphi 0, %s71
    %s97 = sphi 0, %s99
    %s100 = sphi 0, %s97
    %s101 = sphi 0, %s100
    %s117 = sphi 0, %s101
  $region4: #{generator_forward.19} parent=0 // loop_header_branch
    %11 = sbr.rel (%p9) target = $region8
  $region5: #{generator_forward.19} parent=0 // loop_body
    %s13 = ssub.s32 %s8, 1
    %s14 = ssub.s32 %s8, 2
    %s24 = sadd.s32 1, %s17
    %p25 = scmp.ge.s32.totalorder %s24, 1
    %s26 = scalar_select %p25, 0, %s24
    %s27 = sadd.s32 1, %s16
    %s28 = scalar_select %p25, %s27, %s16
    %p29 = scmp.ge.s32.totalorder %s28, 1
    %s30 = scalar_select %p29, 0, %s28
    %s31 = sadd.s32 1, %s15
    %s32 = scalar_select %p29, %s31, %s15
    %p33 = scmp.ge.s32.totalorder %s32, 4
    %s34 = scalar_select %p33, 0, %s32
    %s35 = ssub.s32 %s15, %s34
    %s36 = ssub.s32 %s16, %s30
    %s37 = sor.u32 %s35, %s36
    %p38 = scmp.eq.s32.totalorder %s37, 0
    %s40 = sadd.s32 %s39, 1
    %s41 = scalar_select %p38, %s39, %s40
    %p44 = pneg %p38
    %p45 = scmp.eq.s32.totalorder %s8, 3
    %p46 = por %p44, %p45
    %p47 = scmp.ne.s32.totalorder %s39, %s42
    %p48 = scmp.eq.s32.totalorder %s8, 0
    %p49 = por %p47, %p48
    %p50 = scmp.ne.s32.totalorder %s39, %s42
    %p51 = scmp.eq.s32.totalorder %s13, 3
    %p52 = por %p50, %p51
    %p53 = scmp.ne.s32.totalorder %s42, %s43
    %p54 = scmp.eq.s32.totalorder %s13, 0
    %p55 = por %p53, %p54
    %p56 = scmp.ne.s32.totalorder %s42, %s43
    %p57 = scmp.eq.s32.totalorder %s14, 3
    %p58 = por %p56, %p57
    %p60 = scmp.ne.s32.totalorder %s43, %s59
    %p61 = scmp.eq.s32.totalorder %s14, 0
    %p62 = por %p60, %p61
    %s63 = ssub.s32 %s15, %s34
    %s64 = ssub.s32 %s17, %s26
    %s65 = sor.u32 %s63, %s64
    %p66 = scmp.eq.s32.totalorder %s65, 0
    %s68 = sadd.s32 %s67, 1
    %s69 = scalar_select %p66, %s67, %s68
    %p72 = pneg %p66
    %p73 = scmp.eq.s32.totalorder %s8, 3
    %p74 = por %p72, %p73
    %p75 = scmp.ne.s32.totalorder %s67, %s70
    %p76 = scmp.eq.s32.totalorder %s8, 0
    %p77 = por %p75, %p76
    %p78 = scmp.ne.s32.totalorder %s67, %s70
    %p79 = scmp.eq.s32.totalorder %s13, 3
    %p80 = por %p78, %p79
    %p81 = scmp.ne.s32.totalorder %s70, %s71
    %p82 = scmp.eq.s32.totalorder %s13, 0
    %p83 = por %p81, %p82
    %p84 = scmp.ne.s32.totalorder %s70, %s71
    %p85 = scmp.eq.s32.totalorder %s14, 3
    %p86 = por %p84, %p85
    %p88 = scmp.ne.s32.totalorder %s71, %s87
    %p89 = scmp.eq.s32.totalorder %s14, 0
    %p90 = por %p88, %p89
    %s91 = ssub.s32 %s15, %s34
    %s92 = ssub.s32 %s16, %s30
    %s93 = sor.u32 %s91, %s92
    %s94 = ssub.s32 %s17, %s26
    %s95 = sor.u32 %s93, %s94
    %p96 = scmp.eq.s32.totalorder %s95, 0
    %s98 = sadd.s32 %s97, 1
    %s99 = scalar_select %p96, %s97, %s98
    %p102 = pneg %p96
    %p103 = scmp.eq.s32.totalorder %s8, 3
    %p104 = por %p102, %p103
    %p105 = scmp.ne.s32.totalorder %s97, %s100
    %p106 = scmp.eq.s32.totalorder %s8, 0
    %p107 = por %p105, %p106
    %p108 = scmp.ne.s32.totalorder %s97, %s100
    %p109 = scmp.eq.s32.totalorder %s13, 3
    %p110 = por %p108, %p109
    %p111 = scmp.ne.s32.totalorder %s100, %s101
    %p112 = scmp.eq.s32.totalorder %s13, 0
    %p113 = por %p111, %p112
    %p114 = scmp.ne.s32.totalorder %s100, %s101
    %p115 = scmp.eq.s32.totalorder %s14, 3
    %p116 = por %p114, %p115
    %p118 = scmp.ne.s32.totalorder %s101, %s117
    %p119 = scmp.eq.s32.totalorder %s14, 0
    %p120 = por %p118, %p119
    %p121 = scmp.le.s32.totalorder 1, %s8
    %p122 = scmp.lt.s32.totalorder %s8, 5
    %p123 = pnand %p121, %p122
    %p124 = pneg %p123
    // Predicated region
    $region9: #{generator_forward.19} parent=5 // pred_check
      _
    $region10: #{generator_forward.19} parent=5 // pred_check_branch
      %126 = sbr.rel (%p123) target = $region12
    $region11: #{generator_forward.19} parent=5 // pred_region
      %s127 = ssub.s32 %s8, 1
    $region12: #{generator_forward.19} parent=5 // pred_fallthru
      _
    %p128 = scmp.lt.s32.totalorder %s8, 4
    // Predicated region
    $region13: #{generator_forward.19} parent=5 // pred_check
      %p129 = pneg %p128
    $region14: #{generator_forward.19} parent=5 // pred_check_branch
      %131 = sbr.rel (%p129) target = $region16
    $region15: #{generator_forward.19} parent=5 // pred_region
      // Predicated region
      $region17: #{generator_forward.19} parent=15 // pred_check
        %p132 = pneg %p49
      $region18: #{generator_forward.19} parent=15 // pred_check_branch
        %134 = sbr.rel (%p132) target = $region20
      $region19: #{generator_forward.19} parent=15 // pred_region
        %s135 = smul.u32 16, %s16
        %p136 = scmp.lt.s32.totalorder %s15, 3
        %s137 = scalar_select %p136, %s15, 3
        %p138 = scmp.lt.s32.totalorder %s135, 15
        %s139 = scalar_select %p138, %s135, 15
        %s140 = smul.addr %s139, 8
        %s141 = smul.addr %s137, 128
        %s142 = sadd.s32 %s140, %s141
        %s143 = smul.addr %s142, 4
        %s144 = scalar_lea.vmem %s0, %s143
        %s145 = smul.u32 16, %s16
      $region20: #{generator_forward.19} parent=15 // pred_fallthru
        _
      // Predicated region
      $region21: #{generator_forward.19} parent=15 // pred_check
        %p146 = pneg %p77
      $region22: #{generator_forward.19} parent=15 // pred_check_branch
        %148 = sbr.rel (%p146) target = $region24
      $region23: #{generator_forward.19} parent=15 // pred_region
        %p149 = scmp.lt.s32.totalorder %s15, 3
        %s150 = scalar_select %p149, %s15, 3
        %p151 = scmp.lt.s32.totalorder %s17, 0
        %s152 = scalar_select %p151, %s17, 0
        %s153 = smul.addr %s150, 128
        %s154 = sadd.s32 %s152, %s153
        %s155 = smul.addr %s154, 4
        %s156 = scalar_lea.vmem %s1, %s155
      $region24: #{generator_forward.19} parent=15 // pred_fallthru
        _
    $region16: #{generator_forward.19} parent=5 // pred_fallthru
      _
    %p157 = scmp.le.s32.totalorder 1, %s8
    %p158 = scmp.lt.s32.totalorder %s8, 5
    %p159 = pnand %p157, %p158
    %p160 = pneg %p159
    // Predicated region
    $region25: #{generator_forward.19} parent=5 // pred_check
      _
    $region26: #{generator_forward.19} parent=5 // pred_check_branch
      %162 = sbr.rel (%p159) target = $region28
    $region27: #{generator_forward.19} parent=5 // pred_region
      %s163 = ssub.s32 %s8, 1
      %s164 = smul.u32 16, %s19
      %p165 = scmp.lt.s32.totalorder %s18, 3
      %s166 = scalar_select %p165, %s18, 3
      %p167 = scmp.lt.s32.totalorder %s164, 15
      %s168 = scalar_select %p167, %s164, 15
      %s169 = smul.addr %s168, 8
      %s170 = smul.addr %s166, 128
      %s171 = sadd.s32 %s169, %s170
      %s172 = smul.addr %s171, 4
      %s173 = scalar_lea.vmem %s0, %s172
      %p174 = pneg %p55
      %p175 = pneg %p52
      %p176 = scmp.lt.s32.totalorder %s18, 3
      %s177 = scalar_select %p176, %s18, 3
      %p178 = scmp.lt.s32.totalorder %s20, 0
      %s179 = scalar_select %p178, %s20, 0
      %s180 = smul.addr %s177, 128
      %s181 = sadd.s32 %s179, %s180
      %s182 = smul.addr %s181, 4
      %s183 = scalar_lea.vmem %s1, %s182
      %p184 = pneg %p83
      %p185 = pneg %p80
      %p186 = pneg %p113
      %p187 = pneg %p110
      %s188 = smul.u32 16, %s19
      %p189 = scmp.lt.s32.totalorder %s18, 3
      %s190 = scalar_select %p189, %s18, 3
      %p191 = scmp.lt.s32.totalorder %s188, 15
      %s192 = scalar_select %p191, %s188, 15
      %p193 = scmp.lt.s32.totalorder %s20, 0
      %s194 = scalar_select %p193, %s20, 0
      %s195 = sadd.s32 %s194, %s192
      %s196 = smul.addr %s190, 16
      %s197 = sadd.s32 %s195, %s196
      %s198 = smul.addr %s197, 8
      %s199 = scalar_lea.vmem %s2, %s198
      %s200 = smul.u32 16, %s19
      %p201 = scmp.lt.s32.totalorder %s18, 3
      %s202 = scalar_select %p201, %s18, 3
      %p203 = scmp.lt.s32.totalorder %s200, 15
      %s204 = scalar_select %p203, %s200, 15
      %s205 = smul.addr %s204, 8
      %s206 = smul.addr %s202, 128
      %s207 = sadd.s32 %s205, %s206
      %s208 = smul.addr %s207, 4
      %s209 = scalar_lea.vmem %s0, %s208
      %s210 = smul.u32 16, %s19
      %p211 = scmp.lt.s32.totalorder %s18, 3
      %s212 = scalar_select %p211, %s18, 3
      %p213 = scmp.lt.s32.totalorder %s20, 0
      %s214 = scalar_select %p213, %s20, 0
      %s215 = smul.addr %s212, 128
      %s216 = sadd.s32 %s214, %s215
      %s217 = smul.addr %s216, 4
      %s218 = scalar_lea.vmem %s1, %s217
      %s219 = smul.u32 16, %s19
      %p220 = scmp.lt.s32.totalorder %s18, 3
      %s221 = scalar_select %p220, %s18, 3
      %p222 = scmp.lt.s32.totalorder %s219, 15
      %s223 = scalar_select %p222, %s219, 15
      %p224 = scmp.lt.s32.totalorder %s20, 0
      %s225 = scalar_select %p224, %s20, 0
      %s226 = sadd.s32 %s225, %s223
      %s227 = smul.addr %s221, 16
      %s228 = sadd.s32 %s226, %s227
      %s229 = smul.addr %s228, 8
      %s230 = scalar_lea.vmem %s2, %s229
      %s231 = smul.u32 16, %s19
      %v232 = vld [vmem:[%s209] sm:$0xff]
      %v233 = vld [vmem:[%s209 + $0x8] sm:$0xff]
      %v234 = vld [vmem:[%s209 + $0x10] sm:$0xff]
      %v235 = vld [vmem:[%s209 + $0x18] sm:$0xff]
      %v236 = vld [vmem:[%s209 + $0x20] sm:$0xff]
      %v237 = vld [vmem:[%s209 + $0x28] sm:$0xff]
      %v238 = vld [vmem:[%s209 + $0x30] sm:$0xff]
      %v239 = vld [vmem:[%s209 + $0x38] sm:$0xff]
      %v240 = vld [vmem:[%s209 + $0x40] sm:$0xff]
      %v241 = vld [vmem:[%s209 + $0x48] sm:$0xff]
      %v242 = vld [vmem:[%s209 + $0x50] sm:$0xff]
      %v243 = vld [vmem:[%s209 + $0x58] sm:$0xff]
      %v244 = vld [vmem:[%s209 + $0x60] sm:$0xff]
      %v245 = vld [vmem:[%s209 + $0x68] sm:$0xff]
      %v246 = vld [vmem:[%s209 + $0x70] sm:$0xff]
      %v247 = vld [vmem:[%s209 + $0x78] sm:$0xff]
      %v248 = vld [vmem:[%s209 + $0x80] sm:$0xff]
      %v249 = vld [vmem:[%s209 + $0x88] sm:$0xff]
      %v250 = vld [vmem:[%s209 + $0x90] sm:$0xff]
      %v251 = vld [vmem:[%s209 + $0x98] sm:$0xff]
      %v252 = vld [vmem:[%s209 + $0xa0] sm:$0xff]
      %v253 = vld [vmem:[%s209 + $0xa8] sm:$0xff]
      %v254 = vld [vmem:[%s209 + $0xb0] sm:$0xff]
      %v255 = vld [vmem:[%s209 + $0xb8] sm:$0xff]
      %v256 = vld [vmem:[%s209 + $0xc0] sm:$0xff]
      %v257 = vld [vmem:[%s209 + $0xc8] sm:$0xff]
      %v258 = vld [vmem:[%s209 + $0xd0] sm:$0xff]
      %v259 = vld [vmem:[%s209 + $0xd8] sm:$0xff]
      %v260 = vld [vmem:[%s209 + $0xe0] sm:$0xff]
      %v261 = vld [vmem:[%s209 + $0xe8] sm:$0xff]
      %v262 = vld [vmem:[%s209 + $0xf0] sm:$0xff]
      %v263 = vld [vmem:[%s209 + $0xf8] sm:$0xff]
      %v264 = vld [vmem:[%s209 + $0x100] sm:$0xff]
      %v265 = vld [vmem:[%s209 + $0x108] sm:$0xff]
      %v266 = vld [vmem:[%s209 + $0x110] sm:$0xff]
      %v267 = vld [vmem:[%s209 + $0x118] sm:$0xff]
      %v268 = vld [vmem:[%s209 + $0x120] sm:$0xff]
      %v269 = vld [vmem:[%s209 + $0x128] sm:$0xff]
      %v270 = vld [vmem:[%s209 + $0x130] sm:$0xff]
      %v271 = vld [vmem:[%s209 + $0x138] sm:$0xff]
      %v272 = vld [vmem:[%s209 + $0x140] sm:$0xff]
      %v273 = vld [vmem:[%s209 + $0x148] sm:$0xff]
      %v274 = vld [vmem:[%s209 + $0x150] sm:$0xff]
      %v275 = vld [vmem:[%s209 + $0x158] sm:$0xff]
      %v276 = vld [vmem:[%s209 + $0x160] sm:$0xff]
      %v277 = vld [vmem:[%s209 + $0x168] sm:$0xff]
      %v278 = vld [vmem:[%s209 + $0x170] sm:$0xff]
      %v279 = vld [vmem:[%s209 + $0x178] sm:$0xff]
      %v280 = vld [vmem:[%s209 + $0x180] sm:$0xff]
      %v281 = vld [vmem:[%s209 + $0x188] sm:$0xff]
      %v282 = vld [vmem:[%s209 + $0x190] sm:$0xff]
      %v283 = vld [vmem:[%s209 + $0x198] sm:$0xff]
      %v284 = vld [vmem:[%s209 + $0x1a0] sm:$0xff]
      %v285 = vld [vmem:[%s209 + $0x1a8] sm:$0xff]
      %v286 = vld [vmem:[%s209 + $0x1b0] sm:$0xff]
      %v287 = vld [vmem:[%s209 + $0x1b8] sm:$0xff]
      %v288 = vld [vmem:[%s209 + $0x1c0] sm:$0xff]
      %v289 = vld [vmem:[%s209 + $0x1c8] sm:$0xff]
      %v290 = vld [vmem:[%s209 + $0x1d0] sm:$0xff]
      %v291 = vld [vmem:[%s209 + $0x1d8] sm:$0xff]
      %v292 = vld [vmem:[%s209 + $0x1e0] sm:$0xff]
      %v293 = vld [vmem:[%s209 + $0x1e8] sm:$0xff]
      %v294 = vld [vmem:[%s209 + $0x1f0] sm:$0xff]
      %v295 = vld [vmem:[%s209 + $0x1f8] sm:$0xff]
      %v296 = vld [vmem:[%s218] sm:$0xf]
      %v297 = vld [vmem:[%s218 + $0x4] sm:$0xf]
      %v298 = vld [vmem:[%s218 + $0x8] sm:$0xf]
      %v299 = vld [vmem:[%s218 + $0xc] sm:$0xf]
      %v300 = vld [vmem:[%s218 + $0x10] sm:$0xf]
      %v301 = vld [vmem:[%s218 + $0x14] sm:$0xf]
      %v302 = vld [vmem:[%s218 + $0x18] sm:$0xf]
      %v303 = vld [vmem:[%s218 + $0x1c] sm:$0xf]
      %v304 = vld [vmem:[%s218 + $0x20] sm:$0xf]
      %v305 = vld [vmem:[%s218 + $0x24] sm:$0xf]
      %v306 = vld [vmem:[%s218 + $0x28] sm:$0xf]
      %v307 = vld [vmem:[%s218 + $0x2c] sm:$0xf]
      %v308 = vld [vmem:[%s218 + $0x30] sm:$0xf]
      %v309 = vld [vmem:[%s218 + $0x34] sm:$0xf]
      %v310 = vld [vmem:[%s218 + $0x38] sm:$0xf]
      %v311 = vld [vmem:[%s218 + $0x3c] sm:$0xf]
      %v312 = vld [vmem:[%s218 + $0x40] sm:$0xf]
      %v313 = vld [vmem:[%s218 + $0x44] sm:$0xf]
      %v314 = vld [vmem:[%s218 + $0x48] sm:$0xf]
      %v315 = vld [vmem:[%s218 + $0x4c] sm:$0xf]
      %v316 = vld [vmem:[%s218 + $0x50] sm:$0xf]
      %v317 = vld [vmem:[%s218 + $0x54] sm:$0xf]
      %v318 = vld [vmem:[%s218 + $0x58] sm:$0xf]
      %v319 = vld [vmem:[%s218 + $0x5c] sm:$0xf]
      %v320 = vld [vmem:[%s218 + $0x60] sm:$0xf]
      %v321 = vld [vmem:[%s218 + $0x64] sm:$0xf]
      %v322 = vld [vmem:[%s218 + $0x68] sm:$0xf]
      %v323 = vld [vmem:[%s218 + $0x6c] sm:$0xf]
      %v324 = vld [vmem:[%s218 + $0x70] sm:$0xf]
      %v325 = vld [vmem:[%s218 + $0x74] sm:$0xf]
      %v326 = vld [vmem:[%s218 + $0x78] sm:$0xf]
      %v327 = vld [vmem:[%s218 + $0x7c] sm:$0xf]
      %v328 = vld [vmem:[%s218 + $0x80] sm:$0xf]
      %v329 = vld [vmem:[%s218 + $0x84] sm:$0xf]
      %v330 = vld [vmem:[%s218 + $0x88] sm:$0xf]
      %v331 = vld [vmem:[%s218 + $0x8c] sm:$0xf]
      %v332 = vld [vmem:[%s218 + $0x90] sm:$0xf]
      %v333 = vld [vmem:[%s218 + $0x94] sm:$0xf]
      %v334 = vld [vmem:[%s218 + $0x98] sm:$0xf]
      %v335 = vld [vmem:[%s218 + $0x9c] sm:$0xf]
      %v336 = vld [vmem:[%s218 + $0xa0] sm:$0xf]
      %v337 = vld [vmem:[%s218 + $0xa4] sm:$0xf]
      %v338 = vld [vmem:[%s218 + $0xa8] sm:$0xf]
      %v339 = vld [vmem:[%s218 + $0xac] sm:$0xf]
      %v340 = vld [vmem:[%s218 + $0xb0] sm:$0xf]
      %v341 = vld [vmem:[%s218 + $0xb4] sm:$0xf]
      %v342 = vld [vmem:[%s218 + $0xb8] sm:$0xf]
      %v343 = vld [vmem:[%s218 + $0xbc] sm:$0xf]
      %v344 = vld [vmem:[%s218 + $0xc0] sm:$0xf]
      %v345 = vld [vmem:[%s218 + $0xc4] sm:$0xf]
      %v346 = vld [vmem:[%s218 + $0xc8] sm:$0xf]
      %v347 = vld [vmem:[%s218 + $0xcc] sm:$0xf]
      %v348 = vld [vmem:[%s218 + $0xd0] sm:$0xf]
      %v349 = vld [vmem:[%s218 + $0xd4] sm:$0xf]
      %v350 = vld [vmem:[%s218 + $0xd8] sm:$0xf]
      %v351 = vld [vmem:[%s218 + $0xdc] sm:$0xf]
      %v352 = vld [vmem:[%s218 + $0xe0] sm:$0xf]
      %v353 = vld [vmem:[%s218 + $0xe4] sm:$0xf]
      %v354 = vld [vmem:[%s218 + $0xe8] sm:$0xf]
      %v355 = vld [vmem:[%s218 + $0xec] sm:$0xf]
      %v356 = vld [vmem:[%s218 + $0xf0] sm:$0xf]
      %v357 = vld [vmem:[%s218 + $0xf4] sm:$0xf]
      %v358 = vld [vmem:[%s218 + $0xf8] sm:$0xf]
      %v359 = vld [vmem:[%s218 + $0xfc] sm:$0xf]
      %v360 = vld [vmem:[%s218 + $0x100] sm:$0xf]
      %v361 = vld [vmem:[%s218 + $0x104] sm:$0xf]
      %v362 = vld [vmem:[%s218 + $0x108] sm:$0xf]
      %v363 = vld [vmem:[%s218 + $0x10c] sm:$0xf]
      %v364 = vld [vmem:[%s218 + $0x110] sm:$0xf]
      %v365 = vld [vmem:[%s218 + $0x114] sm:$0xf]
      %v366 = vld [vmem:[%s218 + $0x118] sm:$0xf]
      %v367 = vld [vmem:[%s218 + $0x11c] sm:$0xf]
      %v368 = vld [vmem:[%s218 + $0x120] sm:$0xf]
      %v369 = vld [vmem:[%s218 + $0x124] sm:$0xf]
      %v370 = vld [vmem:[%s218 + $0x128] sm:$0xf]
      %v371 = vld [vmem:[%s218 + $0x12c] sm:$0xf]
      %v372 = vld [vmem:[%s218 + $0x130] sm:$0xf]
      %v373 = vld [vmem:[%s218 + $0x134] sm:$0xf]
      %v374 = vld [vmem:[%s218 + $0x138] sm:$0xf]
      %v375 = vld [vmem:[%s218 + $0x13c] sm:$0xf]
      %v376 = vld [vmem:[%s218 + $0x140] sm:$0xf]
      %v377 = vld [vmem:[%s218 + $0x144] sm:$0xf]
      %v378 = vld [vmem:[%s218 + $0x148] sm:$0xf]
      %v379 = vld [vmem:[%s218 + $0x14c] sm:$0xf]
      %v380 = vld [vmem:[%s218 + $0x150] sm:$0xf]
      %v381 = vld [vmem:[%s218 + $0x154] sm:$0xf]
      %v382 = vld [vmem:[%s218 + $0x158] sm:$0xf]
      %v383 = vld [vmem:[%s218 + $0x15c] sm:$0xf]
      %v384 = vld [vmem:[%s218 + $0x160] sm:$0xf]
      %v385 = vld [vmem:[%s218 + $0x164] sm:$0xf]
      %v386 = vld [vmem:[%s218 + $0x168] sm:$0xf]
      %v387 = vld [vmem:[%s218 + $0x16c] sm:$0xf]
      %v388 = vld [vmem:[%s218 + $0x170] sm:$0xf]
      %v389 = vld [vmem:[%s218 + $0x174] sm:$0xf]
      %v390 = vld [vmem:[%s218 + $0x178] sm:$0xf]
      %v391 = vld [vmem:[%s218 + $0x17c] sm:$0xf]
      %v392 = vld [vmem:[%s218 + $0x180] sm:$0xf]
      %v393 = vld [vmem:[%s218 + $0x184] sm:$0xf]
      %v394 = vld [vmem:[%s218 + $0x188] sm:$0xf]
      %v395 = vld [vmem:[%s218 + $0x18c] sm:$0xf]
      %v396 = vld [vmem:[%s218 + $0x190] sm:$0xf]
      %v397 = vld [vmem:[%s218 + $0x194] sm:$0xf]
      %v398 = vld [vmem:[%s218 + $0x198] sm:$0xf]
      %v399 = vld [vmem:[%s218 + $0x19c] sm:$0xf]
      %v400 = vld [vmem:[%s218 + $0x1a0] sm:$0xf]
      %v401 = vld [vmem:[%s218 + $0x1a4] sm:$0xf]
      %v402 = vld [vmem:[%s218 + $0x1a8] sm:$0xf]
      %v403 = vld [vmem:[%s218 + $0x1ac] sm:$0xf]
      %v404 = vld [vmem:[%s218 + $0x1b0] sm:$0xf]
      %v405 = vld [vmem:[%s218 + $0x1b4] sm:$0xf]
      %v406 = vld [vmem:[%s218 + $0x1b8] sm:$0xf]
      %v407 = vld [vmem:[%s218 + $0x1bc] sm:$0xf]
      %v408 = vld [vmem:[%s218 + $0x1c0] sm:$0xf]
      %v409 = vld [vmem:[%s218 + $0x1c4] sm:$0xf]
      %v410 = vld [vmem:[%s218 + $0x1c8] sm:$0xf]
      %v411 = vld [vmem:[%s218 + $0x1cc] sm:$0xf]
      %v412 = vld [vmem:[%s218 + $0x1d0] sm:$0xf]
      %v413 = vld [vmem:[%s218 + $0x1d4] sm:$0xf]
      %v414 = vld [vmem:[%s218 + $0x1d8] sm:$0xf]
      %v415 = vld [vmem:[%s218 + $0x1dc] sm:$0xf]
      %v416 = vld [vmem:[%s218 + $0x1e0] sm:$0xf]
      %v417 = vld [vmem:[%s218 + $0x1e4] sm:$0xf]
      %v418 = vld [vmem:[%s218 + $0x1e8] sm:$0xf]
      %v419 = vld [vmem:[%s218 + $0x1ec] sm:$0xf]
      %v420 = vld [vmem:[%s218 + $0x1f0] sm:$0xf]
      %v421 = vld [vmem:[%s218 + $0x1f4] sm:$0xf]
      %v422 = vld [vmem:[%s218 + $0x1f8] sm:$0xf]
      %v423 = vld [vmem:[%s218 + $0x1fc] sm:$0xf]
      %v488 = vunpack.c.l.b16 %v232
      %v489 = vunpack.c.h.b16 %v232
      %v490 = vunpack.c.l.b16 %v233
      %v491 = vunpack.c.h.b16 %v233
      %v492 = vunpack.c.l.b16 %v234
      %v493 = vunpack.c.h.b16 %v234
      %v494 = vunpack.c.l.b16 %v235
      %v495 = vunpack.c.h.b16 %v235
      %v496 = vunpack.c.l.b16 %v236
      %v497 = vunpack.c.h.b16 %v236
      %v498 = vunpack.c.l.b16 %v237
      %v499 = vunpack.c.h.b16 %v237
      %v500 = vunpack.c.l.b16 %v238
      %v501 = vunpack.c.h.b16 %v238
      %v502 = vunpack.c.l.b16 %v239
      %v503 = vunpack.c.h.b16 %v239
      %v504 = vunpack.c.l.b16 %v240
      %v505 = vunpack.c.h.b16 %v240
      %v506 = vunpack.c.l.b16 %v241
      %v507 = vunpack.c.h.b16 %v241
      %v508 = vunpack.c.l.b16 %v242
      %v509 = vunpack.c.h.b16 %v242
      %v510 = vunpack.c.l.b16 %v243
      %v511 = vunpack.c.h.b16 %v243
      %v512 = vunpack.c.l.b16 %v244
      %v513 = vunpack.c.h.b16 %v244
      %v514 = vunpack.c.l.b16 %v245
      %v515 = vunpack.c.h.b16 %v245
      %v516 = vunpack.c.l.b16 %v246
      %v517 = vunpack.c.h.b16 %v246
      %v518 = vunpack.c.l.b16 %v247
      %v519 = vunpack.c.h.b16 %v247
      %v520 = vunpack.c.l.b16 %v248
      %v521 = vunpack.c.h.b16 %v248
      %v522 = vunpack.c.l.b16 %v249
      %v523 = vunpack.c.h.b16 %v249
      %v524 = vunpack.c.l.b16 %v250
      %v525 = vunpack.c.h.b16 %v250
      %v526 = vunpack.c.l.b16 %v251
      %v527 = vunpack.c.h.b16 %v251
      %v528 = vunpack.c.l.b16 %v252
      %v529 = vunpack.c.h.b16 %v252
      %v530 = vunpack.c.l.b16 %v253
      %v531 = vunpack.c.h.b16 %v253
      %v532 = vunpack.c.l.b16 %v254
      %v533 = vunpack.c.h.b16 %v254
      %v534 = vunpack.c.l.b16 %v255
      %v535 = vunpack.c.h.b16 %v255
      %v536 = vunpack.c.l.b16 %v256
      %v537 = vunpack.c.h.b16 %v256
      %v538 = vunpack.c.l.b16 %v257
      %v539 = vunpack.c.h.b16 %v257
      %v540 = vunpack.c.l.b16 %v258
      %v541 = vunpack.c.h.b16 %v258
      %v542 = vunpack.c.l.b16 %v259
      %v543 = vunpack.c.h.b16 %v259
      %v544 = vunpack.c.l.b16 %v260
      %v545 = vunpack.c.h.b16 %v260
      %v546 = vunpack.c.l.b16 %v261
      %v547 = vunpack.c.h.b16 %v261
      %v548 = vunpack.c.l.b16 %v262
      %v549 = vunpack.c.h.b16 %v262
      %v550 = vunpack.c.l.b16 %v263
      %v551 = vunpack.c.h.b16 %v263
      %v552 = vunpack.c.l.b16 %v264
      %v553 = vunpack.c.h.b16 %v264
      %v554 = vunpack.c.l.b16 %v265
      %v555 = vunpack.c.h.b16 %v265
      %v556 = vunpack.c.l.b16 %v266
      %v557 = vunpack.c.h.b16 %v266
      %v558 = vunpack.c.l.b16 %v267
      %v559 = vunpack.c.h.b16 %v267
      %v560 = vunpack.c.l.b16 %v268
      %v561 = vunpack.c.h.b16 %v268
      %v562 = vunpack.c.l.b16 %v269
      %v563 = vunpack.c.h.b16 %v269
      %v564 = vunpack.c.l.b16 %v270
      %v565 = vunpack.c.h.b16 %v270
      %v566 = vunpack.c.l.b16 %v271
      %v567 = vunpack.c.h.b16 %v271
      %v568 = vunpack.c.l.b16 %v272
      %v569 = vunpack.c.h.b16 %v272
      %v570 = vunpack.c.l.b16 %v273
      %v571 = vunpack.c.h.b16 %v273
      %v572 = vunpack.c.l.b16 %v274
      %v573 = vunpack.c.h.b16 %v274
      %v574 = vunpack.c.l.b16 %v275
      %v575 = vunpack.c.h.b16 %v275
      %v576 = vunpack.c.l.b16 %v276
      %v577 = vunpack.c.h.b16 %v276
      %v578 = vunpack.c.l.b16 %v277
      %v579 = vunpack.c.h.b16 %v277
      %v580 = vunpack.c.l.b16 %v278
      %v581 = vunpack.c.h.b16 %v278
      %v582 = vunpack.c.l.b16 %v279
      %v583 = vunpack.c.h.b16 %v279
      %v584 = vunpack.c.l.b16 %v280
      %v585 = vunpack.c.h.b16 %v280
      %v586 = vunpack.c.l.b16 %v281
      %v587 = vunpack.c.h.b16 %v281
      %v588 = vunpack.c.l.b16 %v282
      %v589 = vunpack.c.h.b16 %v282
      %v590 = vunpack.c.l.b16 %v283
      %v591 = vunpack.c.h.b16 %v283
      %v592 = vunpack.c.l.b16 %v284
      %v593 = vunpack.c.h.b16 %v284
      %v594 = vunpack.c.l.b16 %v285
      %v595 = vunpack.c.h.b16 %v285
      %v596 = vunpack.c.l.b16 %v286
      %v597 = vunpack.c.h.b16 %v286
      %v598 = vunpack.c.l.b16 %v287
      %v599 = vunpack.c.h.b16 %v287
      %v600 = vunpack.c.l.b16 %v288
      %v601 = vunpack.c.h.b16 %v288
      %v602 = vunpack.c.l.b16 %v289
      %v603 = vunpack.c.h.b16 %v289
      %v604 = vunpack.c.l.b16 %v290
      %v605 = vunpack.c.h.b16 %v290
      %v606 = vunpack.c.l.b16 %v291
      %v607 = vunpack.c.h.b16 %v291
      %v608 = vunpack.c.l.b16 %v292
      %v609 = vunpack.c.h.b16 %v292
      %v610 = vunpack.c.l.b16 %v293
      %v611 = vunpack.c.h.b16 %v293
      %v612 = vunpack.c.l.b16 %v294
      %v613 = vunpack.c.h.b16 %v294
      %v614 = vunpack.c.l.b16 %v295
      %v615 = vunpack.c.h.b16 %v295
      %v616 = vpack.c.b16 %v496, %v488
      %v617 = vpack.c.b16 %v497, %v489
      %v618 = vpack.c.b16 %v498, %v490
      %v619 = vpack.c.b16 %v499, %v491
      %v620 = vpack.c.b16 %v500, %v492
      %v621 = vpack.c.b16 %v501, %v493
      %v622 = vpack.c.b16 %v502, %v494
      %v623 = vpack.c.b16 %v503, %v495
      %v624 = vpack.c.b16 %v512, %v504
      %v625 = vpack.c.b16 %v513, %v505
      %v626 = vpack.c.b16 %v514, %v506
      %v627 = vpack.c.b16 %v515, %v507
      %v628 = vpack.c.b16 %v516, %v508
      %v629 = vpack.c.b16 %v517, %v509
      %v630 = vpack.c.b16 %v518, %v510
      %v631 = vpack.c.b16 %v519, %v511
      %v632 = vpack.c.b16 %v528, %v520
      %v633 = vpack.c.b16 %v529, %v521
      %v634 = vpack.c.b16 %v530, %v522
      %v635 = vpack.c.b16 %v531, %v523
      %v636 = vpack.c.b16 %v532, %v524
      %v637 = vpack.c.b16 %v533, %v525
      %v638 = vpack.c.b16 %v534, %v526
      %v639 = vpack.c.b16 %v535, %v527
      %v640 = vpack.c.b16 %v544, %v536
      %v641 = vpack.c.b16 %v545, %v537
      %v642 = vpack.c.b16 %v546, %v538
      %v643 = vpack.c.b16 %v547, %v539
      %v644 = vpack.c.b16 %v548, %v540
      %v645 = vpack.c.b16 %v549, %v541
      %v646 = vpack.c.b16 %v550, %v542
      %v647 = vpack.c.b16 %v551, %v543
      %v648 = vpack.c.b16 %v560, %v552
      %v649 = vpack.c.b16 %v561, %v553
      %v650 = vpack.c.b16 %v562, %v554
      %v651 = vpack.c.b16 %v563, %v555
      %v652 = vpack.c.b16 %v564, %v556
      %v653 = vpack.c.b16 %v565, %v557
      %v654 = vpack.c.b16 %v566, %v558
      %v655 = vpack.c.b16 %v567, %v559
      %v656 = vpack.c.b16 %v576, %v568
      %v657 = vpack.c.b16 %v577, %v569
      %v658 = vpack.c.b16 %v578, %v570
      %v659 = vpack.c.b16 %v579, %v571
      %v660 = vpack.c.b16 %v580, %v572
      %v661 = vpack.c.b16 %v581, %v573
      %v662 = vpack.c.b16 %v582, %v574
      %v663 = vpack.c.b16 %v583, %v575
      %v664 = vpack.c.b16 %v592, %v584
      %v665 = vpack.c.b16 %v593, %v585
      %v666 = vpack.c.b16 %v594, %v586
      %v667 = vpack.c.b16 %v595, %v587
      %v668 = vpack.c.b16 %v596, %v588
      %v669 = vpack.c.b16 %v597, %v589
      %v670 = vpack.c.b16 %v598, %v590
      %v671 = vpack.c.b16 %v599, %v591
      %v672 = vpack.c.b16 %v608, %v600
      %v673 = vpack.c.b16 %v609, %v601
      %v674 = vpack.c.b16 %v610, %v602
      %v675 = vpack.c.b16 %v611, %v603
      %v676 = vpack.c.b16 %v612, %v604
      %v677 = vpack.c.b16 %v613, %v605
      %v678 = vpack.c.b16 %v614, %v606
      %v679 = vpack.c.b16 %v615, %v607
      %v872 = vunpack.c.l.b16 %v296
      %v873 = vunpack.c.l.b16 %v297
      %v874 = vunpack.c.l.b16 %v298
      %v875 = vunpack.c.l.b16 %v299
      %v876 = vunpack.c.l.b16 %v300
      %v877 = vunpack.c.l.b16 %v301
      %v878 = vunpack.c.l.b16 %v302
      %v879 = vunpack.c.l.b16 %v303
      %v880 = vunpack.c.l.b16 %v304
      %v881 = vunpack.c.l.b16 %v305
      %v882 = vunpack.c.l.b16 %v306
      %v883 = vunpack.c.l.b16 %v307
      %v884 = vunpack.c.l.b16 %v308
      %v885 = vunpack.c.l.b16 %v309
      %v886 = vunpack.c.l.b16 %v310
      %v887 = vunpack.c.l.b16 %v311
      %v888 = vunpack.c.l.b16 %v312
      %v889 = vunpack.c.l.b16 %v313
      %v890 = vunpack.c.l.b16 %v314
      %v891 = vunpack.c.l.b16 %v315
      %v892 = vunpack.c.l.b16 %v316
      %v893 = vunpack.c.l.b16 %v317
      %v894 = vunpack.c.l.b16 %v318
      %v895 = vunpack.c.l.b16 %v319
      %v896 = vunpack.c.l.b16 %v320
      %v897 = vunpack.c.l.b16 %v321
      %v898 = vunpack.c.l.b16 %v322
      %v899 = vunpack.c.l.b16 %v323
      %v900 = vunpack.c.l.b16 %v324
      %v901 = vunpack.c.l.b16 %v325
      %v902 = vunpack.c.l.b16 %v326
      %v903 = vunpack.c.l.b16 %v327
      %v904 = vunpack.c.l.b16 %v328
      %v905 = vunpack.c.l.b16 %v329
      %v906 = vunpack.c.l.b16 %v330
      %v907 = vunpack.c.l.b16 %v331
      %v908 = vunpack.c.l.b16 %v332
      %v909 = vunpack.c.l.b16 %v333
      %v910 = vunpack.c.l.b16 %v334
      %v911 = vunpack.c.l.b16 %v335
      %v912 = vunpack.c.l.b16 %v336
      %v913 = vunpack.c.l.b16 %v337
      %v914 = vunpack.c.l.b16 %v338
      %v915 = vunpack.c.l.b16 %v339
      %v916 = vunpack.c.l.b16 %v340
      %v917 = vunpack.c.l.b16 %v341
      %v918 = vunpack.c.l.b16 %v342
      %v919 = vunpack.c.l.b16 %v343
      %v920 = vunpack.c.l.b16 %v344
      %v921 = vunpack.c.l.b16 %v345
      %v922 = vunpack.c.l.b16 %v346
      %v923 = vunpack.c.l.b16 %v347
      %v924 = vunpack.c.l.b16 %v348
      %v925 = vunpack.c.l.b16 %v349
      %v926 = vunpack.c.l.b16 %v350
      %v927 = vunpack.c.l.b16 %v351
      %v928 = vunpack.c.l.b16 %v352
      %v929 = vunpack.c.l.b16 %v353
      %v930 = vunpack.c.l.b16 %v354
      %v931 = vunpack.c.l.b16 %v355
      %v932 = vunpack.c.l.b16 %v356
      %v933 = vunpack.c.l.b16 %v357
      %v934 = vunpack.c.l.b16 %v358
      %v935 = vunpack.c.l.b16 %v359
      %v936 = vunpack.c.l.b16 %v360
      %v937 = vunpack.c.l.b16 %v361
      %v938 = vunpack.c.l.b16 %v362
      %v939 = vunpack.c.l.b16 %v363
      %v940 = vunpack.c.l.b16 %v364
      %v941 = vunpack.c.l.b16 %v365
      %v942 = vunpack.c.l.b16 %v366
      %v943 = vunpack.c.l.b16 %v367
      %v944 = vunpack.c.l.b16 %v368
      %v945 = vunpack.c.l.b16 %v369
      %v946 = vunpack.c.l.b16 %v370
      %v947 = vunpack.c.l.b16 %v371
      %v948 = vunpack.c.l.b16 %v372
      %v949 = vunpack.c.l.b16 %v373
      %v950 = vunpack.c.l.b16 %v374
      %v951 = vunpack.c.l.b16 %v375
      %v952 = vunpack.c.l.b16 %v376
      %v953 = vunpack.c.l.b16 %v377
      %v954 = vunpack.c.l.b16 %v378
      %v955 = vunpack.c.l.b16 %v379
      %v956 = vunpack.c.l.b16 %v380
      %v957 = vunpack.c.l.b16 %v381
      %v958 = vunpack.c.l.b16 %v382
      %v959 = vunpack.c.l.b16 %v383
      %v960 = vunpack.c.l.b16 %v384
      %v961 = vunpack.c.l.b16 %v385
      %v962 = vunpack.c.l.b16 %v386
      %v963 = vunpack.c.l.b16 %v387
      %v964 = vunpack.c.l.b16 %v388
      %v965 = vunpack.c.l.b16 %v389
      %v966 = vunpack.c.l.b16 %v390
      %v967 = vunpack.c.l.b16 %v391
      %v968 = vunpack.c.l.b16 %v392
      %v969 = vunpack.c.l.b16 %v393
      %v970 = vunpack.c.l.b16 %v394
      %v971 = vunpack.c.l.b16 %v395
      %v972 = vunpack.c.l.b16 %v396
      %v973 = vunpack.c.l.b16 %v397
      %v974 = vunpack.c.l.b16 %v398
      %v975 = vunpack.c.l.b16 %v399
      %v976 = vunpack.c.l.b16 %v400
      %v977 = vunpack.c.l.b16 %v401
      %v978 = vunpack.c.l.b16 %v402
      %v979 = vunpack.c.l.b16 %v403
      %v980 = vunpack.c.l.b16 %v404
      %v981 = vunpack.c.l.b16 %v405
      %v982 = vunpack.c.l.b16 %v406
      %v983 = vunpack.c.l.b16 %v407
      %v984 = vunpack.c.l.b16 %v408
      %v985 = vunpack.c.l.b16 %v409
      %v986 = vunpack.c.l.b16 %v410
      %v987 = vunpack.c.l.b16 %v411
      %v988 = vunpack.c.l.b16 %v412
      %v989 = vunpack.c.l.b16 %v413
      %v990 = vunpack.c.l.b16 %v414
      %v991 = vunpack.c.l.b16 %v415
      %v992 = vunpack.c.l.b16 %v416
      %v993 = vunpack.c.l.b16 %v417
      %v994 = vunpack.c.l.b16 %v418
      %v995 = vunpack.c.l.b16 %v419
      %v996 = vunpack.c.l.b16 %v420
      %v997 = vunpack.c.l.b16 %v421
      %v998 = vunpack.c.l.b16 %v422
      %v999 = vunpack.c.l.b16 %v423
      %v1000 = vpack.c.b16 %v873, %v872
      %v1001 = vpack.c.b16 %v875, %v874
      %v1002 = vpack.c.b16 %v877, %v876
      %v1003 = vpack.c.b16 %v879, %v878
      %v1004 = vpack.c.b16 %v881, %v880
      %v1005 = vpack.c.b16 %v883, %v882
      %v1006 = vpack.c.b16 %v885, %v884
      %v1007 = vpack.c.b16 %v887, %v886
      %v1008 = vpack.c.b16 %v889, %v888
      %v1009 = vpack.c.b16 %v891, %v890
      %v1010 = vpack.c.b16 %v893, %v892
      %v1011 = vpack.c.b16 %v895, %v894
      %v1012 = vpack.c.b16 %v897, %v896
      %v1013 = vpack.c.b16 %v899, %v898
      %v1014 = vpack.c.b16 %v901, %v900
      %v1015 = vpack.c.b16 %v903, %v902
      %v1016 = vpack.c.b16 %v905, %v904
      %v1017 = vpack.c.b16 %v907, %v906
      %v1018 = vpack.c.b16 %v909, %v908
      %v1019 = vpack.c.b16 %v911, %v910
      %v1020 = vpack.c.b16 %v913, %v912
      %v1021 = vpack.c.b16 %v915, %v914
      %v1022 = vpack.c.b16 %v917, %v916
      %v1023 = vpack.c.b16 %v919, %v918
      %v1024 = vpack.c.b16 %v921, %v920
      %v1025 = vpack.c.b16 %v923, %v922
      %v1026 = vpack.c.b16 %v925, %v924
      %v1027 = vpack.c.b16 %v927, %v926
      %v1028 = vpack.c.b16 %v929, %v928
      %v1029 = vpack.c.b16 %v931, %v930
      %v1030 = vpack.c.b16 %v933, %v932
      %v1031 = vpack.c.b16 %v935, %v934
      %v1032 = vpack.c.b16 %v937, %v936
      %v1033 = vpack.c.b16 %v939, %v938
      %v1034 = vpack.c.b16 %v941, %v940
      %v1035 = vpack.c.b16 %v943, %v942
      %v1036 = vpack.c.b16 %v945, %v944
      %v1037 = vpack.c.b16 %v947, %v946
      %v1038 = vpack.c.b16 %v949, %v948
      %v1039 = vpack.c.b16 %v951, %v950
      %v1040 = vpack.c.b16 %v953, %v952
      %v1041 = vpack.c.b16 %v955, %v954
      %v1042 = vpack.c.b16 %v957, %v956
      %v1043 = vpack.c.b16 %v959, %v958
      %v1044 = vpack.c.b16 %v961, %v960
      %v1045 = vpack.c.b16 %v963, %v962
      %v1046 = vpack.c.b16 %v965, %v964
      %v1047 = vpack.c.b16 %v967, %v966
      %v1048 = vpack.c.b16 %v969, %v968
      %v1049 = vpack.c.b16 %v971, %v970
      %v1050 = vpack.c.b16 %v973, %v972
      %v1051 = vpack.c.b16 %v975, %v974
      %v1052 = vpack.c.b16 %v977, %v976
      %v1053 = vpack.c.b16 %v979, %v978
      %v1054 = vpack.c.b16 %v981, %v980
      %v1055 = vpack.c.b16 %v983, %v982
      %v1056 = vpack.c.b16 %v985, %v984
      %v1057 = vpack.c.b16 %v987, %v986
      %v1058 = vpack.c.b16 %v989, %v988
      %v1059 = vpack.c.b16 %v991, %v990
      %v1060 = vpack.c.b16 %v993, %v992
      %v1061 = vpack.c.b16 %v995, %v994
      %v1062 = vpack.c.b16 %v997, %v996
      %v1063 = vpack.c.b16 %v999, %v998
      %1128 = vmatpush.bf16.msra.mxu0 %v1007
      %1129 = vmatpush.bf16.msra.mxu0 %v1006
      %1130 = vmatpush.bf16.msra.mxu0 %v1005
      %1131 = vmatpush.bf16.msra.mxu0 %v1004
      %1132 = vmatpush.bf16.msra.mxu0 %v1003
      %1133 = vmatpush.bf16.msra.mxu0 %v1002
      %1134 = vmatpush.bf16.msra.mxu0 %v1001
      %1135 = vmatpush.bf16.msra.mxu0 %v1000
      %1136 = vmatmul.bf16.gmra.mxu0 %v616
      %v1137 = vpop.f32.mrf.mxu0
      %v1138 = vadd.f32 0.0, %v1137
      %v1139 = vpop.f32.mrf.mxu0
      %v1140 = vadd.f32 0.0, %v1139
      %1141 = vmatmul.bf16.gmra.mxu0 %v624
      %v1142 = vpop.f32.mrf.mxu0
      %v1143 = vadd.f32 0.0, %v1142
      %v1144 = vpop.f32.mrf.mxu0
      %v1145 = vadd.f32 0.0, %v1144
      %1146 = vmatmul.bf16.gmra.mxu0 %v632
      %v1147 = vpop.f32.mrf.mxu0
      %v1148 = vadd.f32 0.0, %v1147
      %v1149 = vpop.f32.mrf.mxu0
      %v1150 = vadd.f32 0.0, %v1149
      %1151 = vmatmul.bf16.gmra.mxu0 %v640
      %v1152 = vpop.f32.mrf.mxu0
      %v1153 = vadd.f32 0.0, %v1152
      %v1154 = vpop.f32.mrf.mxu0
      %v1155 = vadd.f32 0.0, %v1154
      %1156 = vmatmul.bf16.gmra.mxu0 %v648
      %v1157 = vpop.f32.mrf.mxu0
      %v1158 = vadd.f32 0.0, %v1157
      %v1159 = vpop.f32.mrf.mxu0
      %v1160 = vadd.f32 0.0, %v1159
      %1161 = vmatmul.bf16.gmra.mxu0 %v656
      %v1162 = vpop.f32.mrf.mxu0
      %v1163 = vadd.f32 0.0, %v1162
      %v1164 = vpop.f32.mrf.mxu0
      %v1165 = vadd.f32 0.0, %v1164
      %1166 = vmatmul.bf16.gmra.mxu0 %v664
      %v1167 = vpop.f32.mrf.mxu0
      %v1168 = vadd.f32 0.0, %v1167
      %v1169 = vpop.f32.mrf.mxu0
      %v1170 = vadd.f32 0.0, %v1169
      %1171 = vmatmul.bf16.gmra.mxu0 %v672
      %v1172 = vpop.f32.mrf.mxu0
      %v1173 = vadd.f32 0.0, %v1172
      %v1174 = vpop.f32.mrf.mxu0
      %v1175 = vadd.f32 0.0, %v1174
      %1176 = vdwg.mxu0
      %1177 = vmatpush.bf16.msra.mxu0 %v1015
      %1178 = vmatpush.bf16.msra.mxu0 %v1014
      %1179 = vmatpush.bf16.msra.mxu0 %v1013
      %1180 = vmatpush.bf16.msra.mxu0 %v1012
      %1181 = vmatpush.bf16.msra.mxu0 %v1011
      %1182 = vmatpush.bf16.msra.mxu0 %v1010
      %1183 = vmatpush.bf16.msra.mxu0 %v1009
      %1184 = vmatpush.bf16.msra.mxu0 %v1008
      %1185 = vmatmul.bf16.gmra.mxu0 %v617
      %v1186 = vpop.f32.mrf.mxu0
      %v1187 = vadd.f32 %v1138, %v1186
      %v1188 = vpop.f32.mrf.mxu0
      %v1189 = vadd.f32 %v1140, %v1188
      %1190 = vmatmul.bf16.gmra.mxu0 %v625
      %v1191 = vpop.f32.mrf.mxu0
      %v1192 = vadd.f32 %v1143, %v1191
      %v1193 = vpop.f32.mrf.mxu0
      %v1194 = vadd.f32 %v1145, %v1193
      %1195 = vmatmul.bf16.gmra.mxu0 %v633
      %v1196 = vpop.f32.mrf.mxu0
      %v1197 = vadd.f32 %v1148, %v1196
      %v1198 = vpop.f32.mrf.mxu0
      %v1199 = vadd.f32 %v1150, %v1198
      %1200 = vmatmul.bf16.gmra.mxu0 %v641
      %v1201 = vpop.f32.mrf.mxu0
      %v1202 = vadd.f32 %v1153, %v1201
      %v1203 = vpop.f32.mrf.mxu0
      %v1204 = vadd.f32 %v1155, %v1203
      %1205 = vmatmul.bf16.gmra.mxu0 %v649
      %v1206 = vpop.f32.mrf.mxu0
      %v1207 = vadd.f32 %v1158, %v1206
      %v1208 = vpop.f32.mrf.mxu0
      %v1209 = vadd.f32 %v1160, %v1208
      %1210 = vmatmul.bf16.gmra.mxu0 %v657
      %v1211 = vpop.f32.mrf.mxu0
      %v1212 = vadd.f32 %v1163, %v1211
      %v1213 = vpop.f32.mrf.mxu0
      %v1214 = vadd.f32 %v1165, %v1213
      %1215 = vmatmul.bf16.gmra.mxu0 %v665
      %v1216 = vpop.f32.mrf.mxu0
      %v1217 = vadd.f32 %v1168, %v1216
      %v1218 = vpop.f32.mrf.mxu0
      %v1219 = vadd.f32 %v1170, %v1218
      %1220 = vmatmul.bf16.gmra.mxu0 %v673
      %v1221 = vpop.f32.mrf.mxu0
      %v1222 = vadd.f32 %v1173, %v1221
      %v1223 = vpop.f32.mrf.mxu0
      %v1224 = vadd.f32 %v1175, %v1223
      %1225 = vdwg.mxu0
      %1226 = vmatpush.bf16.msra.mxu0 %v1023
      %1227 = vmatpush.bf16.msra.mxu0 %v1022
      %1228 = vmatpush.bf16.msra.mxu0 %v1021
      %1229 = vmatpush.bf16.msra.mxu0 %v1020
      %1230 = vmatpush.bf16.msra.mxu0 %v1019
      %1231 = vmatpush.bf16.msra.mxu0 %v1018
      %1232 = vmatpush.bf16.msra.mxu0 %v1017
      %1233 = vmatpush.bf16.msra.mxu0 %v1016
      %1234 = vmatmul.bf16.gmra.mxu0 %v618
      %v1235 = vpop.f32.mrf.mxu0
      %v1236 = vadd.f32 %v1187, %v1235
      %v1237 = vpop.f32.mrf.mxu0
      %v1238 = vadd.f32 %v1189, %v1237
      %1239 = vmatmul.bf16.gmra.mxu0 %v626
      %v1240 = vpop.f32.mrf.mxu0
      %v1241 = vadd.f32 %v1192, %v1240
      %v1242 = vpop.f32.mrf.mxu0
      %v1243 = vadd.f32 %v1194, %v1242
      %1244 = vmatmul.bf16.gmra.mxu0 %v634
      %v1245 = vpop.f32.mrf.mxu0
      %v1246 = vadd.f32 %v1197, %v1245
      %v1247 = vpop.f32.mrf.mxu0
      %v1248 = vadd.f32 %v1199, %v1247
      %1249 = vmatmul.bf16.gmra.mxu0 %v642
      %v1250 = vpop.f32.mrf.mxu0
      %v1251 = vadd.f32 %v1202, %v1250
      %v1252 = vpop.f32.mrf.mxu0
      %v1253 = vadd.f32 %v1204, %v1252
      %1254 = vmatmul.bf16.gmra.mxu0 %v650
      %v1255 = vpop.f32.mrf.mxu0
      %v1256 = vadd.f32 %v1207, %v1255
      %v1257 = vpop.f32.mrf.mxu0
      %v1258 = vadd.f32 %v1209, %v1257
      %1259 = vmatmul.bf16.gmra.mxu0 %v658
      %v1260 = vpop.f32.mrf.mxu0
      %v1261 = vadd.f32 %v1212, %v1260
      %v1262 = vpop.f32.mrf.mxu0
      %v1263 = vadd.f32 %v1214, %v1262
      %1264 = vmatmul.bf16.gmra.mxu0 %v666
      %v1265 = vpop.f32.mrf.mxu0
      %v1266 = vadd.f32 %v1217, %v1265
      %v1267 = vpop.f32.mrf.mxu0
      %v1268 = vadd.f32 %v1219, %v1267
      %1269 = vmatmul.bf16.gmra.mxu0 %v674
      %v1270 = vpop.f32.mrf.mxu0
      %v1271 = vadd.f32 %v1222, %v1270
      %v1272 = vpop.f32.mrf.mxu0
      %v1273 = vadd.f32 %v1224, %v1272
      %1274 = vdwg.mxu0
      %1275 = vmatpush.bf16.msra.mxu0 %v1031
      %1276 = vmatpush.bf16.msra.mxu0 %v1030
      %1277 = vmatpush.bf16.msra.mxu0 %v1029
      %1278 = vmatpush.bf16.msra.mxu0 %v1028
      %1279 = vmatpush.bf16.msra.mxu0 %v1027
      %1280 = vmatpush.bf16.msra.mxu0 %v1026
      %1281 = vmatpush.bf16.msra.mxu0 %v1025
      %1282 = vmatpush.bf16.msra.mxu0 %v1024
      %1283 = vmatmul.bf16.gmra.mxu0 %v619
      %v1284 = vpop.f32.mrf.mxu0
      %v1285 = vadd.f32 %v1236, %v1284
      %v1286 = vpop.f32.mrf.mxu0
      %v1287 = vadd.f32 %v1238, %v1286
      %1288 = vmatmul.bf16.gmra.mxu0 %v627
      %v1289 = vpop.f32.mrf.mxu0
      %v1290 = vadd.f32 %v1241, %v1289
      %v1291 = vpop.f32.mrf.mxu0
      %v1292 = vadd.f32 %v1243, %v1291
      %1293 = vmatmul.bf16.gmra.mxu0 %v635
      %v1294 = vpop.f32.mrf.mxu0
      %v1295 = vadd.f32 %v1246, %v1294
      %v1296 = vpop.f32.mrf.mxu0
      %v1297 = vadd.f32 %v1248, %v1296
      %1298 = vmatmul.bf16.gmra.mxu0 %v643
      %v1299 = vpop.f32.mrf.mxu0
      %v1300 = vadd.f32 %v1251, %v1299
      %v1301 = vpop.f32.mrf.mxu0
      %v1302 = vadd.f32 %v1253, %v1301
      %1303 = vmatmul.bf16.gmra.mxu0 %v651
      %v1304 = vpop.f32.mrf.mxu0
      %v1305 = vadd.f32 %v1256, %v1304
      %v1306 = vpop.f32.mrf.mxu0
      %v1307 = vadd.f32 %v1258, %v1306
      %1308 = vmatmul.bf16.gmra.mxu0 %v659
      %v1309 = vpop.f32.mrf.mxu0
      %v1310 = vadd.f32 %v1261, %v1309
      %v1311 = vpop.f32.mrf.mxu0
      %v1312 = vadd.f32 %v1263, %v1311
      %1313 = vmatmul.bf16.gmra.mxu0 %v667
      %v1314 = vpop.f32.mrf.mxu0
      %v1315 = vadd.f32 %v1266, %v1314
      %v1316 = vpop.f32.mrf.mxu0
      %v1317 = vadd.f32 %v1268, %v1316
      %1318 = vmatmul.bf16.gmra.mxu0 %v675
      %v1319 = vpop.f32.mrf.mxu0
      %v1320 = vadd.f32 %v1271, %v1319
      %v1321 = vpop.f32.mrf.mxu0
      %v1322 = vadd.f32 %v1273, %v1321
      %1323 = vdwg.mxu0
      %1324 = vmatpush.bf16.msra.mxu0 %v1039
      %1325 = vmatpush.bf16.msra.mxu0 %v1038
      %1326 = vmatpush.bf16.msra.mxu0 %v1037
      %1327 = vmatpush.bf16.msra.mxu0 %v1036
      %1328 = vmatpush.bf16.msra.mxu0 %v1035
      %1329 = vmatpush.bf16.msra.mxu0 %v1034
      %1330 = vmatpush.bf16.msra.mxu0 %v1033
      %1331 = vmatpush.bf16.msra.mxu0 %v1032
      %1332 = vmatmul.bf16.gmra.mxu0 %v620
      %v1333 = vpop.f32.mrf.mxu0
      %v1334 = vadd.f32 %v1285, %v1333
      %v1335 = vpop.f32.mrf.mxu0
      %v1336 = vadd.f32 %v1287, %v1335
      %1337 = vmatmul.bf16.gmra.mxu0 %v628
      %v1338 = vpop.f32.mrf.mxu0
      %v1339 = vadd.f32 %v1290, %v1338
      %v1340 = vpop.f32.mrf.mxu0
      %v1341 = vadd.f32 %v1292, %v1340
      %1342 = vmatmul.bf16.gmra.mxu0 %v636
      %v1343 = vpop.f32.mrf.mxu0
      %v1344 = vadd.f32 %v1295, %v1343
      %v1345 = vpop.f32.mrf.mxu0
      %v1346 = vadd.f32 %v1297, %v1345
      %1347 = vmatmul.bf16.gmra.mxu0 %v644
      %v1348 = vpop.f32.mrf.mxu0
      %v1349 = vadd.f32 %v1300, %v1348
      %v1350 = vpop.f32.mrf.mxu0
      %v1351 = vadd.f32 %v1302, %v1350
      %1352 = vmatmul.bf16.gmra.mxu0 %v652
      %v1353 = vpop.f32.mrf.mxu0
      %v1354 = vadd.f32 %v1305, %v1353
      %v1355 = vpop.f32.mrf.mxu0
      %v1356 = vadd.f32 %v1307, %v1355
      %1357 = vmatmul.bf16.gmra.mxu0 %v660
      %v1358 = vpop.f32.mrf.mxu0
      %v1359 = vadd.f32 %v1310, %v1358
      %v1360 = vpop.f32.mrf.mxu0
      %v1361 = vadd.f32 %v1312, %v1360
      %1362 = vmatmul.bf16.gmra.mxu0 %v668
      %v1363 = vpop.f32.mrf.mxu0
      %v1364 = vadd.f32 %v1315, %v1363
      %v1365 = vpop.f32.mrf.mxu0
      %v1366 = vadd.f32 %v1317, %v1365
      %1367 = vmatmul.bf16.gmra.mxu0 %v676
      %v1368 = vpop.f32.mrf.mxu0
      %v1369 = vadd.f32 %v1320, %v1368
      %v1370 = vpop.f32.mrf.mxu0
      %v1371 = vadd.f32 %v1322, %v1370
      %1372 = vdwg.mxu0
      %1373 = vmatpush.bf16.msra.mxu0 %v1047
      %1374 = vmatpush.bf16.msra.mxu0 %v1046
      %1375 = vmatpush.bf16.msra.mxu0 %v1045
      %1376 = vmatpush.bf16.msra.mxu0 %v1044
      %1377 = vmatpush.bf16.msra.mxu0 %v1043
      %1378 = vmatpush.bf16.msra.mxu0 %v1042
      %1379 = vmatpush.bf16.msra.mxu0 %v1041
      %1380 = vmatpush.bf16.msra.mxu0 %v1040
      %1381 = vmatmul.bf16.gmra.mxu0 %v621
      %v1382 = vpop.f32.mrf.mxu0
      %v1383 = vadd.f32 %v1334, %v1382
      %v1384 = vpop.f32.mrf.mxu0
      %v1385 = vadd.f32 %v1336, %v1384
      %1386 = vmatmul.bf16.gmra.mxu0 %v629
      %v1387 = vpop.f32.mrf.mxu0
      %v1388 = vadd.f32 %v1339, %v1387
      %v1389 = vpop.f32.mrf.mxu0
      %v1390 = vadd.f32 %v1341, %v1389
      %1391 = vmatmul.bf16.gmra.mxu0 %v637
      %v1392 = vpop.f32.mrf.mxu0
      %v1393 = vadd.f32 %v1344, %v1392
      %v1394 = vpop.f32.mrf.mxu0
      %v1395 = vadd.f32 %v1346, %v1394
      %1396 = vmatmul.bf16.gmra.mxu0 %v645
      %v1397 = vpop.f32.mrf.mxu0
      %v1398 = vadd.f32 %v1349, %v1397
      %v1399 = vpop.f32.mrf.mxu0
      %v1400 = vadd.f32 %v1351, %v1399
      %1401 = vmatmul.bf16.gmra.mxu0 %v653
      %v1402 = vpop.f32.mrf.mxu0
      %v1403 = vadd.f32 %v1354, %v1402
      %v1404 = vpop.f32.mrf.mxu0
      %v1405 = vadd.f32 %v1356, %v1404
      %1406 = vmatmul.bf16.gmra.mxu0 %v661
      %v1407 = vpop.f32.mrf.mxu0
      %v1408 = vadd.f32 %v1359, %v1407
      %v1409 = vpop.f32.mrf.mxu0
      %v1410 = vadd.f32 %v1361, %v1409
      %1411 = vmatmul.bf16.gmra.mxu0 %v669
      %v1412 = vpop.f32.mrf.mxu0
      %v1413 = vadd.f32 %v1364, %v1412
      %v1414 = vpop.f32.mrf.mxu0
      %v1415 = vadd.f32 %v1366, %v1414
      %1416 = vmatmul.bf16.gmra.mxu0 %v677
      %v1417 = vpop.f32.mrf.mxu0
      %v1418 = vadd.f32 %v1369, %v1417
      %v1419 = vpop.f32.mrf.mxu0
      %v1420 = vadd.f32 %v1371, %v1419
      %1421 = vdwg.mxu0
      %1422 = vmatpush.bf16.msra.mxu0 %v1055
      %1423 = vmatpush.bf16.msra.mxu0 %v1054
      %1424 = vmatpush.bf16.msra.mxu0 %v1053
      %1425 = vmatpush.bf16.msra.mxu0 %v1052
      %1426 = vmatpush.bf16.msra.mxu0 %v1051
      %1427 = vmatpush.bf16.msra.mxu0 %v1050
      %1428 = vmatpush.bf16.msra.mxu0 %v1049
      %1429 = vmatpush.bf16.msra.mxu0 %v1048
      %1430 = vmatmul.bf16.gmra.mxu0 %v622
      %v1431 = vpop.f32.mrf.mxu0
      %v1432 = vadd.f32 %v1383, %v1431
      %v1433 = vpop.f32.mrf.mxu0
      %v1434 = vadd.f32 %v1385, %v1433
      %1435 = vmatmul.bf16.gmra.mxu0 %v630
      %v1436 = vpop.f32.mrf.mxu0
      %v1437 = vadd.f32 %v1388, %v1436
      %v1438 = vpop.f32.mrf.mxu0
      %v1439 = vadd.f32 %v1390, %v1438
      %1440 = vmatmul.bf16.gmra.mxu0 %v638
      %v1441 = vpop.f32.mrf.mxu0
      %v1442 = vadd.f32 %v1393, %v1441
      %v1443 = vpop.f32.mrf.mxu0
      %v1444 = vadd.f32 %v1395, %v1443
      %1445 = vmatmul.bf16.gmra.mxu0 %v646
      %v1446 = vpop.f32.mrf.mxu0
      %v1447 = vadd.f32 %v1398, %v1446
      %v1448 = vpop.f32.mrf.mxu0
      %v1449 = vadd.f32 %v1400, %v1448
      %1450 = vmatmul.bf16.gmra.mxu0 %v654
      %v1451 = vpop.f32.mrf.mxu0
      %v1452 = vadd.f32 %v1403, %v1451
      %v1453 = vpop.f32.mrf.mxu0
      %v1454 = vadd.f32 %v1405, %v1453
      %1455 = vmatmul.bf16.gmra.mxu0 %v662
      %v1456 = vpop.f32.mrf.mxu0
      %v1457 = vadd.f32 %v1408, %v1456
      %v1458 = vpop.f32.mrf.mxu0
      %v1459 = vadd.f32 %v1410, %v1458
      %1460 = vmatmul.bf16.gmra.mxu0 %v670
      %v1461 = vpop.f32.mrf.mxu0
      %v1462 = vadd.f32 %v1413, %v1461
      %v1463 = vpop.f32.mrf.mxu0
      %v1464 = vadd.f32 %v1415, %v1463
      %1465 = vmatmul.bf16.gmra.mxu0 %v678
      %v1466 = vpop.f32.mrf.mxu0
      %v1467 = vadd.f32 %v1418, %v1466
      %v1468 = vpop.f32.mrf.mxu0
      %v1469 = vadd.f32 %v1420, %v1468
      %1470 = vdwg.mxu0
      %1471 = vmatpush.bf16.msra.mxu0 %v1063
      %1472 = vmatpush.bf16.msra.mxu0 %v1062
      %1473 = vmatpush.bf16.msra.mxu0 %v1061
      %1474 = vmatpush.bf16.msra.mxu0 %v1060
      %1475 = vmatpush.bf16.msra.mxu0 %v1059
      %1476 = vmatpush.bf16.msra.mxu0 %v1058
      %1477 = vmatpush.bf16.msra.mxu0 %v1057
      %1478 = vmatpush.bf16.msra.mxu0 %v1056
      %1479 = vmatmul.bf16.gmra.mxu0 %v623
      %v1480 = vpop.f32.mrf.mxu0
      %v1481 = vadd.f32 %v1432, %v1480
      %v1482 = vpop.f32.mrf.mxu0
      %v1483 = vadd.f32 %v1434, %v1482
      %1484 = vmatmul.bf16.gmra.mxu0 %v631
      %v1485 = vpop.f32.mrf.mxu0
      %v1486 = vadd.f32 %v1437, %v1485
      %v1487 = vpop.f32.mrf.mxu0
      %v1488 = vadd.f32 %v1439, %v1487
      %1489 = vmatmul.bf16.gmra.mxu0 %v639
      %v1490 = vpop.f32.mrf.mxu0
      %v1491 = vadd.f32 %v1442, %v1490
      %v1492 = vpop.f32.mrf.mxu0
      %v1493 = vadd.f32 %v1444, %v1492
      %1494 = vmatmul.bf16.gmra.mxu0 %v647
      %v1495 = vpop.f32.mrf.mxu0
      %v1496 = vadd.f32 %v1447, %v1495
      %v1497 = vpop.f32.mrf.mxu0
      %v1498 = vadd.f32 %v1449, %v1497
      %1499 = vmatmul.bf16.gmra.mxu0 %v655
      %v1500 = vpop.f32.mrf.mxu0
      %v1501 = vadd.f32 %v1452, %v1500
      %v1502 = vpop.f32.mrf.mxu0
      %v1503 = vadd.f32 %v1454, %v1502
      %1504 = vmatmul.bf16.gmra.mxu0 %v663
      %v1505 = vpop.f32.mrf.mxu0
      %v1506 = vadd.f32 %v1457, %v1505
      %v1507 = vpop.f32.mrf.mxu0
      %v1508 = vadd.f32 %v1459, %v1507
      %1509 = vmatmul.bf16.gmra.mxu0 %v671
      %v1510 = vpop.f32.mrf.mxu0
      %v1511 = vadd.f32 %v1462, %v1510
      %v1512 = vpop.f32.mrf.mxu0
      %v1513 = vadd.f32 %v1464, %v1512
      %1514 = vmatmul.bf16.gmra.mxu0 %v679
      %v1515 = vpop.f32.mrf.mxu0
      %v1516 = vadd.f32 %v1467, %v1515
      %v1517 = vpop.f32.mrf.mxu0
      %v1518 = vadd.f32 %v1469, %v1517
      %1519 = vdwg.mxu0
      %1520 = vst [vmem:[%s230] sm:$0xff] %v1481
      %1521 = vst [vmem:[%s230 + $0x8] sm:$0xff] %v1483
      %1522 = vst [vmem:[%s230 + $0x10] sm:$0xff] %v1486
      %1523 = vst [vmem:[%s230 + $0x18] sm:$0xff] %v1488
      %1524 = vst [vmem:[%s230 + $0x20] sm:$0xff] %v1491
      %1525 = vst [vmem:[%s230 + $0x28] sm:$0xff] %v1493
      %1526 = vst [vmem:[%s230 + $0x30] sm:$0xff] %v1496
      %1527 = vst [vmem:[%s230 + $0x38] sm:$0xff] %v1498
      %1528 = vst [vmem:[%s230 + $0x40] sm:$0xff] %v1501
      %1529 = vst [vmem:[%s230 + $0x48] sm:$0xff] %v1503
      %1530 = vst [vmem:[%s230 + $0x50] sm:$0xff] %v1506
      %1531 = vst [vmem:[%s230 + $0x58] sm:$0xff] %v1508
      %1532 = vst [vmem:[%s230 + $0x60] sm:$0xff] %v1511
      %1533 = vst [vmem:[%s230 + $0x68] sm:$0xff] %v1513
      %1534 = vst [vmem:[%s230 + $0x70] sm:$0xff] %v1516
      %1535 = vst [vmem:[%s230 + $0x78] sm:$0xff] %v1518
      %s1536 = smul.u32 16, %s19
      %p1537 = scmp.lt.s32.totalorder %s18, 3
      %s1538 = scalar_select %p1537, %s18, 3
      %p1539 = scmp.lt.s32.totalorder %s1536, 15
      %s1540 = scalar_select %p1539, %s1536, 15
      %p1541 = scmp.lt.s32.totalorder %s20, 0
      %s1542 = scalar_select %p1541, %s20, 0
      %s1543 = sadd.s32 %s1542, %s1540
      %s1544 = smul.addr %s1538, 16
      %s1545 = sadd.s32 %s1543, %s1544
      %s1546 = smul.addr %s1545, 8
      %s1547 = scalar_lea.vmem %s2, %s1546
      // Predicated region
      $region29: #{generator_forward.19} parent=27 // pred_check
        %p1548 = pneg %p110
      $region30: #{generator_forward.19} parent=27 // pred_check_branch
        %1550 = sbr.rel (%p1548) target = $region32
      $region31: #{generator_forward.19} parent=27 // pred_region
        %s1551 = smul.u32 16, %s19
      $region32: #{generator_forward.19} parent=27 // pred_fallthru
        _
    $region28: #{generator_forward.19} parent=5 // pred_fallthru
      _
    %p1552 = scmp.le.s32.totalorder 2, %s8
    // Predicated region
    $region33: #{generator_forward.19} parent=5 // pred_check
      %p1553 = pneg %p1552
    $region34: #{generator_forward.19} parent=5 // pred_check_branch
      %1555 = sbr.rel (%p1553) target = $region36
    $region35: #{generator_forward.19} parent=5 // pred_region
      %s1556 = ssub.s32 %s8, 2
      // Predicated region
      $region37: #{generator_forward.19} parent=35 // pred_check
        %p1557 = pneg %p116
      $region38: #{generator_forward.19} parent=35 // pred_check_branch
        %1559 = sbr.rel (%p1557) target = $region40
      $region39: #{generator_forward.19} parent=35 // pred_region
        %s1560 = smul.u32 16, %s22
        %p1561 = scmp.lt.s32.totalorder %s21, 3
        %s1562 = scalar_select %p1561, %s21, 3
        %p1563 = scmp.lt.s32.totalorder %s1560, 15
        %s1564 = scalar_select %p1563, %s1560, 15
        %p1565 = scmp.lt.s32.totalorder %s23, 0
        %s1566 = scalar_select %p1565, %s23, 0
        %s1567 = sadd.s32 %s1566, %s1564
        %s1568 = smul.addr %s1562, 16
        %s1569 = sadd.s32 %s1567, %s1568
        %s1570 = smul.addr %s1569, 8
        %s1571 = scalar_lea.vmem %s2, %s1570
      $region40: #{generator_forward.19} parent=35 // pred_fallthru
        _
    $region36: #{generator_forward.19} parent=5 // pred_fallthru
      _
  $region6: #{generator_forward.19} parent=0 // loop_footer
    %s12 = sadd.s32 1, %s8
  $region7: #{generator_forward.19} parent=0 // loop_footer_branch
    %7 = sbr.rel target = $region3
  $region8: #{generator_forward.19} parent=0 // loop_exit
    _

// kernel: generator_forward.20
$region0: #{generator_forward.20}
  #allocation0 [shape = 'u32[]', space=smem, size = 0x4, offset = 0x4, fixed_abs, tag = 'smem constant byte address 0x4 - core index']
  #allocation1 [shape = 'u32[72,128]{1,0:T(1,128)}', space=vmem, size = 0x9000, scoped, tag = 'internal scratch']
  %s0 = inlined_call_operand.vmem [shape: f32[512,128], index: 0, kind: input, shape index: {}]
  %s1 = inlined_call_operand.vmem [shape: f32[1,128], index: 1, kind: output, shape index: {0}]
  %s2 = inlined_call_operand.vmem [shape: f32[1,128], index: 2, kind: output, shape index: {1}]
  %3 = xla_tuple %s1, %s2
  %s4 = sld [smem:[#allocation0]]
  $region26: #{generator_forward.20} parent=0
    _
  %s6 = ssub.s32 1, %s4
  %s7 = scalar_select 0, %s6, %s4
  // Predicated region
  $region2: #{generator_forward.20} parent=0 // pred_check
    _
  $region3: #{generator_forward.20} parent=0 // pred_check_branch
    %9 = sbr.rel (0) target = $region5
  $region4: #{generator_forward.20} parent=0 // pred_region
    _
  $region5: #{generator_forward.20} parent=0 // pred_fallthru
    _
  %p10 = scmp.eq.s32.totalorder 0, 0
  // Predicated region
  $region6: #{generator_forward.20} parent=0 // pred_check
    %p11 = pneg %p10
  $region7: #{generator_forward.20} parent=0 // pred_check_branch
    %13 = sbr.rel (%p11) target = $region9
  $region8: #{generator_forward.20} parent=0 // pred_region
    %14 = vst [vmem:[%s1] sm:$0x1] 0.0
    %15 = vst [vmem:[%s2] sm:$0x1] 0.0
  $region9: #{generator_forward.20} parent=0 // pred_fallthru
    _
  %v16 = vld [vmem:[%s0] sm:$0xff]
  %v17 = vld [vmem:[%s0 + $0x8] sm:$0xff]
  %v18 = vld [vmem:[%s0 + $0x10] sm:$0xff]
  %v19 = vld [vmem:[%s0 + $0x18] sm:$0xff]
  %v20 = vld [vmem:[%s0 + $0x20] sm:$0xff]
  %v21 = vld [vmem:[%s0 + $0x28] sm:$0xff]
  %v22 = vld [vmem:[%s0 + $0x30] sm:$0xff]
  %v23 = vld [vmem:[%s0 + $0x38] sm:$0xff]
  %v24 = vld [vmem:[%s0 + $0x40] sm:$0xff]
  %v25 = vld [vmem:[%s0 + $0x48] sm:$0xff]
  %v26 = vld [vmem:[%s0 + $0x50] sm:$0xff]
  %v27 = vld [vmem:[%s0 + $0x58] sm:$0xff]
  %v28 = vld [vmem:[%s0 + $0x60] sm:$0xff]
  %v29 = vld [vmem:[%s0 + $0x68] sm:$0xff]
  %v30 = vld [vmem:[%s0 + $0x70] sm:$0xff]
  %v31 = vld [vmem:[%s0 + $0x78] sm:$0xff]
  %v32 = vld [vmem:[%s0 + $0x80] sm:$0xff]
  %v33 = vld [vmem:[%s0 + $0x88] sm:$0xff]
  %v34 = vld [vmem:[%s0 + $0x90] sm:$0xff]
  %v35 = vld [vmem:[%s0 + $0x98] sm:$0xff]
  %v36 = vld [vmem:[%s0 + $0xa0] sm:$0xff]
  %v37 = vld [vmem:[%s0 + $0xa8] sm:$0xff]
  %v38 = vld [vmem:[%s0 + $0xb0] sm:$0xff]
  %v39 = vld [vmem:[%s0 + $0xb8] sm:$0xff]
  %v40 = vld [vmem:[%s0 + $0xc0] sm:$0xff]
  %v41 = vld [vmem:[%s0 + $0xc8] sm:$0xff]
  %v42 = vld [vmem:[%s0 + $0xd0] sm:$0xff]
  %v43 = vld [vmem:[%s0 + $0xd8] sm:$0xff]
  %v44 = vld [vmem:[%s0 + $0xe0] sm:$0xff]
  %v45 = vld [vmem:[%s0 + $0xe8] sm:$0xff]
  %v46 = vld [vmem:[%s0 + $0xf0] sm:$0xff]
  %v47 = vld [vmem:[%s0 + $0xf8] sm:$0xff]
  %v48 = vld [vmem:[%s0 + $0x100] sm:$0xff]
  %v49 = vld [vmem:[%s0 + $0x108] sm:$0xff]
  %v50 = vld [vmem:[%s0 + $0x110] sm:$0xff]
  %v51 = vld [vmem:[%s0 + $0x118] sm:$0xff]
  %v52 = vld [vmem:[%s0 + $0x120] sm:$0xff]
  %v53 = vld [vmem:[%s0 + $0x128] sm:$0xff]
  %v54 = vld [vmem:[%s0 + $0x130] sm:$0xff]
  %v55 = vld [vmem:[%s0 + $0x138] sm:$0xff]
  %v56 = vld [vmem:[%s0 + $0x140] sm:$0xff]
  %v57 = vld [vmem:[%s0 + $0x148] sm:$0xff]
  %v58 = vld [vmem:[%s0 + $0x150] sm:$0xff]
  %v59 = vld [vmem:[%s0 + $0x158] sm:$0xff]
  %v60 = vld [vmem:[%s0 + $0x160] sm:$0xff]
  %v61 = vld [vmem:[%s0 + $0x168] sm:$0xff]
  %v62 = vld [vmem:[%s0 + $0x170] sm:$0xff]
  %v63 = vld [vmem:[%s0 + $0x178] sm:$0xff]
  %v64 = vld [vmem:[%s0 + $0x180] sm:$0xff]
  %v65 = vld [vmem:[%s0 + $0x188] sm:$0xff]
  %v66 = vld [vmem:[%s0 + $0x190] sm:$0xff]
  %v67 = vld [vmem:[%s0 + $0x198] sm:$0xff]
  %v68 = vld [vmem:[%s0 + $0x1a0] sm:$0xff]
  %v69 = vld [vmem:[%s0 + $0x1a8] sm:$0xff]
  %v70 = vld [vmem:[%s0 + $0x1b0] sm:$0xff]
  %v71 = vld [vmem:[%s0 + $0x1b8] sm:$0xff]
  %v72 = vld [vmem:[%s0 + $0x1c0] sm:$0xff]
  %v73 = vld [vmem:[%s0 + $0x1c8] sm:$0xff]
  %v74 = vld [vmem:[%s0 + $0x1d0] sm:$0xff]
  %v75 = vld [vmem:[%s0 + $0x1d8] sm:$0xff]
  %v76 = vld [vmem:[%s0 + $0x1e0] sm:$0xff]
  %v77 = vld [vmem:[%s0 + $0x1e8] sm:$0xff]
  %v78 = vld [vmem:[%s0 + $0x1f0] sm:$0xff]
  %v79 = vld [vmem:[%s0 + $0x1f8] sm:$0xff]
  %v80 = vld [vmem:[%s1] sm:$0x1]
  %v81 = vadd.f32 %v16, %v17
  %v82 = vadd.f32 %v81, %v18
  %v83 = vadd.f32 %v82, %v19
  %v84 = vadd.f32 %v83, %v20
  %v85 = vadd.f32 %v84, %v21
  %v86 = vadd.f32 %v85, %v22
  %v87 = vadd.f32 %v86, %v23
  %v88 = vadd.f32 %v87, %v24
  %v89 = vadd.f32 %v88, %v25
  %v90 = vadd.f32 %v89, %v26
  %v91 = vadd.f32 %v90, %v27
  %v92 = vadd.f32 %v91, %v28
  %v93 = vadd.f32 %v92, %v29
  %v94 = vadd.f32 %v93, %v30
  %v95 = vadd.f32 %v94, %v31
  %v96 = vadd.f32 %v95, %v32
  %v97 = vadd.f32 %v96, %v33
  %v98 = vadd.f32 %v97, %v34
  %v99 = vadd.f32 %v98, %v35
  %v100 = vadd.f32 %v99, %v36
  %v101 = vadd.f32 %v100, %v37
  %v102 = vadd.f32 %v101, %v38
  %v103 = vadd.f32 %v102, %v39
  %v104 = vadd.f32 %v103, %v40
  %v105 = vadd.f32 %v104, %v41
  %v106 = vadd.f32 %v105, %v42
  %v107 = vadd.f32 %v106, %v43
  %v108 = vadd.f32 %v107, %v44
  %v109 = vadd.f32 %v108, %v45
  %v110 = vadd.f32 %v109, %v46
  %v111 = vadd.f32 %v110, %v47
  %v112 = vadd.f32 %v111, %v48
  %v113 = vadd.f32 %v112, %v49
  %v114 = vadd.f32 %v113, %v50
  %v115 = vadd.f32 %v114, %v51
  %v116 = vadd.f32 %v115, %v52
  %v117 = vadd.f32 %v116, %v53
  %v118 = vadd.f32 %v117, %v54
  %v119 = vadd.f32 %v118, %v55
  %v120 = vadd.f32 %v119, %v56
  %v121 = vadd.f32 %v120, %v57
  %v122 = vadd.f32 %v121, %v58
  %v123 = vadd.f32 %v122, %v59
  %v124 = vadd.f32 %v123, %v60
  %v125 = vadd.f32 %v124, %v61
  %v126 = vadd.f32 %v125, %v62
  %v127 = vadd.f32 %v126, %v63
  %v128 = vadd.f32 %v127, %v64
  %v129 = vadd.f32 %v128, %v65
  %v130 = vadd.f32 %v129, %v66
  %v131 = vadd.f32 %v130, %v67
  %v132 = vadd.f32 %v131, %v68
  %v133 = vadd.f32 %v132, %v69
  %v134 = vadd.f32 %v133, %v70
  %v135 = vadd.f32 %v134, %v71
  %v136 = vadd.f32 %v135, %v72
  %v137 = vadd.f32 %v136, %v73
  %v138 = vadd.f32 %v137, %v74
  %v139 = vadd.f32 %v138, %v75
  %v140 = vadd.f32 %v139, %v76
  %v141 = vadd.f32 %v140, %v77
  %v142 = vadd.f32 %v141, %v78
  %v143 = vadd.f32 %v142, %v79
  %v144 = vrot.slane %v143, 4
  %v145 = vadd.f32 %v143, %v144
  %v146 = vrot.slane %v145, 2
  %v147 = vadd.f32 %v145, %v146
  %v148 = vrot.slane %v147, 1
  %v149 = vadd.f32 %v147, %v148
  %v150 = vadd.f32 %v80, %v149
  %151 = vst [vmem:[%s1] sm:$0x1] %v150
  %v152 = vld [vmem:[%s2] sm:$0x1]
  %v153 = vmul.f32 %v16, %v16
  %v154 = vmul.f32 %v17, %v17
  %v155 = vmul.f32 %v18, %v18
  %v156 = vmul.f32 %v19, %v19
  %v157 = vmul.f32 %v20, %v20
  %v158 = vmul.f32 %v21, %v21
  %v159 = vmul.f32 %v22, %v22
  %v160 = vmul.f32 %v23, %v23
  %v161 = vmul.f32 %v24, %v24
  %v162 = vmul.f32 %v25, %v25
  %v163 = vmul.f32 %v26, %v26
  %v164 = vmul.f32 %v27, %v27
  %v165 = vmul.f32 %v28, %v28
  %v166 = vmul.f32 %v29, %v29
  %v167 = vmul.f32 %v30, %v30
  %v168 = vmul.f32 %v31, %v31
  %v169 = vmul.f32 %v32, %v32
  %v170 = vmul.f32 %v33, %v33
  %v171 = vmul.f32 %v34, %v34
  %v172 = vmul.f32 %v35, %v35
  %v173 = vmul.f32 %v36, %v36
  %v174 = vmul.f32 %v37, %v37
  %v175 = vmul.f32 %v38, %v38
  %v176 = vmul.f32 %v39, %v39
  %v177 = vmul.f32 %v40, %v40
  %v178 = vmul.f32 %v41, %v41
  %v179 = vmul.f32 %v42, %v42
  %v180 = vmul.f32 %v43, %v43
  %v181 = vmul.f32 %v44, %v44
  %v182 = vmul.f32 %v45, %v45
  %v183 = vmul.f32 %v46, %v46
  %v184 = vmul.f32 %v47, %v47
  %v185 = vmul.f32 %v48, %v48
  %v186 = vmul.f32 %v49, %v49
  %v187 = vmul.f32 %v50, %v50
  %v188 = vmul.f32 %v51, %v51
  %v189 = vmul.f32 %v52, %v52
  %v190 = vmul.f32 %v53, %v53
  %v191 = vmul.f32 %v54, %v54
  %v192 = vmul.f32 %v55, %v55
  %v193 = vmul.f32 %v56, %v56
  %v194 = vmul.f32 %v57, %v57
  %v195 = vmul.f32 %v58, %v58
  %v196 = vmul.f32 %v59, %v59
  %v197 = vmul.f32 %v60, %v60
  %v198 = vmul.f32 %v61, %v61
  %v199 = vmul.f32 %v62, %v62
  %v200 = vmul.f32 %v63, %v63
  %v201 = vmul.f32 %v64, %v64
  %v202 = vmul.f32 %v65, %v65
  %v203 = vmul.f32 %v66, %v66
  %v204 = vmul.f32 %v67, %v67
  %v205 = vmul.f32 %v68, %v68
  %v206 = vmul.f32 %v69, %v69
  %v207 = vmul.f32 %v70, %v70
  %v208 = vmul.f32 %v71, %v71
  %v209 = vmul.f32 %v72, %v72
  %v210 = vmul.f32 %v73, %v73
  %v211 = vmul.f32 %v74, %v74
  %v212 = vmul.f32 %v75, %v75
  %v213 = vmul.f32 %v76, %v76
  %v214 = vmul.f32 %v77, %v77
  %v215 = vmul.f32 %v78, %v78
  %v216 = vmul.f32 %v79, %v79
  %v217 = vadd.f32 %v153, %v154
  %v218 = vadd.f32 %v217, %v155
  %v219 = vadd.f32 %v218, %v156
  %v220 = vadd.f32 %v219, %v157
  %v221 = vadd.f32 %v220, %v158
  %v222 = vadd.f32 %v221, %v159
  %v223 = vadd.f32 %v222, %v160
  %v224 = vadd.f32 %v223, %v161
  %v225 = vadd.f32 %v224, %v162
  %v226 = vadd.f32 %v225, %v163
  %v227 = vadd.f32 %v226, %v164
  %v228 = vadd.f32 %v227, %v165
  %v229 = vadd.f32 %v228, %v166
  %v230 = vadd.f32 %v229, %v167
  %v231 = vadd.f32 %v230, %v168
  %v232 = vadd.f32 %v231, %v169
  %v233 = vadd.f32 %v232, %v170
  %v234 = vadd.f32 %v233, %v171
  %v235 = vadd.f32 %v234, %v172
  %v236 = vadd.f32 %v235, %v173
  %v237 = vadd.f32 %v236, %v174
  %v238 = vadd.f32 %v237, %v175
  %v239 = vadd.f32 %v238, %v176
  %v240 = vadd.f32 %v239, %v177
  %v241 = vadd.f32 %v240, %v178
  %v242 = vadd.f32 %v241, %v179
  %v243 = vadd.f32 %v242, %v180
  %v244 = vadd.f32 %v243, %v181
  %v245 = vadd.f32 %v244, %v182
  %v246 = vadd.f32 %v245, %v183
  %v247 = vadd.f32 %v246, %v184
  %v248 = vadd.f32 %v247, %v185
  %v249 = vadd.f32 %v248, %v186
  %v250 = vadd.f32 %v249, %v187
  %v251 = vadd.f32 %v250, %v188
  %v252 = vadd.f32 %v251, %v189
  %v253 = vadd.f32 %v252, %v190
  %v254 = vadd.f32 %v253, %v191
  %v255 = vadd.f32 %v254, %v192
  %v256 = vadd.f32 %v255, %v193
  %v257 = vadd.f32 %v256, %v194
  %v258 = vadd.f32 %v257, %v195
  %v259 = vadd.f32 %v258, %v196
  %v260 = vadd.f32 %v259, %v197
  %v261 = vadd.f32 %v260, %v198
  %v262 = vadd.f32 %v261, %v199
  %v263 = vadd.f32 %v262, %v200
  %v264 = vadd.f32 %v263, %v201
  %v265 = vadd.f32 %v264, %v202
  %v266 = vadd.f32 %v265, %v203
  %v267 = vadd.f32 %v266, %v204
  %v268 = vadd.f32 %v267, %v205
  %v269 = vadd.f32 %v268, %v206
  %v270 = vadd.f32 %v269, %v207
  %v271 = vadd.f32 %v270, %v208
  %v272 = vadd.f32 %v271, %v209
  %v273 = vadd.f32 %v272, %v210
  %v274 = vadd.f32 %v273, %v211
  %v275 = vadd.f32 %v274, %v212
  %v276 = vadd.f32 %v275, %v213
  %v277 = vadd.f32 %v276, %v214
  %v278 = vadd.f32 %v277, %v215
  %v279 = vadd.f32 %v278, %v216
  %v280 = vrot.slane %v279, 4
  %v281 = vadd.f32 %v279, %v280
  %v282 = vrot.slane %v281, 2
  %v283 = vadd.f32 %v281, %v282
  %v284 = vrot.slane %v283, 1
  %v285 = vadd.f32 %v283, %v284
  %v286 = vadd.f32 %v152, %v285
  %287 = vst [vmem:[%s2] sm:$0x1] %v286
  // Predicated region
  $region10: #{generator_forward.20} parent=0 // pred_check
    _
  $region11: #{generator_forward.20} parent=0 // pred_check_branch
    %289 = sbr.rel (0) target = $region13
  $region12: #{generator_forward.20} parent=0 // pred_region
    _
  $region13: #{generator_forward.20} parent=0 // pred_fallthru
    _
  // Predicated region
  $region14: #{generator_forward.20} parent=0 // pred_check
    _
  $region15: #{generator_forward.20} parent=0 // pred_check_branch
    %291 = sbr.rel (0) target = $region17
  $region16: #{generator_forward.20} parent=0 // pred_region
    _
  $region17: #{generator_forward.20} parent=0 // pred_fallthru
    _
  // Predicated region
  $region18: #{generator_forward.20} parent=0 // pred_check
    _
  $region19: #{generator_forward.20} parent=0 // pred_check_branch
    %293 = sbr.rel (0) target = $region21
  $region20: #{generator_forward.20} parent=0 // pred_region
    _
  $region21: #{generator_forward.20} parent=0 // pred_fallthru
    _
  // Predicated region
  $region22: #{generator_forward.20} parent=0 // pred_check
    _
  $region23: #{generator_forward.20} parent=0 // pred_check_branch
    %295 = sbr.rel (0) target = $region25
  $region24: #{generator_forward.20} parent=0 // pred_region
    _
  $region25: #{generator_forward.20} parent=0 // pred_fallthru
    _

// kernel: generator_forward.21
$region0: #{generator_forward.21}
  #allocation0 [shape = 'u32[]', space=smem, size = 0x4, offset = 0x4, fixed_abs, tag = 'smem constant byte address 0x4 - core index']
  #allocation1 [shape = 'u32[72,128]{1,0:T(1,128)}', space=vmem, size = 0x9000, scoped, tag = 'internal scratch']
  %s0 = inlined_call_operand.vmem [shape: f32[512,128], index: 0, kind: input, shape index: {}]
  %s1 = inlined_call_operand.vmem [shape: f32[1,128], index: 1, kind: input, shape index: {}]
  %s2 = inlined_call_operand.vmem [shape: f32[1,128], index: 2, kind: input, shape index: {}]
  %s3 = inlined_call_operand.vmem [shape: bf16[512,128], index: 3, kind: output, shape index: {}]
  %s4 = sld [smem:[#allocation0]]
  $region22: #{generator_forward.21} parent=0
    _
  %s6 = ssub.s32 1, %s4
  %s7 = scalar_select 0, %s6, %s4
  // Predicated region
  $region2: #{generator_forward.21} parent=0 // pred_check
    _
  $region3: #{generator_forward.21} parent=0 // pred_check_branch
    %9 = sbr.rel (0) target = $region5
  $region4: #{generator_forward.21} parent=0 // pred_region
    _
  $region5: #{generator_forward.21} parent=0 // pred_fallthru
    _
  // Predicated region
  $region6: #{generator_forward.21} parent=0 // pred_check
    _
  $region7: #{generator_forward.21} parent=0 // pred_check_branch
    %11 = sbr.rel (0) target = $region9
  $region8: #{generator_forward.21} parent=0 // pred_region
    _
  $region9: #{generator_forward.21} parent=0 // pred_fallthru
    _
  // Predicated region
  $region10: #{generator_forward.21} parent=0 // pred_check
    _
  $region11: #{generator_forward.21} parent=0 // pred_check_branch
    %13 = sbr.rel (0) target = $region13
  $region12: #{generator_forward.21} parent=0 // pred_region
    _
  $region13: #{generator_forward.21} parent=0 // pred_fallthru
    _
  %v14 = vld [vmem:[%s0] sm:$0xff]
  %v15 = vld [vmem:[%s0 + $0x8] sm:$0xff]
  %v16 = vld [vmem:[%s0 + $0x10] sm:$0xff]
  %v17 = vld [vmem:[%s0 + $0x18] sm:$0xff]
  %v18 = vld [vmem:[%s0 + $0x20] sm:$0xff]
  %v19 = vld [vmem:[%s0 + $0x28] sm:$0xff]
  %v20 = vld [vmem:[%s0 + $0x30] sm:$0xff]
  %v21 = vld [vmem:[%s0 + $0x38] sm:$0xff]
  %v22 = vld [vmem:[%s0 + $0x40] sm:$0xff]
  %v23 = vld [vmem:[%s0 + $0x48] sm:$0xff]
  %v24 = vld [vmem:[%s0 + $0x50] sm:$0xff]
  %v25 = vld [vmem:[%s0 + $0x58] sm:$0xff]
  %v26 = vld [vmem:[%s0 + $0x60] sm:$0xff]
  %v27 = vld [vmem:[%s0 + $0x68] sm:$0xff]
  %v28 = vld [vmem:[%s0 + $0x70] sm:$0xff]
  %v29 = vld [vmem:[%s0 + $0x78] sm:$0xff]
  %v30 = vld [vmem:[%s0 + $0x80] sm:$0xff]
  %v31 = vld [vmem:[%s0 + $0x88] sm:$0xff]
  %v32 = vld [vmem:[%s0 + $0x90] sm:$0xff]
  %v33 = vld [vmem:[%s0 + $0x98] sm:$0xff]
  %v34 = vld [vmem:[%s0 + $0xa0] sm:$0xff]
  %v35 = vld [vmem:[%s0 + $0xa8] sm:$0xff]
  %v36 = vld [vmem:[%s0 + $0xb0] sm:$0xff]
  %v37 = vld [vmem:[%s0 + $0xb8] sm:$0xff]
  %v38 = vld [vmem:[%s0 + $0xc0] sm:$0xff]
  %v39 = vld [vmem:[%s0 + $0xc8] sm:$0xff]
  %v40 = vld [vmem:[%s0 + $0xd0] sm:$0xff]
  %v41 = vld [vmem:[%s0 + $0xd8] sm:$0xff]
  %v42 = vld [vmem:[%s0 + $0xe0] sm:$0xff]
  %v43 = vld [vmem:[%s0 + $0xe8] sm:$0xff]
  %v44 = vld [vmem:[%s0 + $0xf0] sm:$0xff]
  %v45 = vld [vmem:[%s0 + $0xf8] sm:$0xff]
  %v46 = vld [vmem:[%s0 + $0x100] sm:$0xff]
  %v47 = vld [vmem:[%s0 + $0x108] sm:$0xff]
  %v48 = vld [vmem:[%s0 + $0x110] sm:$0xff]
  %v49 = vld [vmem:[%s0 + $0x118] sm:$0xff]
  %v50 = vld [vmem:[%s0 + $0x120] sm:$0xff]
  %v51 = vld [vmem:[%s0 + $0x128] sm:$0xff]
  %v52 = vld [vmem:[%s0 + $0x130] sm:$0xff]
  %v53 = vld [vmem:[%s0 + $0x138] sm:$0xff]
  %v54 = vld [vmem:[%s0 + $0x140] sm:$0xff]
  %v55 = vld [vmem:[%s0 + $0x148] sm:$0xff]
  %v56 = vld [vmem:[%s0 + $0x150] sm:$0xff]
  %v57 = vld [vmem:[%s0 + $0x158] sm:$0xff]
  %v58 = vld [vmem:[%s0 + $0x160] sm:$0xff]
  %v59 = vld [vmem:[%s0 + $0x168] sm:$0xff]
  %v60 = vld [vmem:[%s0 + $0x170] sm:$0xff]
  %v61 = vld [vmem:[%s0 + $0x178] sm:$0xff]
  %v62 = vld [vmem:[%s0 + $0x180] sm:$0xff]
  %v63 = vld [vmem:[%s0 + $0x188] sm:$0xff]
  %v64 = vld [vmem:[%s0 + $0x190] sm:$0xff]
  %v65 = vld [vmem:[%s0 + $0x198] sm:$0xff]
  %v66 = vld [vmem:[%s0 + $0x1a0] sm:$0xff]
  %v67 = vld [vmem:[%s0 + $0x1a8] sm:$0xff]
  %v68 = vld [vmem:[%s0 + $0x1b0] sm:$0xff]
  %v69 = vld [vmem:[%s0 + $0x1b8] sm:$0xff]
  %v70 = vld [vmem:[%s0 + $0x1c0] sm:$0xff]
  %v71 = vld [vmem:[%s0 + $0x1c8] sm:$0xff]
  %v72 = vld [vmem:[%s0 + $0x1d0] sm:$0xff]
  %v73 = vld [vmem:[%s0 + $0x1d8] sm:$0xff]
  %v74 = vld [vmem:[%s0 + $0x1e0] sm:$0xff]
  %v75 = vld [vmem:[%s0 + $0x1e8] sm:$0xff]
  %v76 = vld [vmem:[%s0 + $0x1f0] sm:$0xff]
  %v77 = vld [vmem:[%s0 + $0x1f8] sm:$0xff]
  %v78 = vld [vmem:[%s1] sm:$0x1]
  %v80 = vperm.slane %v78, 0
  %v82 = vmul.f32 %v14, %v80
  %v83 = vmul.f32 %v15, %v80
  %v84 = vmul.f32 %v16, %v80
  %v85 = vmul.f32 %v17, %v80
  %v86 = vmul.f32 %v18, %v80
  %v87 = vmul.f32 %v19, %v80
  %v88 = vmul.f32 %v20, %v80
  %v89 = vmul.f32 %v21, %v80
  %v90 = vmul.f32 %v22, %v80
  %v91 = vmul.f32 %v23, %v80
  %v92 = vmul.f32 %v24, %v80
  %v93 = vmul.f32 %v25, %v80
  %v94 = vmul.f32 %v26, %v80
  %v95 = vmul.f32 %v27, %v80
  %v96 = vmul.f32 %v28, %v80
  %v97 = vmul.f32 %v29, %v80
  %v98 = vmul.f32 %v30, %v80
  %v99 = vmul.f32 %v31, %v80
  %v100 = vmul.f32 %v32, %v80
  %v101 = vmul.f32 %v33, %v80
  %v102 = vmul.f32 %v34, %v80
  %v103 = vmul.f32 %v35, %v80
  %v104 = vmul.f32 %v36, %v80
  %v105 = vmul.f32 %v37, %v80
  %v106 = vmul.f32 %v38, %v80
  %v107 = vmul.f32 %v39, %v80
  %v108 = vmul.f32 %v40, %v80
  %v109 = vmul.f32 %v41, %v80
  %v110 = vmul.f32 %v42, %v80
  %v111 = vmul.f32 %v43, %v80
  %v112 = vmul.f32 %v44, %v80
  %v113 = vmul.f32 %v45, %v80
  %v114 = vmul.f32 %v46, %v80
  %v115 = vmul.f32 %v47, %v80
  %v116 = vmul.f32 %v48, %v80
  %v117 = vmul.f32 %v49, %v80
  %v118 = vmul.f32 %v50, %v80
  %v119 = vmul.f32 %v51, %v80
  %v120 = vmul.f32 %v52, %v80
  %v121 = vmul.f32 %v53, %v80
  %v122 = vmul.f32 %v54, %v80
  %v123 = vmul.f32 %v55, %v80
  %v124 = vmul.f32 %v56, %v80
  %v125 = vmul.f32 %v57, %v80
  %v126 = vmul.f32 %v58, %v80
  %v127 = vmul.f32 %v59, %v80
  %v128 = vmul.f32 %v60, %v80
  %v129 = vmul.f32 %v61, %v80
  %v130 = vmul.f32 %v62, %v80
  %v131 = vmul.f32 %v63, %v80
  %v132 = vmul.f32 %v64, %v80
  %v133 = vmul.f32 %v65, %v80
  %v134 = vmul.f32 %v66, %v80
  %v135 = vmul.f32 %v67, %v80
  %v136 = vmul.f32 %v68, %v80
  %v137 = vmul.f32 %v69, %v80
  %v138 = vmul.f32 %v70, %v80
  %v139 = vmul.f32 %v71, %v80
  %v140 = vmul.f32 %v72, %v80
  %v141 = vmul.f32 %v73, %v80
  %v142 = vmul.f32 %v74, %v80
  %v143 = vmul.f32 %v75, %v80
  %v144 = vmul.f32 %v76, %v80
  %v145 = vmul.f32 %v77, %v80
  %v146 = vld [vmem:[%s2] sm:$0x1]
  %v148 = vperm.slane %v146, 0
  %v150 = vadd.f32 %v82, %v148
  %v151 = vadd.f32 %v83, %v148
  %v152 = vadd.f32 %v84, %v148
  %v153 = vadd.f32 %v85, %v148
  %v154 = vadd.f32 %v86, %v148
  %v155 = vadd.f32 %v87, %v148
  %v156 = vadd.f32 %v88, %v148
  %v157 = vadd.f32 %v89, %v148
  %v158 = vadd.f32 %v90, %v148
  %v159 = vadd.f32 %v91, %v148
  %v160 = vadd.f32 %v92, %v148
  %v161 = vadd.f32 %v93, %v148
  %v162 = vadd.f32 %v94, %v148
  %v163 = vadd.f32 %v95, %v148
  %v164 = vadd.f32 %v96, %v148
  %v165 = vadd.f32 %v97, %v148
  %v166 = vadd.f32 %v98, %v148
  %v167 = vadd.f32 %v99, %v148
  %v168 = vadd.f32 %v100, %v148
  %v169 = vadd.f32 %v101, %v148
  %v170 = vadd.f32 %v102, %v148
  %v171 = vadd.f32 %v103, %v148
  %v172 = vadd.f32 %v104, %v148
  %v173 = vadd.f32 %v105, %v148
  %v174 = vadd.f32 %v106, %v148
  %v175 = vadd.f32 %v107, %v148
  %v176 = vadd.f32 %v108, %v148
  %v177 = vadd.f32 %v109, %v148
  %v178 = vadd.f32 %v110, %v148
  %v179 = vadd.f32 %v111, %v148
  %v180 = vadd.f32 %v112, %v148
  %v181 = vadd.f32 %v113, %v148
  %v182 = vadd.f32 %v114, %v148
  %v183 = vadd.f32 %v115, %v148
  %v184 = vadd.f32 %v116, %v148
  %v185 = vadd.f32 %v117, %v148
  %v186 = vadd.f32 %v118, %v148
  %v187 = vadd.f32 %v119, %v148
  %v188 = vadd.f32 %v120, %v148
  %v189 = vadd.f32 %v121, %v148
  %v190 = vadd.f32 %v122, %v148
  %v191 = vadd.f32 %v123, %v148
  %v192 = vadd.f32 %v124, %v148
  %v193 = vadd.f32 %v125, %v148
  %v194 = vadd.f32 %v126, %v148
  %v195 = vadd.f32 %v127, %v148
  %v196 = vadd.f32 %v128, %v148
  %v197 = vadd.f32 %v129, %v148
  %v198 = vadd.f32 %v130, %v148
  %v199 = vadd.f32 %v131, %v148
  %v200 = vadd.f32 %v132, %v148
  %v201 = vadd.f32 %v133, %v148
  %v202 = vadd.f32 %v134, %v148
  %v203 = vadd.f32 %v135, %v148
  %v204 = vadd.f32 %v136, %v148
  %v205 = vadd.f32 %v137, %v148
  %v206 = vadd.f32 %v138, %v148
  %v207 = vadd.f32 %v139, %v148
  %v208 = vadd.f32 %v140, %v148
  %v209 = vadd.f32 %v141, %v148
  %v210 = vadd.f32 %v142, %v148
  %v211 = vadd.f32 %v143, %v148
  %v212 = vadd.f32 %v144, %v148
  %v213 = vadd.f32 %v145, %v148
  %v214 = vmax.f32 %v150, 0.0
  %v215 = vmax.f32 %v151, 0.0
  %v216 = vmax.f32 %v152, 0.0
  %v217 = vmax.f32 %v153, 0.0
  %v218 = vmax.f32 %v154, 0.0
  %v219 = vmax.f32 %v155, 0.0
  %v220 = vmax.f32 %v156, 0.0
  %v221 = vmax.f32 %v157, 0.0
  %v222 = vmax.f32 %v158, 0.0
  %v223 = vmax.f32 %v159, 0.0
  %v224 = vmax.f32 %v160, 0.0
  %v225 = vmax.f32 %v161, 0.0
  %v226 = vmax.f32 %v162, 0.0
  %v227 = vmax.f32 %v163, 0.0
  %v228 = vmax.f32 %v164, 0.0
  %v229 = vmax.f32 %v165, 0.0
  %v230 = vmax.f32 %v166, 0.0
  %v231 = vmax.f32 %v167, 0.0
  %v232 = vmax.f32 %v168, 0.0
  %v233 = vmax.f32 %v169, 0.0
  %v234 = vmax.f32 %v170, 0.0
  %v235 = vmax.f32 %v171, 0.0
  %v236 = vmax.f32 %v172, 0.0
  %v237 = vmax.f32 %v173, 0.0
  %v238 = vmax.f32 %v174, 0.0
  %v239 = vmax.f32 %v175, 0.0
  %v240 = vmax.f32 %v176, 0.0
  %v241 = vmax.f32 %v177, 0.0
  %v242 = vmax.f32 %v178, 0.0
  %v243 = vmax.f32 %v179, 0.0
  %v244 = vmax.f32 %v180, 0.0
  %v245 = vmax.f32 %v181, 0.0
  %v246 = vmax.f32 %v182, 0.0
  %v247 = vmax.f32 %v183, 0.0
  %v248 = vmax.f32 %v184, 0.0
  %v249 = vmax.f32 %v185, 0.0
  %v250 = vmax.f32 %v186, 0.0
  %v251 = vmax.f32 %v187, 0.0
  %v252 = vmax.f32 %v188, 0.0
  %v253 = vmax.f32 %v189, 0.0
  %v254 = vmax.f32 %v190, 0.0
  %v255 = vmax.f32 %v191, 0.0
  %v256 = vmax.f32 %v192, 0.0
  %v257 = vmax.f32 %v193, 0.0
  %v258 = vmax.f32 %v194, 0.0
  %v259 = vmax.f32 %v195, 0.0
  %v260 = vmax.f32 %v196, 0.0
  %v261 = vmax.f32 %v197, 0.0
  %v262 = vmax.f32 %v198, 0.0
  %v263 = vmax.f32 %v199, 0.0
  %v264 = vmax.f32 %v200, 0.0
  %v265 = vmax.f32 %v201, 0.0
  %v266 = vmax.f32 %v202, 0.0
  %v267 = vmax.f32 %v203, 0.0
  %v268 = vmax.f32 %v204, 0.0
  %v269 = vmax.f32 %v205, 0.0
  %v270 = vmax.f32 %v206, 0.0
  %v271 = vmax.f32 %v207, 0.0
  %v272 = vmax.f32 %v208, 0.0
  %v273 = vmax.f32 %v209, 0.0
  %v274 = vmax.f32 %v210, 0.0
  %v275 = vmax.f32 %v211, 0.0
  %v276 = vmax.f32 %v212, 0.0
  %v277 = vmax.f32 %v213, 0.0
  %v278 = vpack.c.bf16 %v214, %v214
  %v279 = vpack.c.bf16 %v215, %v215
  %v280 = vpack.c.bf16 %v216, %v216
  %v281 = vpack.c.bf16 %v217, %v217
  %v282 = vpack.c.bf16 %v218, %v218
  %v283 = vpack.c.bf16 %v219, %v219
  %v284 = vpack.c.bf16 %v220, %v220
  %v285 = vpack.c.bf16 %v221, %v221
  %v286 = vpack.c.bf16 %v222, %v222
  %v287 = vpack.c.bf16 %v223, %v223
  %v288 = vpack.c.bf16 %v224, %v224
  %v289 = vpack.c.bf16 %v225, %v225
  %v290 = vpack.c.bf16 %v226, %v226
  %v291 = vpack.c.bf16 %v227, %v227
  %v292 = vpack.c.bf16 %v228, %v228
  %v293 = vpack.c.bf16 %v229, %v229
  %v294 = vpack.c.bf16 %v230, %v230
  %v295 = vpack.c.bf16 %v231, %v231
  %v296 = vpack.c.bf16 %v232, %v232
  %v297 = vpack.c.bf16 %v233, %v233
  %v298 = vpack.c.bf16 %v234, %v234
  %v299 = vpack.c.bf16 %v235, %v235
  %v300 = vpack.c.bf16 %v236, %v236
  %v301 = vpack.c.bf16 %v237, %v237
  %v302 = vpack.c.bf16 %v238, %v238
  %v303 = vpack.c.bf16 %v239, %v239
  %v304 = vpack.c.bf16 %v240, %v240
  %v305 = vpack.c.bf16 %v241, %v241
  %v306 = vpack.c.bf16 %v242, %v242
  %v307 = vpack.c.bf16 %v243, %v243
  %v308 = vpack.c.bf16 %v244, %v244
  %v309 = vpack.c.bf16 %v245, %v245
  %v310 = vpack.c.bf16 %v246, %v246
  %v311 = vpack.c.bf16 %v247, %v247
  %v312 = vpack.c.bf16 %v248, %v248
  %v313 = vpack.c.bf16 %v249, %v249
  %v314 = vpack.c.bf16 %v250, %v250
  %v315 = vpack.c.bf16 %v251, %v251
  %v316 = vpack.c.bf16 %v252, %v252
  %v317 = vpack.c.bf16 %v253, %v253
  %v318 = vpack.c.bf16 %v254, %v254
  %v319 = vpack.c.bf16 %v255, %v255
  %v320 = vpack.c.bf16 %v256, %v256
  %v321 = vpack.c.bf16 %v257, %v257
  %v322 = vpack.c.bf16 %v258, %v258
  %v323 = vpack.c.bf16 %v259, %v259
  %v324 = vpack.c.bf16 %v260, %v260
  %v325 = vpack.c.bf16 %v261, %v261
  %v326 = vpack.c.bf16 %v262, %v262
  %v327 = vpack.c.bf16 %v263, %v263
  %v328 = vpack.c.bf16 %v264, %v264
  %v329 = vpack.c.bf16 %v265, %v265
  %v330 = vpack.c.bf16 %v266, %v266
  %v331 = vpack.c.bf16 %v267, %v267
  %v332 = vpack.c.bf16 %v268, %v268
  %v333 = vpack.c.bf16 %v269, %v269
  %v334 = vpack.c.bf16 %v270, %v270
  %v335 = vpack.c.bf16 %v271, %v271
  %v336 = vpack.c.bf16 %v272, %v272
  %v337 = vpack.c.bf16 %v273, %v273
  %v338 = vpack.c.bf16 %v274, %v274
  %v339 = vpack.c.bf16 %v275, %v275
  %v340 = vpack.c.bf16 %v276, %v276
  %v341 = vpack.c.bf16 %v277, %v277
  %342 = vst [vmem:[%s3] sm:$0xf] %v278
  %343 = vst [vmem:[%s3 + $0x4] sm:$0xf] %v279
  %344 = vst [vmem:[%s3 + $0x8] sm:$0xf] %v280
  %345 = vst [vmem:[%s3 + $0xc] sm:$0xf] %v281
  %346 = vst [vmem:[%s3 + $0x10] sm:$0xf] %v282
  %347 = vst [vmem:[%s3 + $0x14] sm:$0xf] %v283
  %348 = vst [vmem:[%s3 + $0x18] sm:$0xf] %v284
  %349 = vst [vmem:[%s3 + $0x1c] sm:$0xf] %v285
  %350 = vst [vmem:[%s3 + $0x20] sm:$0xf] %v286
  %351 = vst [vmem:[%s3 + $0x24] sm:$0xf] %v287
  %352 = vst [vmem:[%s3 + $0x28] sm:$0xf] %v288
  %353 = vst [vmem:[%s3 + $0x2c] sm:$0xf] %v289
  %354 = vst [vmem:[%s3 + $0x30] sm:$0xf] %v290
  %355 = vst [vmem:[%s3 + $0x34] sm:$0xf] %v291
  %356 = vst [vmem:[%s3 + $0x38] sm:$0xf] %v292
  %357 = vst [vmem:[%s3 + $0x3c] sm:$0xf] %v293
  %358 = vst [vmem:[%s3 + $0x40] sm:$0xf] %v294
  %359 = vst [vmem:[%s3 + $0x44] sm:$0xf] %v295
  %360 = vst [vmem:[%s3 + $0x48] sm:$0xf] %v296
  %361 = vst [vmem:[%s3 + $0x4c] sm:$0xf] %v297
  %362 = vst [vmem:[%s3 + $0x50] sm:$0xf] %v298
  %363 = vst [vmem:[%s3 + $0x54] sm:$0xf] %v299
  %364 = vst [vmem:[%s3 + $0x58] sm:$0xf] %v300
  %365 = vst [vmem:[%s3 + $0x5c] sm:$0xf] %v301
  %366 = vst [vmem:[%s3 + $0x60] sm:$0xf] %v302
  %367 = vst [vmem:[%s3 + $0x64] sm:$0xf] %v303
  %368 = vst [vmem:[%s3 + $0x68] sm:$0xf] %v304
  %369 = vst [vmem:[%s3 + $0x6c] sm:$0xf] %v305
  %370 = vst [vmem:[%s3 + $0x70] sm:$0xf] %v306
  %371 = vst [vmem:[%s3 + $0x74] sm:$0xf] %v307
  %372 = vst [vmem:[%s3 + $0x78] sm:$0xf] %v308
  %373 = vst [vmem:[%s3 + $0x7c] sm:$0xf] %v309
  %374 = vst [vmem:[%s3 + $0x80] sm:$0xf] %v310
  %375 = vst [vmem:[%s3 + $0x84] sm:$0xf] %v311
  %376 = vst [vmem:[%s3 + $0x88] sm:$0xf] %v312
  %377 = vst [vmem:[%s3 + $0x8c] sm:$0xf] %v313
  %378 = vst [vmem:[%s3 + $0x90] sm:$0xf] %v314
  %379 = vst [vmem:[%s3 + $0x94] sm:$0xf] %v315
  %380 = vst [vmem:[%s3 + $0x98] sm:$0xf] %v316
  %381 = vst [vmem:[%s3 + $0x9c] sm:$0xf] %v317
  %382 = vst [vmem:[%s3 + $0xa0] sm:$0xf] %v318
  %383 = vst [vmem:[%s3 + $0xa4] sm:$0xf] %v319
  %384 = vst [vmem:[%s3 + $0xa8] sm:$0xf] %v320
  %385 = vst [vmem:[%s3 + $0xac] sm:$0xf] %v321
  %386 = vst [vmem:[%s3 + $0xb0] sm:$0xf] %v322
  %387 = vst [vmem:[%s3 + $0xb4] sm:$0xf] %v323
  %388 = vst [vmem:[%s3 + $0xb8] sm:$0xf] %v324
  %389 = vst [vmem:[%s3 + $0xbc] sm:$0xf] %v325
  %390 = vst [vmem:[%s3 + $0xc0] sm:$0xf] %v326
  %391 = vst [vmem:[%s3 + $0xc4] sm:$0xf] %v327
  %392 = vst [vmem:[%s3 + $0xc8] sm:$0xf] %v328
  %393 = vst [vmem:[%s3 + $0xcc] sm:$0xf] %v329
  %394 = vst [vmem:[%s3 + $0xd0] sm:$0xf] %v330
  %395 = vst [vmem:[%s3 + $0xd4] sm:$0xf] %v331
  %396 = vst [vmem:[%s3 + $0xd8] sm:$0xf] %v332
  %397 = vst [vmem:[%s3 + $0xdc] sm:$0xf] %v333
  %398 = vst [vmem:[%s3 + $0xe0] sm:$0xf] %v334
  %399 = vst [vmem:[%s3 + $0xe4] sm:$0xf] %v335
  %400 = vst [vmem:[%s3 + $0xe8] sm:$0xf] %v336
  %401 = vst [vmem:[%s3 + $0xec] sm:$0xf] %v337
  %402 = vst [vmem:[%s3 + $0xf0] sm:$0xf] %v338
  %403 = vst [vmem:[%s3 + $0xf4] sm:$0xf] %v339
  %404 = vst [vmem:[%s3 + $0xf8] sm:$0xf] %v340
  %405 = vst [vmem:[%s3 + $0xfc] sm:$0xf] %v341
  // Predicated region
  $region14: #{generator_forward.21} parent=0 // pred_check
    _
  $region15: #{generator_forward.21} parent=0 // pred_check_branch
    %407 = sbr.rel (0) target = $region17
  $region16: #{generator_forward.21} parent=0 // pred_region
    _
  $region17: #{generator_forward.21} parent=0 // pred_fallthru
    _
  // Predicated region
  $region18: #{generator_forward.21} parent=0 // pred_check
    _
  $region19: #{generator_forward.21} parent=0 // pred_check_branch
    %409 = sbr.rel (0) target = $region21
  $region20: #{generator_forward.21} parent=0 // pred_region
    _
  $region21: #{generator_forward.21} parent=0 // pred_fallthru
    _

// kernel: generator_forward.22
$region0: #{generator_forward.22}
  #allocation0 [shape = 'u32[]', space=smem, size = 0x4, offset = 0x4, fixed_abs, tag = 'smem constant byte address 0x4 - core index']
  #allocation1 [shape = 'u32[72,128]{1,0:T(1,128)}', space=vmem, size = 0x9000, scoped, tag = 'internal scratch']
  %s0 = inlined_call_operand.vmem [shape: bf16[4,512,512], index: 0, kind: input, shape index: {}]
  %s1 = inlined_call_operand.vmem [shape: bf16[4,512,64], index: 1, kind: input, shape index: {}]
  %s2 = inlined_call_operand.vmem [shape: f32[4,512,64], index: 2, kind: output, shape index: {}]
  %s3 = sld [smem:[#allocation0]]
  $region41: #{generator_forward.22} parent=0
    _
  %s5 = ssub.s32 1, %s3
  %s6 = scalar_select 0, %s5, %s3
  loop: start=0, step=1, limit=6
  $region2: #{generator_forward.22} parent=0 // loop_pre_header
    _
  $region3: #{generator_forward.22} parent=0 // loop_header
    %s8 = sphi 0, %s12
    %p9 = scmp.ge.s32.totalorder %s8, 6
    %s15 = sphi 0, %s34
    %s16 = sphi 0, %s30
    %s17 = sphi 0, %s26
    %s18 = sphi 0, %s15
    %s19 = sphi 0, %s16
    %s20 = sphi 0, %s17
    %s21 = sphi 0, %s18
    %s22 = sphi 0, %s19
    %s23 = sphi 0, %s20
    %s39 = sphi 0, %s41
    %s42 = sphi 0, %s39
    %s43 = sphi 0, %s42
    %s59 = sphi 0, %s43
    %s67 = sphi 0, %s69
    %s70 = sphi 0, %s67
    %s71 = sphi 0, %s70
    %s87 = sphi 0, %s71
    %s97 = sphi 0, %s99
    %s100 = sphi 0, %s97
    %s101 = sphi 0, %s100
    %s117 = sphi 0, %s101
  $region4: #{generator_forward.22} parent=0 // loop_header_branch
    %11 = sbr.rel (%p9) target = $region8
  $region5: #{generator_forward.22} parent=0 // loop_body
    %s13 = ssub.s32 %s8, 1
    %s14 = ssub.s32 %s8, 2
    %s24 = sadd.s32 1, %s17
    %p25 = scmp.ge.s32.totalorder %s24, 1
    %s26 = scalar_select %p25, 0, %s24
    %s27 = sadd.s32 1, %s16
    %s28 = scalar_select %p25, %s27, %s16
    %p29 = scmp.ge.s32.totalorder %s28, 1
    %s30 = scalar_select %p29, 0, %s28
    %s31 = sadd.s32 1, %s15
    %s32 = scalar_select %p29, %s31, %s15
    %p33 = scmp.ge.s32.totalorder %s32, 4
    %s34 = scalar_select %p33, 0, %s32
    %s35 = ssub.s32 %s15, %s34
    %s36 = ssub.s32 %s16, %s30
    %s37 = sor.u32 %s35, %s36
    %p38 = scmp.eq.s32.totalorder %s37, 0
    %s40 = sadd.s32 %s39, 1
    %s41 = scalar_select %p38, %s39, %s40
    %p44 = pneg %p38
    %p45 = scmp.eq.s32.totalorder %s8, 3
    %p46 = por %p44, %p45
    %p47 = scmp.ne.s32.totalorder %s39, %s42
    %p48 = scmp.eq.s32.totalorder %s8, 0
    %p49 = por %p47, %p48
    %p50 = scmp.ne.s32.totalorder %s39, %s42
    %p51 = scmp.eq.s32.totalorder %s13, 3
    %p52 = por %p50, %p51
    %p53 = scmp.ne.s32.totalorder %s42, %s43
    %p54 = scmp.eq.s32.totalorder %s13, 0
    %p55 = por %p53, %p54
    %p56 = scmp.ne.s32.totalorder %s42, %s43
    %p57 = scmp.eq.s32.totalorder %s14, 3
    %p58 = por %p56, %p57
    %p60 = scmp.ne.s32.totalorder %s43, %s59
    %p61 = scmp.eq.s32.totalorder %s14, 0
    %p62 = por %p60, %p61
    %s63 = ssub.s32 %s15, %s34
    %s64 = ssub.s32 %s17, %s26
    %s65 = sor.u32 %s63, %s64
    %p66 = scmp.eq.s32.totalorder %s65, 0
    %s68 = sadd.s32 %s67, 1
    %s69 = scalar_select %p66, %s67, %s68
    %p72 = pneg %p66
    %p73 = scmp.eq.s32.totalorder %s8, 3
    %p74 = por %p72, %p73
    %p75 = scmp.ne.s32.totalorder %s67, %s70
    %p76 = scmp.eq.s32.totalorder %s8, 0
    %p77 = por %p75, %p76
    %p78 = scmp.ne.s32.totalorder %s67, %s70
    %p79 = scmp.eq.s32.totalorder %s13, 3
    %p80 = por %p78, %p79
    %p81 = scmp.ne.s32.totalorder %s70, %s71
    %p82 = scmp.eq.s32.totalorder %s13, 0
    %p83 = por %p81, %p82
    %p84 = scmp.ne.s32.totalorder %s70, %s71
    %p85 = scmp.eq.s32.totalorder %s14, 3
    %p86 = por %p84, %p85
    %p88 = scmp.ne.s32.totalorder %s71, %s87
    %p89 = scmp.eq.s32.totalorder %s14, 0
    %p90 = por %p88, %p89
    %s91 = ssub.s32 %s15, %s34
    %s92 = ssub.s32 %s16, %s30
    %s93 = sor.u32 %s91, %s92
    %s94 = ssub.s32 %s17, %s26
    %s95 = sor.u32 %s93, %s94
    %p96 = scmp.eq.s32.totalorder %s95, 0
    %s98 = sadd.s32 %s97, 1
    %s99 = scalar_select %p96, %s97, %s98
    %p102 = pneg %p96
    %p103 = scmp.eq.s32.totalorder %s8, 3
    %p104 = por %p102, %p103
    %p105 = scmp.ne.s32.totalorder %s97, %s100
    %p106 = scmp.eq.s32.totalorder %s8, 0
    %p107 = por %p105, %p106
    %p108 = scmp.ne.s32.totalorder %s97, %s100
    %p109 = scmp.eq.s32.totalorder %s13, 3
    %p110 = por %p108, %p109
    %p111 = scmp.ne.s32.totalorder %s100, %s101
    %p112 = scmp.eq.s32.totalorder %s13, 0
    %p113 = por %p111, %p112
    %p114 = scmp.ne.s32.totalorder %s100, %s101
    %p115 = scmp.eq.s32.totalorder %s14, 3
    %p116 = por %p114, %p115
    %p118 = scmp.ne.s32.totalorder %s101, %s117
    %p119 = scmp.eq.s32.totalorder %s14, 0
    %p120 = por %p118, %p119
    %p121 = scmp.le.s32.totalorder 1, %s8
    %p122 = scmp.lt.s32.totalorder %s8, 5
    %p123 = pnand %p121, %p122
    %p124 = pneg %p123
    // Predicated region
    $region9: #{generator_forward.22} parent=5 // pred_check
      _
    $region10: #{generator_forward.22} parent=5 // pred_check_branch
      %126 = sbr.rel (%p123) target = $region12
    $region11: #{generator_forward.22} parent=5 // pred_region
      %s127 = ssub.s32 %s8, 1
    $region12: #{generator_forward.22} parent=5 // pred_fallthru
      _
    %p128 = scmp.lt.s32.totalorder %s8, 4
    // Predicated region
    $region13: #{generator_forward.22} parent=5 // pred_check
      %p129 = pneg %p128
    $region14: #{generator_forward.22} parent=5 // pred_check_branch
      %131 = sbr.rel (%p129) target = $region16
    $region15: #{generator_forward.22} parent=5 // pred_region
      // Predicated region
      $region17: #{generator_forward.22} parent=15 // pred_check
        %p132 = pneg %p49
      $region18: #{generator_forward.22} parent=15 // pred_check_branch
        %134 = sbr.rel (%p132) target = $region20
      $region19: #{generator_forward.22} parent=15 // pred_region
        %s135 = smul.u32 64, %s16
        %p136 = scmp.lt.s32.totalorder %s15, 3
        %s137 = scalar_select %p136, %s15, 3
        %p138 = scmp.lt.s32.totalorder %s135, 63
        %s139 = scalar_select %p138, %s135, 63
        %s140 = smul.addr %s139, 4
        %s141 = smul.addr %s137, 256
        %s142 = sadd.s32 %s140, %s141
        %s143 = smul.addr %s142, 4
        %s144 = scalar_lea.vmem %s0, %s143
        %s145 = smul.u32 64, %s16
      $region20: #{generator_forward.22} parent=15 // pred_fallthru
        _
      // Predicated region
      $region21: #{generator_forward.22} parent=15 // pred_check
        %p146 = pneg %p77
      $region22: #{generator_forward.22} parent=15 // pred_check_branch
        %148 = sbr.rel (%p146) target = $region24
      $region23: #{generator_forward.22} parent=15 // pred_region
        %p149 = scmp.lt.s32.totalorder %s15, 3
        %s150 = scalar_select %p149, %s15, 3
        %p151 = scmp.lt.s32.totalorder %s17, 0
        %s152 = scalar_select %p151, %s17, 0
        %s153 = smul.addr %s150, 64
        %s154 = sadd.s32 %s152, %s153
        %s155 = smul.addr %s154, 4
        %s156 = scalar_lea.vmem %s1, %s155
      $region24: #{generator_forward.22} parent=15 // pred_fallthru
        _
    $region16: #{generator_forward.22} parent=5 // pred_fallthru
      _
    %p157 = scmp.le.s32.totalorder 1, %s8
    %p158 = scmp.lt.s32.totalorder %s8, 5
    %p159 = pnand %p157, %p158
    %p160 = pneg %p159
    // Predicated region
    $region25: #{generator_forward.22} parent=5 // pred_check
      _
    $region26: #{generator_forward.22} parent=5 // pred_check_branch
      %162 = sbr.rel (%p159) target = $region28
    $region27: #{generator_forward.22} parent=5 // pred_region
      %s163 = ssub.s32 %s8, 1
      %s164 = smul.u32 64, %s19
      %p165 = scmp.lt.s32.totalorder %s18, 3
      %s166 = scalar_select %p165, %s18, 3
      %p167 = scmp.lt.s32.totalorder %s164, 63
      %s168 = scalar_select %p167, %s164, 63
      %s169 = smul.addr %s168, 4
      %s170 = smul.addr %s166, 256
      %s171 = sadd.s32 %s169, %s170
      %s172 = smul.addr %s171, 4
      %s173 = scalar_lea.vmem %s0, %s172
      %p174 = pneg %p55
      %p175 = pneg %p52
      %p176 = scmp.lt.s32.totalorder %s18, 3
      %s177 = scalar_select %p176, %s18, 3
      %p178 = scmp.lt.s32.totalorder %s20, 0
      %s179 = scalar_select %p178, %s20, 0
      %s180 = smul.addr %s177, 64
      %s181 = sadd.s32 %s179, %s180
      %s182 = smul.addr %s181, 4
      %s183 = scalar_lea.vmem %s1, %s182
      %p184 = pneg %p83
      %p185 = pneg %p80
      %p186 = pneg %p113
      %p187 = pneg %p110
      %s188 = smul.u32 64, %s19
      %p189 = scmp.lt.s32.totalorder %s18, 3
      %s190 = scalar_select %p189, %s18, 3
      %p191 = scmp.lt.s32.totalorder %s188, 63
      %s192 = scalar_select %p191, %s188, 63
      %p193 = scmp.lt.s32.totalorder %s20, 0
      %s194 = scalar_select %p193, %s20, 0
      %s195 = sadd.s32 %s194, %s192
      %s196 = smul.addr %s190, 64
      %s197 = sadd.s32 %s195, %s196
      %s198 = smul.addr %s197, 8
      %s199 = scalar_lea.vmem %s2, %s198
      %s200 = smul.u32 64, %s19
      %p201 = scmp.lt.s32.totalorder %s18, 3
      %s202 = scalar_select %p201, %s18, 3
      %p203 = scmp.lt.s32.totalorder %s200, 63
      %s204 = scalar_select %p203, %s200, 63
      %s205 = smul.addr %s204, 4
      %s206 = smul.addr %s202, 256
      %s207 = sadd.s32 %s205, %s206
      %s208 = smul.addr %s207, 4
      %s209 = scalar_lea.vmem %s0, %s208
      %s210 = smul.u32 64, %s19
      %p211 = scmp.lt.s32.totalorder %s18, 3
      %s212 = scalar_select %p211, %s18, 3
      %p213 = scmp.lt.s32.totalorder %s20, 0
      %s214 = scalar_select %p213, %s20, 0
      %s215 = smul.addr %s212, 64
      %s216 = sadd.s32 %s214, %s215
      %s217 = smul.addr %s216, 4
      %s218 = scalar_lea.vmem %s1, %s217
      %s219 = smul.u32 64, %s19
      %p220 = scmp.lt.s32.totalorder %s18, 3
      %s221 = scalar_select %p220, %s18, 3
      %p222 = scmp.lt.s32.totalorder %s219, 63
      %s223 = scalar_select %p222, %s219, 63
      %p224 = scmp.lt.s32.totalorder %s20, 0
      %s225 = scalar_select %p224, %s20, 0
      %s226 = sadd.s32 %s225, %s223
      %s227 = smul.addr %s221, 64
      %s228 = sadd.s32 %s226, %s227
      %s229 = smul.addr %s228, 8
      %s230 = scalar_lea.vmem %s2, %s229
      %s231 = smul.u32 64, %s19
      %v232 = vld [vmem:[%s209] sm:$0xff]
      %v233 = vld [vmem:[%s209 + $0x8] sm:$0xff]
      %v234 = vld [vmem:[%s209 + $0x10] sm:$0xff]
      %v235 = vld [vmem:[%s209 + $0x18] sm:$0xff]
      %v236 = vld [vmem:[%s209 + $0x20] sm:$0xff]
      %v237 = vld [vmem:[%s209 + $0x28] sm:$0xff]
      %v238 = vld [vmem:[%s209 + $0x30] sm:$0xff]
      %v239 = vld [vmem:[%s209 + $0x38] sm:$0xff]
      %v240 = vld [vmem:[%s209 + $0x40] sm:$0xff]
      %v241 = vld [vmem:[%s209 + $0x48] sm:$0xff]
      %v242 = vld [vmem:[%s209 + $0x50] sm:$0xff]
      %v243 = vld [vmem:[%s209 + $0x58] sm:$0xff]
      %v244 = vld [vmem:[%s209 + $0x60] sm:$0xff]
      %v245 = vld [vmem:[%s209 + $0x68] sm:$0xff]
      %v246 = vld [vmem:[%s209 + $0x70] sm:$0xff]
      %v247 = vld [vmem:[%s209 + $0x78] sm:$0xff]
      %v248 = vld [vmem:[%s209 + $0x80] sm:$0xff]
      %v249 = vld [vmem:[%s209 + $0x88] sm:$0xff]
      %v250 = vld [vmem:[%s209 + $0x90] sm:$0xff]
      %v251 = vld [vmem:[%s209 + $0x98] sm:$0xff]
      %v252 = vld [vmem:[%s209 + $0xa0] sm:$0xff]
      %v253 = vld [vmem:[%s209 + $0xa8] sm:$0xff]
      %v254 = vld [vmem:[%s209 + $0xb0] sm:$0xff]
      %v255 = vld [vmem:[%s209 + $0xb8] sm:$0xff]
      %v256 = vld [vmem:[%s209 + $0xc0] sm:$0xff]
      %v257 = vld [vmem:[%s209 + $0xc8] sm:$0xff]
      %v258 = vld [vmem:[%s209 + $0xd0] sm:$0xff]
      %v259 = vld [vmem:[%s209 + $0xd8] sm:$0xff]
      %v260 = vld [vmem:[%s209 + $0xe0] sm:$0xff]
      %v261 = vld [vmem:[%s209 + $0xe8] sm:$0xff]
      %v262 = vld [vmem:[%s209 + $0xf0] sm:$0xff]
      %v263 = vld [vmem:[%s209 + $0xf8] sm:$0xff]
      %v264 = vld [vmem:[%s209 + $0x100] sm:$0xff]
      %v265 = vld [vmem:[%s209 + $0x108] sm:$0xff]
      %v266 = vld [vmem:[%s209 + $0x110] sm:$0xff]
      %v267 = vld [vmem:[%s209 + $0x118] sm:$0xff]
      %v268 = vld [vmem:[%s209 + $0x120] sm:$0xff]
      %v269 = vld [vmem:[%s209 + $0x128] sm:$0xff]
      %v270 = vld [vmem:[%s209 + $0x130] sm:$0xff]
      %v271 = vld [vmem:[%s209 + $0x138] sm:$0xff]
      %v272 = vld [vmem:[%s209 + $0x140] sm:$0xff]
      %v273 = vld [vmem:[%s209 + $0x148] sm:$0xff]
      %v274 = vld [vmem:[%s209 + $0x150] sm:$0xff]
      %v275 = vld [vmem:[%s209 + $0x158] sm:$0xff]
      %v276 = vld [vmem:[%s209 + $0x160] sm:$0xff]
      %v277 = vld [vmem:[%s209 + $0x168] sm:$0xff]
      %v278 = vld [vmem:[%s209 + $0x170] sm:$0xff]
      %v279 = vld [vmem:[%s209 + $0x178] sm:$0xff]
      %v280 = vld [vmem:[%s209 + $0x180] sm:$0xff]
      %v281 = vld [vmem:[%s209 + $0x188] sm:$0xff]
      %v282 = vld [vmem:[%s209 + $0x190] sm:$0xff]
      %v283 = vld [vmem:[%s209 + $0x198] sm:$0xff]
      %v284 = vld [vmem:[%s209 + $0x1a0] sm:$0xff]
      %v285 = vld [vmem:[%s209 + $0x1a8] sm:$0xff]
      %v286 = vld [vmem:[%s209 + $0x1b0] sm:$0xff]
      %v287 = vld [vmem:[%s209 + $0x1b8] sm:$0xff]
      %v288 = vld [vmem:[%s209 + $0x1c0] sm:$0xff]
      %v289 = vld [vmem:[%s209 + $0x1c8] sm:$0xff]
      %v290 = vld [vmem:[%s209 + $0x1d0] sm:$0xff]
      %v291 = vld [vmem:[%s209 + $0x1d8] sm:$0xff]
      %v292 = vld [vmem:[%s209 + $0x1e0] sm:$0xff]
      %v293 = vld [vmem:[%s209 + $0x1e8] sm:$0xff]
      %v294 = vld [vmem:[%s209 + $0x1f0] sm:$0xff]
      %v295 = vld [vmem:[%s209 + $0x1f8] sm:$0xff]
      %v296 = vld [vmem:[%s209 + $0x200] sm:$0xff]
      %v297 = vld [vmem:[%s209 + $0x208] sm:$0xff]
      %v298 = vld [vmem:[%s209 + $0x210] sm:$0xff]
      %v299 = vld [vmem:[%s209 + $0x218] sm:$0xff]
      %v300 = vld [vmem:[%s209 + $0x220] sm:$0xff]
      %v301 = vld [vmem:[%s209 + $0x228] sm:$0xff]
      %v302 = vld [vmem:[%s209 + $0x230] sm:$0xff]
      %v303 = vld [vmem:[%s209 + $0x238] sm:$0xff]
      %v304 = vld [vmem:[%s209 + $0x240] sm:$0xff]
      %v305 = vld [vmem:[%s209 + $0x248] sm:$0xff]
      %v306 = vld [vmem:[%s209 + $0x250] sm:$0xff]
      %v307 = vld [vmem:[%s209 + $0x258] sm:$0xff]
      %v308 = vld [vmem:[%s209 + $0x260] sm:$0xff]
      %v309 = vld [vmem:[%s209 + $0x268] sm:$0xff]
      %v310 = vld [vmem:[%s209 + $0x270] sm:$0xff]
      %v311 = vld [vmem:[%s209 + $0x278] sm:$0xff]
      %v312 = vld [vmem:[%s209 + $0x280] sm:$0xff]
      %v313 = vld [vmem:[%s209 + $0x288] sm:$0xff]
      %v314 = vld [vmem:[%s209 + $0x290] sm:$0xff]
      %v315 = vld [vmem:[%s209 + $0x298] sm:$0xff]
      %v316 = vld [vmem:[%s209 + $0x2a0] sm:$0xff]
      %v317 = vld [vmem:[%s209 + $0x2a8] sm:$0xff]
      %v318 = vld [vmem:[%s209 + $0x2b0] sm:$0xff]
      %v319 = vld [vmem:[%s209 + $0x2b8] sm:$0xff]
      %v320 = vld [vmem:[%s209 + $0x2c0] sm:$0xff]
      %v321 = vld [vmem:[%s209 + $0x2c8] sm:$0xff]
      %v322 = vld [vmem:[%s209 + $0x2d0] sm:$0xff]
      %v323 = vld [vmem:[%s209 + $0x2d8] sm:$0xff]
      %v324 = vld [vmem:[%s209 + $0x2e0] sm:$0xff]
      %v325 = vld [vmem:[%s209 + $0x2e8] sm:$0xff]
      %v326 = vld [vmem:[%s209 + $0x2f0] sm:$0xff]
      %v327 = vld [vmem:[%s209 + $0x2f8] sm:$0xff]
      %v328 = vld [vmem:[%s209 + $0x300] sm:$0xff]
      %v329 = vld [vmem:[%s209 + $0x308] sm:$0xff]
      %v330 = vld [vmem:[%s209 + $0x310] sm:$0xff]
      %v331 = vld [vmem:[%s209 + $0x318] sm:$0xff]
      %v332 = vld [vmem:[%s209 + $0x320] sm:$0xff]
      %v333 = vld [vmem:[%s209 + $0x328] sm:$0xff]
      %v334 = vld [vmem:[%s209 + $0x330] sm:$0xff]
      %v335 = vld [vmem:[%s209 + $0x338] sm:$0xff]
      %v336 = vld [vmem:[%s209 + $0x340] sm:$0xff]
      %v337 = vld [vmem:[%s209 + $0x348] sm:$0xff]
      %v338 = vld [vmem:[%s209 + $0x350] sm:$0xff]
      %v339 = vld [vmem:[%s209 + $0x358] sm:$0xff]
      %v340 = vld [vmem:[%s209 + $0x360] sm:$0xff]
      %v341 = vld [vmem:[%s209 + $0x368] sm:$0xff]
      %v342 = vld [vmem:[%s209 + $0x370] sm:$0xff]
      %v343 = vld [vmem:[%s209 + $0x378] sm:$0xff]
      %v344 = vld [vmem:[%s209 + $0x380] sm:$0xff]
      %v345 = vld [vmem:[%s209 + $0x388] sm:$0xff]
      %v346 = vld [vmem:[%s209 + $0x390] sm:$0xff]
      %v347 = vld [vmem:[%s209 + $0x398] sm:$0xff]
      %v348 = vld [vmem:[%s209 + $0x3a0] sm:$0xff]
      %v349 = vld [vmem:[%s209 + $0x3a8] sm:$0xff]
      %v350 = vld [vmem:[%s209 + $0x3b0] sm:$0xff]
      %v351 = vld [vmem:[%s209 + $0x3b8] sm:$0xff]
      %v352 = vld [vmem:[%s209 + $0x3c0] sm:$0xff]
      %v353 = vld [vmem:[%s209 + $0x3c8] sm:$0xff]
      %v354 = vld [vmem:[%s209 + $0x3d0] sm:$0xff]
      %v355 = vld [vmem:[%s209 + $0x3d8] sm:$0xff]
      %v356 = vld [vmem:[%s209 + $0x3e0] sm:$0xff]
      %v357 = vld [vmem:[%s209 + $0x3e8] sm:$0xff]
      %v358 = vld [vmem:[%s209 + $0x3f0] sm:$0xff]
      %v359 = vld [vmem:[%s209 + $0x3f8] sm:$0xff]
      %v360 = vld [vmem:[%s218] sm:$0xf]
      %v361 = vld [vmem:[%s218 + $0x4] sm:$0xf]
      %v362 = vld [vmem:[%s218 + $0x8] sm:$0xf]
      %v363 = vld [vmem:[%s218 + $0xc] sm:$0xf]
      %v364 = vld [vmem:[%s218 + $0x10] sm:$0xf]
      %v365 = vld [vmem:[%s218 + $0x14] sm:$0xf]
      %v366 = vld [vmem:[%s218 + $0x18] sm:$0xf]
      %v367 = vld [vmem:[%s218 + $0x1c] sm:$0xf]
      %v368 = vld [vmem:[%s218 + $0x20] sm:$0xf]
      %v369 = vld [vmem:[%s218 + $0x24] sm:$0xf]
      %v370 = vld [vmem:[%s218 + $0x28] sm:$0xf]
      %v371 = vld [vmem:[%s218 + $0x2c] sm:$0xf]
      %v372 = vld [vmem:[%s218 + $0x30] sm:$0xf]
      %v373 = vld [vmem:[%s218 + $0x34] sm:$0xf]
      %v374 = vld [vmem:[%s218 + $0x38] sm:$0xf]
      %v375 = vld [vmem:[%s218 + $0x3c] sm:$0xf]
      %v376 = vld [vmem:[%s218 + $0x40] sm:$0xf]
      %v377 = vld [vmem:[%s218 + $0x44] sm:$0xf]
      %v378 = vld [vmem:[%s218 + $0x48] sm:$0xf]
      %v379 = vld [vmem:[%s218 + $0x4c] sm:$0xf]
      %v380 = vld [vmem:[%s218 + $0x50] sm:$0xf]
      %v381 = vld [vmem:[%s218 + $0x54] sm:$0xf]
      %v382 = vld [vmem:[%s218 + $0x58] sm:$0xf]
      %v383 = vld [vmem:[%s218 + $0x5c] sm:$0xf]
      %v384 = vld [vmem:[%s218 + $0x60] sm:$0xf]
      %v385 = vld [vmem:[%s218 + $0x64] sm:$0xf]
      %v386 = vld [vmem:[%s218 + $0x68] sm:$0xf]
      %v387 = vld [vmem:[%s218 + $0x6c] sm:$0xf]
      %v388 = vld [vmem:[%s218 + $0x70] sm:$0xf]
      %v389 = vld [vmem:[%s218 + $0x74] sm:$0xf]
      %v390 = vld [vmem:[%s218 + $0x78] sm:$0xf]
      %v391 = vld [vmem:[%s218 + $0x7c] sm:$0xf]
      %v392 = vld [vmem:[%s218 + $0x80] sm:$0xf]
      %v393 = vld [vmem:[%s218 + $0x84] sm:$0xf]
      %v394 = vld [vmem:[%s218 + $0x88] sm:$0xf]
      %v395 = vld [vmem:[%s218 + $0x8c] sm:$0xf]
      %v396 = vld [vmem:[%s218 + $0x90] sm:$0xf]
      %v397 = vld [vmem:[%s218 + $0x94] sm:$0xf]
      %v398 = vld [vmem:[%s218 + $0x98] sm:$0xf]
      %v399 = vld [vmem:[%s218 + $0x9c] sm:$0xf]
      %v400 = vld [vmem:[%s218 + $0xa0] sm:$0xf]
      %v401 = vld [vmem:[%s218 + $0xa4] sm:$0xf]
      %v402 = vld [vmem:[%s218 + $0xa8] sm:$0xf]
      %v403 = vld [vmem:[%s218 + $0xac] sm:$0xf]
      %v404 = vld [vmem:[%s218 + $0xb0] sm:$0xf]
      %v405 = vld [vmem:[%s218 + $0xb4] sm:$0xf]
      %v406 = vld [vmem:[%s218 + $0xb8] sm:$0xf]
      %v407 = vld [vmem:[%s218 + $0xbc] sm:$0xf]
      %v408 = vld [vmem:[%s218 + $0xc0] sm:$0xf]
      %v409 = vld [vmem:[%s218 + $0xc4] sm:$0xf]
      %v410 = vld [vmem:[%s218 + $0xc8] sm:$0xf]
      %v411 = vld [vmem:[%s218 + $0xcc] sm:$0xf]
      %v412 = vld [vmem:[%s218 + $0xd0] sm:$0xf]
      %v413 = vld [vmem:[%s218 + $0xd4] sm:$0xf]
      %v414 = vld [vmem:[%s218 + $0xd8] sm:$0xf]
      %v415 = vld [vmem:[%s218 + $0xdc] sm:$0xf]
      %v416 = vld [vmem:[%s218 + $0xe0] sm:$0xf]
      %v417 = vld [vmem:[%s218 + $0xe4] sm:$0xf]
      %v418 = vld [vmem:[%s218 + $0xe8] sm:$0xf]
      %v419 = vld [vmem:[%s218 + $0xec] sm:$0xf]
      %v420 = vld [vmem:[%s218 + $0xf0] sm:$0xf]
      %v421 = vld [vmem:[%s218 + $0xf4] sm:$0xf]
      %v422 = vld [vmem:[%s218 + $0xf8] sm:$0xf]
      %v423 = vld [vmem:[%s218 + $0xfc] sm:$0xf]
      %v552 = vunpack.c.l.b16 %v232
      %v553 = vunpack.c.h.b16 %v232
      %v554 = vunpack.c.l.b16 %v233
      %v555 = vunpack.c.h.b16 %v233
      %v556 = vunpack.c.l.b16 %v234
      %v557 = vunpack.c.h.b16 %v234
      %v558 = vunpack.c.l.b16 %v235
      %v559 = vunpack.c.h.b16 %v235
      %v560 = vunpack.c.l.b16 %v236
      %v561 = vunpack.c.h.b16 %v236
      %v562 = vunpack.c.l.b16 %v237
      %v563 = vunpack.c.h.b16 %v237
      %v564 = vunpack.c.l.b16 %v238
      %v565 = vunpack.c.h.b16 %v238
      %v566 = vunpack.c.l.b16 %v239
      %v567 = vunpack.c.h.b16 %v239
      %v568 = vunpack.c.l.b16 %v240
      %v569 = vunpack.c.h.b16 %v240
      %v570 = vunpack.c.l.b16 %v241
      %v571 = vunpack.c.h.b16 %v241
      %v572 = vunpack.c.l.b16 %v242
      %v573 = vunpack.c.h.b16 %v242
      %v574 = vunpack.c.l.b16 %v243
      %v575 = vunpack.c.h.b16 %v243
      %v576 = vunpack.c.l.b16 %v244
      %v577 = vunpack.c.h.b16 %v244
      %v578 = vunpack.c.l.b16 %v245
      %v579 = vunpack.c.h.b16 %v245
      %v580 = vunpack.c.l.b16 %v246
      %v581 = vunpack.c.h.b16 %v246
      %v582 = vunpack.c.l.b16 %v247
      %v583 = vunpack.c.h.b16 %v247
      %v584 = vunpack.c.l.b16 %v248
      %v585 = vunpack.c.h.b16 %v248
      %v586 = vunpack.c.l.b16 %v249
      %v587 = vunpack.c.h.b16 %v249
      %v588 = vunpack.c.l.b16 %v250
      %v589 = vunpack.c.h.b16 %v250
      %v590 = vunpack.c.l.b16 %v251
      %v591 = vunpack.c.h.b16 %v251
      %v592 = vunpack.c.l.b16 %v252
      %v593 = vunpack.c.h.b16 %v252
      %v594 = vunpack.c.l.b16 %v253
      %v595 = vunpack.c.h.b16 %v253
      %v596 = vunpack.c.l.b16 %v254
      %v597 = vunpack.c.h.b16 %v254
      %v598 = vunpack.c.l.b16 %v255
      %v599 = vunpack.c.h.b16 %v255
      %v600 = vunpack.c.l.b16 %v256
      %v601 = vunpack.c.h.b16 %v256
      %v602 = vunpack.c.l.b16 %v257
      %v603 = vunpack.c.h.b16 %v257
      %v604 = vunpack.c.l.b16 %v258
      %v605 = vunpack.c.h.b16 %v258
      %v606 = vunpack.c.l.b16 %v259
      %v607 = vunpack.c.h.b16 %v259
      %v608 = vunpack.c.l.b16 %v260
      %v609 = vunpack.c.h.b16 %v260
      %v610 = vunpack.c.l.b16 %v261
      %v611 = vunpack.c.h.b16 %v261
      %v612 = vunpack.c.l.b16 %v262
      %v613 = vunpack.c.h.b16 %v262
      %v614 = vunpack.c.l.b16 %v263
      %v615 = vunpack.c.h.b16 %v263
      %v616 = vunpack.c.l.b16 %v264
      %v617 = vunpack.c.h.b16 %v264
      %v618 = vunpack.c.l.b16 %v265
      %v619 = vunpack.c.h.b16 %v265
      %v620 = vunpack.c.l.b16 %v266
      %v621 = vunpack.c.h.b16 %v266
      %v622 = vunpack.c.l.b16 %v267
      %v623 = vunpack.c.h.b16 %v267
      %v624 = vunpack.c.l.b16 %v268
      %v625 = vunpack.c.h.b16 %v268
      %v626 = vunpack.c.l.b16 %v269
      %v627 = vunpack.c.h.b16 %v269
      %v628 = vunpack.c.l.b16 %v270
      %v629 = vunpack.c.h.b16 %v270
      %v630 = vunpack.c.l.b16 %v271
      %v631 = vunpack.c.h.b16 %v271
      %v632 = vunpack.c.l.b16 %v272
      %v633 = vunpack.c.h.b16 %v272
      %v634 = vunpack.c.l.b16 %v273
      %v635 = vunpack.c.h.b16 %v273
      %v636 = vunpack.c.l.b16 %v274
      %v637 = vunpack.c.h.b16 %v274
      %v638 = vunpack.c.l.b16 %v275
      %v639 = vunpack.c.h.b16 %v275
      %v640 = vunpack.c.l.b16 %v276
      %v641 = vunpack.c.h.b16 %v276
      %v642 = vunpack.c.l.b16 %v277
      %v643 = vunpack.c.h.b16 %v277
      %v644 = vunpack.c.l.b16 %v278
      %v645 = vunpack.c.h.b16 %v278
      %v646 = vunpack.c.l.b16 %v279
      %v647 = vunpack.c.h.b16 %v279
      %v648 = vunpack.c.l.b16 %v280
      %v649 = vunpack.c.h.b16 %v280
      %v650 = vunpack.c.l.b16 %v281
      %v651 = vunpack.c.h.b16 %v281
      %v652 = vunpack.c.l.b16 %v282
      %v653 = vunpack.c.h.b16 %v282
      %v654 = vunpack.c.l.b16 %v283
      %v655 = vunpack.c.h.b16 %v283
      %v656 = vunpack.c.l.b16 %v284
      %v657 = vunpack.c.h.b16 %v284
      %v658 = vunpack.c.l.b16 %v285
      %v659 = vunpack.c.h.b16 %v285
      %v660 = vunpack.c.l.b16 %v286
      %v661 = vunpack.c.h.b16 %v286
      %v662 = vunpack.c.l.b16 %v287
      %v663 = vunpack.c.h.b16 %v287
      %v664 = vunpack.c.l.b16 %v288
      %v665 = vunpack.c.h.b16 %v288
      %v666 = vunpack.c.l.b16 %v289
      %v667 = vunpack.c.h.b16 %v289
      %v668 = vunpack.c.l.b16 %v290
      %v669 = vunpack.c.h.b16 %v290
      %v670 = vunpack.c.l.b16 %v291
      %v671 = vunpack.c.h.b16 %v291
      %v672 = vunpack.c.l.b16 %v292
      %v673 = vunpack.c.h.b16 %v292
      %v674 = vunpack.c.l.b16 %v293
      %v675 = vunpack.c.h.b16 %v293
      %v676 = vunpack.c.l.b16 %v294
      %v677 = vunpack.c.h.b16 %v294
      %v678 = vunpack.c.l.b16 %v295
      %v679 = vunpack.c.h.b16 %v295
      %v680 = vunpack.c.l.b16 %v296
      %v681 = vunpack.c.h.b16 %v296
      %v682 = vunpack.c.l.b16 %v297
      %v683 = vunpack.c.h.b16 %v297
      %v684 = vunpack.c.l.b16 %v298
      %v685 = vunpack.c.h.b16 %v298
      %v686 = vunpack.c.l.b16 %v299
      %v687 = vunpack.c.h.b16 %v299
      %v688 = vunpack.c.l.b16 %v300
      %v689 = vunpack.c.h.b16 %v300
      %v690 = vunpack.c.l.b16 %v301
      %v691 = vunpack.c.h.b16 %v301
      %v692 = vunpack.c.l.b16 %v302
      %v693 = vunpack.c.h.b16 %v302
      %v694 = vunpack.c.l.b16 %v303
      %v695 = vunpack.c.h.b16 %v303
      %v696 = vunpack.c.l.b16 %v304
      %v697 = vunpack.c.h.b16 %v304
      %v698 = vunpack.c.l.b16 %v305
      %v699 = vunpack.c.h.b16 %v305
      %v700 = vunpack.c.l.b16 %v306
      %v701 = vunpack.c.h.b16 %v306
      %v702 = vunpack.c.l.b16 %v307
      %v703 = vunpack.c.h.b16 %v307
      %v704 = vunpack.c.l.b16 %v308
      %v705 = vunpack.c.h.b16 %v308
      %v706 = vunpack.c.l.b16 %v309
      %v707 = vunpack.c.h.b16 %v309
      %v708 = vunpack.c.l.b16 %v310
      %v709 = vunpack.c.h.b16 %v310
      %v710 = vunpack.c.l.b16 %v311
      %v711 = vunpack.c.h.b16 %v311
      %v712 = vunpack.c.l.b16 %v312
      %v713 = vunpack.c.h.b16 %v312
      %v714 = vunpack.c.l.b16 %v313
      %v715 = vunpack.c.h.b16 %v313
      %v716 = vunpack.c.l.b16 %v314
      %v717 = vunpack.c.h.b16 %v314
      %v718 = vunpack.c.l.b16 %v315
      %v719 = vunpack.c.h.b16 %v315
      %v720 = vunpack.c.l.b16 %v316
      %v721 = vunpack.c.h.b16 %v316
      %v722 = vunpack.c.l.b16 %v317
      %v723 = vunpack.c.h.b16 %v317
      %v724 = vunpack.c.l.b16 %v318
      %v725 = vunpack.c.h.b16 %v318
      %v726 = vunpack.c.l.b16 %v319
      %v727 = vunpack.c.h.b16 %v319
      %v728 = vunpack.c.l.b16 %v320
      %v729 = vunpack.c.h.b16 %v320
      %v730 = vunpack.c.l.b16 %v321
      %v731 = vunpack.c.h.b16 %v321
      %v732 = vunpack.c.l.b16 %v322
      %v733 = vunpack.c.h.b16 %v322
      %v734 = vunpack.c.l.b16 %v323
      %v735 = vunpack.c.h.b16 %v323
      %v736 = vunpack.c.l.b16 %v324
      %v737 = vunpack.c.h.b16 %v324
      %v738 = vunpack.c.l.b16 %v325
      %v739 = vunpack.c.h.b16 %v325
      %v740 = vunpack.c.l.b16 %v326
      %v741 = vunpack.c.h.b16 %v326
      %v742 = vunpack.c.l.b16 %v327
      %v743 = vunpack.c.h.b16 %v327
      %v744 = vunpack.c.l.b16 %v328
      %v745 = vunpack.c.h.b16 %v328
      %v746 = vunpack.c.l.b16 %v329
      %v747 = vunpack.c.h.b16 %v329
      %v748 = vunpack.c.l.b16 %v330
      %v749 = vunpack.c.h.b16 %v330
      %v750 = vunpack.c.l.b16 %v331
      %v751 = vunpack.c.h.b16 %v331
      %v752 = vunpack.c.l.b16 %v332
      %v753 = vunpack.c.h.b16 %v332
      %v754 = vunpack.c.l.b16 %v333
      %v755 = vunpack.c.h.b16 %v333
      %v756 = vunpack.c.l.b16 %v334
      %v757 = vunpack.c.h.b16 %v334
      %v758 = vunpack.c.l.b16 %v335
      %v759 = vunpack.c.h.b16 %v335
      %v760 = vunpack.c.l.b16 %v336
      %v761 = vunpack.c.h.b16 %v336
      %v762 = vunpack.c.l.b16 %v337
      %v763 = vunpack.c.h.b16 %v337
      %v764 = vunpack.c.l.b16 %v338
      %v765 = vunpack.c.h.b16 %v338
      %v766 = vunpack.c.l.b16 %v339
      %v767 = vunpack.c.h.b16 %v339
      %v768 = vunpack.c.l.b16 %v340
      %v769 = vunpack.c.h.b16 %v340
      %v770 = vunpack.c.l.b16 %v341
      %v771 = vunpack.c.h.b16 %v341
      %v772 = vunpack.c.l.b16 %v342
      %v773 = vunpack.c.h.b16 %v342
      %v774 = vunpack.c.l.b16 %v343
      %v775 = vunpack.c.h.b16 %v343
      %v776 = vunpack.c.l.b16 %v344
      %v777 = vunpack.c.h.b16 %v344
      %v778 = vunpack.c.l.b16 %v345
      %v779 = vunpack.c.h.b16 %v345
      %v780 = vunpack.c.l.b16 %v346
      %v781 = vunpack.c.h.b16 %v346
      %v782 = vunpack.c.l.b16 %v347
      %v783 = vunpack.c.h.b16 %v347
      %v784 = vunpack.c.l.b16 %v348
      %v785 = vunpack.c.h.b16 %v348
      %v786 = vunpack.c.l.b16 %v349
      %v787 = vunpack.c.h.b16 %v349
      %v788 = vunpack.c.l.b16 %v350
      %v789 = vunpack.c.h.b16 %v350
      %v790 = vunpack.c.l.b16 %v351
      %v791 = vunpack.c.h.b16 %v351
      %v792 = vunpack.c.l.b16 %v352
      %v793 = vunpack.c.h.b16 %v352
      %v794 = vunpack.c.l.b16 %v353
      %v795 = vunpack.c.h.b16 %v353
      %v796 = vunpack.c.l.b16 %v354
      %v797 = vunpack.c.h.b16 %v354
      %v798 = vunpack.c.l.b16 %v355
      %v799 = vunpack.c.h.b16 %v355
      %v800 = vunpack.c.l.b16 %v356
      %v801 = vunpack.c.h.b16 %v356
      %v802 = vunpack.c.l.b16 %v357
      %v803 = vunpack.c.h.b16 %v357
      %v804 = vunpack.c.l.b16 %v358
      %v805 = vunpack.c.h.b16 %v358
      %v806 = vunpack.c.l.b16 %v359
      %v807 = vunpack.c.h.b16 %v359
      %v808 = vpack.c.b16 %v556, %v552
      %v809 = vpack.c.b16 %v557, %v553
      %v810 = vpack.c.b16 %v558, %v554
      %v811 = vpack.c.b16 %v559, %v555
      %v812 = vpack.c.b16 %v564, %v560
      %v813 = vpack.c.b16 %v565, %v561
      %v814 = vpack.c.b16 %v566, %v562
      %v815 = vpack.c.b16 %v567, %v563
      %v816 = vpack.c.b16 %v572, %v568
      %v817 = vpack.c.b16 %v573, %v569
      %v818 = vpack.c.b16 %v574, %v570
      %v819 = vpack.c.b16 %v575, %v571
      %v820 = vpack.c.b16 %v580, %v576
      %v821 = vpack.c.b16 %v581, %v577
      %v822 = vpack.c.b16 %v582, %v578
      %v823 = vpack.c.b16 %v583, %v579
      %v824 = vpack.c.b16 %v588, %v584
      %v825 = vpack.c.b16 %v589, %v585
      %v826 = vpack.c.b16 %v590, %v586
      %v827 = vpack.c.b16 %v591, %v587
      %v828 = vpack.c.b16 %v596, %v592
      %v829 = vpack.c.b16 %v597, %v593
      %v830 = vpack.c.b16 %v598, %v594
      %v831 = vpack.c.b16 %v599, %v595
      %v832 = vpack.c.b16 %v604, %v600
      %v833 = vpack.c.b16 %v605, %v601
      %v834 = vpack.c.b16 %v606, %v602
      %v835 = vpack.c.b16 %v607, %v603
      %v836 = vpack.c.b16 %v612, %v608
      %v837 = vpack.c.b16 %v613, %v609
      %v838 = vpack.c.b16 %v614, %v610
      %v839 = vpack.c.b16 %v615, %v611
      %v840 = vpack.c.b16 %v620, %v616
      %v841 = vpack.c.b16 %v621, %v617
      %v842 = vpack.c.b16 %v622, %v618
      %v843 = vpack.c.b16 %v623, %v619
      %v844 = vpack.c.b16 %v628, %v624
      %v845 = vpack.c.b16 %v629, %v625
      %v846 = vpack.c.b16 %v630, %v626
      %v847 = vpack.c.b16 %v631, %v627
      %v848 = vpack.c.b16 %v636, %v632
      %v849 = vpack.c.b16 %v637, %v633
      %v850 = vpack.c.b16 %v638, %v634
      %v851 = vpack.c.b16 %v639, %v635
      %v852 = vpack.c.b16 %v644, %v640
      %v853 = vpack.c.b16 %v645, %v641
      %v854 = vpack.c.b16 %v646, %v642
      %v855 = vpack.c.b16 %v647, %v643
      %v856 = vpack.c.b16 %v652, %v648
      %v857 = vpack.c.b16 %v653, %v649
      %v858 = vpack.c.b16 %v654, %v650
      %v859 = vpack.c.b16 %v655, %v651
      %v860 = vpack.c.b16 %v660, %v656
      %v861 = vpack.c.b16 %v661, %v657
      %v862 = vpack.c.b16 %v662, %v658
      %v863 = vpack.c.b16 %v663, %v659
      %v864 = vpack.c.b16 %v668, %v664
      %v865 = vpack.c.b16 %v669, %v665
      %v866 = vpack.c.b16 %v670, %v666
      %v867 = vpack.c.b16 %v671, %v667
      %v868 = vpack.c.b16 %v676, %v672
      %v869 = vpack.c.b16 %v677, %v673
      %v870 = vpack.c.b16 %v678, %v674
      %v871 = vpack.c.b16 %v679, %v675
      %v872 = vpack.c.b16 %v684, %v680
      %v873 = vpack.c.b16 %v685, %v681
      %v874 = vpack.c.b16 %v686, %v682
      %v875 = vpack.c.b16 %v687, %v683
      %v876 = vpack.c.b16 %v692, %v688
      %v877 = vpack.c.b16 %v693, %v689
      %v878 = vpack.c.b16 %v694, %v690
      %v879 = vpack.c.b16 %v695, %v691
      %v880 = vpack.c.b16 %v700, %v696
      %v881 = vpack.c.b16 %v701, %v697
      %v882 = vpack.c.b16 %v702, %v698
      %v883 = vpack.c.b16 %v703, %v699
      %v884 = vpack.c.b16 %v708, %v704
      %v885 = vpack.c.b16 %v709, %v705
      %v886 = vpack.c.b16 %v710, %v706
      %v887 = vpack.c.b16 %v711, %v707
      %v888 = vpack.c.b16 %v716, %v712
      %v889 = vpack.c.b16 %v717, %v713
      %v890 = vpack.c.b16 %v718, %v714
      %v891 = vpack.c.b16 %v719, %v715
      %v892 = vpack.c.b16 %v724, %v720
      %v893 = vpack.c.b16 %v725, %v721
      %v894 = vpack.c.b16 %v726, %v722
      %v895 = vpack.c.b16 %v727, %v723
      %v896 = vpack.c.b16 %v732, %v728
      %v897 = vpack.c.b16 %v733, %v729
      %v898 = vpack.c.b16 %v734, %v730
      %v899 = vpack.c.b16 %v735, %v731
      %v900 = vpack.c.b16 %v740, %v736
      %v901 = vpack.c.b16 %v741, %v737
      %v902 = vpack.c.b16 %v742, %v738
      %v903 = vpack.c.b16 %v743, %v739
      %v904 = vpack.c.b16 %v748, %v744
      %v905 = vpack.c.b16 %v749, %v745
      %v906 = vpack.c.b16 %v750, %v746
      %v907 = vpack.c.b16 %v751, %v747
      %v908 = vpack.c.b16 %v756, %v752
      %v909 = vpack.c.b16 %v757, %v753
      %v910 = vpack.c.b16 %v758, %v754
      %v911 = vpack.c.b16 %v759, %v755
      %v912 = vpack.c.b16 %v764, %v760
      %v913 = vpack.c.b16 %v765, %v761
      %v914 = vpack.c.b16 %v766, %v762
      %v915 = vpack.c.b16 %v767, %v763
      %v916 = vpack.c.b16 %v772, %v768
      %v917 = vpack.c.b16 %v773, %v769
      %v918 = vpack.c.b16 %v774, %v770
      %v919 = vpack.c.b16 %v775, %v771
      %v920 = vpack.c.b16 %v780, %v776
      %v921 = vpack.c.b16 %v781, %v777
      %v922 = vpack.c.b16 %v782, %v778
      %v923 = vpack.c.b16 %v783, %v779
      %v924 = vpack.c.b16 %v788, %v784
      %v925 = vpack.c.b16 %v789, %v785
      %v926 = vpack.c.b16 %v790, %v786
      %v927 = vpack.c.b16 %v791, %v787
      %v928 = vpack.c.b16 %v796, %v792
      %v929 = vpack.c.b16 %v797, %v793
      %v930 = vpack.c.b16 %v798, %v794
      %v931 = vpack.c.b16 %v799, %v795
      %v932 = vpack.c.b16 %v804, %v800
      %v933 = vpack.c.b16 %v805, %v801
      %v934 = vpack.c.b16 %v806, %v802
      %v935 = vpack.c.b16 %v807, %v803
      %v1128 = vunpack.c.l.b16 %v360
      %v1129 = vunpack.c.l.b16 %v361
      %v1130 = vunpack.c.l.b16 %v362
      %v1131 = vunpack.c.l.b16 %v363
      %v1132 = vunpack.c.l.b16 %v364
      %v1133 = vunpack.c.l.b16 %v365
      %v1134 = vunpack.c.l.b16 %v366
      %v1135 = vunpack.c.l.b16 %v367
      %v1136 = vunpack.c.l.b16 %v368
      %v1137 = vunpack.c.l.b16 %v369
      %v1138 = vunpack.c.l.b16 %v370
      %v1139 = vunpack.c.l.b16 %v371
      %v1140 = vunpack.c.l.b16 %v372
      %v1141 = vunpack.c.l.b16 %v373
      %v1142 = vunpack.c.l.b16 %v374
      %v1143 = vunpack.c.l.b16 %v375
      %v1144 = vunpack.c.l.b16 %v376
      %v1145 = vunpack.c.l.b16 %v377
      %v1146 = vunpack.c.l.b16 %v378
      %v1147 = vunpack.c.l.b16 %v379
      %v1148 = vunpack.c.l.b16 %v380
      %v1149 = vunpack.c.l.b16 %v381
      %v1150 = vunpack.c.l.b16 %v382
      %v1151 = vunpack.c.l.b16 %v383
      %v1152 = vunpack.c.l.b16 %v384
      %v1153 = vunpack.c.l.b16 %v385
      %v1154 = vunpack.c.l.b16 %v386
      %v1155 = vunpack.c.l.b16 %v387
      %v1156 = vunpack.c.l.b16 %v388
      %v1157 = vunpack.c.l.b16 %v389
      %v1158 = vunpack.c.l.b16 %v390
      %v1159 = vunpack.c.l.b16 %v391
      %v1160 = vunpack.c.l.b16 %v392
      %v1161 = vunpack.c.l.b16 %v393
      %v1162 = vunpack.c.l.b16 %v394
      %v1163 = vunpack.c.l.b16 %v395
      %v1164 = vunpack.c.l.b16 %v396
      %v1165 = vunpack.c.l.b16 %v397
      %v1166 = vunpack.c.l.b16 %v398
      %v1167 = vunpack.c.l.b16 %v399
      %v1168 = vunpack.c.l.b16 %v400
      %v1169 = vunpack.c.l.b16 %v401
      %v1170 = vunpack.c.l.b16 %v402
      %v1171 = vunpack.c.l.b16 %v403
      %v1172 = vunpack.c.l.b16 %v404
      %v1173 = vunpack.c.l.b16 %v405
      %v1174 = vunpack.c.l.b16 %v406
      %v1175 = vunpack.c.l.b16 %v407
      %v1176 = vunpack.c.l.b16 %v408
      %v1177 = vunpack.c.l.b16 %v409
      %v1178 = vunpack.c.l.b16 %v410
      %v1179 = vunpack.c.l.b16 %v411
      %v1180 = vunpack.c.l.b16 %v412
      %v1181 = vunpack.c.l.b16 %v413
      %v1182 = vunpack.c.l.b16 %v414
      %v1183 = vunpack.c.l.b16 %v415
      %v1184 = vunpack.c.l.b16 %v416
      %v1185 = vunpack.c.l.b16 %v417
      %v1186 = vunpack.c.l.b16 %v418
      %v1187 = vunpack.c.l.b16 %v419
      %v1188 = vunpack.c.l.b16 %v420
      %v1189 = vunpack.c.l.b16 %v421
      %v1190 = vunpack.c.l.b16 %v422
      %v1191 = vunpack.c.l.b16 %v423
      %v1192 = vpack.c.b16 %v1129, %v1128
      %v1193 = vpack.c.b16 %v1131, %v1130
      %v1194 = vpack.c.b16 %v1133, %v1132
      %v1195 = vpack.c.b16 %v1135, %v1134
      %v1196 = vpack.c.b16 %v1137, %v1136
      %v1197 = vpack.c.b16 %v1139, %v1138
      %v1198 = vpack.c.b16 %v1141, %v1140
      %v1199 = vpack.c.b16 %v1143, %v1142
      %v1200 = vpack.c.b16 %v1145, %v1144
      %v1201 = vpack.c.b16 %v1147, %v1146
      %v1202 = vpack.c.b16 %v1149, %v1148
      %v1203 = vpack.c.b16 %v1151, %v1150
      %v1204 = vpack.c.b16 %v1153, %v1152
      %v1205 = vpack.c.b16 %v1155, %v1154
      %v1206 = vpack.c.b16 %v1157, %v1156
      %v1207 = vpack.c.b16 %v1159, %v1158
      %v1208 = vpack.c.b16 %v1161, %v1160
      %v1209 = vpack.c.b16 %v1163, %v1162
      %v1210 = vpack.c.b16 %v1165, %v1164
      %v1211 = vpack.c.b16 %v1167, %v1166
      %v1212 = vpack.c.b16 %v1169, %v1168
      %v1213 = vpack.c.b16 %v1171, %v1170
      %v1214 = vpack.c.b16 %v1173, %v1172
      %v1215 = vpack.c.b16 %v1175, %v1174
      %v1216 = vpack.c.b16 %v1177, %v1176
      %v1217 = vpack.c.b16 %v1179, %v1178
      %v1218 = vpack.c.b16 %v1181, %v1180
      %v1219 = vpack.c.b16 %v1183, %v1182
      %v1220 = vpack.c.b16 %v1185, %v1184
      %v1221 = vpack.c.b16 %v1187, %v1186
      %v1222 = vpack.c.b16 %v1189, %v1188
      %v1223 = vpack.c.b16 %v1191, %v1190
      %1256 = vmatpush.bf16.msra.mxu0 %v1199
      %1257 = vmatpush.bf16.msra.mxu0 %v1198
      %1258 = vmatpush.bf16.msra.mxu0 %v1197
      %1259 = vmatpush.bf16.msra.mxu0 %v1196
      %1260 = vmatpush.bf16.msra.mxu0 %v1195
      %1261 = vmatpush.bf16.msra.mxu0 %v1194
      %1262 = vmatpush.bf16.msra.mxu0 %v1193
      %1263 = vmatpush.bf16.msra.mxu0 %v1192
      %1264 = vmatmul.bf16.gmra.mxu0 %v808
      %v1265 = vpop.f32.mrf.mxu0
      %v1266 = vadd.f32 0.0, %v1265
      %v1267 = vpop.f32.mrf.mxu0
      %v1268 = vadd.f32 0.0, %v1267
      %1269 = vmatmul.bf16.gmra.mxu0 %v812
      %v1270 = vpop.f32.mrf.mxu0
      %v1271 = vadd.f32 0.0, %v1270
      %v1272 = vpop.f32.mrf.mxu0
      %v1273 = vadd.f32 0.0, %v1272
      %1274 = vmatmul.bf16.gmra.mxu0 %v816
      %v1275 = vpop.f32.mrf.mxu0
      %v1276 = vadd.f32 0.0, %v1275
      %v1277 = vpop.f32.mrf.mxu0
      %v1278 = vadd.f32 0.0, %v1277
      %1279 = vmatmul.bf16.gmra.mxu0 %v820
      %v1280 = vpop.f32.mrf.mxu0
      %v1281 = vadd.f32 0.0, %v1280
      %v1282 = vpop.f32.mrf.mxu0
      %v1283 = vadd.f32 0.0, %v1282
      %1284 = vmatmul.bf16.gmra.mxu0 %v824
      %v1285 = vpop.f32.mrf.mxu0
      %v1286 = vadd.f32 0.0, %v1285
      %v1287 = vpop.f32.mrf.mxu0
      %v1288 = vadd.f32 0.0, %v1287
      %1289 = vmatmul.bf16.gmra.mxu0 %v828
      %v1290 = vpop.f32.mrf.mxu0
      %v1291 = vadd.f32 0.0, %v1290
      %v1292 = vpop.f32.mrf.mxu0
      %v1293 = vadd.f32 0.0, %v1292
      %1294 = vmatmul.bf16.gmra.mxu0 %v832
      %v1295 = vpop.f32.mrf.mxu0
      %v1296 = vadd.f32 0.0, %v1295
      %v1297 = vpop.f32.mrf.mxu0
      %v1298 = vadd.f32 0.0, %v1297
      %1299 = vmatmul.bf16.gmra.mxu0 %v836
      %v1300 = vpop.f32.mrf.mxu0
      %v1301 = vadd.f32 0.0, %v1300
      %v1302 = vpop.f32.mrf.mxu0
      %v1303 = vadd.f32 0.0, %v1302
      %1304 = vmatmul.bf16.gmra.mxu0 %v840
      %v1305 = vpop.f32.mrf.mxu0
      %v1306 = vadd.f32 0.0, %v1305
      %v1307 = vpop.f32.mrf.mxu0
      %v1308 = vadd.f32 0.0, %v1307
      %1309 = vmatmul.bf16.gmra.mxu0 %v844
      %v1310 = vpop.f32.mrf.mxu0
      %v1311 = vadd.f32 0.0, %v1310
      %v1312 = vpop.f32.mrf.mxu0
      %v1313 = vadd.f32 0.0, %v1312
      %1314 = vmatmul.bf16.gmra.mxu0 %v848
      %v1315 = vpop.f32.mrf.mxu0
      %v1316 = vadd.f32 0.0, %v1315
      %v1317 = vpop.f32.mrf.mxu0
      %v1318 = vadd.f32 0.0, %v1317
      %1319 = vmatmul.bf16.gmra.mxu0 %v852
      %v1320 = vpop.f32.mrf.mxu0
      %v1321 = vadd.f32 0.0, %v1320
      %v1322 = vpop.f32.mrf.mxu0
      %v1323 = vadd.f32 0.0, %v1322
      %1324 = vmatmul.bf16.gmra.mxu0 %v856
      %v1325 = vpop.f32.mrf.mxu0
      %v1326 = vadd.f32 0.0, %v1325
      %v1327 = vpop.f32.mrf.mxu0
      %v1328 = vadd.f32 0.0, %v1327
      %1329 = vmatmul.bf16.gmra.mxu0 %v860
      %v1330 = vpop.f32.mrf.mxu0
      %v1331 = vadd.f32 0.0, %v1330
      %v1332 = vpop.f32.mrf.mxu0
      %v1333 = vadd.f32 0.0, %v1332
      %1334 = vmatmul.bf16.gmra.mxu0 %v864
      %v1335 = vpop.f32.mrf.mxu0
      %v1336 = vadd.f32 0.0, %v1335
      %v1337 = vpop.f32.mrf.mxu0
      %v1338 = vadd.f32 0.0, %v1337
      %1339 = vmatmul.bf16.gmra.mxu0 %v868
      %v1340 = vpop.f32.mrf.mxu0
      %v1341 = vadd.f32 0.0, %v1340
      %v1342 = vpop.f32.mrf.mxu0
      %v1343 = vadd.f32 0.0, %v1342
      %1344 = vmatmul.bf16.gmra.mxu0 %v872
      %v1345 = vpop.f32.mrf.mxu0
      %v1346 = vadd.f32 0.0, %v1345
      %v1347 = vpop.f32.mrf.mxu0
      %v1348 = vadd.f32 0.0, %v1347
      %1349 = vmatmul.bf16.gmra.mxu0 %v876
      %v1350 = vpop.f32.mrf.mxu0
      %v1351 = vadd.f32 0.0, %v1350
      %v1352 = vpop.f32.mrf.mxu0
      %v1353 = vadd.f32 0.0, %v1352
      %1354 = vmatmul.bf16.gmra.mxu0 %v880
      %v1355 = vpop.f32.mrf.mxu0
      %v1356 = vadd.f32 0.0, %v1355
      %v1357 = vpop.f32.mrf.mxu0
      %v1358 = vadd.f32 0.0, %v1357
      %1359 = vmatmul.bf16.gmra.mxu0 %v884
      %v1360 = vpop.f32.mrf.mxu0
      %v1361 = vadd.f32 0.0, %v1360
      %v1362 = vpop.f32.mrf.mxu0
      %v1363 = vadd.f32 0.0, %v1362
      %1364 = vmatmul.bf16.gmra.mxu0 %v888
      %v1365 = vpop.f32.mrf.mxu0
      %v1366 = vadd.f32 0.0, %v1365
      %v1367 = vpop.f32.mrf.mxu0
      %v1368 = vadd.f32 0.0, %v1367
      %1369 = vmatmul.bf16.gmra.mxu0 %v892
      %v1370 = vpop.f32.mrf.mxu0
      %v1371 = vadd.f32 0.0, %v1370
      %v1372 = vpop.f32.mrf.mxu0
      %v1373 = vadd.f32 0.0, %v1372
      %1374 = vmatmul.bf16.gmra.mxu0 %v896
      %v1375 = vpop.f32.mrf.mxu0
      %v1376 = vadd.f32 0.0, %v1375
      %v1377 = vpop.f32.mrf.mxu0
      %v1378 = vadd.f32 0.0, %v1377
      %1379 = vmatmul.bf16.gmra.mxu0 %v900
      %v1380 = vpop.f32.mrf.mxu0
      %v1381 = vadd.f32 0.0, %v1380
      %v1382 = vpop.f32.mrf.mxu0
      %v1383 = vadd.f32 0.0, %v1382
      %1384 = vmatmul.bf16.gmra.mxu0 %v904
      %v1385 = vpop.f32.mrf.mxu0
      %v1386 = vadd.f32 0.0, %v1385
      %v1387 = vpop.f32.mrf.mxu0
      %v1388 = vadd.f32 0.0, %v1387
      %1389 = vmatmul.bf16.gmra.mxu0 %v908
      %v1390 = vpop.f32.mrf.mxu0
      %v1391 = vadd.f32 0.0, %v1390
      %v1392 = vpop.f32.mrf.mxu0
      %v1393 = vadd.f32 0.0, %v1392
      %1394 = vmatmul.bf16.gmra.mxu0 %v912
      %v1395 = vpop.f32.mrf.mxu0
      %v1396 = vadd.f32 0.0, %v1395
      %v1397 = vpop.f32.mrf.mxu0
      %v1398 = vadd.f32 0.0, %v1397
      %1399 = vmatmul.bf16.gmra.mxu0 %v916
      %v1400 = vpop.f32.mrf.mxu0
      %v1401 = vadd.f32 0.0, %v1400
      %v1402 = vpop.f32.mrf.mxu0
      %v1403 = vadd.f32 0.0, %v1402
      %1404 = vmatmul.bf16.gmra.mxu0 %v920
      %v1405 = vpop.f32.mrf.mxu0
      %v1406 = vadd.f32 0.0, %v1405
      %v1407 = vpop.f32.mrf.mxu0
      %v1408 = vadd.f32 0.0, %v1407
      %1409 = vmatmul.bf16.gmra.mxu0 %v924
      %v1410 = vpop.f32.mrf.mxu0
      %v1411 = vadd.f32 0.0, %v1410
      %v1412 = vpop.f32.mrf.mxu0
      %v1413 = vadd.f32 0.0, %v1412
      %1414 = vmatmul.bf16.gmra.mxu0 %v928
      %v1415 = vpop.f32.mrf.mxu0
      %v1416 = vadd.f32 0.0, %v1415
      %v1417 = vpop.f32.mrf.mxu0
      %v1418 = vadd.f32 0.0, %v1417
      %1419 = vmatmul.bf16.gmra.mxu0 %v932
      %v1420 = vpop.f32.mrf.mxu0
      %v1421 = vadd.f32 0.0, %v1420
      %v1422 = vpop.f32.mrf.mxu0
      %v1423 = vadd.f32 0.0, %v1422
      %1424 = vdwg.mxu0
      %1425 = vmatpush.bf16.msra.mxu0 %v1207
      %1426 = vmatpush.bf16.msra.mxu0 %v1206
      %1427 = vmatpush.bf16.msra.mxu0 %v1205
      %1428 = vmatpush.bf16.msra.mxu0 %v1204
      %1429 = vmatpush.bf16.msra.mxu0 %v1203
      %1430 = vmatpush.bf16.msra.mxu0 %v1202
      %1431 = vmatpush.bf16.msra.mxu0 %v1201
      %1432 = vmatpush.bf16.msra.mxu0 %v1200
      %1433 = vmatmul.bf16.gmra.mxu0 %v809
      %v1434 = vpop.f32.mrf.mxu0
      %v1435 = vadd.f32 %v1266, %v1434
      %v1436 = vpop.f32.mrf.mxu0
      %v1437 = vadd.f32 %v1268, %v1436
      %1438 = vmatmul.bf16.gmra.mxu0 %v813
      %v1439 = vpop.f32.mrf.mxu0
      %v1440 = vadd.f32 %v1271, %v1439
      %v1441 = vpop.f32.mrf.mxu0
      %v1442 = vadd.f32 %v1273, %v1441
      %1443 = vmatmul.bf16.gmra.mxu0 %v817
      %v1444 = vpop.f32.mrf.mxu0
      %v1445 = vadd.f32 %v1276, %v1444
      %v1446 = vpop.f32.mrf.mxu0
      %v1447 = vadd.f32 %v1278, %v1446
      %1448 = vmatmul.bf16.gmra.mxu0 %v821
      %v1449 = vpop.f32.mrf.mxu0
      %v1450 = vadd.f32 %v1281, %v1449
      %v1451 = vpop.f32.mrf.mxu0
      %v1452 = vadd.f32 %v1283, %v1451
      %1453 = vmatmul.bf16.gmra.mxu0 %v825
      %v1454 = vpop.f32.mrf.mxu0
      %v1455 = vadd.f32 %v1286, %v1454
      %v1456 = vpop.f32.mrf.mxu0
      %v1457 = vadd.f32 %v1288, %v1456
      %1458 = vmatmul.bf16.gmra.mxu0 %v829
      %v1459 = vpop.f32.mrf.mxu0
      %v1460 = vadd.f32 %v1291, %v1459
      %v1461 = vpop.f32.mrf.mxu0
      %v1462 = vadd.f32 %v1293, %v1461
      %1463 = vmatmul.bf16.gmra.mxu0 %v833
      %v1464 = vpop.f32.mrf.mxu0
      %v1465 = vadd.f32 %v1296, %v1464
      %v1466 = vpop.f32.mrf.mxu0
      %v1467 = vadd.f32 %v1298, %v1466
      %1468 = vmatmul.bf16.gmra.mxu0 %v837
      %v1469 = vpop.f32.mrf.mxu0
      %v1470 = vadd.f32 %v1301, %v1469
      %v1471 = vpop.f32.mrf.mxu0
      %v1472 = vadd.f32 %v1303, %v1471
      %1473 = vmatmul.bf16.gmra.mxu0 %v841
      %v1474 = vpop.f32.mrf.mxu0
      %v1475 = vadd.f32 %v1306, %v1474
      %v1476 = vpop.f32.mrf.mxu0
      %v1477 = vadd.f32 %v1308, %v1476
      %1478 = vmatmul.bf16.gmra.mxu0 %v845
      %v1479 = vpop.f32.mrf.mxu0
      %v1480 = vadd.f32 %v1311, %v1479
      %v1481 = vpop.f32.mrf.mxu0
      %v1482 = vadd.f32 %v1313, %v1481
      %1483 = vmatmul.bf16.gmra.mxu0 %v849
      %v1484 = vpop.f32.mrf.mxu0
      %v1485 = vadd.f32 %v1316, %v1484
      %v1486 = vpop.f32.mrf.mxu0
      %v1487 = vadd.f32 %v1318, %v1486
      %1488 = vmatmul.bf16.gmra.mxu0 %v853
      %v1489 = vpop.f32.mrf.mxu0
      %v1490 = vadd.f32 %v1321, %v1489
      %v1491 = vpop.f32.mrf.mxu0
      %v1492 = vadd.f32 %v1323, %v1491
      %1493 = vmatmul.bf16.gmra.mxu0 %v857
      %v1494 = vpop.f32.mrf.mxu0
      %v1495 = vadd.f32 %v1326, %v1494
      %v1496 = vpop.f32.mrf.mxu0
      %v1497 = vadd.f32 %v1328, %v1496
      %1498 = vmatmul.bf16.gmra.mxu0 %v861
      %v1499 = vpop.f32.mrf.mxu0
      %v1500 = vadd.f32 %v1331, %v1499
      %v1501 = vpop.f32.mrf.mxu0
      %v1502 = vadd.f32 %v1333, %v1501
      %1503 = vmatmul.bf16.gmra.mxu0 %v865
      %v1504 = vpop.f32.mrf.mxu0
      %v1505 = vadd.f32 %v1336, %v1504
      %v1506 = vpop.f32.mrf.mxu0
      %v1507 = vadd.f32 %v1338, %v1506
      %1508 = vmatmul.bf16.gmra.mxu0 %v869
      %v1509 = vpop.f32.mrf.mxu0
      %v1510 = vadd.f32 %v1341, %v1509
      %v1511 = vpop.f32.mrf.mxu0
      %v1512 = vadd.f32 %v1343, %v1511
      %1513 = vmatmul.bf16.gmra.mxu0 %v873
      %v1514 = vpop.f32.mrf.mxu0
      %v1515 = vadd.f32 %v1346, %v1514
      %v1516 = vpop.f32.mrf.mxu0
      %v1517 = vadd.f32 %v1348, %v1516
      %1518 = vmatmul.bf16.gmra.mxu0 %v877
      %v1519 = vpop.f32.mrf.mxu0
      %v1520 = vadd.f32 %v1351, %v1519
      %v1521 = vpop.f32.mrf.mxu0
      %v1522 = vadd.f32 %v1353, %v1521
      %1523 = vmatmul.bf16.gmra.mxu0 %v881
      %v1524 = vpop.f32.mrf.mxu0
      %v1525 = vadd.f32 %v1356, %v1524
      %v1526 = vpop.f32.mrf.mxu0
      %v1527 = vadd.f32 %v1358, %v1526
      %1528 = vmatmul.bf16.gmra.mxu0 %v885
      %v1529 = vpop.f32.mrf.mxu0
      %v1530 = vadd.f32 %v1361, %v1529
      %v1531 = vpop.f32.mrf.mxu0
      %v1532 = vadd.f32 %v1363, %v1531
      %1533 = vmatmul.bf16.gmra.mxu0 %v889
      %v1534 = vpop.f32.mrf.mxu0
      %v1535 = vadd.f32 %v1366, %v1534
      %v1536 = vpop.f32.mrf.mxu0
      %v1537 = vadd.f32 %v1368, %v1536
      %1538 = vmatmul.bf16.gmra.mxu0 %v893
      %v1539 = vpop.f32.mrf.mxu0
      %v1540 = vadd.f32 %v1371, %v1539
      %v1541 = vpop.f32.mrf.mxu0
      %v1542 = vadd.f32 %v1373, %v1541
      %1543 = vmatmul.bf16.gmra.mxu0 %v897
      %v1544 = vpop.f32.mrf.mxu0
      %v1545 = vadd.f32 %v1376, %v1544
      %v1546 = vpop.f32.mrf.mxu0
      %v1547 = vadd.f32 %v1378, %v1546
      %1548 = vmatmul.bf16.gmra.mxu0 %v901
      %v1549 = vpop.f32.mrf.mxu0
      %v1550 = vadd.f32 %v1381, %v1549
      %v1551 = vpop.f32.mrf.mxu0
      %v1552 = vadd.f32 %v1383, %v1551
      %1553 = vmatmul.bf16.gmra.mxu0 %v905
      %v1554 = vpop.f32.mrf.mxu0
      %v1555 = vadd.f32 %v1386, %v1554
      %v1556 = vpop.f32.mrf.mxu0
      %v1557 = vadd.f32 %v1388, %v1556
      %1558 = vmatmul.bf16.gmra.mxu0 %v909
      %v1559 = vpop.f32.mrf.mxu0
      %v1560 = vadd.f32 %v1391, %v1559
      %v1561 = vpop.f32.mrf.mxu0
      %v1562 = vadd.f32 %v1393, %v1561
      %1563 = vmatmul.bf16.gmra.mxu0 %v913
      %v1564 = vpop.f32.mrf.mxu0
      %v1565 = vadd.f32 %v1396, %v1564
      %v1566 = vpop.f32.mrf.mxu0
      %v1567 = vadd.f32 %v1398, %v1566
      %1568 = vmatmul.bf16.gmra.mxu0 %v917
      %v1569 = vpop.f32.mrf.mxu0
      %v1570 = vadd.f32 %v1401, %v1569
      %v1571 = vpop.f32.mrf.mxu0
      %v1572 = vadd.f32 %v1403, %v1571
      %1573 = vmatmul.bf16.gmra.mxu0 %v921
      %v1574 = vpop.f32.mrf.mxu0
      %v1575 = vadd.f32 %v1406, %v1574
      %v1576 = vpop.f32.mrf.mxu0
      %v1577 = vadd.f32 %v1408, %v1576
      %1578 = vmatmul.bf16.gmra.mxu0 %v925
      %v1579 = vpop.f32.mrf.mxu0
      %v1580 = vadd.f32 %v1411, %v1579
      %v1581 = vpop.f32.mrf.mxu0
      %v1582 = vadd.f32 %v1413, %v1581
      %1583 = vmatmul.bf16.gmra.mxu0 %v929
      %v1584 = vpop.f32.mrf.mxu0
      %v1585 = vadd.f32 %v1416, %v1584
      %v1586 = vpop.f32.mrf.mxu0
      %v1587 = vadd.f32 %v1418, %v1586
      %1588 = vmatmul.bf16.gmra.mxu0 %v933
      %v1589 = vpop.f32.mrf.mxu0
      %v1590 = vadd.f32 %v1421, %v1589
      %v1591 = vpop.f32.mrf.mxu0
      %v1592 = vadd.f32 %v1423, %v1591
      %1593 = vdwg.mxu0
      %1594 = vmatpush.bf16.msra.mxu0 %v1215
      %1595 = vmatpush.bf16.msra.mxu0 %v1214
      %1596 = vmatpush.bf16.msra.mxu0 %v1213
      %1597 = vmatpush.bf16.msra.mxu0 %v1212
      %1598 = vmatpush.bf16.msra.mxu0 %v1211
      %1599 = vmatpush.bf16.msra.mxu0 %v1210
      %1600 = vmatpush.bf16.msra.mxu0 %v1209
      %1601 = vmatpush.bf16.msra.mxu0 %v1208
      %1602 = vmatmul.bf16.gmra.mxu0 %v810
      %v1603 = vpop.f32.mrf.mxu0
      %v1604 = vadd.f32 %v1435, %v1603
      %v1605 = vpop.f32.mrf.mxu0
      %v1606 = vadd.f32 %v1437, %v1605
      %1607 = vmatmul.bf16.gmra.mxu0 %v814
      %v1608 = vpop.f32.mrf.mxu0
      %v1609 = vadd.f32 %v1440, %v1608
      %v1610 = vpop.f32.mrf.mxu0
      %v1611 = vadd.f32 %v1442, %v1610
      %1612 = vmatmul.bf16.gmra.mxu0 %v818
      %v1613 = vpop.f32.mrf.mxu0
      %v1614 = vadd.f32 %v1445, %v1613
      %v1615 = vpop.f32.mrf.mxu0
      %v1616 = vadd.f32 %v1447, %v1615
      %1617 = vmatmul.bf16.gmra.mxu0 %v822
      %v1618 = vpop.f32.mrf.mxu0
      %v1619 = vadd.f32 %v1450, %v1618
      %v1620 = vpop.f32.mrf.mxu0
      %v1621 = vadd.f32 %v1452, %v1620
      %1622 = vmatmul.bf16.gmra.mxu0 %v826
      %v1623 = vpop.f32.mrf.mxu0
      %v1624 = vadd.f32 %v1455, %v1623
      %v1625 = vpop.f32.mrf.mxu0
      %v1626 = vadd.f32 %v1457, %v1625
      %1627 = vmatmul.bf16.gmra.mxu0 %v830
      %v1628 = vpop.f32.mrf.mxu0
      %v1629 = vadd.f32 %v1460, %v1628
      %v1630 = vpop.f32.mrf.mxu0
      %v1631 = vadd.f32 %v1462, %v1630
      %1632 = vmatmul.bf16.gmra.mxu0 %v834
      %v1633 = vpop.f32.mrf.mxu0
      %v1634 = vadd.f32 %v1465, %v1633
      %v1635 = vpop.f32.mrf.mxu0
      %v1636 = vadd.f32 %v1467, %v1635
      %1637 = vmatmul.bf16.gmra.mxu0 %v838
      %v1638 = vpop.f32.mrf.mxu0
      %v1639 = vadd.f32 %v1470, %v1638
      %v1640 = vpop.f32.mrf.mxu0
      %v1641 = vadd.f32 %v1472, %v1640
      %1642 = vmatmul.bf16.gmra.mxu0 %v842
      %v1643 = vpop.f32.mrf.mxu0
      %v1644 = vadd.f32 %v1475, %v1643
      %v1645 = vpop.f32.mrf.mxu0
      %v1646 = vadd.f32 %v1477, %v1645
      %1647 = vmatmul.bf16.gmra.mxu0 %v846
      %v1648 = vpop.f32.mrf.mxu0
      %v1649 = vadd.f32 %v1480, %v1648
      %v1650 = vpop.f32.mrf.mxu0
      %v1651 = vadd.f32 %v1482, %v1650
      %1652 = vmatmul.bf16.gmra.mxu0 %v850
      %v1653 = vpop.f32.mrf.mxu0
      %v1654 = vadd.f32 %v1485, %v1653
      %v1655 = vpop.f32.mrf.mxu0
      %v1656 = vadd.f32 %v1487, %v1655
      %1657 = vmatmul.bf16.gmra.mxu0 %v854
      %v1658 = vpop.f32.mrf.mxu0
      %v1659 = vadd.f32 %v1490, %v1658
      %v1660 = vpop.f32.mrf.mxu0
      %v1661 = vadd.f32 %v1492, %v1660
      %1662 = vmatmul.bf16.gmra.mxu0 %v858
      %v1663 = vpop.f32.mrf.mxu0
      %v1664 = vadd.f32 %v1495, %v1663
      %v1665 = vpop.f32.mrf.mxu0
      %v1666 = vadd.f32 %v1497, %v1665
      %1667 = vmatmul.bf16.gmra.mxu0 %v862
      %v1668 = vpop.f32.mrf.mxu0
      %v1669 = vadd.f32 %v1500, %v1668
      %v1670 = vpop.f32.mrf.mxu0
      %v1671 = vadd.f32 %v1502, %v1670
      %1672 = vmatmul.bf16.gmra.mxu0 %v866
      %v1673 = vpop.f32.mrf.mxu0
      %v1674 = vadd.f32 %v1505, %v1673
      %v1675 = vpop.f32.mrf.mxu0
      %v1676 = vadd.f32 %v1507, %v1675
      %1677 = vmatmul.bf16.gmra.mxu0 %v870
      %v1678 = vpop.f32.mrf.mxu0
      %v1679 = vadd.f32 %v1510, %v1678
      %v1680 = vpop.f32.mrf.mxu0
      %v1681 = vadd.f32 %v1512, %v1680
      %1682 = vmatmul.bf16.gmra.mxu0 %v874
      %v1683 = vpop.f32.mrf.mxu0
      %v1684 = vadd.f32 %v1515, %v1683
      %v1685 = vpop.f32.mrf.mxu0
      %v1686 = vadd.f32 %v1517, %v1685
      %1687 = vmatmul.bf16.gmra.mxu0 %v878
      %v1688 = vpop.f32.mrf.mxu0
      %v1689 = vadd.f32 %v1520, %v1688
      %v1690 = vpop.f32.mrf.mxu0
      %v1691 = vadd.f32 %v1522, %v1690
      %1692 = vmatmul.bf16.gmra.mxu0 %v882
      %v1693 = vpop.f32.mrf.mxu0
      %v1694 = vadd.f32 %v1525, %v1693
      %v1695 = vpop.f32.mrf.mxu0
      %v1696 = vadd.f32 %v1527, %v1695
      %1697 = vmatmul.bf16.gmra.mxu0 %v886
      %v1698 = vpop.f32.mrf.mxu0
      %v1699 = vadd.f32 %v1530, %v1698
      %v1700 = vpop.f32.mrf.mxu0
      %v1701 = vadd.f32 %v1532, %v1700
      %1702 = vmatmul.bf16.gmra.mxu0 %v890
      %v1703 = vpop.f32.mrf.mxu0
      %v1704 = vadd.f32 %v1535, %v1703
      %v1705 = vpop.f32.mrf.mxu0
      %v1706 = vadd.f32 %v1537, %v1705
      %1707 = vmatmul.bf16.gmra.mxu0 %v894
      %v1708 = vpop.f32.mrf.mxu0
      %v1709 = vadd.f32 %v1540, %v1708
      %v1710 = vpop.f32.mrf.mxu0
      %v1711 = vadd.f32 %v1542, %v1710
      %1712 = vmatmul.bf16.gmra.mxu0 %v898
      %v1713 = vpop.f32.mrf.mxu0
      %v1714 = vadd.f32 %v1545, %v1713
      %v1715 = vpop.f32.mrf.mxu0
      %v1716 = vadd.f32 %v1547, %v1715
      %1717 = vmatmul.bf16.gmra.mxu0 %v902
      %v1718 = vpop.f32.mrf.mxu0
      %v1719 = vadd.f32 %v1550, %v1718
      %v1720 = vpop.f32.mrf.mxu0
      %v1721 = vadd.f32 %v1552, %v1720
      %1722 = vmatmul.bf16.gmra.mxu0 %v906
      %v1723 = vpop.f32.mrf.mxu0
      %v1724 = vadd.f32 %v1555, %v1723
      %v1725 = vpop.f32.mrf.mxu0
      %v1726 = vadd.f32 %v1557, %v1725
      %1727 = vmatmul.bf16.gmra.mxu0 %v910
      %v1728 = vpop.f32.mrf.mxu0
      %v1729 = vadd.f32 %v1560, %v1728
      %v1730 = vpop.f32.mrf.mxu0
      %v1731 = vadd.f32 %v1562, %v1730
      %1732 = vmatmul.bf16.gmra.mxu0 %v914
      %v1733 = vpop.f32.mrf.mxu0
      %v1734 = vadd.f32 %v1565, %v1733
      %v1735 = vpop.f32.mrf.mxu0
      %v1736 = vadd.f32 %v1567, %v1735
      %1737 = vmatmul.bf16.gmra.mxu0 %v918
      %v1738 = vpop.f32.mrf.mxu0
      %v1739 = vadd.f32 %v1570, %v1738
      %v1740 = vpop.f32.mrf.mxu0
      %v1741 = vadd.f32 %v1572, %v1740
      %1742 = vmatmul.bf16.gmra.mxu0 %v922
      %v1743 = vpop.f32.mrf.mxu0
      %v1744 = vadd.f32 %v1575, %v1743
      %v1745 = vpop.f32.mrf.mxu0
      %v1746 = vadd.f32 %v1577, %v1745
      %1747 = vmatmul.bf16.gmra.mxu0 %v926
      %v1748 = vpop.f32.mrf.mxu0
      %v1749 = vadd.f32 %v1580, %v1748
      %v1750 = vpop.f32.mrf.mxu0
      %v1751 = vadd.f32 %v1582, %v1750
      %1752 = vmatmul.bf16.gmra.mxu0 %v930
      %v1753 = vpop.f32.mrf.mxu0
      %v1754 = vadd.f32 %v1585, %v1753
      %v1755 = vpop.f32.mrf.mxu0
      %v1756 = vadd.f32 %v1587, %v1755
      %1757 = vmatmul.bf16.gmra.mxu0 %v934
      %v1758 = vpop.f32.mrf.mxu0
      %v1759 = vadd.f32 %v1590, %v1758
      %v1760 = vpop.f32.mrf.mxu0
      %v1761 = vadd.f32 %v1592, %v1760
      %1762 = vdwg.mxu0
      %1763 = vmatpush.bf16.msra.mxu0 %v1223
      %1764 = vmatpush.bf16.msra.mxu0 %v1222
      %1765 = vmatpush.bf16.msra.mxu0 %v1221
      %1766 = vmatpush.bf16.msra.mxu0 %v1220
      %1767 = vmatpush.bf16.msra.mxu0 %v1219
      %1768 = vmatpush.bf16.msra.mxu0 %v1218
      %1769 = vmatpush.bf16.msra.mxu0 %v1217
      %1770 = vmatpush.bf16.msra.mxu0 %v1216
      %1771 = vmatmul.bf16.gmra.mxu0 %v811
      %v1772 = vpop.f32.mrf.mxu0
      %v1773 = vadd.f32 %v1604, %v1772
      %v1774 = vpop.f32.mrf.mxu0
      %v1775 = vadd.f32 %v1606, %v1774
      %1776 = vmatmul.bf16.gmra.mxu0 %v815
      %v1777 = vpop.f32.mrf.mxu0
      %v1778 = vadd.f32 %v1609, %v1777
      %v1779 = vpop.f32.mrf.mxu0
      %v1780 = vadd.f32 %v1611, %v1779
      %1781 = vmatmul.bf16.gmra.mxu0 %v819
      %v1782 = vpop.f32.mrf.mxu0
      %v1783 = vadd.f32 %v1614, %v1782
      %v1784 = vpop.f32.mrf.mxu0
      %v1785 = vadd.f32 %v1616, %v1784
      %1786 = vmatmul.bf16.gmra.mxu0 %v823
      %v1787 = vpop.f32.mrf.mxu0
      %v1788 = vadd.f32 %v1619, %v1787
      %v1789 = vpop.f32.mrf.mxu0
      %v1790 = vadd.f32 %v1621, %v1789
      %1791 = vmatmul.bf16.gmra.mxu0 %v827
      %v1792 = vpop.f32.mrf.mxu0
      %v1793 = vadd.f32 %v1624, %v1792
      %v1794 = vpop.f32.mrf.mxu0
      %v1795 = vadd.f32 %v1626, %v1794
      %1796 = vmatmul.bf16.gmra.mxu0 %v831
      %v1797 = vpop.f32.mrf.mxu0
      %v1798 = vadd.f32 %v1629, %v1797
      %v1799 = vpop.f32.mrf.mxu0
      %v1800 = vadd.f32 %v1631, %v1799
      %1801 = vmatmul.bf16.gmra.mxu0 %v835
      %v1802 = vpop.f32.mrf.mxu0
      %v1803 = vadd.f32 %v1634, %v1802
      %v1804 = vpop.f32.mrf.mxu0
      %v1805 = vadd.f32 %v1636, %v1804
      %1806 = vmatmul.bf16.gmra.mxu0 %v839
      %v1807 = vpop.f32.mrf.mxu0
      %v1808 = vadd.f32 %v1639, %v1807
      %v1809 = vpop.f32.mrf.mxu0
      %v1810 = vadd.f32 %v1641, %v1809
      %1811 = vmatmul.bf16.gmra.mxu0 %v843
      %v1812 = vpop.f32.mrf.mxu0
      %v1813 = vadd.f32 %v1644, %v1812
      %v1814 = vpop.f32.mrf.mxu0
      %v1815 = vadd.f32 %v1646, %v1814
      %1816 = vmatmul.bf16.gmra.mxu0 %v847
      %v1817 = vpop.f32.mrf.mxu0
      %v1818 = vadd.f32 %v1649, %v1817
      %v1819 = vpop.f32.mrf.mxu0
      %v1820 = vadd.f32 %v1651, %v1819
      %1821 = vmatmul.bf16.gmra.mxu0 %v851
      %v1822 = vpop.f32.mrf.mxu0
      %v1823 = vadd.f32 %v1654, %v1822
      %v1824 = vpop.f32.mrf.mxu0
      %v1825 = vadd.f32 %v1656, %v1824
      %1826 = vmatmul.bf16.gmra.mxu0 %v855
      %v1827 = vpop.f32.mrf.mxu0
      %v1828 = vadd.f32 %v1659, %v1827
      %v1829 = vpop.f32.mrf.mxu0
      %v1830 = vadd.f32 %v1661, %v1829
      %1831 = vmatmul.bf16.gmra.mxu0 %v859
      %v1832 = vpop.f32.mrf.mxu0
      %v1833 = vadd.f32 %v1664, %v1832
      %v1834 = vpop.f32.mrf.mxu0
      %v1835 = vadd.f32 %v1666, %v1834
      %1836 = vmatmul.bf16.gmra.mxu0 %v863
      %v1837 = vpop.f32.mrf.mxu0
      %v1838 = vadd.f32 %v1669, %v1837
      %v1839 = vpop.f32.mrf.mxu0
      %v1840 = vadd.f32 %v1671, %v1839
      %1841 = vmatmul.bf16.gmra.mxu0 %v867
      %v1842 = vpop.f32.mrf.mxu0
      %v1843 = vadd.f32 %v1674, %v1842
      %v1844 = vpop.f32.mrf.mxu0
      %v1845 = vadd.f32 %v1676, %v1844
      %1846 = vmatmul.bf16.gmra.mxu0 %v871
      %v1847 = vpop.f32.mrf.mxu0
      %v1848 = vadd.f32 %v1679, %v1847
      %v1849 = vpop.f32.mrf.mxu0
      %v1850 = vadd.f32 %v1681, %v1849
      %1851 = vmatmul.bf16.gmra.mxu0 %v875
      %v1852 = vpop.f32.mrf.mxu0
      %v1853 = vadd.f32 %v1684, %v1852
      %v1854 = vpop.f32.mrf.mxu0
      %v1855 = vadd.f32 %v1686, %v1854
      %1856 = vmatmul.bf16.gmra.mxu0 %v879
      %v1857 = vpop.f32.mrf.mxu0
      %v1858 = vadd.f32 %v1689, %v1857
      %v1859 = vpop.f32.mrf.mxu0
      %v1860 = vadd.f32 %v1691, %v1859
      %1861 = vmatmul.bf16.gmra.mxu0 %v883
      %v1862 = vpop.f32.mrf.mxu0
      %v1863 = vadd.f32 %v1694, %v1862
      %v1864 = vpop.f32.mrf.mxu0
      %v1865 = vadd.f32 %v1696, %v1864
      %1866 = vmatmul.bf16.gmra.mxu0 %v887
      %v1867 = vpop.f32.mrf.mxu0
      %v1868 = vadd.f32 %v1699, %v1867
      %v1869 = vpop.f32.mrf.mxu0
      %v1870 = vadd.f32 %v1701, %v1869
      %1871 = vmatmul.bf16.gmra.mxu0 %v891
      %v1872 = vpop.f32.mrf.mxu0
      %v1873 = vadd.f32 %v1704, %v1872
      %v1874 = vpop.f32.mrf.mxu0
      %v1875 = vadd.f32 %v1706, %v1874
      %1876 = vmatmul.bf16.gmra.mxu0 %v895
      %v1877 = vpop.f32.mrf.mxu0
      %v1878 = vadd.f32 %v1709, %v1877
      %v1879 = vpop.f32.mrf.mxu0
      %v1880 = vadd.f32 %v1711, %v1879
      %1881 = vmatmul.bf16.gmra.mxu0 %v899
      %v1882 = vpop.f32.mrf.mxu0
      %v1883 = vadd.f32 %v1714, %v1882
      %v1884 = vpop.f32.mrf.mxu0
      %v1885 = vadd.f32 %v1716, %v1884
      %1886 = vmatmul.bf16.gmra.mxu0 %v903
      %v1887 = vpop.f32.mrf.mxu0
      %v1888 = vadd.f32 %v1719, %v1887
      %v1889 = vpop.f32.mrf.mxu0
      %v1890 = vadd.f32 %v1721, %v1889
      %1891 = vmatmul.bf16.gmra.mxu0 %v907
      %v1892 = vpop.f32.mrf.mxu0
      %v1893 = vadd.f32 %v1724, %v1892
      %v1894 = vpop.f32.mrf.mxu0
      %v1895 = vadd.f32 %v1726, %v1894
      %1896 = vmatmul.bf16.gmra.mxu0 %v911
      %v1897 = vpop.f32.mrf.mxu0
      %v1898 = vadd.f32 %v1729, %v1897
      %v1899 = vpop.f32.mrf.mxu0
      %v1900 = vadd.f32 %v1731, %v1899
      %1901 = vmatmul.bf16.gmra.mxu0 %v915
      %v1902 = vpop.f32.mrf.mxu0
      %v1903 = vadd.f32 %v1734, %v1902
      %v1904 = vpop.f32.mrf.mxu0
      %v1905 = vadd.f32 %v1736, %v1904
      %1906 = vmatmul.bf16.gmra.mxu0 %v919
      %v1907 = vpop.f32.mrf.mxu0
      %v1908 = vadd.f32 %v1739, %v1907
      %v1909 = vpop.f32.mrf.mxu0
      %v1910 = vadd.f32 %v1741, %v1909
      %1911 = vmatmul.bf16.gmra.mxu0 %v923
      %v1912 = vpop.f32.mrf.mxu0
      %v1913 = vadd.f32 %v1744, %v1912
      %v1914 = vpop.f32.mrf.mxu0
      %v1915 = vadd.f32 %v1746, %v1914
      %1916 = vmatmul.bf16.gmra.mxu0 %v927
      %v1917 = vpop.f32.mrf.mxu0
      %v1918 = vadd.f32 %v1749, %v1917
      %v1919 = vpop.f32.mrf.mxu0
      %v1920 = vadd.f32 %v1751, %v1919
      %1921 = vmatmul.bf16.gmra.mxu0 %v931
      %v1922 = vpop.f32.mrf.mxu0
      %v1923 = vadd.f32 %v1754, %v1922
      %v1924 = vpop.f32.mrf.mxu0
      %v1925 = vadd.f32 %v1756, %v1924
      %1926 = vmatmul.bf16.gmra.mxu0 %v935
      %v1927 = vpop.f32.mrf.mxu0
      %v1928 = vadd.f32 %v1759, %v1927
      %v1929 = vpop.f32.mrf.mxu0
      %v1930 = vadd.f32 %v1761, %v1929
      %1931 = vdwg.mxu0
      %vm1932 = vcmask 523264
      %1933 = vst.msk [vmem:[%s230] sm:$0xff] %vm1932, %v1773
      %1934 = vst.msk [vmem:[%s230 + $0x8] sm:$0xff] %vm1932, %v1775
      %1935 = vst.msk [vmem:[%s230 + $0x10] sm:$0xff] %vm1932, %v1778
      %1936 = vst.msk [vmem:[%s230 + $0x18] sm:$0xff] %vm1932, %v1780
      %1937 = vst.msk [vmem:[%s230 + $0x20] sm:$0xff] %vm1932, %v1783
      %1938 = vst.msk [vmem:[%s230 + $0x28] sm:$0xff] %vm1932, %v1785
      %1939 = vst.msk [vmem:[%s230 + $0x30] sm:$0xff] %vm1932, %v1788
      %1940 = vst.msk [vmem:[%s230 + $0x38] sm:$0xff] %vm1932, %v1790
      %1941 = vst.msk [vmem:[%s230 + $0x40] sm:$0xff] %vm1932, %v1793
      %1942 = vst.msk [vmem:[%s230 + $0x48] sm:$0xff] %vm1932, %v1795
      %1943 = vst.msk [vmem:[%s230 + $0x50] sm:$0xff] %vm1932, %v1798
      %1944 = vst.msk [vmem:[%s230 + $0x58] sm:$0xff] %vm1932, %v1800
      %1945 = vst.msk [vmem:[%s230 + $0x60] sm:$0xff] %vm1932, %v1803
      %1946 = vst.msk [vmem:[%s230 + $0x68] sm:$0xff] %vm1932, %v1805
      %1947 = vst.msk [vmem:[%s230 + $0x70] sm:$0xff] %vm1932, %v1808
      %1948 = vst.msk [vmem:[%s230 + $0x78] sm:$0xff] %vm1932, %v1810
      %1949 = vst.msk [vmem:[%s230 + $0x80] sm:$0xff] %vm1932, %v1813
      %1950 = vst.msk [vmem:[%s230 + $0x88] sm:$0xff] %vm1932, %v1815
      %1951 = vst.msk [vmem:[%s230 + $0x90] sm:$0xff] %vm1932, %v1818
      %1952 = vst.msk [vmem:[%s230 + $0x98] sm:$0xff] %vm1932, %v1820
      %1953 = vst.msk [vmem:[%s230 + $0xa0] sm:$0xff] %vm1932, %v1823
      %1954 = vst.msk [vmem:[%s230 + $0xa8] sm:$0xff] %vm1932, %v1825
      %1955 = vst.msk [vmem:[%s230 + $0xb0] sm:$0xff] %vm1932, %v1828
      %1956 = vst.msk [vmem:[%s230 + $0xb8] sm:$0xff] %vm1932, %v1830
      %1957 = vst.msk [vmem:[%s230 + $0xc0] sm:$0xff] %vm1932, %v1833
      %1958 = vst.msk [vmem:[%s230 + $0xc8] sm:$0xff] %vm1932, %v1835
      %1959 = vst.msk [vmem:[%s230 + $0xd0] sm:$0xff] %vm1932, %v1838
      %1960 = vst.msk [vmem:[%s230 + $0xd8] sm:$0xff] %vm1932, %v1840
      %1961 = vst.msk [vmem:[%s230 + $0xe0] sm:$0xff] %vm1932, %v1843
      %1962 = vst.msk [vmem:[%s230 + $0xe8] sm:$0xff] %vm1932, %v1845
      %1963 = vst.msk [vmem:[%s230 + $0xf0] sm:$0xff] %vm1932, %v1848
      %1964 = vst.msk [vmem:[%s230 + $0xf8] sm:$0xff] %vm1932, %v1850
      %1965 = vst.msk [vmem:[%s230 + $0x100] sm:$0xff] %vm1932, %v1853
      %1966 = vst.msk [vmem:[%s230 + $0x108] sm:$0xff] %vm1932, %v1855
      %1967 = vst.msk [vmem:[%s230 + $0x110] sm:$0xff] %vm1932, %v1858
      %1968 = vst.msk [vmem:[%s230 + $0x118] sm:$0xff] %vm1932, %v1860
      %1969 = vst.msk [vmem:[%s230 + $0x120] sm:$0xff] %vm1932, %v1863
      %1970 = vst.msk [vmem:[%s230 + $0x128] sm:$0xff] %vm1932, %v1865
      %1971 = vst.msk [vmem:[%s230 + $0x130] sm:$0xff] %vm1932, %v1868
      %1972 = vst.msk [vmem:[%s230 + $0x138] sm:$0xff] %vm1932, %v1870
      %1973 = vst.msk [vmem:[%s230 + $0x140] sm:$0xff] %vm1932, %v1873
      %1974 = vst.msk [vmem:[%s230 + $0x148] sm:$0xff] %vm1932, %v1875
      %1975 = vst.msk [vmem:[%s230 + $0x150] sm:$0xff] %vm1932, %v1878
      %1976 = vst.msk [vmem:[%s230 + $0x158] sm:$0xff] %vm1932, %v1880
      %1977 = vst.msk [vmem:[%s230 + $0x160] sm:$0xff] %vm1932, %v1883
      %1978 = vst.msk [vmem:[%s230 + $0x168] sm:$0xff] %vm1932, %v1885
      %1979 = vst.msk [vmem:[%s230 + $0x170] sm:$0xff] %vm1932, %v1888
      %1980 = vst.msk [vmem:[%s230 + $0x178] sm:$0xff] %vm1932, %v1890
      %1981 = vst.msk [vmem:[%s230 + $0x180] sm:$0xff] %vm1932, %v1893
      %1982 = vst.msk [vmem:[%s230 + $0x188] sm:$0xff] %vm1932, %v1895
      %1983 = vst.msk [vmem:[%s230 + $0x190] sm:$0xff] %vm1932, %v1898
      %1984 = vst.msk [vmem:[%s230 + $0x198] sm:$0xff] %vm1932, %v1900
      %1985 = vst.msk [vmem:[%s230 + $0x1a0] sm:$0xff] %vm1932, %v1903
      %1986 = vst.msk [vmem:[%s230 + $0x1a8] sm:$0xff] %vm1932, %v1905
      %1987 = vst.msk [vmem:[%s230 + $0x1b0] sm:$0xff] %vm1932, %v1908
      %1988 = vst.msk [vmem:[%s230 + $0x1b8] sm:$0xff] %vm1932, %v1910
      %1989 = vst.msk [vmem:[%s230 + $0x1c0] sm:$0xff] %vm1932, %v1913
      %1990 = vst.msk [vmem:[%s230 + $0x1c8] sm:$0xff] %vm1932, %v1915
      %1991 = vst.msk [vmem:[%s230 + $0x1d0] sm:$0xff] %vm1932, %v1918
      %1992 = vst.msk [vmem:[%s230 + $0x1d8] sm:$0xff] %vm1932, %v1920
      %1993 = vst.msk [vmem:[%s230 + $0x1e0] sm:$0xff] %vm1932, %v1923
      %1994 = vst.msk [vmem:[%s230 + $0x1e8] sm:$0xff] %vm1932, %v1925
      %1995 = vst.msk [vmem:[%s230 + $0x1f0] sm:$0xff] %vm1932, %v1928
      %1996 = vst.msk [vmem:[%s230 + $0x1f8] sm:$0xff] %vm1932, %v1930
      %s1997 = smul.u32 64, %s19
      %p1998 = scmp.lt.s32.totalorder %s18, 3
      %s1999 = scalar_select %p1998, %s18, 3
      %p2000 = scmp.lt.s32.totalorder %s1997, 63
      %s2001 = scalar_select %p2000, %s1997, 63
      %p2002 = scmp.lt.s32.totalorder %s20, 0
      %s2003 = scalar_select %p2002, %s20, 0
      %s2004 = sadd.s32 %s2003, %s2001
      %s2005 = smul.addr %s1999, 64
      %s2006 = sadd.s32 %s2004, %s2005
      %s2007 = smul.addr %s2006, 8
      %s2008 = scalar_lea.vmem %s2, %s2007
      // Predicated region
      $region29: #{generator_forward.22} parent=27 // pred_check
        %p2009 = pneg %p110
      $region30: #{generator_forward.22} parent=27 // pred_check_branch
        %2011 = sbr.rel (%p2009) target = $region32
      $region31: #{generator_forward.22} parent=27 // pred_region
        %s2012 = smul.u32 64, %s19
      $region32: #{generator_forward.22} parent=27 // pred_fallthru
        _
    $region28: #{generator_forward.22} parent=5 // pred_fallthru
      _
    %p2013 = scmp.le.s32.totalorder 2, %s8
    // Predicated region
    $region33: #{generator_forward.22} parent=5 // pred_check
      %p2014 = pneg %p2013
    $region34: #{generator_forward.22} parent=5 // pred_check_branch
      %2016 = sbr.rel (%p2014) target = $region36
    $region35: #{generator_forward.22} parent=5 // pred_region
      %s2017 = ssub.s32 %s8, 2
      // Predicated region
      $region37: #{generator_forward.22} parent=35 // pred_check
        %p2018 = pneg %p116
      $region38: #{generator_forward.22} parent=35 // pred_check_branch
        %2020 = sbr.rel (%p2018) target = $region40
      $region39: #{generator_forward.22} parent=35 // pred_region
        %s2021 = smul.u32 64, %s22
        %p2022 = scmp.lt.s32.totalorder %s21, 3
        %s2023 = scalar_select %p2022, %s21, 3
        %p2024 = scmp.lt.s32.totalorder %s2021, 63
        %s2025 = scalar_select %p2024, %s2021, 63
        %p2026 = scmp.lt.s32.totalorder %s23, 0
        %s2027 = scalar_select %p2026, %s23, 0
        %s2028 = sadd.s32 %s2027, %s2025
        %s2029 = smul.addr %s2023, 64
        %s2030 = sadd.s32 %s2028, %s2029
        %s2031 = smul.addr %s2030, 8
        %s2032 = scalar_lea.vmem %s2, %s2031
      $region40: #{generator_forward.22} parent=35 // pred_fallthru
        _
    $region36: #{generator_forward.22} parent=5 // pred_fallthru
      _
  $region6: #{generator_forward.22} parent=0 // loop_footer
    %s12 = sadd.s32 1, %s8
  $region7: #{generator_forward.22} parent=0 // loop_footer_branch
    %7 = sbr.rel target = $region3
  $region8: #{generator_forward.22} parent=0 // loop_exit
    _

// kernel: generator_forward.23
$region0: #{generator_forward.23}
  #allocation0 [shape = 'u32[]', space=smem, size = 0x4, offset = 0x4, fixed_abs, tag = 'smem constant byte address 0x4 - core index']
  #allocation1 [shape = 'u32[72,128]{1,0:T(1,128)}', space=vmem, size = 0x9000, scoped, tag = 'internal scratch']
  %s0 = inlined_call_operand.vmem [shape: f32[2048,64], index: 0, kind: input, shape index: {}]
  %s1 = inlined_call_operand.vmem [shape: f32[1,64], index: 1, kind: output, shape index: {0}]
  %s2 = inlined_call_operand.vmem [shape: f32[1,64], index: 2, kind: output, shape index: {1}]
  %3 = xla_tuple %s1, %s2
  %s4 = sld [smem:[#allocation0]]
  $region49: #{generator_forward.23} parent=0
    _
  %s6 = ssub.s32 1, %s4
  %s7 = scalar_select 0, %s6, %s4
  loop: start=0, step=1, limit=4
  $region2: #{generator_forward.23} parent=0 // loop_pre_header
    _
  $region3: #{generator_forward.23} parent=0 // loop_header
    %s9 = sphi 0, %s13
    %p10 = scmp.ge.s32.totalorder %s9, 4
    %s19 = sphi 0, %s21
    %s22 = sphi 0, %s19
    %s23 = sphi 0, %s22
    %s39 = sphi 0, %s23
    %s43 = sphi 0, %s43
    %s45 = sphi 0, %s43
    %s46 = sphi 0, %s45
    %s60 = sphi 0, %s46
    %s64 = sphi 0, %s64
    %s66 = sphi 0, %s64
    %s67 = sphi 0, %s66
    %s81 = sphi 0, %s67
  $region4: #{generator_forward.23} parent=0 // loop_header_branch
    %12 = sbr.rel (%p10) target = $region8
  $region5: #{generator_forward.23} parent=0 // loop_body
    %s14 = ssub.s32 %s9, 1
    %s15 = ssub.s32 %s9, 2
    %s16 = sadd.s32 %s9, 1
    %s17 = ssub.s32 %s9, %s16
    %p18 = scmp.eq.s32.totalorder %s17, 0
    %s20 = sadd.s32 %s19, 1
    %s21 = scalar_select %p18, %s19, %s20
    %p24 = pneg %p18
    %p25 = scmp.eq.s32.totalorder %s9, 1
    %p26 = por %p24, %p25
    %p27 = scmp.ne.s32.totalorder %s19, %s22
    %p28 = scmp.eq.s32.totalorder %s9, 0
    %p29 = por %p27, %p28
    %p30 = scmp.ne.s32.totalorder %s19, %s22
    %p31 = scmp.eq.s32.totalorder %s14, 1
    %p32 = por %p30, %p31
    %p33 = scmp.ne.s32.totalorder %s22, %s23
    %p34 = scmp.eq.s32.totalorder %s14, 0
    %p35 = por %p33, %p34
    %p36 = scmp.ne.s32.totalorder %s22, %s23
    %p37 = scmp.eq.s32.totalorder %s15, 1
    %p38 = por %p36, %p37
    %p40 = scmp.ne.s32.totalorder %s23, %s39
    %p41 = scmp.eq.s32.totalorder %s15, 0
    %p42 = por %p40, %p41
    %s44 = sadd.s32 %s43, 1
    %p47 = scmp.eq.s32.totalorder %s9, 1
    %p48 = scmp.ne.s32.totalorder %s43, %s45
    %p49 = scmp.eq.s32.totalorder %s9, 0
    %p50 = por %p48, %p49
    %p51 = scmp.ne.s32.totalorder %s43, %s45
    %p52 = scmp.eq.s32.totalorder %s14, 1
    %p53 = por %p51, %p52
    %p54 = scmp.ne.s32.totalorder %s45, %s46
    %p55 = scmp.eq.s32.totalorder %s14, 0
    %p56 = por %p54, %p55
    %p57 = scmp.ne.s32.totalorder %s45, %s46
    %p58 = scmp.eq.s32.totalorder %s15, 1
    %p59 = por %p57, %p58
    %p61 = scmp.ne.s32.totalorder %s46, %s60
    %p62 = scmp.eq.s32.totalorder %s15, 0
    %p63 = por %p61, %p62
    %s65 = sadd.s32 %s64, 1
    %p68 = scmp.eq.s32.totalorder %s9, 1
    %p69 = scmp.ne.s32.totalorder %s64, %s66
    %p70 = scmp.eq.s32.totalorder %s9, 0
    %p71 = por %p69, %p70
    %p72 = scmp.ne.s32.totalorder %s64, %s66
    %p73 = scmp.eq.s32.totalorder %s14, 1
    %p74 = por %p72, %p73
    %p75 = scmp.ne.s32.totalorder %s66, %s67
    %p76 = scmp.eq.s32.totalorder %s14, 0
    %p77 = por %p75, %p76
    %p78 = scmp.ne.s32.totalorder %s66, %s67
    %p79 = scmp.eq.s32.totalorder %s15, 1
    %p80 = por %p78, %p79
    %p82 = scmp.ne.s32.totalorder %s67, %s81
    %p83 = scmp.eq.s32.totalorder %s15, 0
    %p84 = por %p82, %p83
    %p85 = scmp.le.s32.totalorder 1, %s9
    %p86 = scmp.lt.s32.totalorder %s9, 3
    %p87 = pnand %p85, %p86
    %p88 = pneg %p87
    // Predicated region
    $region9: #{generator_forward.23} parent=5 // pred_check
      _
    $region10: #{generator_forward.23} parent=5 // pred_check_branch
      %90 = sbr.rel (%p87) target = $region12
    $region11: #{generator_forward.23} parent=5 // pred_region
      %s91 = ssub.s32 %s9, 1
    $region12: #{generator_forward.23} parent=5 // pred_fallthru
      _
    %p92 = scmp.lt.s32.totalorder %s9, 2
    // Predicated region
    $region13: #{generator_forward.23} parent=5 // pred_check
      %p93 = pneg %p92
    $region14: #{generator_forward.23} parent=5 // pred_check_branch
      %95 = sbr.rel (%p93) target = $region16
    $region15: #{generator_forward.23} parent=5 // pred_region
      // Predicated region
      $region17: #{generator_forward.23} parent=15 // pred_check
        %p96 = pneg %p29
      $region18: #{generator_forward.23} parent=15 // pred_check_branch
        %98 = sbr.rel (%p96) target = $region20
      $region19: #{generator_forward.23} parent=15 // pred_region
        %s99 = smul.u32 128, %s9
        %p100 = scmp.lt.s32.totalorder %s99, 255
        %s101 = scalar_select %p100, %s99, 255
        %s102 = smul.addr %s101, 8
        %s103 = scalar_lea.vmem %s0, %s102
        %s104 = smul.u32 128, %s9
      $region20: #{generator_forward.23} parent=15 // pred_fallthru
        _
    $region16: #{generator_forward.23} parent=5 // pred_fallthru
      _
    %p105 = scmp.le.s32.totalorder 1, %s9
    %p106 = scmp.lt.s32.totalorder %s9, 3
    %p107 = pnand %p105, %p106
    %p108 = pneg %p107
    // Predicated region
    $region21: #{generator_forward.23} parent=5 // pred_check
      _
    $region22: #{generator_forward.23} parent=5 // pred_check_branch
      %110 = sbr.rel (%p107) target = $region24
    $region23: #{generator_forward.23} parent=5 // pred_region
      %s111 = ssub.s32 %s9, 1
      %s112 = smul.u32 128, %s14
      %p113 = scmp.lt.s32.totalorder %s112, 255
      %s114 = scalar_select %p113, %s112, 255
      %s115 = smul.addr %s114, 8
      %s116 = scalar_lea.vmem %s0, %s115
      %p117 = pneg %p35
      %p118 = pneg %p32
      %p119 = pneg %p56
      %p120 = pneg %p53
      %p121 = pneg %p77
      %p122 = pneg %p74
      %s123 = smul.u32 128, %s14
      %p124 = scmp.lt.s32.totalorder %s123, 255
      %s125 = scalar_select %p124, %s123, 255
      %s126 = smul.addr %s125, 8
      %s127 = scalar_lea.vmem %s0, %s126
      %s128 = smul.u32 128, %s14
      %p129 = scmp.eq.s32.totalorder %s14, 0
      // Predicated region
      $region25: #{generator_forward.23} parent=23 // pred_check
        %p130 = pneg %p129
      $region26: #{generator_forward.23} parent=23 // pred_check_branch
        %132 = sbr.rel (%p130) target = $region28
      $region27: #{generator_forward.23} parent=23 // pred_region
        %vm133 = vcmask 516096
        %134 = vst.msk [vmem:[%s1] sm:$0x1] %vm133, 0.0
        %135 = vst.msk [vmem:[%s2] sm:$0x1] %vm133, 0.0
      $region28: #{generator_forward.23} parent=23 // pred_fallthru
        _
      %v136 = vld [vmem:[%s127] sm:$0xff]
      %v137 = vld [vmem:[%s127 + $0x8] sm:$0xff]
      %v138 = vld [vmem:[%s127 + $0x10] sm:$0xff]
      %v139 = vld [vmem:[%s127 + $0x18] sm:$0xff]
      %v140 = vld [vmem:[%s127 + $0x20] sm:$0xff]
      %v141 = vld [vmem:[%s127 + $0x28] sm:$0xff]
      %v142 = vld [vmem:[%s127 + $0x30] sm:$0xff]
      %v143 = vld [vmem:[%s127 + $0x38] sm:$0xff]
      %v144 = vld [vmem:[%s127 + $0x40] sm:$0xff]
      %v145 = vld [vmem:[%s127 + $0x48] sm:$0xff]
      %v146 = vld [vmem:[%s127 + $0x50] sm:$0xff]
      %v147 = vld [vmem:[%s127 + $0x58] sm:$0xff]
      %v148 = vld [vmem:[%s127 + $0x60] sm:$0xff]
      %v149 = vld [vmem:[%s127 + $0x68] sm:$0xff]
      %v150 = vld [vmem:[%s127 + $0x70] sm:$0xff]
      %v151 = vld [vmem:[%s127 + $0x78] sm:$0xff]
      %v152 = vld [vmem:[%s127 + $0x80] sm:$0xff]
      %v153 = vld [vmem:[%s127 + $0x88] sm:$0xff]
      %v154 = vld [vmem:[%s127 + $0x90] sm:$0xff]
      %v155 = vld [vmem:[%s127 + $0x98] sm:$0xff]
      %v156 = vld [vmem:[%s127 + $0xa0] sm:$0xff]
      %v157 = vld [vmem:[%s127 + $0xa8] sm:$0xff]
      %v158 = vld [vmem:[%s127 + $0xb0] sm:$0xff]
      %v159 = vld [vmem:[%s127 + $0xb8] sm:$0xff]
      %v160 = vld [vmem:[%s127 + $0xc0] sm:$0xff]
      %v161 = vld [vmem:[%s127 + $0xc8] sm:$0xff]
      %v162 = vld [vmem:[%s127 + $0xd0] sm:$0xff]
      %v163 = vld [vmem:[%s127 + $0xd8] sm:$0xff]
      %v164 = vld [vmem:[%s127 + $0xe0] sm:$0xff]
      %v165 = vld [vmem:[%s127 + $0xe8] sm:$0xff]
      %v166 = vld [vmem:[%s127 + $0xf0] sm:$0xff]
      %v167 = vld [vmem:[%s127 + $0xf8] sm:$0xff]
      %v168 = vld [vmem:[%s127 + $0x100] sm:$0xff]
      %v169 = vld [vmem:[%s127 + $0x108] sm:$0xff]
      %v170 = vld [vmem:[%s127 + $0x110] sm:$0xff]
      %v171 = vld [vmem:[%s127 + $0x118] sm:$0xff]
      %v172 = vld [vmem:[%s127 + $0x120] sm:$0xff]
      %v173 = vld [vmem:[%s127 + $0x128] sm:$0xff]
      %v174 = vld [vmem:[%s127 + $0x130] sm:$0xff]
      %v175 = vld [vmem:[%s127 + $0x138] sm:$0xff]
      %v176 = vld [vmem:[%s127 + $0x140] sm:$0xff]
      %v177 = vld [vmem:[%s127 + $0x148] sm:$0xff]
      %v178 = vld [vmem:[%s127 + $0x150] sm:$0xff]
      %v179 = vld [vmem:[%s127 + $0x158] sm:$0xff]
      %v180 = vld [vmem:[%s127 + $0x160] sm:$0xff]
      %v181 = vld [vmem:[%s127 + $0x168] sm:$0xff]
      %v182 = vld [vmem:[%s127 + $0x170] sm:$0xff]
      %v183 = vld [vmem:[%s127 + $0x178] sm:$0xff]
      %v184 = vld [vmem:[%s127 + $0x180] sm:$0xff]
      %v185 = vld [vmem:[%s127 + $0x188] sm:$0xff]
      %v186 = vld [vmem:[%s127 + $0x190] sm:$0xff]
      %v187 = vld [vmem:[%s127 + $0x198] sm:$0xff]
      %v188 = vld [vmem:[%s127 + $0x1a0] sm:$0xff]
      %v189 = vld [vmem:[%s127 + $0x1a8] sm:$0xff]
      %v190 = vld [vmem:[%s127 + $0x1b0] sm:$0xff]
      %v191 = vld [vmem:[%s127 + $0x1b8] sm:$0xff]
      %v192 = vld [vmem:[%s127 + $0x1c0] sm:$0xff]
      %v193 = vld [vmem:[%s127 + $0x1c8] sm:$0xff]
      %v194 = vld [vmem:[%s127 + $0x1d0] sm:$0xff]
      %v195 = vld [vmem:[%s127 + $0x1d8] sm:$0xff]
      %v196 = vld [vmem:[%s127 + $0x1e0] sm:$0xff]
      %v197 = vld [vmem:[%s127 + $0x1e8] sm:$0xff]
      %v198 = vld [vmem:[%s127 + $0x1f0] sm:$0xff]
      %v199 = vld [vmem:[%s127 + $0x1f8] sm:$0xff]
      %v200 = vld [vmem:[%s127 + $0x200] sm:$0xff]
      %v201 = vld [vmem:[%s127 + $0x208] sm:$0xff]
      %v202 = vld [vmem:[%s127 + $0x210] sm:$0xff]
      %v203 = vld [vmem:[%s127 + $0x218] sm:$0xff]
      %v204 = vld [vmem:[%s127 + $0x220] sm:$0xff]
      %v205 = vld [vmem:[%s127 + $0x228] sm:$0xff]
      %v206 = vld [vmem:[%s127 + $0x230] sm:$0xff]
      %v207 = vld [vmem:[%s127 + $0x238] sm:$0xff]
      %v208 = vld [vmem:[%s127 + $0x240] sm:$0xff]
      %v209 = vld [vmem:[%s127 + $0x248] sm:$0xff]
      %v210 = vld [vmem:[%s127 + $0x250] sm:$0xff]
      %v211 = vld [vmem:[%s127 + $0x258] sm:$0xff]
      %v212 = vld [vmem:[%s127 + $0x260] sm:$0xff]
      %v213 = vld [vmem:[%s127 + $0x268] sm:$0xff]
      %v214 = vld [vmem:[%s127 + $0x270] sm:$0xff]
      %v215 = vld [vmem:[%s127 + $0x278] sm:$0xff]
      %v216 = vld [vmem:[%s127 + $0x280] sm:$0xff]
      %v217 = vld [vmem:[%s127 + $0x288] sm:$0xff]
      %v218 = vld [vmem:[%s127 + $0x290] sm:$0xff]
      %v219 = vld [vmem:[%s127 + $0x298] sm:$0xff]
      %v220 = vld [vmem:[%s127 + $0x2a0] sm:$0xff]
      %v221 = vld [vmem:[%s127 + $0x2a8] sm:$0xff]
      %v222 = vld [vmem:[%s127 + $0x2b0] sm:$0xff]
      %v223 = vld [vmem:[%s127 + $0x2b8] sm:$0xff]
      %v224 = vld [vmem:[%s127 + $0x2c0] sm:$0xff]
      %v225 = vld [vmem:[%s127 + $0x2c8] sm:$0xff]
      %v226 = vld [vmem:[%s127 + $0x2d0] sm:$0xff]
      %v227 = vld [vmem:[%s127 + $0x2d8] sm:$0xff]
      %v228 = vld [vmem:[%s127 + $0x2e0] sm:$0xff]
      %v229 = vld [vmem:[%s127 + $0x2e8] sm:$0xff]
      %v230 = vld [vmem:[%s127 + $0x2f0] sm:$0xff]
      %v231 = vld [vmem:[%s127 + $0x2f8] sm:$0xff]
      %v232 = vld [vmem:[%s127 + $0x300] sm:$0xff]
      %v233 = vld [vmem:[%s127 + $0x308] sm:$0xff]
      %v234 = vld [vmem:[%s127 + $0x310] sm:$0xff]
      %v235 = vld [vmem:[%s127 + $0x318] sm:$0xff]
      %v236 = vld [vmem:[%s127 + $0x320] sm:$0xff]
      %v237 = vld [vmem:[%s127 + $0x328] sm:$0xff]
      %v238 = vld [vmem:[%s127 + $0x330] sm:$0xff]
      %v239 = vld [vmem:[%s127 + $0x338] sm:$0xff]
      %v240 = vld [vmem:[%s127 + $0x340] sm:$0xff]
      %v241 = vld [vmem:[%s127 + $0x348] sm:$0xff]
      %v242 = vld [vmem:[%s127 + $0x350] sm:$0xff]
      %v243 = vld [vmem:[%s127 + $0x358] sm:$0xff]
      %v244 = vld [vmem:[%s127 + $0x360] sm:$0xff]
      %v245 = vld [vmem:[%s127 + $0x368] sm:$0xff]
      %v246 = vld [vmem:[%s127 + $0x370] sm:$0xff]
      %v247 = vld [vmem:[%s127 + $0x378] sm:$0xff]
      %v248 = vld [vmem:[%s127 + $0x380] sm:$0xff]
      %v249 = vld [vmem:[%s127 + $0x388] sm:$0xff]
      %v250 = vld [vmem:[%s127 + $0x390] sm:$0xff]
      %v251 = vld [vmem:[%s127 + $0x398] sm:$0xff]
      %v252 = vld [vmem:[%s127 + $0x3a0] sm:$0xff]
      %v253 = vld [vmem:[%s127 + $0x3a8] sm:$0xff]
      %v254 = vld [vmem:[%s127 + $0x3b0] sm:$0xff]
      %v255 = vld [vmem:[%s127 + $0x3b8] sm:$0xff]
      %v256 = vld [vmem:[%s127 + $0x3c0] sm:$0xff]
      %v257 = vld [vmem:[%s127 + $0x3c8] sm:$0xff]
      %v258 = vld [vmem:[%s127 + $0x3d0] sm:$0xff]
      %v259 = vld [vmem:[%s127 + $0x3d8] sm:$0xff]
      %v260 = vld [vmem:[%s127 + $0x3e0] sm:$0xff]
      %v261 = vld [vmem:[%s127 + $0x3e8] sm:$0xff]
      %v262 = vld [vmem:[%s127 + $0x3f0] sm:$0xff]
      %v263 = vld [vmem:[%s127 + $0x3f8] sm:$0xff]
      %v264 = vld [vmem:[%s1] sm:$0x1]
      %vm265 = vcmask 523264
      %v266 = vsel %vm265, %v136, 0.0
      %v267 = vsel %vm265, %v137, 0.0
      %v268 = vadd.f32 %v266, %v267
      %v269 = vsel %vm265, %v138, 0.0
      %v270 = vadd.f32 %v268, %v269
      %v271 = vsel %vm265, %v139, 0.0
      %v272 = vadd.f32 %v270, %v271
      %v273 = vsel %vm265, %v140, 0.0
      %v274 = vadd.f32 %v272, %v273
      %v275 = vsel %vm265, %v141, 0.0
      %v276 = vadd.f32 %v274, %v275
      %v277 = vsel %vm265, %v142, 0.0
      %v278 = vadd.f32 %v276, %v277
      %v279 = vsel %vm265, %v143, 0.0
      %v280 = vadd.f32 %v278, %v279
      %v281 = vsel %vm265, %v144, 0.0
      %v282 = vadd.f32 %v280, %v281
      %v283 = vsel %vm265, %v145, 0.0
      %v284 = vadd.f32 %v282, %v283
      %v285 = vsel %vm265, %v146, 0.0
      %v286 = vadd.f32 %v284, %v285
      %v287 = vsel %vm265, %v147, 0.0
      %v288 = vadd.f32 %v286, %v287
      %v289 = vsel %vm265, %v148, 0.0
      %v290 = vadd.f32 %v288, %v289
      %v291 = vsel %vm265, %v149, 0.0
      %v292 = vadd.f32 %v290, %v291
      %v293 = vsel %vm265, %v150, 0.0
      %v294 = vadd.f32 %v292, %v293
      %v295 = vsel %vm265, %v151, 0.0
      %v296 = vadd.f32 %v294, %v295
      %v297 = vsel %vm265, %v152, 0.0
      %v298 = vadd.f32 %v296, %v297
      %v299 = vsel %vm265, %v153, 0.0
      %v300 = vadd.f32 %v298, %v299
      %v301 = vsel %vm265, %v154, 0.0
      %v302 = vadd.f32 %v300, %v301
      %v303 = vsel %vm265, %v155, 0.0
      %v304 = vadd.f32 %v302, %v303
      %v305 = vsel %vm265, %v156, 0.0
      %v306 = vadd.f32 %v304, %v305
      %v307 = vsel %vm265, %v157, 0.0
      %v308 = vadd.f32 %v306, %v307
      %v309 = vsel %vm265, %v158, 0.0
      %v310 = vadd.f32 %v308, %v309
      %v311 = vsel %vm265, %v159, 0.0
      %v312 = vadd.f32 %v310, %v311
      %v313 = vsel %vm265, %v160, 0.0
      %v314 = vadd.f32 %v312, %v313
      %v315 = vsel %vm265, %v161, 0.0
      %v316 = vadd.f32 %v314, %v315
      %v317 = vsel %vm265, %v162, 0.0
      %v318 = vadd.f32 %v316, %v317
      %v319 = vsel %vm265, %v163, 0.0
      %v320 = vadd.f32 %v318, %v319
      %v321 = vsel %vm265, %v164, 0.0
      %v322 = vadd.f32 %v320, %v321
      %v323 = vsel %vm265, %v165, 0.0
      %v324 = vadd.f32 %v322, %v323
      %v325 = vsel %vm265, %v166, 0.0
      %v326 = vadd.f32 %v324, %v325
      %v327 = vsel %vm265, %v167, 0.0
      %v328 = vadd.f32 %v326, %v327
      %v329 = vsel %vm265, %v168, 0.0
      %v330 = vadd.f32 %v328, %v329
      %v331 = vsel %vm265, %v169, 0.0
      %v332 = vadd.f32 %v330, %v331
      %v333 = vsel %vm265, %v170, 0.0
      %v334 = vadd.f32 %v332, %v333
      %v335 = vsel %vm265, %v171, 0.0
      %v336 = vadd.f32 %v334, %v335
      %v337 = vsel %vm265, %v172, 0.0
      %v338 = vadd.f32 %v336, %v337
      %v339 = vsel %vm265, %v173, 0.0
      %v340 = vadd.f32 %v338, %v339
      %v341 = vsel %vm265, %v174, 0.0
      %v342 = vadd.f32 %v340, %v341
      %v343 = vsel %vm265, %v175, 0.0
      %v344 = vadd.f32 %v342, %v343
      %v345 = vsel %vm265, %v176, 0.0
      %v346 = vadd.f32 %v344, %v345
      %v347 = vsel %vm265, %v177, 0.0
      %v348 = vadd.f32 %v346, %v347
      %v349 = vsel %vm265, %v178, 0.0
      %v350 = vadd.f32 %v348, %v349
      %v351 = vsel %vm265, %v179, 0.0
      %v352 = vadd.f32 %v350, %v351
      %v353 = vsel %vm265, %v180, 0.0
      %v354 = vadd.f32 %v352, %v353
      %v355 = vsel %vm265, %v181, 0.0
      %v356 = vadd.f32 %v354, %v355
      %v357 = vsel %vm265, %v182, 0.0
      %v358 = vadd.f32 %v356, %v357
      %v359 = vsel %vm265, %v183, 0.0
      %v360 = vadd.f32 %v358, %v359
      %v361 = vsel %vm265, %v184, 0.0
      %v362 = vadd.f32 %v360, %v361
      %v363 = vsel %vm265, %v185, 0.0
      %v364 = vadd.f32 %v362, %v363
      %v365 = vsel %vm265, %v186, 0.0
      %v366 = vadd.f32 %v364, %v365
      %v367 = vsel %vm265, %v187, 0.0
      %v368 = vadd.f32 %v366, %v367
      %v369 = vsel %vm265, %v188, 0.0
      %v370 = vadd.f32 %v368, %v369
      %v371 = vsel %vm265, %v189, 0.0
      %v372 = vadd.f32 %v370, %v371
      %v373 = vsel %vm265, %v190, 0.0
      %v374 = vadd.f32 %v372, %v373
      %v375 = vsel %vm265, %v191, 0.0
      %v376 = vadd.f32 %v374, %v375
      %v377 = vsel %vm265, %v192, 0.0
      %v378 = vadd.f32 %v376, %v377
      %v379 = vsel %vm265, %v193, 0.0
      %v380 = vadd.f32 %v378, %v379
      %v381 = vsel %vm265, %v194, 0.0
      %v382 = vadd.f32 %v380, %v381
      %v383 = vsel %vm265, %v195, 0.0
      %v384 = vadd.f32 %v382, %v383
      %v385 = vsel %vm265, %v196, 0.0
      %v386 = vadd.f32 %v384, %v385
      %v387 = vsel %vm265, %v197, 0.0
      %v388 = vadd.f32 %v386, %v387
      %v389 = vsel %vm265, %v198, 0.0
      %v390 = vadd.f32 %v388, %v389
      %v391 = vsel %vm265, %v199, 0.0
      %v392 = vadd.f32 %v390, %v391
      %v393 = vsel %vm265, %v200, 0.0
      %v394 = vadd.f32 %v392, %v393
      %v395 = vsel %vm265, %v201, 0.0
      %v396 = vadd.f32 %v394, %v395
      %v397 = vsel %vm265, %v202, 0.0
      %v398 = vadd.f32 %v396, %v397
      %v399 = vsel %vm265, %v203, 0.0
      %v400 = vadd.f32 %v398, %v399
      %v401 = vsel %vm265, %v204, 0.0
      %v402 = vadd.f32 %v400, %v401
      %v403 = vsel %vm265, %v205, 0.0
      %v404 = vadd.f32 %v402, %v403
      %v405 = vsel %vm265, %v206, 0.0
      %v406 = vadd.f32 %v404, %v405
      %v407 = vsel %vm265, %v207, 0.0
      %v408 = vadd.f32 %v406, %v407
      %v409 = vsel %vm265, %v208, 0.0
      %v410 = vadd.f32 %v408, %v409
      %v411 = vsel %vm265, %v209, 0.0
      %v412 = vadd.f32 %v410, %v411
      %v413 = vsel %vm265, %v210, 0.0
      %v414 = vadd.f32 %v412, %v413
      %v415 = vsel %vm265, %v211, 0.0
      %v416 = vadd.f32 %v414, %v415
      %v417 = vsel %vm265, %v212, 0.0
      %v418 = vadd.f32 %v416, %v417
      %v419 = vsel %vm265, %v213, 0.0
      %v420 = vadd.f32 %v418, %v419
      %v421 = vsel %vm265, %v214, 0.0
      %v422 = vadd.f32 %v420, %v421
      %v423 = vsel %vm265, %v215, 0.0
      %v424 = vadd.f32 %v422, %v423
      %v425 = vsel %vm265, %v216, 0.0
      %v426 = vadd.f32 %v424, %v425
      %v427 = vsel %vm265, %v217, 0.0
      %v428 = vadd.f32 %v426, %v427
      %v429 = vsel %vm265, %v218, 0.0
      %v430 = vadd.f32 %v428, %v429
      %v431 = vsel %vm265, %v219, 0.0
      %v432 = vadd.f32 %v430, %v431
      %v433 = vsel %vm265, %v220, 0.0
      %v434 = vadd.f32 %v432, %v433
      %v435 = vsel %vm265, %v221, 0.0
      %v436 = vadd.f32 %v434, %v435
      %v437 = vsel %vm265, %v222, 0.0
      %v438 = vadd.f32 %v436, %v437
      %v439 = vsel %vm265, %v223, 0.0
      %v440 = vadd.f32 %v438, %v439
      %v441 = vsel %vm265, %v224, 0.0
      %v442 = vadd.f32 %v440, %v441
      %v443 = vsel %vm265, %v225, 0.0
      %v444 = vadd.f32 %v442, %v443
      %v445 = vsel %vm265, %v226, 0.0
      %v446 = vadd.f32 %v444, %v445
      %v447 = vsel %vm265, %v227, 0.0
      %v448 = vadd.f32 %v446, %v447
      %v449 = vsel %vm265, %v228, 0.0
      %v450 = vadd.f32 %v448, %v449
      %v451 = vsel %vm265, %v229, 0.0
      %v452 = vadd.f32 %v450, %v451
      %v453 = vsel %vm265, %v230, 0.0
      %v454 = vadd.f32 %v452, %v453
      %v455 = vsel %vm265, %v231, 0.0
      %v456 = vadd.f32 %v454, %v455
      %v457 = vsel %vm265, %v232, 0.0
      %v458 = vadd.f32 %v456, %v457
      %v459 = vsel %vm265, %v233, 0.0
      %v460 = vadd.f32 %v458, %v459
      %v461 = vsel %vm265, %v234, 0.0
      %v462 = vadd.f32 %v460, %v461
      %v463 = vsel %vm265, %v235, 0.0
      %v464 = vadd.f32 %v462, %v463
      %v465 = vsel %vm265, %v236, 0.0
      %v466 = vadd.f32 %v464, %v465
      %v467 = vsel %vm265, %v237, 0.0
      %v468 = vadd.f32 %v466, %v467
      %v469 = vsel %vm265, %v238, 0.0
      %v470 = vadd.f32 %v468, %v469
      %v471 = vsel %vm265, %v239, 0.0
      %v472 = vadd.f32 %v470, %v471
      %v473 = vsel %vm265, %v240, 0.0
      %v474 = vadd.f32 %v472, %v473
      %v475 = vsel %vm265, %v241, 0.0
      %v476 = vadd.f32 %v474, %v475
      %v477 = vsel %vm265, %v242, 0.0
      %v478 = vadd.f32 %v476, %v477
      %v479 = vsel %vm265, %v243, 0.0
      %v480 = vadd.f32 %v478, %v479
      %v481 = vsel %vm265, %v244, 0.0
      %v482 = vadd.f32 %v480, %v481
      %v483 = vsel %vm265, %v245, 0.0
      %v484 = vadd.f32 %v482, %v483
      %v485 = vsel %vm265, %v246, 0.0
      %v486 = vadd.f32 %v484, %v485
      %v487 = vsel %vm265, %v247, 0.0
      %v488 = vadd.f32 %v486, %v487
      %v489 = vsel %vm265, %v248, 0.0
      %v490 = vadd.f32 %v488, %v489
      %v491 = vsel %vm265, %v249, 0.0
      %v492 = vadd.f32 %v490, %v491
      %v493 = vsel %vm265, %v250, 0.0
      %v494 = vadd.f32 %v492, %v493
      %v495 = vsel %vm265, %v251, 0.0
      %v496 = vadd.f32 %v494, %v495
      %v497 = vsel %vm265, %v252, 0.0
      %v498 = vadd.f32 %v496, %v497
      %v499 = vsel %vm265, %v253, 0.0
      %v500 = vadd.f32 %v498, %v499
      %v501 = vsel %vm265, %v254, 0.0
      %v502 = vadd.f32 %v500, %v501
      %v503 = vsel %vm265, %v255, 0.0
      %v504 = vadd.f32 %v502, %v503
      %v505 = vsel %vm265, %v256, 0.0
      %v506 = vadd.f32 %v504, %v505
      %v507 = vsel %vm265, %v257, 0.0
      %v508 = vadd.f32 %v506, %v507
      %v509 = vsel %vm265, %v258, 0.0
      %v510 = vadd.f32 %v508, %v509
      %v511 = vsel %vm265, %v259, 0.0
      %v512 = vadd.f32 %v510, %v511
      %v513 = vsel %vm265, %v260, 0.0
      %v514 = vadd.f32 %v512, %v513
      %v515 = vsel %vm265, %v261, 0.0
      %v516 = vadd.f32 %v514, %v515
      %v517 = vsel %vm265, %v262, 0.0
      %v518 = vadd.f32 %v516, %v517
      %v519 = vsel %vm265, %v263, 0.0
      %v520 = vadd.f32 %v518, %v519
      %v521 = vrot.slane %v520, 4
      %v522 = vadd.f32 %v520, %v521
      %v523 = vrot.slane %v522, 2
      %v524 = vadd.f32 %v522, %v523
      %v525 = vrot.slane %v524, 1
      %v526 = vadd.f32 %v524, %v525
      %v527 = vadd.f32 %v264, %v526
      %vm528 = vcmask 516096
      %529 = vst.msk [vmem:[%s1] sm:$0x1] %vm528, %v527
      %v530 = vld [vmem:[%s2] sm:$0x1]
      %v531 = vmul.f32 %v136, %v136
      %v532 = vmul.f32 %v137, %v137
      %v533 = vmul.f32 %v138, %v138
      %v534 = vmul.f32 %v139, %v139
      %v535 = vmul.f32 %v140, %v140
      %v536 = vmul.f32 %v141, %v141
      %v537 = vmul.f32 %v142, %v142
      %v538 = vmul.f32 %v143, %v143
      %v539 = vmul.f32 %v144, %v144
      %v540 = vmul.f32 %v145, %v145
      %v541 = vmul.f32 %v146, %v146
      %v542 = vmul.f32 %v147, %v147
      %v543 = vmul.f32 %v148, %v148
      %v544 = vmul.f32 %v149, %v149
      %v545 = vmul.f32 %v150, %v150
      %v546 = vmul.f32 %v151, %v151
      %v547 = vmul.f32 %v152, %v152
      %v548 = vmul.f32 %v153, %v153
      %v549 = vmul.f32 %v154, %v154
      %v550 = vmul.f32 %v155, %v155
      %v551 = vmul.f32 %v156, %v156
      %v552 = vmul.f32 %v157, %v157
      %v553 = vmul.f32 %v158, %v158
      %v554 = vmul.f32 %v159, %v159
      %v555 = vmul.f32 %v160, %v160
      %v556 = vmul.f32 %v161, %v161
      %v557 = vmul.f32 %v162, %v162
      %v558 = vmul.f32 %v163, %v163
      %v559 = vmul.f32 %v164, %v164
      %v560 = vmul.f32 %v165, %v165
      %v561 = vmul.f32 %v166, %v166
      %v562 = vmul.f32 %v167, %v167
      %v563 = vmul.f32 %v168, %v168
      %v564 = vmul.f32 %v169, %v169
      %v565 = vmul.f32 %v170, %v170
      %v566 = vmul.f32 %v171, %v171
      %v567 = vmul.f32 %v172, %v172
      %v568 = vmul.f32 %v173, %v173
      %v569 = vmul.f32 %v174, %v174
      %v570 = vmul.f32 %v175, %v175
      %v571 = vmul.f32 %v176, %v176
      %v572 = vmul.f32 %v177, %v177
      %v573 = vmul.f32 %v178, %v178
      %v574 = vmul.f32 %v179, %v179
      %v575 = vmul.f32 %v180, %v180
      %v576 = vmul.f32 %v181, %v181
      %v577 = vmul.f32 %v182, %v182
      %v578 = vmul.f32 %v183, %v183
      %v579 = vmul.f32 %v184, %v184
      %v580 = vmul.f32 %v185, %v185
      %v581 = vmul.f32 %v186, %v186
      %v582 = vmul.f32 %v187, %v187
      %v583 = vmul.f32 %v188, %v188
      %v584 = vmul.f32 %v189, %v189
      %v585 = vmul.f32 %v190, %v190
      %v586 = vmul.f32 %v191, %v191
      %v587 = vmul.f32 %v192, %v192
      %v588 = vmul.f32 %v193, %v193
      %v589 = vmul.f32 %v194, %v194
      %v590 = vmul.f32 %v195, %v195
      %v591 = vmul.f32 %v196, %v196
      %v592 = vmul.f32 %v197, %v197
      %v593 = vmul.f32 %v198, %v198
      %v594 = vmul.f32 %v199, %v199
      %v595 = vmul.f32 %v200, %v200
      %v596 = vmul.f32 %v201, %v201
      %v597 = vmul.f32 %v202, %v202
      %v598 = vmul.f32 %v203, %v203
      %v599 = vmul.f32 %v204, %v204
      %v600 = vmul.f32 %v205, %v205
      %v601 = vmul.f32 %v206, %v206
      %v602 = vmul.f32 %v207, %v207
      %v603 = vmul.f32 %v208, %v208
      %v604 = vmul.f32 %v209, %v209
      %v605 = vmul.f32 %v210, %v210
      %v606 = vmul.f32 %v211, %v211
      %v607 = vmul.f32 %v212, %v212
      %v608 = vmul.f32 %v213, %v213
      %v609 = vmul.f32 %v214, %v214
      %v610 = vmul.f32 %v215, %v215
      %v611 = vmul.f32 %v216, %v216
      %v612 = vmul.f32 %v217, %v217
      %v613 = vmul.f32 %v218, %v218
      %v614 = vmul.f32 %v219, %v219
      %v615 = vmul.f32 %v220, %v220
      %v616 = vmul.f32 %v221, %v221
      %v617 = vmul.f32 %v222, %v222
      %v618 = vmul.f32 %v223, %v223
      %v619 = vmul.f32 %v224, %v224
      %v620 = vmul.f32 %v225, %v225
      %v621 = vmul.f32 %v226, %v226
      %v622 = vmul.f32 %v227, %v227
      %v623 = vmul.f32 %v228, %v228
      %v624 = vmul.f32 %v229, %v229
      %v625 = vmul.f32 %v230, %v230
      %v626 = vmul.f32 %v231, %v231
      %v627 = vmul.f32 %v232, %v232
      %v628 = vmul.f32 %v233, %v233
      %v629 = vmul.f32 %v234, %v234
      %v630 = vmul.f32 %v235, %v235
      %v631 = vmul.f32 %v236, %v236
      %v632 = vmul.f32 %v237, %v237
      %v633 = vmul.f32 %v238, %v238
      %v634 = vmul.f32 %v239, %v239
      %v635 = vmul.f32 %v240, %v240
      %v636 = vmul.f32 %v241, %v241
      %v637 = vmul.f32 %v242, %v242
      %v638 = vmul.f32 %v243, %v243
      %v639 = vmul.f32 %v244, %v244
      %v640 = vmul.f32 %v245, %v245
      %v641 = vmul.f32 %v246, %v246
      %v642 = vmul.f32 %v247, %v247
      %v643 = vmul.f32 %v248, %v248
      %v644 = vmul.f32 %v249, %v249
      %v645 = vmul.f32 %v250, %v250
      %v646 = vmul.f32 %v251, %v251
      %v647 = vmul.f32 %v252, %v252
      %v648 = vmul.f32 %v253, %v253
      %v649 = vmul.f32 %v254, %v254
      %v650 = vmul.f32 %v255, %v255
      %v651 = vmul.f32 %v256, %v256
      %v652 = vmul.f32 %v257, %v257
      %v653 = vmul.f32 %v258, %v258
      %v654 = vmul.f32 %v259, %v259
      %v655 = vmul.f32 %v260, %v260
      %v656 = vmul.f32 %v261, %v261
      %v657 = vmul.f32 %v262, %v262
      %v658 = vmul.f32 %v263, %v263
      %v659 = vsel %vm265, %v531, 0.0
      %v660 = vsel %vm265, %v532, 0.0
      %v661 = vadd.f32 %v659, %v660
      %v662 = vsel %vm265, %v533, 0.0
      %v663 = vadd.f32 %v661, %v662
      %v664 = vsel %vm265, %v534, 0.0
      %v665 = vadd.f32 %v663, %v664
      %v666 = vsel %vm265, %v535, 0.0
      %v667 = vadd.f32 %v665, %v666
      %v668 = vsel %vm265, %v536, 0.0
      %v669 = vadd.f32 %v667, %v668
      %v670 = vsel %vm265, %v537, 0.0
      %v671 = vadd.f32 %v669, %v670
      %v672 = vsel %vm265, %v538, 0.0
      %v673 = vadd.f32 %v671, %v672
      %v674 = vsel %vm265, %v539, 0.0
      %v675 = vadd.f32 %v673, %v674
      %v676 = vsel %vm265, %v540, 0.0
      %v677 = vadd.f32 %v675, %v676
      %v678 = vsel %vm265, %v541, 0.0
      %v679 = vadd.f32 %v677, %v678
      %v680 = vsel %vm265, %v542, 0.0
      %v681 = vadd.f32 %v679, %v680
      %v682 = vsel %vm265, %v543, 0.0
      %v683 = vadd.f32 %v681, %v682
      %v684 = vsel %vm265, %v544, 0.0
      %v685 = vadd.f32 %v683, %v684
      %v686 = vsel %vm265, %v545, 0.0
      %v687 = vadd.f32 %v685, %v686
      %v688 = vsel %vm265, %v546, 0.0
      %v689 = vadd.f32 %v687, %v688
      %v690 = vsel %vm265, %v547, 0.0
      %v691 = vadd.f32 %v689, %v690
      %v692 = vsel %vm265, %v548, 0.0
      %v693 = vadd.f32 %v691, %v692
      %v694 = vsel %vm265, %v549, 0.0
      %v695 = vadd.f32 %v693, %v694
      %v696 = vsel %vm265, %v550, 0.0
      %v697 = vadd.f32 %v695, %v696
      %v698 = vsel %vm265, %v551, 0.0
      %v699 = vadd.f32 %v697, %v698
      %v700 = vsel %vm265, %v552, 0.0
      %v701 = vadd.f32 %v699, %v700
      %v702 = vsel %vm265, %v553, 0.0
      %v703 = vadd.f32 %v701, %v702
      %v704 = vsel %vm265, %v554, 0.0
      %v705 = vadd.f32 %v703, %v704
      %v706 = vsel %vm265, %v555, 0.0
      %v707 = vadd.f32 %v705, %v706
      %v708 = vsel %vm265, %v556, 0.0
      %v709 = vadd.f32 %v707, %v708
      %v710 = vsel %vm265, %v557, 0.0
      %v711 = vadd.f32 %v709, %v710
      %v712 = vsel %vm265, %v558, 0.0
      %v713 = vadd.f32 %v711, %v712
      %v714 = vsel %vm265, %v559, 0.0
      %v715 = vadd.f32 %v713, %v714
      %v716 = vsel %vm265, %v560, 0.0
      %v717 = vadd.f32 %v715, %v716
      %v718 = vsel %vm265, %v561, 0.0
      %v719 = vadd.f32 %v717, %v718
      %v720 = vsel %vm265, %v562, 0.0
      %v721 = vadd.f32 %v719, %v720
      %v722 = vsel %vm265, %v563, 0.0
      %v723 = vadd.f32 %v721, %v722
      %v724 = vsel %vm265, %v564, 0.0
      %v725 = vadd.f32 %v723, %v724
      %v726 = vsel %vm265, %v565, 0.0
      %v727 = vadd.f32 %v725, %v726
      %v728 = vsel %vm265, %v566, 0.0
      %v729 = vadd.f32 %v727, %v728
      %v730 = vsel %vm265, %v567, 0.0
      %v731 = vadd.f32 %v729, %v730
      %v732 = vsel %vm265, %v568, 0.0
      %v733 = vadd.f32 %v731, %v732
      %v734 = vsel %vm265, %v569, 0.0
      %v735 = vadd.f32 %v733, %v734
      %v736 = vsel %vm265, %v570, 0.0
      %v737 = vadd.f32 %v735, %v736
      %v738 = vsel %vm265, %v571, 0.0
      %v739 = vadd.f32 %v737, %v738
      %v740 = vsel %vm265, %v572, 0.0
      %v741 = vadd.f32 %v739, %v740
      %v742 = vsel %vm265, %v573, 0.0
      %v743 = vadd.f32 %v741, %v742
      %v744 = vsel %vm265, %v574, 0.0
      %v745 = vadd.f32 %v743, %v744
      %v746 = vsel %vm265, %v575, 0.0
      %v747 = vadd.f32 %v745, %v746
      %v748 = vsel %vm265, %v576, 0.0
      %v749 = vadd.f32 %v747, %v748
      %v750 = vsel %vm265, %v577, 0.0
      %v751 = vadd.f32 %v749, %v750
      %v752 = vsel %vm265, %v578, 0.0
      %v753 = vadd.f32 %v751, %v752
      %v754 = vsel %vm265, %v579, 0.0
      %v755 = vadd.f32 %v753, %v754
      %v756 = vsel %vm265, %v580, 0.0
      %v757 = vadd.f32 %v755, %v756
      %v758 = vsel %vm265, %v581, 0.0
      %v759 = vadd.f32 %v757, %v758
      %v760 = vsel %vm265, %v582, 0.0
      %v761 = vadd.f32 %v759, %v760
      %v762 = vsel %vm265, %v583, 0.0
      %v763 = vadd.f32 %v761, %v762
      %v764 = vsel %vm265, %v584, 0.0
      %v765 = vadd.f32 %v763, %v764
      %v766 = vsel %vm265, %v585, 0.0
      %v767 = vadd.f32 %v765, %v766
      %v768 = vsel %vm265, %v586, 0.0
      %v769 = vadd.f32 %v767, %v768
      %v770 = vsel %vm265, %v587, 0.0
      %v771 = vadd.f32 %v769, %v770
      %v772 = vsel %vm265, %v588, 0.0
      %v773 = vadd.f32 %v771, %v772
      %v774 = vsel %vm265, %v589, 0.0
      %v775 = vadd.f32 %v773, %v774
      %v776 = vsel %vm265, %v590, 0.0
      %v777 = vadd.f32 %v775, %v776
      %v778 = vsel %vm265, %v591, 0.0
      %v779 = vadd.f32 %v777, %v778
      %v780 = vsel %vm265, %v592, 0.0
      %v781 = vadd.f32 %v779, %v780
      %v782 = vsel %vm265, %v593, 0.0
      %v783 = vadd.f32 %v781, %v782
      %v784 = vsel %vm265, %v594, 0.0
      %v785 = vadd.f32 %v783, %v784
      %v786 = vsel %vm265, %v595, 0.0
      %v787 = vadd.f32 %v785, %v786
      %v788 = vsel %vm265, %v596, 0.0
      %v789 = vadd.f32 %v787, %v788
      %v790 = vsel %vm265, %v597, 0.0
      %v791 = vadd.f32 %v789, %v790
      %v792 = vsel %vm265, %v598, 0.0
      %v793 = vadd.f32 %v791, %v792
      %v794 = vsel %vm265, %v599, 0.0
      %v795 = vadd.f32 %v793, %v794
      %v796 = vsel %vm265, %v600, 0.0
      %v797 = vadd.f32 %v795, %v796
      %v798 = vsel %vm265, %v601, 0.0
      %v799 = vadd.f32 %v797, %v798
      %v800 = vsel %vm265, %v602, 0.0
      %v801 = vadd.f32 %v799, %v800
      %v802 = vsel %vm265, %v603, 0.0
      %v803 = vadd.f32 %v801, %v802
      %v804 = vsel %vm265, %v604, 0.0
      %v805 = vadd.f32 %v803, %v804
      %v806 = vsel %vm265, %v605, 0.0
      %v807 = vadd.f32 %v805, %v806
      %v808 = vsel %vm265, %v606, 0.0
      %v809 = vadd.f32 %v807, %v808
      %v810 = vsel %vm265, %v607, 0.0
      %v811 = vadd.f32 %v809, %v810
      %v812 = vsel %vm265, %v608, 0.0
      %v813 = vadd.f32 %v811, %v812
      %v814 = vsel %vm265, %v609, 0.0
      %v815 = vadd.f32 %v813, %v814
      %v816 = vsel %vm265, %v610, 0.0
      %v817 = vadd.f32 %v815, %v816
      %v818 = vsel %vm265, %v611, 0.0
      %v819 = vadd.f32 %v817, %v818
      %v820 = vsel %vm265, %v612, 0.0
      %v821 = vadd.f32 %v819, %v820
      %v822 = vsel %vm265, %v613, 0.0
      %v823 = vadd.f32 %v821, %v822
      %v824 = vsel %vm265, %v614, 0.0
      %v825 = vadd.f32 %v823, %v824
      %v826 = vsel %vm265, %v615, 0.0
      %v827 = vadd.f32 %v825, %v826
      %v828 = vsel %vm265, %v616, 0.0
      %v829 = vadd.f32 %v827, %v828
      %v830 = vsel %vm265, %v617, 0.0
      %v831 = vadd.f32 %v829, %v830
      %v832 = vsel %vm265, %v618, 0.0
      %v833 = vadd.f32 %v831, %v832
      %v834 = vsel %vm265, %v619, 0.0
      %v835 = vadd.f32 %v833, %v834
      %v836 = vsel %vm265, %v620, 0.0
      %v837 = vadd.f32 %v835, %v836
      %v838 = vsel %vm265, %v621, 0.0
      %v839 = vadd.f32 %v837, %v838
      %v840 = vsel %vm265, %v622, 0.0
      %v841 = vadd.f32 %v839, %v840
      %v842 = vsel %vm265, %v623, 0.0
      %v843 = vadd.f32 %v841, %v842
      %v844 = vsel %vm265, %v624, 0.0
      %v845 = vadd.f32 %v843, %v844
      %v846 = vsel %vm265, %v625, 0.0
      %v847 = vadd.f32 %v845, %v846
      %v848 = vsel %vm265, %v626, 0.0
      %v849 = vadd.f32 %v847, %v848
      %v850 = vsel %vm265, %v627, 0.0
      %v851 = vadd.f32 %v849, %v850
      %v852 = vsel %vm265, %v628, 0.0
      %v853 = vadd.f32 %v851, %v852
      %v854 = vsel %vm265, %v629, 0.0
      %v855 = vadd.f32 %v853, %v854
      %v856 = vsel %vm265, %v630, 0.0
      %v857 = vadd.f32 %v855, %v856
      %v858 = vsel %vm265, %v631, 0.0
      %v859 = vadd.f32 %v857, %v858
      %v860 = vsel %vm265, %v632, 0.0
      %v861 = vadd.f32 %v859, %v860
      %v862 = vsel %vm265, %v633, 0.0
      %v863 = vadd.f32 %v861, %v862
      %v864 = vsel %vm265, %v634, 0.0
      %v865 = vadd.f32 %v863, %v864
      %v866 = vsel %vm265, %v635, 0.0
      %v867 = vadd.f32 %v865, %v866
      %v868 = vsel %vm265, %v636, 0.0
      %v869 = vadd.f32 %v867, %v868
      %v870 = vsel %vm265, %v637, 0.0
      %v871 = vadd.f32 %v869, %v870
      %v872 = vsel %vm265, %v638, 0.0
      %v873 = vadd.f32 %v871, %v872
      %v874 = vsel %vm265, %v639, 0.0
      %v875 = vadd.f32 %v873, %v874
      %v876 = vsel %vm265, %v640, 0.0
      %v877 = vadd.f32 %v875, %v876
      %v878 = vsel %vm265, %v641, 0.0
      %v879 = vadd.f32 %v877, %v878
      %v880 = vsel %vm265, %v642, 0.0
      %v881 = vadd.f32 %v879, %v880
      %v882 = vsel %vm265, %v643, 0.0
      %v883 = vadd.f32 %v881, %v882
      %v884 = vsel %vm265, %v644, 0.0
      %v885 = vadd.f32 %v883, %v884
      %v886 = vsel %vm265, %v645, 0.0
      %v887 = vadd.f32 %v885, %v886
      %v888 = vsel %vm265, %v646, 0.0
      %v889 = vadd.f32 %v887, %v888
      %v890 = vsel %vm265, %v647, 0.0
      %v891 = vadd.f32 %v889, %v890
      %v892 = vsel %vm265, %v648, 0.0
      %v893 = vadd.f32 %v891, %v892
      %v894 = vsel %vm265, %v649, 0.0
      %v895 = vadd.f32 %v893, %v894
      %v896 = vsel %vm265, %v650, 0.0
      %v897 = vadd.f32 %v895, %v896
      %v898 = vsel %vm265, %v651, 0.0
      %v899 = vadd.f32 %v897, %v898
      %v900 = vsel %vm265, %v652, 0.0
      %v901 = vadd.f32 %v899, %v900
      %v902 = vsel %vm265, %v653, 0.0
      %v903 = vadd.f32 %v901, %v902
      %v904 = vsel %vm265, %v654, 0.0
      %v905 = vadd.f32 %v903, %v904
      %v906 = vsel %vm265, %v655, 0.0
      %v907 = vadd.f32 %v905, %v906
      %v908 = vsel %vm265, %v656, 0.0
      %v909 = vadd.f32 %v907, %v908
      %v910 = vsel %vm265, %v657, 0.0
      %v911 = vadd.f32 %v909, %v910
      %v912 = vsel %vm265, %v658, 0.0
      %v913 = vadd.f32 %v911, %v912
      %v914 = vrot.slane %v913, 4
      %v915 = vadd.f32 %v913, %v914
      %v916 = vrot.slane %v915, 2
      %v917 = vadd.f32 %v915, %v916
      %v918 = vrot.slane %v917, 1
      %v919 = vadd.f32 %v917, %v918
      %v920 = vadd.f32 %v530, %v919
      %921 = vst.msk [vmem:[%s2] sm:$0x1] %vm528, %v920
      // Predicated region
      $region29: #{generator_forward.23} parent=23 // pred_check
        %p922 = pneg %p53
      $region30: #{generator_forward.23} parent=23 // pred_check_branch
        %924 = sbr.rel (%p922) target = $region32
      $region31: #{generator_forward.23} parent=23 // pred_region
        _
      $region32: #{generator_forward.23} parent=23 // pred_fallthru
        _
      // Predicated region
      $region33: #{generator_forward.23} parent=23 // pred_check
        %p925 = pneg %p74
      $region34: #{generator_forward.23} parent=23 // pred_check_branch
        %927 = sbr.rel (%p925) target = $region36
      $region35: #{generator_forward.23} parent=23 // pred_region
        _
      $region36: #{generator_forward.23} parent=23 // pred_fallthru
        _
      // Predicated region
      $region37: #{generator_forward.23} parent=23 // pred_check
        %p928 = pneg %p53
      $region38: #{generator_forward.23} parent=23 // pred_check_branch
        %930 = sbr.rel (%p928) target = $region40
      $region39: #{generator_forward.23} parent=23 // pred_region
        _
      $region40: #{generator_forward.23} parent=23 // pred_fallthru
        _
      // Predicated region
      $region41: #{generator_forward.23} parent=23 // pred_check
        %p931 = pneg %p74
      $region42: #{generator_forward.23} parent=23 // pred_check_branch
        %933 = sbr.rel (%p931) target = $region44
      $region43: #{generator_forward.23} parent=23 // pred_region
        _
      $region44: #{generator_forward.23} parent=23 // pred_fallthru
        _
    $region24: #{generator_forward.23} parent=5 // pred_fallthru
      _
    %p934 = scmp.le.s32.totalorder 2, %s9
    // Predicated region
    $region45: #{generator_forward.23} parent=5 // pred_check
      %p935 = pneg %p934
    $region46: #{generator_forward.23} parent=5 // pred_check_branch
      %937 = sbr.rel (%p935) target = $region48
    $region47: #{generator_forward.23} parent=5 // pred_region
      %s938 = ssub.s32 %s9, 2
    $region48: #{generator_forward.23} parent=5 // pred_fallthru
      _
  $region6: #{generator_forward.23} parent=0 // loop_footer
    %s13 = sadd.s32 1, %s9
  $region7: #{generator_forward.23} parent=0 // loop_footer_branch
    %8 = sbr.rel target = $region3
  $region8: #{generator_forward.23} parent=0 // loop_exit
    _

// kernel: generator_forward.24
$region0: #{generator_forward.24}
  #allocation0 [shape = 'u32[]', space=smem, size = 0x4, offset = 0x4, fixed_abs, tag = 'smem constant byte address 0x4 - core index']
  #allocation1 [shape = 'u32[72,128]{1,0:T(1,128)}', space=vmem, size = 0x9000, scoped, tag = 'internal scratch']
  %s0 = inlined_call_operand.vmem [shape: f32[2048,64], index: 0, kind: input, shape index: {}]
  %s1 = inlined_call_operand.vmem [shape: f32[1,64], index: 1, kind: input, shape index: {}]
  %s2 = inlined_call_operand.vmem [shape: f32[1,64], index: 2, kind: input, shape index: {}]
  %s3 = inlined_call_operand.vmem [shape: bf16[2048,64], index: 3, kind: output, shape index: {}]
  %s4 = sld [smem:[#allocation0]]
  $region45: #{generator_forward.24} parent=0
    _
  %s6 = ssub.s32 1, %s4
  %s7 = scalar_select 0, %s6, %s4
  loop: start=0, step=1, limit=4
  $region2: #{generator_forward.24} parent=0 // loop_pre_header
    _
  $region3: #{generator_forward.24} parent=0 // loop_header
    %s9 = sphi 0, %s13
    %p10 = scmp.ge.s32.totalorder %s9, 4
    %s19 = sphi 0, %s21
    %s22 = sphi 0, %s19
    %s23 = sphi 0, %s22
    %s39 = sphi 0, %s23
    %s43 = sphi 0, %s43
    %s45 = sphi 0, %s43
    %s46 = sphi 0, %s45
    %s60 = sphi 0, %s46
    %s64 = sphi 0, %s64
    %s66 = sphi 0, %s64
    %s67 = sphi 0, %s66
    %s81 = sphi 0, %s67
    %s87 = sphi 0, %s89
    %s90 = sphi 0, %s87
    %s91 = sphi 0, %s90
    %s107 = sphi 0, %s91
  $region4: #{generator_forward.24} parent=0 // loop_header_branch
    %12 = sbr.rel (%p10) target = $region8
  $region5: #{generator_forward.24} parent=0 // loop_body
    %s14 = ssub.s32 %s9, 1
    %s15 = ssub.s32 %s9, 2
    %s16 = sadd.s32 %s9, 1
    %s17 = ssub.s32 %s9, %s16
    %p18 = scmp.eq.s32.totalorder %s17, 0
    %s20 = sadd.s32 %s19, 1
    %s21 = scalar_select %p18, %s19, %s20
    %p24 = pneg %p18
    %p25 = scmp.eq.s32.totalorder %s9, 1
    %p26 = por %p24, %p25
    %p27 = scmp.ne.s32.totalorder %s19, %s22
    %p28 = scmp.eq.s32.totalorder %s9, 0
    %p29 = por %p27, %p28
    %p30 = scmp.ne.s32.totalorder %s19, %s22
    %p31 = scmp.eq.s32.totalorder %s14, 1
    %p32 = por %p30, %p31
    %p33 = scmp.ne.s32.totalorder %s22, %s23
    %p34 = scmp.eq.s32.totalorder %s14, 0
    %p35 = por %p33, %p34
    %p36 = scmp.ne.s32.totalorder %s22, %s23
    %p37 = scmp.eq.s32.totalorder %s15, 1
    %p38 = por %p36, %p37
    %p40 = scmp.ne.s32.totalorder %s23, %s39
    %p41 = scmp.eq.s32.totalorder %s15, 0
    %p42 = por %p40, %p41
    %s44 = sadd.s32 %s43, 1
    %p47 = scmp.eq.s32.totalorder %s9, 1
    %p48 = scmp.ne.s32.totalorder %s43, %s45
    %p49 = scmp.eq.s32.totalorder %s9, 0
    %p50 = por %p48, %p49
    %p51 = scmp.ne.s32.totalorder %s43, %s45
    %p52 = scmp.eq.s32.totalorder %s14, 1
    %p53 = por %p51, %p52
    %p54 = scmp.ne.s32.totalorder %s45, %s46
    %p55 = scmp.eq.s32.totalorder %s14, 0
    %p56 = por %p54, %p55
    %p57 = scmp.ne.s32.totalorder %s45, %s46
    %p58 = scmp.eq.s32.totalorder %s15, 1
    %p59 = por %p57, %p58
    %p61 = scmp.ne.s32.totalorder %s46, %s60
    %p62 = scmp.eq.s32.totalorder %s15, 0
    %p63 = por %p61, %p62
    %s65 = sadd.s32 %s64, 1
    %p68 = scmp.eq.s32.totalorder %s9, 1
    %p69 = scmp.ne.s32.totalorder %s64, %s66
    %p70 = scmp.eq.s32.totalorder %s9, 0
    %p71 = por %p69, %p70
    %p72 = scmp.ne.s32.totalorder %s64, %s66
    %p73 = scmp.eq.s32.totalorder %s14, 1
    %p74 = por %p72, %p73
    %p75 = scmp.ne.s32.totalorder %s66, %s67
    %p76 = scmp.eq.s32.totalorder %s14, 0
    %p77 = por %p75, %p76
    %p78 = scmp.ne.s32.totalorder %s66, %s67
    %p79 = scmp.eq.s32.totalorder %s15, 1
    %p80 = por %p78, %p79
    %p82 = scmp.ne.s32.totalorder %s67, %s81
    %p83 = scmp.eq.s32.totalorder %s15, 0
    %p84 = por %p82, %p83
    %s85 = ssub.s32 %s9, %s16
    %p86 = scmp.eq.s32.totalorder %s85, 0
    %s88 = sadd.s32 %s87, 1
    %s89 = scalar_select %p86, %s87, %s88
    %p92 = pneg %p86
    %p93 = scmp.eq.s32.totalorder %s9, 1
    %p94 = por %p92, %p93
    %p95 = scmp.ne.s32.totalorder %s87, %s90
    %p96 = scmp.eq.s32.totalorder %s9, 0
    %p97 = por %p95, %p96
    %p98 = scmp.ne.s32.totalorder %s87, %s90
    %p99 = scmp.eq.s32.totalorder %s14, 1
    %p100 = por %p98, %p99
    %p101 = scmp.ne.s32.totalorder %s90, %s91
    %p102 = scmp.eq.s32.totalorder %s14, 0
    %p103 = por %p101, %p102
    %p104 = scmp.ne.s32.totalorder %s90, %s91
    %p105 = scmp.eq.s32.totalorder %s15, 1
    %p106 = por %p104, %p105
    %p108 = scmp.ne.s32.totalorder %s91, %s107
    %p109 = scmp.eq.s32.totalorder %s15, 0
    %p110 = por %p108, %p109
    %p111 = scmp.le.s32.totalorder 1, %s9
    %p112 = scmp.lt.s32.totalorder %s9, 3
    %p113 = pnand %p111, %p112
    %p114 = pneg %p113
    // Predicated region
    $region9: #{generator_forward.24} parent=5 // pred_check
      _
    $region10: #{generator_forward.24} parent=5 // pred_check_branch
      %116 = sbr.rel (%p113) target = $region12
    $region11: #{generator_forward.24} parent=5 // pred_region
      %s117 = ssub.s32 %s9, 1
      // Predicated region
      $region13: #{generator_forward.24} parent=11 // pred_check
        %p118 = pneg %p56
      $region14: #{generator_forward.24} parent=11 // pred_check_branch
        %120 = sbr.rel (%p118) target = $region16
      $region15: #{generator_forward.24} parent=11 // pred_region
        _
      $region16: #{generator_forward.24} parent=11 // pred_fallthru
        _
      // Predicated region
      $region17: #{generator_forward.24} parent=11 // pred_check
        %p121 = pneg %p77
      $region18: #{generator_forward.24} parent=11 // pred_check_branch
        %123 = sbr.rel (%p121) target = $region20
      $region19: #{generator_forward.24} parent=11 // pred_region
        _
      $region20: #{generator_forward.24} parent=11 // pred_fallthru
        _
    $region12: #{generator_forward.24} parent=5 // pred_fallthru
      _
    %p124 = scmp.lt.s32.totalorder %s9, 2
    // Predicated region
    $region21: #{generator_forward.24} parent=5 // pred_check
      %p125 = pneg %p124
    $region22: #{generator_forward.24} parent=5 // pred_check_branch
      %127 = sbr.rel (%p125) target = $region24
    $region23: #{generator_forward.24} parent=5 // pred_region
      // Predicated region
      $region25: #{generator_forward.24} parent=23 // pred_check
        %p128 = pneg %p29
      $region26: #{generator_forward.24} parent=23 // pred_check_branch
        %130 = sbr.rel (%p128) target = $region28
      $region27: #{generator_forward.24} parent=23 // pred_region
        %s131 = smul.u32 128, %s9
        %p132 = scmp.lt.s32.totalorder %s131, 255
        %s133 = scalar_select %p132, %s131, 255
        %s134 = smul.addr %s133, 8
        %s135 = scalar_lea.vmem %s0, %s134
        %s136 = smul.u32 128, %s9
      $region28: #{generator_forward.24} parent=23 // pred_fallthru
        _
    $region24: #{generator_forward.24} parent=5 // pred_fallthru
      _
    %p137 = scmp.le.s32.totalorder 1, %s9
    %p138 = scmp.lt.s32.totalorder %s9, 3
    %p139 = pnand %p137, %p138
    %p140 = pneg %p139
    // Predicated region
    $region29: #{generator_forward.24} parent=5 // pred_check
      _
    $region30: #{generator_forward.24} parent=5 // pred_check_branch
      %142 = sbr.rel (%p139) target = $region32
    $region31: #{generator_forward.24} parent=5 // pred_region
      %s143 = ssub.s32 %s9, 1
      %s144 = smul.u32 128, %s14
      %p145 = scmp.lt.s32.totalorder %s144, 255
      %s146 = scalar_select %p145, %s144, 255
      %s147 = smul.addr %s146, 8
      %s148 = scalar_lea.vmem %s0, %s147
      %p149 = pneg %p35
      %p150 = pneg %p32
      %p151 = pneg %p56
      %p152 = pneg %p53
      %p153 = pneg %p77
      %p154 = pneg %p74
      %p155 = pneg %p103
      %p156 = pneg %p100
      %s157 = smul.u32 128, %s14
      %p158 = scmp.lt.s32.totalorder %s157, 255
      %s159 = scalar_select %p158, %s157, 255
      %s160 = smul.addr %s159, 4
      %s161 = scalar_lea.vmem %s3, %s160
      %s162 = smul.u32 128, %s14
      %p163 = scmp.lt.s32.totalorder %s162, 255
      %s164 = scalar_select %p163, %s162, 255
      %s165 = smul.addr %s164, 8
      %s166 = scalar_lea.vmem %s0, %s165
      %s167 = smul.u32 128, %s14
      %s168 = smul.u32 128, %s14
      %p169 = scmp.lt.s32.totalorder %s168, 255
      %s170 = scalar_select %p169, %s168, 255
      %s171 = smul.addr %s170, 4
      %s172 = scalar_lea.vmem %s3, %s171
      %s173 = smul.u32 128, %s14
      %v174 = vld [vmem:[%s166] sm:$0xff]
      %v175 = vld [vmem:[%s166 + $0x8] sm:$0xff]
      %v176 = vld [vmem:[%s166 + $0x10] sm:$0xff]
      %v177 = vld [vmem:[%s166 + $0x18] sm:$0xff]
      %v178 = vld [vmem:[%s166 + $0x20] sm:$0xff]
      %v179 = vld [vmem:[%s166 + $0x28] sm:$0xff]
      %v180 = vld [vmem:[%s166 + $0x30] sm:$0xff]
      %v181 = vld [vmem:[%s166 + $0x38] sm:$0xff]
      %v182 = vld [vmem:[%s166 + $0x40] sm:$0xff]
      %v183 = vld [vmem:[%s166 + $0x48] sm:$0xff]
      %v184 = vld [vmem:[%s166 + $0x50] sm:$0xff]
      %v185 = vld [vmem:[%s166 + $0x58] sm:$0xff]
      %v186 = vld [vmem:[%s166 + $0x60] sm:$0xff]
      %v187 = vld [vmem:[%s166 + $0x68] sm:$0xff]
      %v188 = vld [vmem:[%s166 + $0x70] sm:$0xff]
      %v189 = vld [vmem:[%s166 + $0x78] sm:$0xff]
      %v190 = vld [vmem:[%s166 + $0x80] sm:$0xff]
      %v191 = vld [vmem:[%s166 + $0x88] sm:$0xff]
      %v192 = vld [vmem:[%s166 + $0x90] sm:$0xff]
      %v193 = vld [vmem:[%s166 + $0x98] sm:$0xff]
      %v194 = vld [vmem:[%s166 + $0xa0] sm:$0xff]
      %v195 = vld [vmem:[%s166 + $0xa8] sm:$0xff]
      %v196 = vld [vmem:[%s166 + $0xb0] sm:$0xff]
      %v197 = vld [vmem:[%s166 + $0xb8] sm:$0xff]
      %v198 = vld [vmem:[%s166 + $0xc0] sm:$0xff]
      %v199 = vld [vmem:[%s166 + $0xc8] sm:$0xff]
      %v200 = vld [vmem:[%s166 + $0xd0] sm:$0xff]
      %v201 = vld [vmem:[%s166 + $0xd8] sm:$0xff]
      %v202 = vld [vmem:[%s166 + $0xe0] sm:$0xff]
      %v203 = vld [vmem:[%s166 + $0xe8] sm:$0xff]
      %v204 = vld [vmem:[%s166 + $0xf0] sm:$0xff]
      %v205 = vld [vmem:[%s166 + $0xf8] sm:$0xff]
      %v206 = vld [vmem:[%s166 + $0x100] sm:$0xff]
      %v207 = vld [vmem:[%s166 + $0x108] sm:$0xff]
      %v208 = vld [vmem:[%s166 + $0x110] sm:$0xff]
      %v209 = vld [vmem:[%s166 + $0x118] sm:$0xff]
      %v210 = vld [vmem:[%s166 + $0x120] sm:$0xff]
      %v211 = vld [vmem:[%s166 + $0x128] sm:$0xff]
      %v212 = vld [vmem:[%s166 + $0x130] sm:$0xff]
      %v213 = vld [vmem:[%s166 + $0x138] sm:$0xff]
      %v214 = vld [vmem:[%s166 + $0x140] sm:$0xff]
      %v215 = vld [vmem:[%s166 + $0x148] sm:$0xff]
      %v216 = vld [vmem:[%s166 + $0x150] sm:$0xff]
      %v217 = vld [vmem:[%s166 + $0x158] sm:$0xff]
      %v218 = vld [vmem:[%s166 + $0x160] sm:$0xff]
      %v219 = vld [vmem:[%s166 + $0x168] sm:$0xff]
      %v220 = vld [vmem:[%s166 + $0x170] sm:$0xff]
      %v221 = vld [vmem:[%s166 + $0x178] sm:$0xff]
      %v222 = vld [vmem:[%s166 + $0x180] sm:$0xff]
      %v223 = vld [vmem:[%s166 + $0x188] sm:$0xff]
      %v224 = vld [vmem:[%s166 + $0x190] sm:$0xff]
      %v225 = vld [vmem:[%s166 + $0x198] sm:$0xff]
      %v226 = vld [vmem:[%s166 + $0x1a0] sm:$0xff]
      %v227 = vld [vmem:[%s166 + $0x1a8] sm:$0xff]
      %v228 = vld [vmem:[%s166 + $0x1b0] sm:$0xff]
      %v229 = vld [vmem:[%s166 + $0x1b8] sm:$0xff]
      %v230 = vld [vmem:[%s166 + $0x1c0] sm:$0xff]
      %v231 = vld [vmem:[%s166 + $0x1c8] sm:$0xff]
      %v232 = vld [vmem:[%s166 + $0x1d0] sm:$0xff]
      %v233 = vld [vmem:[%s166 + $0x1d8] sm:$0xff]
      %v234 = vld [vmem:[%s166 + $0x1e0] sm:$0xff]
      %v235 = vld [vmem:[%s166 + $0x1e8] sm:$0xff]
      %v236 = vld [vmem:[%s166 + $0x1f0] sm:$0xff]
      %v237 = vld [vmem:[%s166 + $0x1f8] sm:$0xff]
      %v238 = vld [vmem:[%s166 + $0x200] sm:$0xff]
      %v239 = vld [vmem:[%s166 + $0x208] sm:$0xff]
      %v240 = vld [vmem:[%s166 + $0x210] sm:$0xff]
      %v241 = vld [vmem:[%s166 + $0x218] sm:$0xff]
      %v242 = vld [vmem:[%s166 + $0x220] sm:$0xff]
      %v243 = vld [vmem:[%s166 + $0x228] sm:$0xff]
      %v244 = vld [vmem:[%s166 + $0x230] sm:$0xff]
      %v245 = vld [vmem:[%s166 + $0x238] sm:$0xff]
      %v246 = vld [vmem:[%s166 + $0x240] sm:$0xff]
      %v247 = vld [vmem:[%s166 + $0x248] sm:$0xff]
      %v248 = vld [vmem:[%s166 + $0x250] sm:$0xff]
      %v249 = vld [vmem:[%s166 + $0x258] sm:$0xff]
      %v250 = vld [vmem:[%s166 + $0x260] sm:$0xff]
      %v251 = vld [vmem:[%s166 + $0x268] sm:$0xff]
      %v252 = vld [vmem:[%s166 + $0x270] sm:$0xff]
      %v253 = vld [vmem:[%s166 + $0x278] sm:$0xff]
      %v254 = vld [vmem:[%s166 + $0x280] sm:$0xff]
      %v255 = vld [vmem:[%s166 + $0x288] sm:$0xff]
      %v256 = vld [vmem:[%s166 + $0x290] sm:$0xff]
      %v257 = vld [vmem:[%s166 + $0x298] sm:$0xff]
      %v258 = vld [vmem:[%s166 + $0x2a0] sm:$0xff]
      %v259 = vld [vmem:[%s166 + $0x2a8] sm:$0xff]
      %v260 = vld [vmem:[%s166 + $0x2b0] sm:$0xff]
      %v261 = vld [vmem:[%s166 + $0x2b8] sm:$0xff]
      %v262 = vld [vmem:[%s166 + $0x2c0] sm:$0xff]
      %v263 = vld [vmem:[%s166 + $0x2c8] sm:$0xff]
      %v264 = vld [vmem:[%s166 + $0x2d0] sm:$0xff]
      %v265 = vld [vmem:[%s166 + $0x2d8] sm:$0xff]
      %v266 = vld [vmem:[%s166 + $0x2e0] sm:$0xff]
      %v267 = vld [vmem:[%s166 + $0x2e8] sm:$0xff]
      %v268 = vld [vmem:[%s166 + $0x2f0] sm:$0xff]
      %v269 = vld [vmem:[%s166 + $0x2f8] sm:$0xff]
      %v270 = vld [vmem:[%s166 + $0x300] sm:$0xff]
      %v271 = vld [vmem:[%s166 + $0x308] sm:$0xff]
      %v272 = vld [vmem:[%s166 + $0x310] sm:$0xff]
      %v273 = vld [vmem:[%s166 + $0x318] sm:$0xff]
      %v274 = vld [vmem:[%s166 + $0x320] sm:$0xff]
      %v275 = vld [vmem:[%s166 + $0x328] sm:$0xff]
      %v276 = vld [vmem:[%s166 + $0x330] sm:$0xff]
      %v277 = vld [vmem:[%s166 + $0x338] sm:$0xff]
      %v278 = vld [vmem:[%s166 + $0x340] sm:$0xff]
      %v279 = vld [vmem:[%s166 + $0x348] sm:$0xff]
      %v280 = vld [vmem:[%s166 + $0x350] sm:$0xff]
      %v281 = vld [vmem:[%s166 + $0x358] sm:$0xff]
      %v282 = vld [vmem:[%s166 + $0x360] sm:$0xff]
      %v283 = vld [vmem:[%s166 + $0x368] sm:$0xff]
      %v284 = vld [vmem:[%s166 + $0x370] sm:$0xff]
      %v285 = vld [vmem:[%s166 + $0x378] sm:$0xff]
      %v286 = vld [vmem:[%s166 + $0x380] sm:$0xff]
      %v287 = vld [vmem:[%s166 + $0x388] sm:$0xff]
      %v288 = vld [vmem:[%s166 + $0x390] sm:$0xff]
      %v289 = vld [vmem:[%s166 + $0x398] sm:$0xff]
      %v290 = vld [vmem:[%s166 + $0x3a0] sm:$0xff]
      %v291 = vld [vmem:[%s166 + $0x3a8] sm:$0xff]
      %v292 = vld [vmem:[%s166 + $0x3b0] sm:$0xff]
      %v293 = vld [vmem:[%s166 + $0x3b8] sm:$0xff]
      %v294 = vld [vmem:[%s166 + $0x3c0] sm:$0xff]
      %v295 = vld [vmem:[%s166 + $0x3c8] sm:$0xff]
      %v296 = vld [vmem:[%s166 + $0x3d0] sm:$0xff]
      %v297 = vld [vmem:[%s166 + $0x3d8] sm:$0xff]
      %v298 = vld [vmem:[%s166 + $0x3e0] sm:$0xff]
      %v299 = vld [vmem:[%s166 + $0x3e8] sm:$0xff]
      %v300 = vld [vmem:[%s166 + $0x3f0] sm:$0xff]
      %v301 = vld [vmem:[%s166 + $0x3f8] sm:$0xff]
      %v302 = vld [vmem:[%s1] sm:$0x1]
      %v304 = vperm.slane %v302, 0
      %v306 = vmul.f32 %v174, %v304
      %v307 = vmul.f32 %v175, %v304
      %v308 = vmul.f32 %v176, %v304
      %v309 = vmul.f32 %v177, %v304
      %v310 = vmul.f32 %v178, %v304
      %v311 = vmul.f32 %v179, %v304
      %v312 = vmul.f32 %v180, %v304
      %v313 = vmul.f32 %v181, %v304
      %v314 = vmul.f32 %v182, %v304
      %v315 = vmul.f32 %v183, %v304
      %v316 = vmul.f32 %v184, %v304
      %v317 = vmul.f32 %v185, %v304
      %v318 = vmul.f32 %v186, %v304
      %v319 = vmul.f32 %v187, %v304
      %v320 = vmul.f32 %v188, %v304
      %v321 = vmul.f32 %v189, %v304
      %v322 = vmul.f32 %v190, %v304
      %v323 = vmul.f32 %v191, %v304
      %v324 = vmul.f32 %v192, %v304
      %v325 = vmul.f32 %v193, %v304
      %v326 = vmul.f32 %v194, %v304
      %v327 = vmul.f32 %v195, %v304
      %v328 = vmul.f32 %v196, %v304
      %v329 = vmul.f32 %v197, %v304
      %v330 = vmul.f32 %v198, %v304
      %v331 = vmul.f32 %v199, %v304
      %v332 = vmul.f32 %v200, %v304
      %v333 = vmul.f32 %v201, %v304
      %v334 = vmul.f32 %v202, %v304
      %v335 = vmul.f32 %v203, %v304
      %v336 = vmul.f32 %v204, %v304
      %v337 = vmul.f32 %v205, %v304
      %v338 = vmul.f32 %v206, %v304
      %v339 = vmul.f32 %v207, %v304
      %v340 = vmul.f32 %v208, %v304
      %v341 = vmul.f32 %v209, %v304
      %v342 = vmul.f32 %v210, %v304
      %v343 = vmul.f32 %v211, %v304
      %v344 = vmul.f32 %v212, %v304
      %v345 = vmul.f32 %v213, %v304
      %v346 = vmul.f32 %v214, %v304
      %v347 = vmul.f32 %v215, %v304
      %v348 = vmul.f32 %v216, %v304
      %v349 = vmul.f32 %v217, %v304
      %v350 = vmul.f32 %v218, %v304
      %v351 = vmul.f32 %v219, %v304
      %v352 = vmul.f32 %v220, %v304
      %v353 = vmul.f32 %v221, %v304
      %v354 = vmul.f32 %v222, %v304
      %v355 = vmul.f32 %v223, %v304
      %v356 = vmul.f32 %v224, %v304
      %v357 = vmul.f32 %v225, %v304
      %v358 = vmul.f32 %v226, %v304
      %v359 = vmul.f32 %v227, %v304
      %v360 = vmul.f32 %v228, %v304
      %v361 = vmul.f32 %v229, %v304
      %v362 = vmul.f32 %v230, %v304
      %v363 = vmul.f32 %v231, %v304
      %v364 = vmul.f32 %v232, %v304
      %v365 = vmul.f32 %v233, %v304
      %v366 = vmul.f32 %v234, %v304
      %v367 = vmul.f32 %v235, %v304
      %v368 = vmul.f32 %v236, %v304
      %v369 = vmul.f32 %v237, %v304
      %v370 = vmul.f32 %v238, %v304
      %v371 = vmul.f32 %v239, %v304
      %v372 = vmul.f32 %v240, %v304
      %v373 = vmul.f32 %v241, %v304
      %v374 = vmul.f32 %v242, %v304
      %v375 = vmul.f32 %v243, %v304
      %v376 = vmul.f32 %v244, %v304
      %v377 = vmul.f32 %v245, %v304
      %v378 = vmul.f32 %v246, %v304
      %v379 = vmul.f32 %v247, %v304
      %v380 = vmul.f32 %v248, %v304
      %v381 = vmul.f32 %v249, %v304
      %v382 = vmul.f32 %v250, %v304
      %v383 = vmul.f32 %v251, %v304
      %v384 = vmul.f32 %v252, %v304
      %v385 = vmul.f32 %v253, %v304
      %v386 = vmul.f32 %v254, %v304
      %v387 = vmul.f32 %v255, %v304
      %v388 = vmul.f32 %v256, %v304
      %v389 = vmul.f32 %v257, %v304
      %v390 = vmul.f32 %v258, %v304
      %v391 = vmul.f32 %v259, %v304
      %v392 = vmul.f32 %v260, %v304
      %v393 = vmul.f32 %v261, %v304
      %v394 = vmul.f32 %v262, %v304
      %v395 = vmul.f32 %v263, %v304
      %v396 = vmul.f32 %v264, %v304
      %v397 = vmul.f32 %v265, %v304
      %v398 = vmul.f32 %v266, %v304
      %v399 = vmul.f32 %v267, %v304
      %v400 = vmul.f32 %v268, %v304
      %v401 = vmul.f32 %v269, %v304
      %v402 = vmul.f32 %v270, %v304
      %v403 = vmul.f32 %v271, %v304
      %v404 = vmul.f32 %v272, %v304
      %v405 = vmul.f32 %v273, %v304
      %v406 = vmul.f32 %v274, %v304
      %v407 = vmul.f32 %v275, %v304
      %v408 = vmul.f32 %v276, %v304
      %v409 = vmul.f32 %v277, %v304
      %v410 = vmul.f32 %v278, %v304
      %v411 = vmul.f32 %v279, %v304
      %v412 = vmul.f32 %v280, %v304
      %v413 = vmul.f32 %v281, %v304
      %v414 = vmul.f32 %v282, %v304
      %v415 = vmul.f32 %v283, %v304
      %v416 = vmul.f32 %v284, %v304
      %v417 = vmul.f32 %v285, %v304
      %v418 = vmul.f32 %v286, %v304
      %v419 = vmul.f32 %v287, %v304
      %v420 = vmul.f32 %v288, %v304
      %v421 = vmul.f32 %v289, %v304
      %v422 = vmul.f32 %v290, %v304
      %v423 = vmul.f32 %v291, %v304
      %v424 = vmul.f32 %v292, %v304
      %v425 = vmul.f32 %v293, %v304
      %v426 = vmul.f32 %v294, %v304
      %v427 = vmul.f32 %v295, %v304
      %v428 = vmul.f32 %v296, %v304
      %v429 = vmul.f32 %v297, %v304
      %v430 = vmul.f32 %v298, %v304
      %v431 = vmul.f32 %v299, %v304
      %v432 = vmul.f32 %v300, %v304
      %v433 = vmul.f32 %v301, %v304
      %v434 = vld [vmem:[%s2] sm:$0x1]
      %v436 = vperm.slane %v434, 0
      %v438 = vadd.f32 %v306, %v436
      %v439 = vadd.f32 %v307, %v436
      %v440 = vadd.f32 %v308, %v436
      %v441 = vadd.f32 %v309, %v436
      %v442 = vadd.f32 %v310, %v436
      %v443 = vadd.f32 %v311, %v436
      %v444 = vadd.f32 %v312, %v436
      %v445 = vadd.f32 %v313, %v436
      %v446 = vadd.f32 %v314, %v436
      %v447 = vadd.f32 %v315, %v436
      %v448 = vadd.f32 %v316, %v436
      %v449 = vadd.f32 %v317, %v436
      %v450 = vadd.f32 %v318, %v436
      %v451 = vadd.f32 %v319, %v436
      %v452 = vadd.f32 %v320, %v436
      %v453 = vadd.f32 %v321, %v436
      %v454 = vadd.f32 %v322, %v436
      %v455 = vadd.f32 %v323, %v436
      %v456 = vadd.f32 %v324, %v436
      %v457 = vadd.f32 %v325, %v436
      %v458 = vadd.f32 %v326, %v436
      %v459 = vadd.f32 %v327, %v436
      %v460 = vadd.f32 %v328, %v436
      %v461 = vadd.f32 %v329, %v436
      %v462 = vadd.f32 %v330, %v436
      %v463 = vadd.f32 %v331, %v436
      %v464 = vadd.f32 %v332, %v436
      %v465 = vadd.f32 %v333, %v436
      %v466 = vadd.f32 %v334, %v436
      %v467 = vadd.f32 %v335, %v436
      %v468 = vadd.f32 %v336, %v436
      %v469 = vadd.f32 %v337, %v436
      %v470 = vadd.f32 %v338, %v436
      %v471 = vadd.f32 %v339, %v436
      %v472 = vadd.f32 %v340, %v436
      %v473 = vadd.f32 %v341, %v436
      %v474 = vadd.f32 %v342, %v436
      %v475 = vadd.f32 %v343, %v436
      %v476 = vadd.f32 %v344, %v436
      %v477 = vadd.f32 %v345, %v436
      %v478 = vadd.f32 %v346, %v436
      %v479 = vadd.f32 %v347, %v436
      %v480 = vadd.f32 %v348, %v436
      %v481 = vadd.f32 %v349, %v436
      %v482 = vadd.f32 %v350, %v436
      %v483 = vadd.f32 %v351, %v436
      %v484 = vadd.f32 %v352, %v436
      %v485 = vadd.f32 %v353, %v436
      %v486 = vadd.f32 %v354, %v436
      %v487 = vadd.f32 %v355, %v436
      %v488 = vadd.f32 %v356, %v436
      %v489 = vadd.f32 %v357, %v436
      %v490 = vadd.f32 %v358, %v436
      %v491 = vadd.f32 %v359, %v436
      %v492 = vadd.f32 %v360, %v436
      %v493 = vadd.f32 %v361, %v436
      %v494 = vadd.f32 %v362, %v436
      %v495 = vadd.f32 %v363, %v436
      %v496 = vadd.f32 %v364, %v436
      %v497 = vadd.f32 %v365, %v436
      %v498 = vadd.f32 %v366, %v436
      %v499 = vadd.f32 %v367, %v436
      %v500 = vadd.f32 %v368, %v436
      %v501 = vadd.f32 %v369, %v436
      %v502 = vadd.f32 %v370, %v436
      %v503 = vadd.f32 %v371, %v436
      %v504 = vadd.f32 %v372, %v436
      %v505 = vadd.f32 %v373, %v436
      %v506 = vadd.f32 %v374, %v436
      %v507 = vadd.f32 %v375, %v436
      %v508 = vadd.f32 %v376, %v436
      %v509 = vadd.f32 %v377, %v436
      %v510 = vadd.f32 %v378, %v436
      %v511 = vadd.f32 %v379, %v436
      %v512 = vadd.f32 %v380, %v436
      %v513 = vadd.f32 %v381, %v436
      %v514 = vadd.f32 %v382, %v436
      %v515 = vadd.f32 %v383, %v436
      %v516 = vadd.f32 %v384, %v436
      %v517 = vadd.f32 %v385, %v436
      %v518 = vadd.f32 %v386, %v436
      %v519 = vadd.f32 %v387, %v436
      %v520 = vadd.f32 %v388, %v436
      %v521 = vadd.f32 %v389, %v436
      %v522 = vadd.f32 %v390, %v436
      %v523 = vadd.f32 %v391, %v436
      %v524 = vadd.f32 %v392, %v436
      %v525 = vadd.f32 %v393, %v436
      %v526 = vadd.f32 %v394, %v436
      %v527 = vadd.f32 %v395, %v436
      %v528 = vadd.f32 %v396, %v436
      %v529 = vadd.f32 %v397, %v436
      %v530 = vadd.f32 %v398, %v436
      %v531 = vadd.f32 %v399, %v436
      %v532 = vadd.f32 %v400, %v436
      %v533 = vadd.f32 %v401, %v436
      %v534 = vadd.f32 %v402, %v436
      %v535 = vadd.f32 %v403, %v436
      %v536 = vadd.f32 %v404, %v436
      %v537 = vadd.f32 %v405, %v436
      %v538 = vadd.f32 %v406, %v436
      %v539 = vadd.f32 %v407, %v436
      %v540 = vadd.f32 %v408, %v436
      %v541 = vadd.f32 %v409, %v436
      %v542 = vadd.f32 %v410, %v436
      %v543 = vadd.f32 %v411, %v436
      %v544 = vadd.f32 %v412, %v436
      %v545 = vadd.f32 %v413, %v436
      %v546 = vadd.f32 %v414, %v436
      %v547 = vadd.f32 %v415, %v436
      %v548 = vadd.f32 %v416, %v436
      %v549 = vadd.f32 %v417, %v436
      %v550 = vadd.f32 %v418, %v436
      %v551 = vadd.f32 %v419, %v436
      %v552 = vadd.f32 %v420, %v436
      %v553 = vadd.f32 %v421, %v436
      %v554 = vadd.f32 %v422, %v436
      %v555 = vadd.f32 %v423, %v436
      %v556 = vadd.f32 %v424, %v436
      %v557 = vadd.f32 %v425, %v436
      %v558 = vadd.f32 %v426, %v436
      %v559 = vadd.f32 %v427, %v436
      %v560 = vadd.f32 %v428, %v436
      %v561 = vadd.f32 %v429, %v436
      %v562 = vadd.f32 %v430, %v436
      %v563 = vadd.f32 %v431, %v436
      %v564 = vadd.f32 %v432, %v436
      %v565 = vadd.f32 %v433, %v436
      %v566 = vmax.f32 %v438, 0.0
      %v567 = vmax.f32 %v439, 0.0
      %v568 = vmax.f32 %v440, 0.0
      %v569 = vmax.f32 %v441, 0.0
      %v570 = vmax.f32 %v442, 0.0
      %v571 = vmax.f32 %v443, 0.0
      %v572 = vmax.f32 %v444, 0.0
      %v573 = vmax.f32 %v445, 0.0
      %v574 = vmax.f32 %v446, 0.0
      %v575 = vmax.f32 %v447, 0.0
      %v576 = vmax.f32 %v448, 0.0
      %v577 = vmax.f32 %v449, 0.0
      %v578 = vmax.f32 %v450, 0.0
      %v579 = vmax.f32 %v451, 0.0
      %v580 = vmax.f32 %v452, 0.0
      %v581 = vmax.f32 %v453, 0.0
      %v582 = vmax.f32 %v454, 0.0
      %v583 = vmax.f32 %v455, 0.0
      %v584 = vmax.f32 %v456, 0.0
      %v585 = vmax.f32 %v457, 0.0
      %v586 = vmax.f32 %v458, 0.0
      %v587 = vmax.f32 %v459, 0.0
      %v588 = vmax.f32 %v460, 0.0
      %v589 = vmax.f32 %v461, 0.0
      %v590 = vmax.f32 %v462, 0.0
      %v591 = vmax.f32 %v463, 0.0
      %v592 = vmax.f32 %v464, 0.0
      %v593 = vmax.f32 %v465, 0.0
      %v594 = vmax.f32 %v466, 0.0
      %v595 = vmax.f32 %v467, 0.0
      %v596 = vmax.f32 %v468, 0.0
      %v597 = vmax.f32 %v469, 0.0
      %v598 = vmax.f32 %v470, 0.0
      %v599 = vmax.f32 %v471, 0.0
      %v600 = vmax.f32 %v472, 0.0
      %v601 = vmax.f32 %v473, 0.0
      %v602 = vmax.f32 %v474, 0.0
      %v603 = vmax.f32 %v475, 0.0
      %v604 = vmax.f32 %v476, 0.0
      %v605 = vmax.f32 %v477, 0.0
      %v606 = vmax.f32 %v478, 0.0
      %v607 = vmax.f32 %v479, 0.0
      %v608 = vmax.f32 %v480, 0.0
      %v609 = vmax.f32 %v481, 0.0
      %v610 = vmax.f32 %v482, 0.0
      %v611 = vmax.f32 %v483, 0.0
      %v612 = vmax.f32 %v484, 0.0
      %v613 = vmax.f32 %v485, 0.0
      %v614 = vmax.f32 %v486, 0.0
      %v615 = vmax.f32 %v487, 0.0
      %v616 = vmax.f32 %v488, 0.0
      %v617 = vmax.f32 %v489, 0.0
      %v618 = vmax.f32 %v490, 0.0
      %v619 = vmax.f32 %v491, 0.0
      %v620 = vmax.f32 %v492, 0.0
      %v621 = vmax.f32 %v493, 0.0
      %v622 = vmax.f32 %v494, 0.0
      %v623 = vmax.f32 %v495, 0.0
      %v624 = vmax.f32 %v496, 0.0
      %v625 = vmax.f32 %v497, 0.0
      %v626 = vmax.f32 %v498, 0.0
      %v627 = vmax.f32 %v499, 0.0
      %v628 = vmax.f32 %v500, 0.0
      %v629 = vmax.f32 %v501, 0.0
      %v630 = vmax.f32 %v502, 0.0
      %v631 = vmax.f32 %v503, 0.0
      %v632 = vmax.f32 %v504, 0.0
      %v633 = vmax.f32 %v505, 0.0
      %v634 = vmax.f32 %v506, 0.0
      %v635 = vmax.f32 %v507, 0.0
      %v636 = vmax.f32 %v508, 0.0
      %v637 = vmax.f32 %v509, 0.0
      %v638 = vmax.f32 %v510, 0.0
      %v639 = vmax.f32 %v511, 0.0
      %v640 = vmax.f32 %v512, 0.0
      %v641 = vmax.f32 %v513, 0.0
      %v642 = vmax.f32 %v514, 0.0
      %v643 = vmax.f32 %v515, 0.0
      %v644 = vmax.f32 %v516, 0.0
      %v645 = vmax.f32 %v517, 0.0
      %v646 = vmax.f32 %v518, 0.0
      %v647 = vmax.f32 %v519, 0.0
      %v648 = vmax.f32 %v520, 0.0
      %v649 = vmax.f32 %v521, 0.0
      %v650 = vmax.f32 %v522, 0.0
      %v651 = vmax.f32 %v523, 0.0
      %v652 = vmax.f32 %v524, 0.0
      %v653 = vmax.f32 %v525, 0.0
      %v654 = vmax.f32 %v526, 0.0
      %v655 = vmax.f32 %v527, 0.0
      %v656 = vmax.f32 %v528, 0.0
      %v657 = vmax.f32 %v529, 0.0
      %v658 = vmax.f32 %v530, 0.0
      %v659 = vmax.f32 %v531, 0.0
      %v660 = vmax.f32 %v532, 0.0
      %v661 = vmax.f32 %v533, 0.0
      %v662 = vmax.f32 %v534, 0.0
      %v663 = vmax.f32 %v535, 0.0
      %v664 = vmax.f32 %v536, 0.0
      %v665 = vmax.f32 %v537, 0.0
      %v666 = vmax.f32 %v538, 0.0
      %v667 = vmax.f32 %v539, 0.0
      %v668 = vmax.f32 %v540, 0.0
      %v669 = vmax.f32 %v541, 0.0
      %v670 = vmax.f32 %v542, 0.0
      %v671 = vmax.f32 %v543, 0.0
      %v672 = vmax.f32 %v544, 0.0
      %v673 = vmax.f32 %v545, 0.0
      %v674 = vmax.f32 %v546, 0.0
      %v675 = vmax.f32 %v547, 0.0
      %v676 = vmax.f32 %v548, 0.0
      %v677 = vmax.f32 %v549, 0.0
      %v678 = vmax.f32 %v550, 0.0
      %v679 = vmax.f32 %v551, 0.0
      %v680 = vmax.f32 %v552, 0.0
      %v681 = vmax.f32 %v553, 0.0
      %v682 = vmax.f32 %v554, 0.0
      %v683 = vmax.f32 %v555, 0.0
      %v684 = vmax.f32 %v556, 0.0
      %v685 = vmax.f32 %v557, 0.0
      %v686 = vmax.f32 %v558, 0.0
      %v687 = vmax.f32 %v559, 0.0
      %v688 = vmax.f32 %v560, 0.0
      %v689 = vmax.f32 %v561, 0.0
      %v690 = vmax.f32 %v562, 0.0
      %v691 = vmax.f32 %v563, 0.0
      %v692 = vmax.f32 %v564, 0.0
      %v693 = vmax.f32 %v565, 0.0
      %v694 = vpack.c.bf16 %v566, %v566
      %v695 = vpack.c.bf16 %v567, %v567
      %v696 = vpack.c.bf16 %v568, %v568
      %v697 = vpack.c.bf16 %v569, %v569
      %v698 = vpack.c.bf16 %v570, %v570
      %v699 = vpack.c.bf16 %v571, %v571
      %v700 = vpack.c.bf16 %v572, %v572
      %v701 = vpack.c.bf16 %v573, %v573
      %v702 = vpack.c.bf16 %v574, %v574
      %v703 = vpack.c.bf16 %v575, %v575
      %v704 = vpack.c.bf16 %v576, %v576
      %v705 = vpack.c.bf16 %v577, %v577
      %v706 = vpack.c.bf16 %v578, %v578
      %v707 = vpack.c.bf16 %v579, %v579
      %v708 = vpack.c.bf16 %v580, %v580
      %v709 = vpack.c.bf16 %v581, %v581
      %v710 = vpack.c.bf16 %v582, %v582
      %v711 = vpack.c.bf16 %v583, %v583
      %v712 = vpack.c.bf16 %v584, %v584
      %v713 = vpack.c.bf16 %v585, %v585
      %v714 = vpack.c.bf16 %v586, %v586
      %v715 = vpack.c.bf16 %v587, %v587
      %v716 = vpack.c.bf16 %v588, %v588
      %v717 = vpack.c.bf16 %v589, %v589
      %v718 = vpack.c.bf16 %v590, %v590
      %v719 = vpack.c.bf16 %v591, %v591
      %v720 = vpack.c.bf16 %v592, %v592
      %v721 = vpack.c.bf16 %v593, %v593
      %v722 = vpack.c.bf16 %v594, %v594
      %v723 = vpack.c.bf16 %v595, %v595
      %v724 = vpack.c.bf16 %v596, %v596
      %v725 = vpack.c.bf16 %v597, %v597
      %v726 = vpack.c.bf16 %v598, %v598
      %v727 = vpack.c.bf16 %v599, %v599
      %v728 = vpack.c.bf16 %v600, %v600
      %v729 = vpack.c.bf16 %v601, %v601
      %v730 = vpack.c.bf16 %v602, %v602
      %v731 = vpack.c.bf16 %v603, %v603
      %v732 = vpack.c.bf16 %v604, %v604
      %v733 = vpack.c.bf16 %v605, %v605
      %v734 = vpack.c.bf16 %v606, %v606
      %v735 = vpack.c.bf16 %v607, %v607
      %v736 = vpack.c.bf16 %v608, %v608
      %v737 = vpack.c.bf16 %v609, %v609
      %v738 = vpack.c.bf16 %v610, %v610
      %v739 = vpack.c.bf16 %v611, %v611
      %v740 = vpack.c.bf16 %v612, %v612
      %v741 = vpack.c.bf16 %v613, %v613
      %v742 = vpack.c.bf16 %v614, %v614
      %v743 = vpack.c.bf16 %v615, %v615
      %v744 = vpack.c.bf16 %v616, %v616
      %v745 = vpack.c.bf16 %v617, %v617
      %v746 = vpack.c.bf16 %v618, %v618
      %v747 = vpack.c.bf16 %v619, %v619
      %v748 = vpack.c.bf16 %v620, %v620
      %v749 = vpack.c.bf16 %v621, %v621
      %v750 = vpack.c.bf16 %v622, %v622
      %v751 = vpack.c.bf16 %v623, %v623
      %v752 = vpack.c.bf16 %v624, %v624
      %v753 = vpack.c.bf16 %v625, %v625
      %v754 = vpack.c.bf16 %v626, %v626
      %v755 = vpack.c.bf16 %v627, %v627
      %v756 = vpack.c.bf16 %v628, %v628
      %v757 = vpack.c.bf16 %v629, %v629
      %v758 = vpack.c.bf16 %v630, %v630
      %v759 = vpack.c.bf16 %v631, %v631
      %v760 = vpack.c.bf16 %v632, %v632
      %v761 = vpack.c.bf16 %v633, %v633
      %v762 = vpack.c.bf16 %v634, %v634
      %v763 = vpack.c.bf16 %v635, %v635
      %v764 = vpack.c.bf16 %v636, %v636
      %v765 = vpack.c.bf16 %v637, %v637
      %v766 = vpack.c.bf16 %v638, %v638
      %v767 = vpack.c.bf16 %v639, %v639
      %v768 = vpack.c.bf16 %v640, %v640
      %v769 = vpack.c.bf16 %v641, %v641
      %v770 = vpack.c.bf16 %v642, %v642
      %v771 = vpack.c.bf16 %v643, %v643
      %v772 = vpack.c.bf16 %v644, %v644
      %v773 = vpack.c.bf16 %v645, %v645
      %v774 = vpack.c.bf16 %v646, %v646
      %v775 = vpack.c.bf16 %v647, %v647
      %v776 = vpack.c.bf16 %v648, %v648
      %v777 = vpack.c.bf16 %v649, %v649
      %v778 = vpack.c.bf16 %v650, %v650
      %v779 = vpack.c.bf16 %v651, %v651
      %v780 = vpack.c.bf16 %v652, %v652
      %v781 = vpack.c.bf16 %v653, %v653
      %v782 = vpack.c.bf16 %v654, %v654
      %v783 = vpack.c.bf16 %v655, %v655
      %v784 = vpack.c.bf16 %v656, %v656
      %v785 = vpack.c.bf16 %v657, %v657
      %v786 = vpack.c.bf16 %v658, %v658
      %v787 = vpack.c.bf16 %v659, %v659
      %v788 = vpack.c.bf16 %v660, %v660
      %v789 = vpack.c.bf16 %v661, %v661
      %v790 = vpack.c.bf16 %v662, %v662
      %v791 = vpack.c.bf16 %v663, %v663
      %v792 = vpack.c.bf16 %v664, %v664
      %v793 = vpack.c.bf16 %v665, %v665
      %v794 = vpack.c.bf16 %v666, %v666
      %v795 = vpack.c.bf16 %v667, %v667
      %v796 = vpack.c.bf16 %v668, %v668
      %v797 = vpack.c.bf16 %v669, %v669
      %v798 = vpack.c.bf16 %v670, %v670
      %v799 = vpack.c.bf16 %v671, %v671
      %v800 = vpack.c.bf16 %v672, %v672
      %v801 = vpack.c.bf16 %v673, %v673
      %v802 = vpack.c.bf16 %v674, %v674
      %v803 = vpack.c.bf16 %v675, %v675
      %v804 = vpack.c.bf16 %v676, %v676
      %v805 = vpack.c.bf16 %v677, %v677
      %v806 = vpack.c.bf16 %v678, %v678
      %v807 = vpack.c.bf16 %v679, %v679
      %v808 = vpack.c.bf16 %v680, %v680
      %v809 = vpack.c.bf16 %v681, %v681
      %v810 = vpack.c.bf16 %v682, %v682
      %v811 = vpack.c.bf16 %v683, %v683
      %v812 = vpack.c.bf16 %v684, %v684
      %v813 = vpack.c.bf16 %v685, %v685
      %v814 = vpack.c.bf16 %v686, %v686
      %v815 = vpack.c.bf16 %v687, %v687
      %v816 = vpack.c.bf16 %v688, %v688
      %v817 = vpack.c.bf16 %v689, %v689
      %v818 = vpack.c.bf16 %v690, %v690
      %v819 = vpack.c.bf16 %v691, %v691
      %v820 = vpack.c.bf16 %v692, %v692
      %v821 = vpack.c.bf16 %v693, %v693
      %vm822 = vcmask 519168
      %823 = vst.msk [vmem:[%s172] sm:$0xf] %vm822, %v694
      %824 = vst.msk [vmem:[%s172 + $0x4] sm:$0xf] %vm822, %v695
      %825 = vst.msk [vmem:[%s172 + $0x8] sm:$0xf] %vm822, %v696
      %826 = vst.msk [vmem:[%s172 + $0xc] sm:$0xf] %vm822, %v697
      %827 = vst.msk [vmem:[%s172 + $0x10] sm:$0xf] %vm822, %v698
      %828 = vst.msk [vmem:[%s172 + $0x14] sm:$0xf] %vm822, %v699
      %829 = vst.msk [vmem:[%s172 + $0x18] sm:$0xf] %vm822, %v700
      %830 = vst.msk [vmem:[%s172 + $0x1c] sm:$0xf] %vm822, %v701
      %831 = vst.msk [vmem:[%s172 + $0x20] sm:$0xf] %vm822, %v702
      %832 = vst.msk [vmem:[%s172 + $0x24] sm:$0xf] %vm822, %v703
      %833 = vst.msk [vmem:[%s172 + $0x28] sm:$0xf] %vm822, %v704
      %834 = vst.msk [vmem:[%s172 + $0x2c] sm:$0xf] %vm822, %v705
      %835 = vst.msk [vmem:[%s172 + $0x30] sm:$0xf] %vm822, %v706
      %836 = vst.msk [vmem:[%s172 + $0x34] sm:$0xf] %vm822, %v707
      %837 = vst.msk [vmem:[%s172 + $0x38] sm:$0xf] %vm822, %v708
      %838 = vst.msk [vmem:[%s172 + $0x3c] sm:$0xf] %vm822, %v709
      %839 = vst.msk [vmem:[%s172 + $0x40] sm:$0xf] %vm822, %v710
      %840 = vst.msk [vmem:[%s172 + $0x44] sm:$0xf] %vm822, %v711
      %841 = vst.msk [vmem:[%s172 + $0x48] sm:$0xf] %vm822, %v712
      %842 = vst.msk [vmem:[%s172 + $0x4c] sm:$0xf] %vm822, %v713
      %843 = vst.msk [vmem:[%s172 + $0x50] sm:$0xf] %vm822, %v714
      %844 = vst.msk [vmem:[%s172 + $0x54] sm:$0xf] %vm822, %v715
      %845 = vst.msk [vmem:[%s172 + $0x58] sm:$0xf] %vm822, %v716
      %846 = vst.msk [vmem:[%s172 + $0x5c] sm:$0xf] %vm822, %v717
      %847 = vst.msk [vmem:[%s172 + $0x60] sm:$0xf] %vm822, %v718
      %848 = vst.msk [vmem:[%s172 + $0x64] sm:$0xf] %vm822, %v719
      %849 = vst.msk [vmem:[%s172 + $0x68] sm:$0xf] %vm822, %v720
      %850 = vst.msk [vmem:[%s172 + $0x6c] sm:$0xf] %vm822, %v721
      %851 = vst.msk [vmem:[%s172 + $0x70] sm:$0xf] %vm822, %v722
      %852 = vst.msk [vmem:[%s172 + $0x74] sm:$0xf] %vm822, %v723
      %853 = vst.msk [vmem:[%s172 + $0x78] sm:$0xf] %vm822, %v724
      %854 = vst.msk [vmem:[%s172 + $0x7c] sm:$0xf] %vm822, %v725
      %855 = vst.msk [vmem:[%s172 + $0x80] sm:$0xf] %vm822, %v726
      %856 = vst.msk [vmem:[%s172 + $0x84] sm:$0xf] %vm822, %v727
      %857 = vst.msk [vmem:[%s172 + $0x88] sm:$0xf] %vm822, %v728
      %858 = vst.msk [vmem:[%s172 + $0x8c] sm:$0xf] %vm822, %v729
      %859 = vst.msk [vmem:[%s172 + $0x90] sm:$0xf] %vm822, %v730
      %860 = vst.msk [vmem:[%s172 + $0x94] sm:$0xf] %vm822, %v731
      %861 = vst.msk [vmem:[%s172 + $0x98] sm:$0xf] %vm822, %v732
      %862 = vst.msk [vmem:[%s172 + $0x9c] sm:$0xf] %vm822, %v733
      %863 = vst.msk [vmem:[%s172 + $0xa0] sm:$0xf] %vm822, %v734
      %864 = vst.msk [vmem:[%s172 + $0xa4] sm:$0xf] %vm822, %v735
      %865 = vst.msk [vmem:[%s172 + $0xa8] sm:$0xf] %vm822, %v736
      %866 = vst.msk [vmem:[%s172 + $0xac] sm:$0xf] %vm822, %v737
      %867 = vst.msk [vmem:[%s172 + $0xb0] sm:$0xf] %vm822, %v738
      %868 = vst.msk [vmem:[%s172 + $0xb4] sm:$0xf] %vm822, %v739
      %869 = vst.msk [vmem:[%s172 + $0xb8] sm:$0xf] %vm822, %v740
      %870 = vst.msk [vmem:[%s172 + $0xbc] sm:$0xf] %vm822, %v741
      %871 = vst.msk [vmem:[%s172 + $0xc0] sm:$0xf] %vm822, %v742
      %872 = vst.msk [vmem:[%s172 + $0xc4] sm:$0xf] %vm822, %v743
      %873 = vst.msk [vmem:[%s172 + $0xc8] sm:$0xf] %vm822, %v744
      %874 = vst.msk [vmem:[%s172 + $0xcc] sm:$0xf] %vm822, %v745
      %875 = vst.msk [vmem:[%s172 + $0xd0] sm:$0xf] %vm822, %v746
      %876 = vst.msk [vmem:[%s172 + $0xd4] sm:$0xf] %vm822, %v747
      %877 = vst.msk [vmem:[%s172 + $0xd8] sm:$0xf] %vm822, %v748
      %878 = vst.msk [vmem:[%s172 + $0xdc] sm:$0xf] %vm822, %v749
      %879 = vst.msk [vmem:[%s172 + $0xe0] sm:$0xf] %vm822, %v750
      %880 = vst.msk [vmem:[%s172 + $0xe4] sm:$0xf] %vm822, %v751
      %881 = vst.msk [vmem:[%s172 + $0xe8] sm:$0xf] %vm822, %v752
      %882 = vst.msk [vmem:[%s172 + $0xec] sm:$0xf] %vm822, %v753
      %883 = vst.msk [vmem:[%s172 + $0xf0] sm:$0xf] %vm822, %v754
      %884 = vst.msk [vmem:[%s172 + $0xf4] sm:$0xf] %vm822, %v755
      %885 = vst.msk [vmem:[%s172 + $0xf8] sm:$0xf] %vm822, %v756
      %886 = vst.msk [vmem:[%s172 + $0xfc] sm:$0xf] %vm822, %v757
      %887 = vst.msk [vmem:[%s172 + $0x100] sm:$0xf] %vm822, %v758
      %888 = vst.msk [vmem:[%s172 + $0x104] sm:$0xf] %vm822, %v759
      %889 = vst.msk [vmem:[%s172 + $0x108] sm:$0xf] %vm822, %v760
      %890 = vst.msk [vmem:[%s172 + $0x10c] sm:$0xf] %vm822, %v761
      %891 = vst.msk [vmem:[%s172 + $0x110] sm:$0xf] %vm822, %v762
      %892 = vst.msk [vmem:[%s172 + $0x114] sm:$0xf] %vm822, %v763
      %893 = vst.msk [vmem:[%s172 + $0x118] sm:$0xf] %vm822, %v764
      %894 = vst.msk [vmem:[%s172 + $0x11c] sm:$0xf] %vm822, %v765
      %895 = vst.msk [vmem:[%s172 + $0x120] sm:$0xf] %vm822, %v766
      %896 = vst.msk [vmem:[%s172 + $0x124] sm:$0xf] %vm822, %v767
      %897 = vst.msk [vmem:[%s172 + $0x128] sm:$0xf] %vm822, %v768
      %898 = vst.msk [vmem:[%s172 + $0x12c] sm:$0xf] %vm822, %v769
      %899 = vst.msk [vmem:[%s172 + $0x130] sm:$0xf] %vm822, %v770
      %900 = vst.msk [vmem:[%s172 + $0x134] sm:$0xf] %vm822, %v771
      %901 = vst.msk [vmem:[%s172 + $0x138] sm:$0xf] %vm822, %v772
      %902 = vst.msk [vmem:[%s172 + $0x13c] sm:$0xf] %vm822, %v773
      %903 = vst.msk [vmem:[%s172 + $0x140] sm:$0xf] %vm822, %v774
      %904 = vst.msk [vmem:[%s172 + $0x144] sm:$0xf] %vm822, %v775
      %905 = vst.msk [vmem:[%s172 + $0x148] sm:$0xf] %vm822, %v776
      %906 = vst.msk [vmem:[%s172 + $0x14c] sm:$0xf] %vm822, %v777
      %907 = vst.msk [vmem:[%s172 + $0x150] sm:$0xf] %vm822, %v778
      %908 = vst.msk [vmem:[%s172 + $0x154] sm:$0xf] %vm822, %v779
      %909 = vst.msk [vmem:[%s172 + $0x158] sm:$0xf] %vm822, %v780
      %910 = vst.msk [vmem:[%s172 + $0x15c] sm:$0xf] %vm822, %v781
      %911 = vst.msk [vmem:[%s172 + $0x160] sm:$0xf] %vm822, %v782
      %912 = vst.msk [vmem:[%s172 + $0x164] sm:$0xf] %vm822, %v783
      %913 = vst.msk [vmem:[%s172 + $0x168] sm:$0xf] %vm822, %v784
      %914 = vst.msk [vmem:[%s172 + $0x16c] sm:$0xf] %vm822, %v785
      %915 = vst.msk [vmem:[%s172 + $0x170] sm:$0xf] %vm822, %v786
      %916 = vst.msk [vmem:[%s172 + $0x174] sm:$0xf] %vm822, %v787
      %917 = vst.msk [vmem:[%s172 + $0x178] sm:$0xf] %vm822, %v788
      %918 = vst.msk [vmem:[%s172 + $0x17c] sm:$0xf] %vm822, %v789
      %919 = vst.msk [vmem:[%s172 + $0x180] sm:$0xf] %vm822, %v790
      %920 = vst.msk [vmem:[%s172 + $0x184] sm:$0xf] %vm822, %v791
      %921 = vst.msk [vmem:[%s172 + $0x188] sm:$0xf] %vm822, %v792
      %922 = vst.msk [vmem:[%s172 + $0x18c] sm:$0xf] %vm822, %v793
      %923 = vst.msk [vmem:[%s172 + $0x190] sm:$0xf] %vm822, %v794
      %924 = vst.msk [vmem:[%s172 + $0x194] sm:$0xf] %vm822, %v795
      %925 = vst.msk [vmem:[%s172 + $0x198] sm:$0xf] %vm822, %v796
      %926 = vst.msk [vmem:[%s172 + $0x19c] sm:$0xf] %vm822, %v797
      %927 = vst.msk [vmem:[%s172 + $0x1a0] sm:$0xf] %vm822, %v798
      %928 = vst.msk [vmem:[%s172 + $0x1a4] sm:$0xf] %vm822, %v799
      %929 = vst.msk [vmem:[%s172 + $0x1a8] sm:$0xf] %vm822, %v800
      %930 = vst.msk [vmem:[%s172 + $0x1ac] sm:$0xf] %vm822, %v801
      %931 = vst.msk [vmem:[%s172 + $0x1b0] sm:$0xf] %vm822, %v802
      %932 = vst.msk [vmem:[%s172 + $0x1b4] sm:$0xf] %vm822, %v803
      %933 = vst.msk [vmem:[%s172 + $0x1b8] sm:$0xf] %vm822, %v804
      %934 = vst.msk [vmem:[%s172 + $0x1bc] sm:$0xf] %vm822, %v805
      %935 = vst.msk [vmem:[%s172 + $0x1c0] sm:$0xf] %vm822, %v806
      %936 = vst.msk [vmem:[%s172 + $0x1c4] sm:$0xf] %vm822, %v807
      %937 = vst.msk [vmem:[%s172 + $0x1c8] sm:$0xf] %vm822, %v808
      %938 = vst.msk [vmem:[%s172 + $0x1cc] sm:$0xf] %vm822, %v809
      %939 = vst.msk [vmem:[%s172 + $0x1d0] sm:$0xf] %vm822, %v810
      %940 = vst.msk [vmem:[%s172 + $0x1d4] sm:$0xf] %vm822, %v811
      %941 = vst.msk [vmem:[%s172 + $0x1d8] sm:$0xf] %vm822, %v812
      %942 = vst.msk [vmem:[%s172 + $0x1dc] sm:$0xf] %vm822, %v813
      %943 = vst.msk [vmem:[%s172 + $0x1e0] sm:$0xf] %vm822, %v814
      %944 = vst.msk [vmem:[%s172 + $0x1e4] sm:$0xf] %vm822, %v815
      %945 = vst.msk [vmem:[%s172 + $0x1e8] sm:$0xf] %vm822, %v816
      %946 = vst.msk [vmem:[%s172 + $0x1ec] sm:$0xf] %vm822, %v817
      %947 = vst.msk [vmem:[%s172 + $0x1f0] sm:$0xf] %vm822, %v818
      %948 = vst.msk [vmem:[%s172 + $0x1f4] sm:$0xf] %vm822, %v819
      %949 = vst.msk [vmem:[%s172 + $0x1f8] sm:$0xf] %vm822, %v820
      %950 = vst.msk [vmem:[%s172 + $0x1fc] sm:$0xf] %vm822, %v821
      %s951 = smul.u32 128, %s14
      %p952 = scmp.lt.s32.totalorder %s951, 255
      %s953 = scalar_select %p952, %s951, 255
      %s954 = smul.addr %s953, 4
      %s955 = scalar_lea.vmem %s3, %s954
      // Predicated region
      $region33: #{generator_forward.24} parent=31 // pred_check
        %p956 = pneg %p100
      $region34: #{generator_forward.24} parent=31 // pred_check_branch
        %958 = sbr.rel (%p956) target = $region36
      $region35: #{generator_forward.24} parent=31 // pred_region
        %s959 = smul.u32 128, %s14
      $region36: #{generator_forward.24} parent=31 // pred_fallthru
        _
    $region32: #{generator_forward.24} parent=5 // pred_fallthru
      _
    %p960 = scmp.le.s32.totalorder 2, %s9
    // Predicated region
    $region37: #{generator_forward.24} parent=5 // pred_check
      %p961 = pneg %p960
    $region38: #{generator_forward.24} parent=5 // pred_check_branch
      %963 = sbr.rel (%p961) target = $region40
    $region39: #{generator_forward.24} parent=5 // pred_region
      %s964 = ssub.s32 %s9, 2
      // Predicated region
      $region41: #{generator_forward.24} parent=39 // pred_check
        %p965 = pneg %p106
      $region42: #{generator_forward.24} parent=39 // pred_check_branch
        %967 = sbr.rel (%p965) target = $region44
      $region43: #{generator_forward.24} parent=39 // pred_region
        %s968 = smul.u32 128, %s15
        %p969 = scmp.lt.s32.totalorder %s968, 255
        %s970 = scalar_select %p969, %s968, 255
        %s971 = smul.addr %s970, 4
        %s972 = scalar_lea.vmem %s3, %s971
      $region44: #{generator_forward.24} parent=39 // pred_fallthru
        _
    $region40: #{generator_forward.24} parent=5 // pred_fallthru
      _
  $region6: #{generator_forward.24} parent=0 // loop_footer
    %s13 = sadd.s32 1, %s9
  $region7: #{generator_forward.24} parent=0 // loop_footer_branch
    %8 = sbr.rel target = $region3
  $region8: #{generator_forward.24} parent=0 // loop_exit
    _

// kernel: generator_forward.25
$region0: #{generator_forward.25}
  #allocation0 [shape = 'u32[]', space=smem, size = 0x4, offset = 0x4, fixed_abs, tag = 'smem constant byte address 0x4 - core index']
  #allocation1 [shape = 'u32[72,128]{1,0:T(1,128)}', space=vmem, size = 0x9000, scoped, tag = 'internal scratch']
  %s0 = inlined_call_operand.vmem [shape: bf16[4,2048,256], index: 0, kind: input, shape index: {}]
  %s1 = inlined_call_operand.vmem [shape: bf16[4,256,1], index: 1, kind: input, shape index: {}]
  %s2 = inlined_call_operand.vmem [shape: f32[4,2048,1], index: 2, kind: output, shape index: {}]
  %s3 = sld [smem:[#allocation0]]
  $region41: #{generator_forward.25} parent=0
    _
  %s5 = ssub.s32 1, %s3
  %s6 = scalar_select 0, %s5, %s3
  loop: start=0, step=1, limit=18
  $region2: #{generator_forward.25} parent=0 // loop_pre_header
    _
  $region3: #{generator_forward.25} parent=0 // loop_header
    %s8 = sphi 0, %s12
    %p9 = scmp.ge.s32.totalorder %s8, 18
    %s15 = sphi 0, %s34
    %s16 = sphi 0, %s30
    %s17 = sphi 0, %s26
    %s18 = sphi 0, %s15
    %s19 = sphi 0, %s16
    %s20 = sphi 0, %s17
    %s21 = sphi 0, %s18
    %s22 = sphi 0, %s19
    %s23 = sphi 0, %s20
    %s39 = sphi 0, %s41
    %s42 = sphi 0, %s39
    %s43 = sphi 0, %s42
    %s59 = sphi 0, %s43
    %s67 = sphi 0, %s69
    %s70 = sphi 0, %s67
    %s71 = sphi 0, %s70
    %s87 = sphi 0, %s71
    %s97 = sphi 0, %s99
    %s100 = sphi 0, %s97
    %s101 = sphi 0, %s100
    %s117 = sphi 0, %s101
  $region4: #{generator_forward.25} parent=0 // loop_header_branch
    %11 = sbr.rel (%p9) target = $region8
  $region5: #{generator_forward.25} parent=0 // loop_body
    %s13 = ssub.s32 %s8, 1
    %s14 = ssub.s32 %s8, 2
    %s24 = sadd.s32 1, %s17
    %p25 = scmp.ge.s32.totalorder %s24, 1
    %s26 = scalar_select %p25, 0, %s24
    %s27 = sadd.s32 1, %s16
    %s28 = scalar_select %p25, %s27, %s16
    %p29 = scmp.ge.s32.totalorder %s28, 4
    %s30 = scalar_select %p29, 0, %s28
    %s31 = sadd.s32 1, %s15
    %s32 = scalar_select %p29, %s31, %s15
    %p33 = scmp.ge.s32.totalorder %s32, 4
    %s34 = scalar_select %p33, 0, %s32
    %s35 = ssub.s32 %s15, %s34
    %s36 = ssub.s32 %s16, %s30
    %s37 = sor.u32 %s35, %s36
    %p38 = scmp.eq.s32.totalorder %s37, 0
    %s40 = sadd.s32 %s39, 1
    %s41 = scalar_select %p38, %s39, %s40
    %p44 = pneg %p38
    %p45 = scmp.eq.s32.totalorder %s8, 15
    %p46 = por %p44, %p45
    %p47 = scmp.ne.s32.totalorder %s39, %s42
    %p48 = scmp.eq.s32.totalorder %s8, 0
    %p49 = por %p47, %p48
    %p50 = scmp.ne.s32.totalorder %s39, %s42
    %p51 = scmp.eq.s32.totalorder %s13, 15
    %p52 = por %p50, %p51
    %p53 = scmp.ne.s32.totalorder %s42, %s43
    %p54 = scmp.eq.s32.totalorder %s13, 0
    %p55 = por %p53, %p54
    %p56 = scmp.ne.s32.totalorder %s42, %s43
    %p57 = scmp.eq.s32.totalorder %s14, 15
    %p58 = por %p56, %p57
    %p60 = scmp.ne.s32.totalorder %s43, %s59
    %p61 = scmp.eq.s32.totalorder %s14, 0
    %p62 = por %p60, %p61
    %s63 = ssub.s32 %s15, %s34
    %s64 = ssub.s32 %s17, %s26
    %s65 = sor.u32 %s63, %s64
    %p66 = scmp.eq.s32.totalorder %s65, 0
    %s68 = sadd.s32 %s67, 1
    %s69 = scalar_select %p66, %s67, %s68
    %p72 = pneg %p66
    %p73 = scmp.eq.s32.totalorder %s8, 15
    %p74 = por %p72, %p73
    %p75 = scmp.ne.s32.totalorder %s67, %s70
    %p76 = scmp.eq.s32.totalorder %s8, 0
    %p77 = por %p75, %p76
    %p78 = scmp.ne.s32.totalorder %s67, %s70
    %p79 = scmp.eq.s32.totalorder %s13, 15
    %p80 = por %p78, %p79
    %p81 = scmp.ne.s32.totalorder %s70, %s71
    %p82 = scmp.eq.s32.totalorder %s13, 0
    %p83 = por %p81, %p82
    %p84 = scmp.ne.s32.totalorder %s70, %s71
    %p85 = scmp.eq.s32.totalorder %s14, 15
    %p86 = por %p84, %p85
    %p88 = scmp.ne.s32.totalorder %s71, %s87
    %p89 = scmp.eq.s32.totalorder %s14, 0
    %p90 = por %p88, %p89
    %s91 = ssub.s32 %s15, %s34
    %s92 = ssub.s32 %s16, %s30
    %s93 = sor.u32 %s91, %s92
    %s94 = ssub.s32 %s17, %s26
    %s95 = sor.u32 %s93, %s94
    %p96 = scmp.eq.s32.totalorder %s95, 0
    %s98 = sadd.s32 %s97, 1
    %s99 = scalar_select %p96, %s97, %s98
    %p102 = pneg %p96
    %p103 = scmp.eq.s32.totalorder %s8, 15
    %p104 = por %p102, %p103
    %p105 = scmp.ne.s32.totalorder %s97, %s100
    %p106 = scmp.eq.s32.totalorder %s8, 0
    %p107 = por %p105, %p106
    %p108 = scmp.ne.s32.totalorder %s97, %s100
    %p109 = scmp.eq.s32.totalorder %s13, 15
    %p110 = por %p108, %p109
    %p111 = scmp.ne.s32.totalorder %s100, %s101
    %p112 = scmp.eq.s32.totalorder %s13, 0
    %p113 = por %p111, %p112
    %p114 = scmp.ne.s32.totalorder %s100, %s101
    %p115 = scmp.eq.s32.totalorder %s14, 15
    %p116 = por %p114, %p115
    %p118 = scmp.ne.s32.totalorder %s101, %s117
    %p119 = scmp.eq.s32.totalorder %s14, 0
    %p120 = por %p118, %p119
    %p121 = scmp.le.s32.totalorder 1, %s8
    %p122 = scmp.lt.s32.totalorder %s8, 17
    %p123 = pnand %p121, %p122
    %p124 = pneg %p123
    // Predicated region
    $region9: #{generator_forward.25} parent=5 // pred_check
      _
    $region10: #{generator_forward.25} parent=5 // pred_check_branch
      %126 = sbr.rel (%p123) target = $region12
    $region11: #{generator_forward.25} parent=5 // pred_region
      %s127 = ssub.s32 %s8, 1
    $region12: #{generator_forward.25} parent=5 // pred_fallthru
      _
    %p128 = scmp.lt.s32.totalorder %s8, 16
    // Predicated region
    $region13: #{generator_forward.25} parent=5 // pred_check
      %p129 = pneg %p128
    $region14: #{generator_forward.25} parent=5 // pred_check_branch
      %131 = sbr.rel (%p129) target = $region16
    $region15: #{generator_forward.25} parent=5 // pred_region
      // Predicated region
      $region17: #{generator_forward.25} parent=15 // pred_check
        %p132 = pneg %p49
      $region18: #{generator_forward.25} parent=15 // pred_check_branch
        %134 = sbr.rel (%p132) target = $region20
      $region19: #{generator_forward.25} parent=15 // pred_region
        %s135 = smul.u32 64, %s16
        %p136 = scmp.lt.s32.totalorder %s15, 3
        %s137 = scalar_select %p136, %s15, 3
        %p138 = scmp.lt.s32.totalorder %s135, 255
        %s139 = scalar_select %p138, %s135, 255
        %s140 = smul.addr %s139, 2
        %s141 = smul.addr %s137, 512
        %s142 = sadd.s32 %s140, %s141
        %s143 = smul.addr %s142, 4
        %s144 = scalar_lea.vmem %s0, %s143
        %s145 = smul.u32 64, %s16
      $region20: #{generator_forward.25} parent=15 // pred_fallthru
        _
      // Predicated region
      $region21: #{generator_forward.25} parent=15 // pred_check
        %p146 = pneg %p77
      $region22: #{generator_forward.25} parent=15 // pred_check_branch
        %148 = sbr.rel (%p146) target = $region24
      $region23: #{generator_forward.25} parent=15 // pred_region
        %p149 = scmp.lt.s32.totalorder %s15, 3
        %s150 = scalar_select %p149, %s15, 3
        %p151 = scmp.lt.s32.totalorder %s17, 0
        %s152 = scalar_select %p151, %s17, 0
        %s153 = smul.addr %s150, 32
        %s154 = sadd.s32 %s152, %s153
        %s155 = smul.addr %s154, 4
        %s156 = scalar_lea.vmem %s1, %s155
      $region24: #{generator_forward.25} parent=15 // pred_fallthru
        _
    $region16: #{generator_forward.25} parent=5 // pred_fallthru
      _
    %p157 = scmp.le.s32.totalorder 1, %s8
    %p158 = scmp.lt.s32.totalorder %s8, 17
    %p159 = pnand %p157, %p158
    %p160 = pneg %p159
    // Predicated region
    $region25: #{generator_forward.25} parent=5 // pred_check
      _
    $region26: #{generator_forward.25} parent=5 // pred_check_branch
      %162 = sbr.rel (%p159) target = $region28
    $region27: #{generator_forward.25} parent=5 // pred_region
      %s163 = ssub.s32 %s8, 1
      %s164 = smul.u32 64, %s19
      %p165 = scmp.lt.s32.totalorder %s18, 3
      %s166 = scalar_select %p165, %s18, 3
      %p167 = scmp.lt.s32.totalorder %s164, 255
      %s168 = scalar_select %p167, %s164, 255
      %s169 = smul.addr %s168, 2
      %s170 = smul.addr %s166, 512
      %s171 = sadd.s32 %s169, %s170
      %s172 = smul.addr %s171, 4
      %s173 = scalar_lea.vmem %s0, %s172
      %p174 = pneg %p55
      %p175 = pneg %p52
      %p176 = scmp.lt.s32.totalorder %s18, 3
      %s177 = scalar_select %p176, %s18, 3
      %p178 = scmp.lt.s32.totalorder %s20, 0
      %s179 = scalar_select %p178, %s20, 0
      %s180 = smul.addr %s177, 32
      %s181 = sadd.s32 %s179, %s180
      %s182 = smul.addr %s181, 4
      %s183 = scalar_lea.vmem %s1, %s182
      %p184 = pneg %p83
      %p185 = pneg %p80
      %p186 = pneg %p113
      %p187 = pneg %p110
      %s188 = smul.u32 64, %s19
      %p189 = scmp.lt.s32.totalorder %s18, 3
      %s190 = scalar_select %p189, %s18, 3
      %p191 = scmp.lt.s32.totalorder %s188, 255
      %s192 = scalar_select %p191, %s188, 255
      %p193 = scmp.lt.s32.totalorder %s20, 0
      %s194 = scalar_select %p193, %s20, 0
      %s195 = sadd.s32 %s194, %s192
      %s196 = smul.addr %s190, 256
      %s197 = sadd.s32 %s195, %s196
      %s198 = smul.addr %s197, 8
      %s199 = scalar_lea.vmem %s2, %s198
      %s200 = smul.u32 64, %s19
      %p201 = scmp.lt.s32.totalorder %s18, 3
      %s202 = scalar_select %p201, %s18, 3
      %p203 = scmp.lt.s32.totalorder %s200, 255
      %s204 = scalar_select %p203, %s200, 255
      %s205 = smul.addr %s204, 2
      %s206 = smul.addr %s202, 512
      %s207 = sadd.s32 %s205, %s206
      %s208 = smul.addr %s207, 4
      %s209 = scalar_lea.vmem %s0, %s208
      %s210 = smul.u32 64, %s19
      %p211 = scmp.lt.s32.totalorder %s18, 3
      %s212 = scalar_select %p211, %s18, 3
      %p213 = scmp.lt.s32.totalorder %s20, 0
      %s214 = scalar_select %p213, %s20, 0
      %s215 = smul.addr %s212, 32
      %s216 = sadd.s32 %s214, %s215
      %s217 = smul.addr %s216, 4
      %s218 = scalar_lea.vmem %s1, %s217
      %s219 = smul.u32 64, %s19
      %p220 = scmp.lt.s32.totalorder %s18, 3
      %s221 = scalar_select %p220, %s18, 3
      %p222 = scmp.lt.s32.totalorder %s219, 255
      %s223 = scalar_select %p222, %s219, 255
      %p224 = scmp.lt.s32.totalorder %s20, 0
      %s225 = scalar_select %p224, %s20, 0
      %s226 = sadd.s32 %s225, %s223
      %s227 = smul.addr %s221, 256
      %s228 = sadd.s32 %s226, %s227
      %s229 = smul.addr %s228, 8
      %s230 = scalar_lea.vmem %s2, %s229
      %s231 = smul.u32 64, %s19
      %v232 = vld [vmem:[%s209] sm:$0xff]
      %v233 = vld [vmem:[%s209 + $0x8] sm:$0xff]
      %v234 = vld [vmem:[%s209 + $0x10] sm:$0xff]
      %v235 = vld [vmem:[%s209 + $0x18] sm:$0xff]
      %v236 = vld [vmem:[%s209 + $0x20] sm:$0xff]
      %v237 = vld [vmem:[%s209 + $0x28] sm:$0xff]
      %v238 = vld [vmem:[%s209 + $0x30] sm:$0xff]
      %v239 = vld [vmem:[%s209 + $0x38] sm:$0xff]
      %v240 = vld [vmem:[%s209 + $0x40] sm:$0xff]
      %v241 = vld [vmem:[%s209 + $0x48] sm:$0xff]
      %v242 = vld [vmem:[%s209 + $0x50] sm:$0xff]
      %v243 = vld [vmem:[%s209 + $0x58] sm:$0xff]
      %v244 = vld [vmem:[%s209 + $0x60] sm:$0xff]
      %v245 = vld [vmem:[%s209 + $0x68] sm:$0xff]
      %v246 = vld [vmem:[%s209 + $0x70] sm:$0xff]
      %v247 = vld [vmem:[%s209 + $0x78] sm:$0xff]
      %v248 = vld [vmem:[%s209 + $0x80] sm:$0xff]
      %v249 = vld [vmem:[%s209 + $0x88] sm:$0xff]
      %v250 = vld [vmem:[%s209 + $0x90] sm:$0xff]
      %v251 = vld [vmem:[%s209 + $0x98] sm:$0xff]
      %v252 = vld [vmem:[%s209 + $0xa0] sm:$0xff]
      %v253 = vld [vmem:[%s209 + $0xa8] sm:$0xff]
      %v254 = vld [vmem:[%s209 + $0xb0] sm:$0xff]
      %v255 = vld [vmem:[%s209 + $0xb8] sm:$0xff]
      %v256 = vld [vmem:[%s209 + $0xc0] sm:$0xff]
      %v257 = vld [vmem:[%s209 + $0xc8] sm:$0xff]
      %v258 = vld [vmem:[%s209 + $0xd0] sm:$0xff]
      %v259 = vld [vmem:[%s209 + $0xd8] sm:$0xff]
      %v260 = vld [vmem:[%s209 + $0xe0] sm:$0xff]
      %v261 = vld [vmem:[%s209 + $0xe8] sm:$0xff]
      %v262 = vld [vmem:[%s209 + $0xf0] sm:$0xff]
      %v263 = vld [vmem:[%s209 + $0xf8] sm:$0xff]
      %v264 = vld [vmem:[%s209 + $0x100] sm:$0xff]
      %v265 = vld [vmem:[%s209 + $0x108] sm:$0xff]
      %v266 = vld [vmem:[%s209 + $0x110] sm:$0xff]
      %v267 = vld [vmem:[%s209 + $0x118] sm:$0xff]
      %v268 = vld [vmem:[%s209 + $0x120] sm:$0xff]
      %v269 = vld [vmem:[%s209 + $0x128] sm:$0xff]
      %v270 = vld [vmem:[%s209 + $0x130] sm:$0xff]
      %v271 = vld [vmem:[%s209 + $0x138] sm:$0xff]
      %v272 = vld [vmem:[%s209 + $0x140] sm:$0xff]
      %v273 = vld [vmem:[%s209 + $0x148] sm:$0xff]
      %v274 = vld [vmem:[%s209 + $0x150] sm:$0xff]
      %v275 = vld [vmem:[%s209 + $0x158] sm:$0xff]
      %v276 = vld [vmem:[%s209 + $0x160] sm:$0xff]
      %v277 = vld [vmem:[%s209 + $0x168] sm:$0xff]
      %v278 = vld [vmem:[%s209 + $0x170] sm:$0xff]
      %v279 = vld [vmem:[%s209 + $0x178] sm:$0xff]
      %v280 = vld [vmem:[%s209 + $0x180] sm:$0xff]
      %v281 = vld [vmem:[%s209 + $0x188] sm:$0xff]
      %v282 = vld [vmem:[%s209 + $0x190] sm:$0xff]
      %v283 = vld [vmem:[%s209 + $0x198] sm:$0xff]
      %v284 = vld [vmem:[%s209 + $0x1a0] sm:$0xff]
      %v285 = vld [vmem:[%s209 + $0x1a8] sm:$0xff]
      %v286 = vld [vmem:[%s209 + $0x1b0] sm:$0xff]
      %v287 = vld [vmem:[%s209 + $0x1b8] sm:$0xff]
      %v288 = vld [vmem:[%s209 + $0x1c0] sm:$0xff]
      %v289 = vld [vmem:[%s209 + $0x1c8] sm:$0xff]
      %v290 = vld [vmem:[%s209 + $0x1d0] sm:$0xff]
      %v291 = vld [vmem:[%s209 + $0x1d8] sm:$0xff]
      %v292 = vld [vmem:[%s209 + $0x1e0] sm:$0xff]
      %v293 = vld [vmem:[%s209 + $0x1e8] sm:$0xff]
      %v294 = vld [vmem:[%s209 + $0x1f0] sm:$0xff]
      %v295 = vld [vmem:[%s209 + $0x1f8] sm:$0xff]
      %v296 = vld [vmem:[%s218] sm:$0xf]
      %v297 = vld [vmem:[%s218 + $0x4] sm:$0xf]
      %v298 = vld [vmem:[%s218 + $0x8] sm:$0xf]
      %v299 = vld [vmem:[%s218 + $0xc] sm:$0xf]
      %v300 = vld [vmem:[%s218 + $0x10] sm:$0xf]
      %v301 = vld [vmem:[%s218 + $0x14] sm:$0xf]
      %v302 = vld [vmem:[%s218 + $0x18] sm:$0xf]
      %v303 = vld [vmem:[%s218 + $0x1c] sm:$0xf]
      %v304 = vld [vmem:[%s218 + $0x20] sm:$0xf]
      %v305 = vld [vmem:[%s218 + $0x24] sm:$0xf]
      %v306 = vld [vmem:[%s218 + $0x28] sm:$0xf]
      %v307 = vld [vmem:[%s218 + $0x2c] sm:$0xf]
      %v308 = vld [vmem:[%s218 + $0x30] sm:$0xf]
      %v309 = vld [vmem:[%s218 + $0x34] sm:$0xf]
      %v310 = vld [vmem:[%s218 + $0x38] sm:$0xf]
      %v311 = vld [vmem:[%s218 + $0x3c] sm:$0xf]
      %v312 = vld [vmem:[%s218 + $0x40] sm:$0xf]
      %v313 = vld [vmem:[%s218 + $0x44] sm:$0xf]
      %v314 = vld [vmem:[%s218 + $0x48] sm:$0xf]
      %v315 = vld [vmem:[%s218 + $0x4c] sm:$0xf]
      %v316 = vld [vmem:[%s218 + $0x50] sm:$0xf]
      %v317 = vld [vmem:[%s218 + $0x54] sm:$0xf]
      %v318 = vld [vmem:[%s218 + $0x58] sm:$0xf]
      %v319 = vld [vmem:[%s218 + $0x5c] sm:$0xf]
      %v320 = vld [vmem:[%s218 + $0x60] sm:$0xf]
      %v321 = vld [vmem:[%s218 + $0x64] sm:$0xf]
      %v322 = vld [vmem:[%s218 + $0x68] sm:$0xf]
      %v323 = vld [vmem:[%s218 + $0x6c] sm:$0xf]
      %v324 = vld [vmem:[%s218 + $0x70] sm:$0xf]
      %v325 = vld [vmem:[%s218 + $0x74] sm:$0xf]
      %v326 = vld [vmem:[%s218 + $0x78] sm:$0xf]
      %v327 = vld [vmem:[%s218 + $0x7c] sm:$0xf]
      %v392 = vunpack.c.l.b16 %v232
      %v393 = vunpack.c.h.b16 %v232
      %v394 = vunpack.c.l.b16 %v233
      %v395 = vunpack.c.h.b16 %v233
      %v396 = vunpack.c.l.b16 %v234
      %v397 = vunpack.c.h.b16 %v234
      %v398 = vunpack.c.l.b16 %v235
      %v399 = vunpack.c.h.b16 %v235
      %v400 = vunpack.c.l.b16 %v236
      %v401 = vunpack.c.h.b16 %v236
      %v402 = vunpack.c.l.b16 %v237
      %v403 = vunpack.c.h.b16 %v237
      %v404 = vunpack.c.l.b16 %v238
      %v405 = vunpack.c.h.b16 %v238
      %v406 = vunpack.c.l.b16 %v239
      %v407 = vunpack.c.h.b16 %v239
      %v408 = vunpack.c.l.b16 %v240
      %v409 = vunpack.c.h.b16 %v240
      %v410 = vunpack.c.l.b16 %v241
      %v411 = vunpack.c.h.b16 %v241
      %v412 = vunpack.c.l.b16 %v242
      %v413 = vunpack.c.h.b16 %v242
      %v414 = vunpack.c.l.b16 %v243
      %v415 = vunpack.c.h.b16 %v243
      %v416 = vunpack.c.l.b16 %v244
      %v417 = vunpack.c.h.b16 %v244
      %v418 = vunpack.c.l.b16 %v245
      %v419 = vunpack.c.h.b16 %v245
      %v420 = vunpack.c.l.b16 %v246
      %v421 = vunpack.c.h.b16 %v246
      %v422 = vunpack.c.l.b16 %v247
      %v423 = vunpack.c.h.b16 %v247
      %v424 = vunpack.c.l.b16 %v248
      %v425 = vunpack.c.h.b16 %v248
      %v426 = vunpack.c.l.b16 %v249
      %v427 = vunpack.c.h.b16 %v249
      %v428 = vunpack.c.l.b16 %v250
      %v429 = vunpack.c.h.b16 %v250
      %v430 = vunpack.c.l.b16 %v251
      %v431 = vunpack.c.h.b16 %v251
      %v432 = vunpack.c.l.b16 %v252
      %v433 = vunpack.c.h.b16 %v252
      %v434 = vunpack.c.l.b16 %v253
      %v435 = vunpack.c.h.b16 %v253
      %v436 = vunpack.c.l.b16 %v254
      %v437 = vunpack.c.h.b16 %v254
      %v438 = vunpack.c.l.b16 %v255
      %v439 = vunpack.c.h.b16 %v255
      %v440 = vunpack.c.l.b16 %v256
      %v441 = vunpack.c.h.b16 %v256
      %v442 = vunpack.c.l.b16 %v257
      %v443 = vunpack.c.h.b16 %v257
      %v444 = vunpack.c.l.b16 %v258
      %v445 = vunpack.c.h.b16 %v258
      %v446 = vunpack.c.l.b16 %v259
      %v447 = vunpack.c.h.b16 %v259
      %v448 = vunpack.c.l.b16 %v260
      %v449 = vunpack.c.h.b16 %v260
      %v450 = vunpack.c.l.b16 %v261
      %v451 = vunpack.c.h.b16 %v261
      %v452 = vunpack.c.l.b16 %v262
      %v453 = vunpack.c.h.b16 %v262
      %v454 = vunpack.c.l.b16 %v263
      %v455 = vunpack.c.h.b16 %v263
      %v456 = vunpack.c.l.b16 %v264
      %v457 = vunpack.c.h.b16 %v264
      %v458 = vunpack.c.l.b16 %v265
      %v459 = vunpack.c.h.b16 %v265
      %v460 = vunpack.c.l.b16 %v266
      %v461 = vunpack.c.h.b16 %v266
      %v462 = vunpack.c.l.b16 %v267
      %v463 = vunpack.c.h.b16 %v267
      %v464 = vunpack.c.l.b16 %v268
      %v465 = vunpack.c.h.b16 %v268
      %v466 = vunpack.c.l.b16 %v269
      %v467 = vunpack.c.h.b16 %v269
      %v468 = vunpack.c.l.b16 %v270
      %v469 = vunpack.c.h.b16 %v270
      %v470 = vunpack.c.l.b16 %v271
      %v471 = vunpack.c.h.b16 %v271
      %v472 = vunpack.c.l.b16 %v272
      %v473 = vunpack.c.h.b16 %v272
      %v474 = vunpack.c.l.b16 %v273
      %v475 = vunpack.c.h.b16 %v273
      %v476 = vunpack.c.l.b16 %v274
      %v477 = vunpack.c.h.b16 %v274
      %v478 = vunpack.c.l.b16 %v275
      %v479 = vunpack.c.h.b16 %v275
      %v480 = vunpack.c.l.b16 %v276
      %v481 = vunpack.c.h.b16 %v276
      %v482 = vunpack.c.l.b16 %v277
      %v483 = vunpack.c.h.b16 %v277
      %v484 = vunpack.c.l.b16 %v278
      %v485 = vunpack.c.h.b16 %v278
      %v486 = vunpack.c.l.b16 %v279
      %v487 = vunpack.c.h.b16 %v279
      %v488 = vunpack.c.l.b16 %v280
      %v489 = vunpack.c.h.b16 %v280
      %v490 = vunpack.c.l.b16 %v281
      %v491 = vunpack.c.h.b16 %v281
      %v492 = vunpack.c.l.b16 %v282
      %v493 = vunpack.c.h.b16 %v282
      %v494 = vunpack.c.l.b16 %v283
      %v495 = vunpack.c.h.b16 %v283
      %v496 = vunpack.c.l.b16 %v284
      %v497 = vunpack.c.h.b16 %v284
      %v498 = vunpack.c.l.b16 %v285
      %v499 = vunpack.c.h.b16 %v285
      %v500 = vunpack.c.l.b16 %v286
      %v501 = vunpack.c.h.b16 %v286
      %v502 = vunpack.c.l.b16 %v287
      %v503 = vunpack.c.h.b16 %v287
      %v504 = vunpack.c.l.b16 %v288
      %v505 = vunpack.c.h.b16 %v288
      %v506 = vunpack.c.l.b16 %v289
      %v507 = vunpack.c.h.b16 %v289
      %v508 = vunpack.c.l.b16 %v290
      %v509 = vunpack.c.h.b16 %v290
      %v510 = vunpack.c.l.b16 %v291
      %v511 = vunpack.c.h.b16 %v291
      %v512 = vunpack.c.l.b16 %v292
      %v513 = vunpack.c.h.b16 %v292
      %v514 = vunpack.c.l.b16 %v293
      %v515 = vunpack.c.h.b16 %v293
      %v516 = vunpack.c.l.b16 %v294
      %v517 = vunpack.c.h.b16 %v294
      %v518 = vunpack.c.l.b16 %v295
      %v519 = vunpack.c.h.b16 %v295
      %v520 = vpack.c.b16 %v394, %v392
      %v521 = vpack.c.b16 %v395, %v393
      %v522 = vpack.c.b16 %v398, %v396
      %v523 = vpack.c.b16 %v399, %v397
      %v524 = vpack.c.b16 %v402, %v400
      %v525 = vpack.c.b16 %v403, %v401
      %v526 = vpack.c.b16 %v406, %v404
      %v527 = vpack.c.b16 %v407, %v405
      %v528 = vpack.c.b16 %v410, %v408
      %v529 = vpack.c.b16 %v411, %v409
      %v530 = vpack.c.b16 %v414, %v412
      %v531 = vpack.c.b16 %v415, %v413
      %v532 = vpack.c.b16 %v418, %v416
      %v533 = vpack.c.b16 %v419, %v417
      %v534 = vpack.c.b16 %v422, %v420
      %v535 = vpack.c.b16 %v423, %v421
      %v536 = vpack.c.b16 %v426, %v424
      %v537 = vpack.c.b16 %v427, %v425
      %v538 = vpack.c.b16 %v430, %v428
      %v539 = vpack.c.b16 %v431, %v429
      %v540 = vpack.c.b16 %v434, %v432
      %v541 = vpack.c.b16 %v435, %v433
      %v542 = vpack.c.b16 %v438, %v436
      %v543 = vpack.c.b16 %v439, %v437
      %v544 = vpack.c.b16 %v442, %v440
      %v545 = vpack.c.b16 %v443, %v441
      %v546 = vpack.c.b16 %v446, %v444
      %v547 = vpack.c.b16 %v447, %v445
      %v548 = vpack.c.b16 %v450, %v448
      %v549 = vpack.c.b16 %v451, %v449
      %v550 = vpack.c.b16 %v454, %v452
      %v551 = vpack.c.b16 %v455, %v453
      %v552 = vpack.c.b16 %v458, %v456
      %v553 = vpack.c.b16 %v459, %v457
      %v554 = vpack.c.b16 %v462, %v460
      %v555 = vpack.c.b16 %v463, %v461
      %v556 = vpack.c.b16 %v466, %v464
      %v557 = vpack.c.b16 %v467, %v465
      %v558 = vpack.c.b16 %v470, %v468
      %v559 = vpack.c.b16 %v471, %v469
      %v560 = vpack.c.b16 %v474, %v472
      %v561 = vpack.c.b16 %v475, %v473
      %v562 = vpack.c.b16 %v478, %v476
      %v563 = vpack.c.b16 %v479, %v477
      %v564 = vpack.c.b16 %v482, %v480
      %v565 = vpack.c.b16 %v483, %v481
      %v566 = vpack.c.b16 %v486, %v484
      %v567 = vpack.c.b16 %v487, %v485
      %v568 = vpack.c.b16 %v490, %v488
      %v569 = vpack.c.b16 %v491, %v489
      %v570 = vpack.c.b16 %v494, %v492
      %v571 = vpack.c.b16 %v495, %v493
      %v572 = vpack.c.b16 %v498, %v496
      %v573 = vpack.c.b16 %v499, %v497
      %v574 = vpack.c.b16 %v502, %v500
      %v575 = vpack.c.b16 %v503, %v501
      %v576 = vpack.c.b16 %v506, %v504
      %v577 = vpack.c.b16 %v507, %v505
      %v578 = vpack.c.b16 %v510, %v508
      %v579 = vpack.c.b16 %v511, %v509
      %v580 = vpack.c.b16 %v514, %v512
      %v581 = vpack.c.b16 %v515, %v513
      %v582 = vpack.c.b16 %v518, %v516
      %v583 = vpack.c.b16 %v519, %v517
      %v680 = vunpack.c.l.b16 %v296
      %v681 = vunpack.c.l.b16 %v297
      %v682 = vunpack.c.l.b16 %v298
      %v683 = vunpack.c.l.b16 %v299
      %v684 = vunpack.c.l.b16 %v300
      %v685 = vunpack.c.l.b16 %v301
      %v686 = vunpack.c.l.b16 %v302
      %v687 = vunpack.c.l.b16 %v303
      %v688 = vunpack.c.l.b16 %v304
      %v689 = vunpack.c.l.b16 %v305
      %v690 = vunpack.c.l.b16 %v306
      %v691 = vunpack.c.l.b16 %v307
      %v692 = vunpack.c.l.b16 %v308
      %v693 = vunpack.c.l.b16 %v309
      %v694 = vunpack.c.l.b16 %v310
      %v695 = vunpack.c.l.b16 %v311
      %v696 = vunpack.c.l.b16 %v312
      %v697 = vunpack.c.l.b16 %v313
      %v698 = vunpack.c.l.b16 %v314
      %v699 = vunpack.c.l.b16 %v315
      %v700 = vunpack.c.l.b16 %v316
      %v701 = vunpack.c.l.b16 %v317
      %v702 = vunpack.c.l.b16 %v318
      %v703 = vunpack.c.l.b16 %v319
      %v704 = vunpack.c.l.b16 %v320
      %v705 = vunpack.c.l.b16 %v321
      %v706 = vunpack.c.l.b16 %v322
      %v707 = vunpack.c.l.b16 %v323
      %v708 = vunpack.c.l.b16 %v324
      %v709 = vunpack.c.l.b16 %v325
      %v710 = vunpack.c.l.b16 %v326
      %v711 = vunpack.c.l.b16 %v327
      %v712 = vpack.c.b16 %v681, %v680
      %v713 = vpack.c.b16 %v683, %v682
      %v714 = vpack.c.b16 %v685, %v684
      %v715 = vpack.c.b16 %v687, %v686
      %v716 = vpack.c.b16 %v689, %v688
      %v717 = vpack.c.b16 %v691, %v690
      %v718 = vpack.c.b16 %v693, %v692
      %v719 = vpack.c.b16 %v695, %v694
      %v720 = vpack.c.b16 %v697, %v696
      %v721 = vpack.c.b16 %v699, %v698
      %v722 = vpack.c.b16 %v701, %v700
      %v723 = vpack.c.b16 %v703, %v702
      %v724 = vpack.c.b16 %v705, %v704
      %v725 = vpack.c.b16 %v707, %v706
      %v726 = vpack.c.b16 %v709, %v708
      %v727 = vpack.c.b16 %v711, %v710
      %744 = vmatpush.bf16.msra.mxu0 %v719
      %745 = vmatpush.bf16.msra.mxu0 %v718
      %746 = vmatpush.bf16.msra.mxu0 %v717
      %747 = vmatpush.bf16.msra.mxu0 %v716
      %748 = vmatpush.bf16.msra.mxu0 %v715
      %749 = vmatpush.bf16.msra.mxu0 %v714
      %750 = vmatpush.bf16.msra.mxu0 %v713
      %751 = vmatpush.bf16.msra.mxu0 %v712
      %752 = vmatmul.bf16.gmra.mxu0 %v520
      %v753 = vpop.f32.mrf.mxu0
      %v754 = vadd.f32 0.0, %v753
      %v755 = vpop.f32.mrf.mxu0
      %v756 = vadd.f32 0.0, %v755
      %757 = vmatmul.bf16.gmra.mxu0 %v522
      %v758 = vpop.f32.mrf.mxu0
      %v759 = vadd.f32 0.0, %v758
      %v760 = vpop.f32.mrf.mxu0
      %v761 = vadd.f32 0.0, %v760
      %762 = vmatmul.bf16.gmra.mxu0 %v524
      %v763 = vpop.f32.mrf.mxu0
      %v764 = vadd.f32 0.0, %v763
      %v765 = vpop.f32.mrf.mxu0
      %v766 = vadd.f32 0.0, %v765
      %767 = vmatmul.bf16.gmra.mxu0 %v526
      %v768 = vpop.f32.mrf.mxu0
      %v769 = vadd.f32 0.0, %v768
      %v770 = vpop.f32.mrf.mxu0
      %v771 = vadd.f32 0.0, %v770
      %772 = vmatmul.bf16.gmra.mxu0 %v528
      %v773 = vpop.f32.mrf.mxu0
      %v774 = vadd.f32 0.0, %v773
      %v775 = vpop.f32.mrf.mxu0
      %v776 = vadd.f32 0.0, %v775
      %777 = vmatmul.bf16.gmra.mxu0 %v530
      %v778 = vpop.f32.mrf.mxu0
      %v779 = vadd.f32 0.0, %v778
      %v780 = vpop.f32.mrf.mxu0
      %v781 = vadd.f32 0.0, %v780
      %782 = vmatmul.bf16.gmra.mxu0 %v532
      %v783 = vpop.f32.mrf.mxu0
      %v784 = vadd.f32 0.0, %v783
      %v785 = vpop.f32.mrf.mxu0
      %v786 = vadd.f32 0.0, %v785
      %787 = vmatmul.bf16.gmra.mxu0 %v534
      %v788 = vpop.f32.mrf.mxu0
      %v789 = vadd.f32 0.0, %v788
      %v790 = vpop.f32.mrf.mxu0
      %v791 = vadd.f32 0.0, %v790
      %792 = vmatmul.bf16.gmra.mxu0 %v536
      %v793 = vpop.f32.mrf.mxu0
      %v794 = vadd.f32 0.0, %v793
      %v795 = vpop.f32.mrf.mxu0
      %v796 = vadd.f32 0.0, %v795
      %797 = vmatmul.bf16.gmra.mxu0 %v538
      %v798 = vpop.f32.mrf.mxu0
      %v799 = vadd.f32 0.0, %v798
      %v800 = vpop.f32.mrf.mxu0
      %v801 = vadd.f32 0.0, %v800
      %802 = vmatmul.bf16.gmra.mxu0 %v540
      %v803 = vpop.f32.mrf.mxu0
      %v804 = vadd.f32 0.0, %v803
      %v805 = vpop.f32.mrf.mxu0
      %v806 = vadd.f32 0.0, %v805
      %807 = vmatmul.bf16.gmra.mxu0 %v542
      %v808 = vpop.f32.mrf.mxu0
      %v809 = vadd.f32 0.0, %v808
      %v810 = vpop.f32.mrf.mxu0
      %v811 = vadd.f32 0.0, %v810
      %812 = vmatmul.bf16.gmra.mxu0 %v544
      %v813 = vpop.f32.mrf.mxu0
      %v814 = vadd.f32 0.0, %v813
      %v815 = vpop.f32.mrf.mxu0
      %v816 = vadd.f32 0.0, %v815
      %817 = vmatmul.bf16.gmra.mxu0 %v546
      %v818 = vpop.f32.mrf.mxu0
      %v819 = vadd.f32 0.0, %v818
      %v820 = vpop.f32.mrf.mxu0
      %v821 = vadd.f32 0.0, %v820
      %822 = vmatmul.bf16.gmra.mxu0 %v548
      %v823 = vpop.f32.mrf.mxu0
      %v824 = vadd.f32 0.0, %v823
      %v825 = vpop.f32.mrf.mxu0
      %v826 = vadd.f32 0.0, %v825
      %827 = vmatmul.bf16.gmra.mxu0 %v550
      %v828 = vpop.f32.mrf.mxu0
      %v829 = vadd.f32 0.0, %v828
      %v830 = vpop.f32.mrf.mxu0
      %v831 = vadd.f32 0.0, %v830
      %832 = vmatmul.bf16.gmra.mxu0 %v552
      %v833 = vpop.f32.mrf.mxu0
      %v834 = vadd.f32 0.0, %v833
      %v835 = vpop.f32.mrf.mxu0
      %v836 = vadd.f32 0.0, %v835
      %837 = vmatmul.bf16.gmra.mxu0 %v554
      %v838 = vpop.f32.mrf.mxu0
      %v839 = vadd.f32 0.0, %v838
      %v840 = vpop.f32.mrf.mxu0
      %v841 = vadd.f32 0.0, %v840
      %842 = vmatmul.bf16.gmra.mxu0 %v556
      %v843 = vpop.f32.mrf.mxu0
      %v844 = vadd.f32 0.0, %v843
      %v845 = vpop.f32.mrf.mxu0
      %v846 = vadd.f32 0.0, %v845
      %847 = vmatmul.bf16.gmra.mxu0 %v558
      %v848 = vpop.f32.mrf.mxu0
      %v849 = vadd.f32 0.0, %v848
      %v850 = vpop.f32.mrf.mxu0
      %v851 = vadd.f32 0.0, %v850
      %852 = vmatmul.bf16.gmra.mxu0 %v560
      %v853 = vpop.f32.mrf.mxu0
      %v854 = vadd.f32 0.0, %v853
      %v855 = vpop.f32.mrf.mxu0
      %v856 = vadd.f32 0.0, %v855
      %857 = vmatmul.bf16.gmra.mxu0 %v562
      %v858 = vpop.f32.mrf.mxu0
      %v859 = vadd.f32 0.0, %v858
      %v860 = vpop.f32.mrf.mxu0
      %v861 = vadd.f32 0.0, %v860
      %862 = vmatmul.bf16.gmra.mxu0 %v564
      %v863 = vpop.f32.mrf.mxu0
      %v864 = vadd.f32 0.0, %v863
      %v865 = vpop.f32.mrf.mxu0
      %v866 = vadd.f32 0.0, %v865
      %867 = vmatmul.bf16.gmra.mxu0 %v566
      %v868 = vpop.f32.mrf.mxu0
      %v869 = vadd.f32 0.0, %v868
      %v870 = vpop.f32.mrf.mxu0
      %v871 = vadd.f32 0.0, %v870
      %872 = vmatmul.bf16.gmra.mxu0 %v568
      %v873 = vpop.f32.mrf.mxu0
      %v874 = vadd.f32 0.0, %v873
      %v875 = vpop.f32.mrf.mxu0
      %v876 = vadd.f32 0.0, %v875
      %877 = vmatmul.bf16.gmra.mxu0 %v570
      %v878 = vpop.f32.mrf.mxu0
      %v879 = vadd.f32 0.0, %v878
      %v880 = vpop.f32.mrf.mxu0
      %v881 = vadd.f32 0.0, %v880
      %882 = vmatmul.bf16.gmra.mxu0 %v572
      %v883 = vpop.f32.mrf.mxu0
      %v884 = vadd.f32 0.0, %v883
      %v885 = vpop.f32.mrf.mxu0
      %v886 = vadd.f32 0.0, %v885
      %887 = vmatmul.bf16.gmra.mxu0 %v574
      %v888 = vpop.f32.mrf.mxu0
      %v889 = vadd.f32 0.0, %v888
      %v890 = vpop.f32.mrf.mxu0
      %v891 = vadd.f32 0.0, %v890
      %892 = vmatmul.bf16.gmra.mxu0 %v576
      %v893 = vpop.f32.mrf.mxu0
      %v894 = vadd.f32 0.0, %v893
      %v895 = vpop.f32.mrf.mxu0
      %v896 = vadd.f32 0.0, %v895
      %897 = vmatmul.bf16.gmra.mxu0 %v578
      %v898 = vpop.f32.mrf.mxu0
      %v899 = vadd.f32 0.0, %v898
      %v900 = vpop.f32.mrf.mxu0
      %v901 = vadd.f32 0.0, %v900
      %902 = vmatmul.bf16.gmra.mxu0 %v580
      %v903 = vpop.f32.mrf.mxu0
      %v904 = vadd.f32 0.0, %v903
      %v905 = vpop.f32.mrf.mxu0
      %v906 = vadd.f32 0.0, %v905
      %907 = vmatmul.bf16.gmra.mxu0 %v582
      %v908 = vpop.f32.mrf.mxu0
      %v909 = vadd.f32 0.0, %v908
      %v910 = vpop.f32.mrf.mxu0
      %v911 = vadd.f32 0.0, %v910
      %912 = vdwg.mxu0
      %913 = vmatpush.bf16.msra.mxu0 %v727
      %914 = vmatpush.bf16.msra.mxu0 %v726
      %915 = vmatpush.bf16.msra.mxu0 %v725
      %916 = vmatpush.bf16.msra.mxu0 %v724
      %917 = vmatpush.bf16.msra.mxu0 %v723
      %918 = vmatpush.bf16.msra.mxu0 %v722
      %919 = vmatpush.bf16.msra.mxu0 %v721
      %920 = vmatpush.bf16.msra.mxu0 %v720
      %921 = vmatmul.bf16.gmra.mxu0 %v521
      %v922 = vpop.f32.mrf.mxu0
      %v923 = vadd.f32 %v754, %v922
      %v924 = vpop.f32.mrf.mxu0
      %v925 = vadd.f32 %v756, %v924
      %926 = vmatmul.bf16.gmra.mxu0 %v523
      %v927 = vpop.f32.mrf.mxu0
      %v928 = vadd.f32 %v759, %v927
      %v929 = vpop.f32.mrf.mxu0
      %v930 = vadd.f32 %v761, %v929
      %931 = vmatmul.bf16.gmra.mxu0 %v525
      %v932 = vpop.f32.mrf.mxu0
      %v933 = vadd.f32 %v764, %v932
      %v934 = vpop.f32.mrf.mxu0
      %v935 = vadd.f32 %v766, %v934
      %936 = vmatmul.bf16.gmra.mxu0 %v527
      %v937 = vpop.f32.mrf.mxu0
      %v938 = vadd.f32 %v769, %v937
      %v939 = vpop.f32.mrf.mxu0
      %v940 = vadd.f32 %v771, %v939
      %941 = vmatmul.bf16.gmra.mxu0 %v529
      %v942 = vpop.f32.mrf.mxu0
      %v943 = vadd.f32 %v774, %v942
      %v944 = vpop.f32.mrf.mxu0
      %v945 = vadd.f32 %v776, %v944
      %946 = vmatmul.bf16.gmra.mxu0 %v531
      %v947 = vpop.f32.mrf.mxu0
      %v948 = vadd.f32 %v779, %v947
      %v949 = vpop.f32.mrf.mxu0
      %v950 = vadd.f32 %v781, %v949
      %951 = vmatmul.bf16.gmra.mxu0 %v533
      %v952 = vpop.f32.mrf.mxu0
      %v953 = vadd.f32 %v784, %v952
      %v954 = vpop.f32.mrf.mxu0
      %v955 = vadd.f32 %v786, %v954
      %956 = vmatmul.bf16.gmra.mxu0 %v535
      %v957 = vpop.f32.mrf.mxu0
      %v958 = vadd.f32 %v789, %v957
      %v959 = vpop.f32.mrf.mxu0
      %v960 = vadd.f32 %v791, %v959
      %961 = vmatmul.bf16.gmra.mxu0 %v537
      %v962 = vpop.f32.mrf.mxu0
      %v963 = vadd.f32 %v794, %v962
      %v964 = vpop.f32.mrf.mxu0
      %v965 = vadd.f32 %v796, %v964
      %966 = vmatmul.bf16.gmra.mxu0 %v539
      %v967 = vpop.f32.mrf.mxu0
      %v968 = vadd.f32 %v799, %v967
      %v969 = vpop.f32.mrf.mxu0
      %v970 = vadd.f32 %v801, %v969
      %971 = vmatmul.bf16.gmra.mxu0 %v541
      %v972 = vpop.f32.mrf.mxu0
      %v973 = vadd.f32 %v804, %v972
      %v974 = vpop.f32.mrf.mxu0
      %v975 = vadd.f32 %v806, %v974
      %976 = vmatmul.bf16.gmra.mxu0 %v543
      %v977 = vpop.f32.mrf.mxu0
      %v978 = vadd.f32 %v809, %v977
      %v979 = vpop.f32.mrf.mxu0
      %v980 = vadd.f32 %v811, %v979
      %981 = vmatmul.bf16.gmra.mxu0 %v545
      %v982 = vpop.f32.mrf.mxu0
      %v983 = vadd.f32 %v814, %v982
      %v984 = vpop.f32.mrf.mxu0
      %v985 = vadd.f32 %v816, %v984
      %986 = vmatmul.bf16.gmra.mxu0 %v547
      %v987 = vpop.f32.mrf.mxu0
      %v988 = vadd.f32 %v819, %v987
      %v989 = vpop.f32.mrf.mxu0
      %v990 = vadd.f32 %v821, %v989
      %991 = vmatmul.bf16.gmra.mxu0 %v549
      %v992 = vpop.f32.mrf.mxu0
      %v993 = vadd.f32 %v824, %v992
      %v994 = vpop.f32.mrf.mxu0
      %v995 = vadd.f32 %v826, %v994
      %996 = vmatmul.bf16.gmra.mxu0 %v551
      %v997 = vpop.f32.mrf.mxu0
      %v998 = vadd.f32 %v829, %v997
      %v999 = vpop.f32.mrf.mxu0
      %v1000 = vadd.f32 %v831, %v999
      %1001 = vmatmul.bf16.gmra.mxu0 %v553
      %v1002 = vpop.f32.mrf.mxu0
      %v1003 = vadd.f32 %v834, %v1002
      %v1004 = vpop.f32.mrf.mxu0
      %v1005 = vadd.f32 %v836, %v1004
      %1006 = vmatmul.bf16.gmra.mxu0 %v555
      %v1007 = vpop.f32.mrf.mxu0
      %v1008 = vadd.f32 %v839, %v1007
      %v1009 = vpop.f32.mrf.mxu0
      %v1010 = vadd.f32 %v841, %v1009
      %1011 = vmatmul.bf16.gmra.mxu0 %v557
      %v1012 = vpop.f32.mrf.mxu0
      %v1013 = vadd.f32 %v844, %v1012
      %v1014 = vpop.f32.mrf.mxu0
      %v1015 = vadd.f32 %v846, %v1014
      %1016 = vmatmul.bf16.gmra.mxu0 %v559
      %v1017 = vpop.f32.mrf.mxu0
      %v1018 = vadd.f32 %v849, %v1017
      %v1019 = vpop.f32.mrf.mxu0
      %v1020 = vadd.f32 %v851, %v1019
      %1021 = vmatmul.bf16.gmra.mxu0 %v561
      %v1022 = vpop.f32.mrf.mxu0
      %v1023 = vadd.f32 %v854, %v1022
      %v1024 = vpop.f32.mrf.mxu0
      %v1025 = vadd.f32 %v856, %v1024
      %1026 = vmatmul.bf16.gmra.mxu0 %v563
      %v1027 = vpop.f32.mrf.mxu0
      %v1028 = vadd.f32 %v859, %v1027
      %v1029 = vpop.f32.mrf.mxu0
      %v1030 = vadd.f32 %v861, %v1029
      %1031 = vmatmul.bf16.gmra.mxu0 %v565
      %v1032 = vpop.f32.mrf.mxu0
      %v1033 = vadd.f32 %v864, %v1032
      %v1034 = vpop.f32.mrf.mxu0
      %v1035 = vadd.f32 %v866, %v1034
      %1036 = vmatmul.bf16.gmra.mxu0 %v567
      %v1037 = vpop.f32.mrf.mxu0
      %v1038 = vadd.f32 %v869, %v1037
      %v1039 = vpop.f32.mrf.mxu0
      %v1040 = vadd.f32 %v871, %v1039
      %1041 = vmatmul.bf16.gmra.mxu0 %v569
      %v1042 = vpop.f32.mrf.mxu0
      %v1043 = vadd.f32 %v874, %v1042
      %v1044 = vpop.f32.mrf.mxu0
      %v1045 = vadd.f32 %v876, %v1044
      %1046 = vmatmul.bf16.gmra.mxu0 %v571
      %v1047 = vpop.f32.mrf.mxu0
      %v1048 = vadd.f32 %v879, %v1047
      %v1049 = vpop.f32.mrf.mxu0
      %v1050 = vadd.f32 %v881, %v1049
      %1051 = vmatmul.bf16.gmra.mxu0 %v573
      %v1052 = vpop.f32.mrf.mxu0
      %v1053 = vadd.f32 %v884, %v1052
      %v1054 = vpop.f32.mrf.mxu0
      %v1055 = vadd.f32 %v886, %v1054
      %1056 = vmatmul.bf16.gmra.mxu0 %v575
      %v1057 = vpop.f32.mrf.mxu0
      %v1058 = vadd.f32 %v889, %v1057
      %v1059 = vpop.f32.mrf.mxu0
      %v1060 = vadd.f32 %v891, %v1059
      %1061 = vmatmul.bf16.gmra.mxu0 %v577
      %v1062 = vpop.f32.mrf.mxu0
      %v1063 = vadd.f32 %v894, %v1062
      %v1064 = vpop.f32.mrf.mxu0
      %v1065 = vadd.f32 %v896, %v1064
      %1066 = vmatmul.bf16.gmra.mxu0 %v579
      %v1067 = vpop.f32.mrf.mxu0
      %v1068 = vadd.f32 %v899, %v1067
      %v1069 = vpop.f32.mrf.mxu0
      %v1070 = vadd.f32 %v901, %v1069
      %1071 = vmatmul.bf16.gmra.mxu0 %v581
      %v1072 = vpop.f32.mrf.mxu0
      %v1073 = vadd.f32 %v904, %v1072
      %v1074 = vpop.f32.mrf.mxu0
      %v1075 = vadd.f32 %v906, %v1074
      %1076 = vmatmul.bf16.gmra.mxu0 %v583
      %v1077 = vpop.f32.mrf.mxu0
      %v1078 = vadd.f32 %v909, %v1077
      %v1079 = vpop.f32.mrf.mxu0
      %v1080 = vadd.f32 %v911, %v1079
      %1081 = vdwg.mxu0
      %v1082 = vtanh.pop %v923
      %v1083 = vtanh.pop %v925
      %v1084 = vtanh.pop %v928
      %v1085 = vtanh.pop %v930
      %v1086 = vtanh.pop %v933
      %v1087 = vtanh.pop %v935
      %v1088 = vtanh.pop %v938
      %v1089 = vtanh.pop %v940
      %v1090 = vtanh.pop %v943
      %v1091 = vtanh.pop %v945
      %v1092 = vtanh.pop %v948
      %v1093 = vtanh.pop %v950
      %v1094 = vtanh.pop %v953
      %v1095 = vtanh.pop %v955
      %v1096 = vtanh.pop %v958
      %v1097 = vtanh.pop %v960
      %v1098 = vtanh.pop %v963
      %v1099 = vtanh.pop %v965
      %v1100 = vtanh.pop %v968
      %v1101 = vtanh.pop %v970
      %v1102 = vtanh.pop %v973
      %v1103 = vtanh.pop %v975
      %v1104 = vtanh.pop %v978
      %v1105 = vtanh.pop %v980
      %v1106 = vtanh.pop %v983
      %v1107 = vtanh.pop %v985
      %v1108 = vtanh.pop %v988
      %v1109 = vtanh.pop %v990
      %v1110 = vtanh.pop %v993
      %v1111 = vtanh.pop %v995
      %v1112 = vtanh.pop %v998
      %v1113 = vtanh.pop %v1000
      %v1114 = vtanh.pop %v1003
      %v1115 = vtanh.pop %v1005
      %v1116 = vtanh.pop %v1008
      %v1117 = vtanh.pop %v1010
      %v1118 = vtanh.pop %v1013
      %v1119 = vtanh.pop %v1015
      %v1120 = vtanh.pop %v1018
      %v1121 = vtanh.pop %v1020
      %v1122 = vtanh.pop %v1023
      %v1123 = vtanh.pop %v1025
      %v1124 = vtanh.pop %v1028
      %v1125 = vtanh.pop %v1030
      %v1126 = vtanh.pop %v1033
      %v1127 = vtanh.pop %v1035
      %v1128 = vtanh.pop %v1038
      %v1129 = vtanh.pop %v1040
      %v1130 = vtanh.pop %v1043
      %v1131 = vtanh.pop %v1045
      %v1132 = vtanh.pop %v1048
      %v1133 = vtanh.pop %v1050
      %v1134 = vtanh.pop %v1053
      %v1135 = vtanh.pop %v1055
      %v1136 = vtanh.pop %v1058
      %v1137 = vtanh.pop %v1060
      %v1138 = vtanh.pop %v1063
      %v1139 = vtanh.pop %v1065
      %v1140 = vtanh.pop %v1068
      %v1141 = vtanh.pop %v1070
      %v1142 = vtanh.pop %v1073
      %v1143 = vtanh.pop %v1075
      %v1144 = vtanh.pop %v1078
      %v1145 = vtanh.pop %v1080
      %vm1146 = vcmask 7168
      %1147 = vst.msk [vmem:[%s230] sm:$0xff] %vm1146, %v1082
      %1148 = vst.msk [vmem:[%s230 + $0x8] sm:$0xff] %vm1146, %v1083
      %1149 = vst.msk [vmem:[%s230 + $0x10] sm:$0xff] %vm1146, %v1084
      %1150 = vst.msk [vmem:[%s230 + $0x18] sm:$0xff] %vm1146, %v1085
      %1151 = vst.msk [vmem:[%s230 + $0x20] sm:$0xff] %vm1146, %v1086
      %1152 = vst.msk [vmem:[%s230 + $0x28] sm:$0xff] %vm1146, %v1087
      %1153 = vst.msk [vmem:[%s230 + $0x30] sm:$0xff] %vm1146, %v1088
      %1154 = vst.msk [vmem:[%s230 + $0x38] sm:$0xff] %vm1146, %v1089
      %1155 = vst.msk [vmem:[%s230 + $0x40] sm:$0xff] %vm1146, %v1090
      %1156 = vst.msk [vmem:[%s230 + $0x48] sm:$0xff] %vm1146, %v1091
      %1157 = vst.msk [vmem:[%s230 + $0x50] sm:$0xff] %vm1146, %v1092
      %1158 = vst.msk [vmem:[%s230 + $0x58] sm:$0xff] %vm1146, %v1093
      %1159 = vst.msk [vmem:[%s230 + $0x60] sm:$0xff] %vm1146, %v1094
      %1160 = vst.msk [vmem:[%s230 + $0x68] sm:$0xff] %vm1146, %v1095
      %1161 = vst.msk [vmem:[%s230 + $0x70] sm:$0xff] %vm1146, %v1096
      %1162 = vst.msk [vmem:[%s230 + $0x78] sm:$0xff] %vm1146, %v1097
      %1163 = vst.msk [vmem:[%s230 + $0x80] sm:$0xff] %vm1146, %v1098
      %1164 = vst.msk [vmem:[%s230 + $0x88] sm:$0xff] %vm1146, %v1099
      %1165 = vst.msk [vmem:[%s230 + $0x90] sm:$0xff] %vm1146, %v1100
      %1166 = vst.msk [vmem:[%s230 + $0x98] sm:$0xff] %vm1146, %v1101
      %1167 = vst.msk [vmem:[%s230 + $0xa0] sm:$0xff] %vm1146, %v1102
      %1168 = vst.msk [vmem:[%s230 + $0xa8] sm:$0xff] %vm1146, %v1103
      %1169 = vst.msk [vmem:[%s230 + $0xb0] sm:$0xff] %vm1146, %v1104
      %1170 = vst.msk [vmem:[%s230 + $0xb8] sm:$0xff] %vm1146, %v1105
      %1171 = vst.msk [vmem:[%s230 + $0xc0] sm:$0xff] %vm1146, %v1106
      %1172 = vst.msk [vmem:[%s230 + $0xc8] sm:$0xff] %vm1146, %v1107
      %1173 = vst.msk [vmem:[%s230 + $0xd0] sm:$0xff] %vm1146, %v1108
      %1174 = vst.msk [vmem:[%s230 + $0xd8] sm:$0xff] %vm1146, %v1109
      %1175 = vst.msk [vmem:[%s230 + $0xe0] sm:$0xff] %vm1146, %v1110
      %1176 = vst.msk [vmem:[%s230 + $0xe8] sm:$0xff] %vm1146, %v1111
      %1177 = vst.msk [vmem:[%s230 + $0xf0] sm:$0xff] %vm1146, %v1112
      %1178 = vst.msk [vmem:[%s230 + $0xf8] sm:$0xff] %vm1146, %v1113
      %1179 = vst.msk [vmem:[%s230 + $0x100] sm:$0xff] %vm1146, %v1114
      %1180 = vst.msk [vmem:[%s230 + $0x108] sm:$0xff] %vm1146, %v1115
      %1181 = vst.msk [vmem:[%s230 + $0x110] sm:$0xff] %vm1146, %v1116
      %1182 = vst.msk [vmem:[%s230 + $0x118] sm:$0xff] %vm1146, %v1117
      %1183 = vst.msk [vmem:[%s230 + $0x120] sm:$0xff] %vm1146, %v1118
      %1184 = vst.msk [vmem:[%s230 + $0x128] sm:$0xff] %vm1146, %v1119
      %1185 = vst.msk [vmem:[%s230 + $0x130] sm:$0xff] %vm1146, %v1120
      %1186 = vst.msk [vmem:[%s230 + $0x138] sm:$0xff] %vm1146, %v1121
      %1187 = vst.msk [vmem:[%s230 + $0x140] sm:$0xff] %vm1146, %v1122
      %1188 = vst.msk [vmem:[%s230 + $0x148] sm:$0xff] %vm1146, %v1123
      %1189 = vst.msk [vmem:[%s230 + $0x150] sm:$0xff] %vm1146, %v1124
      %1190 = vst.msk [vmem:[%s230 + $0x158] sm:$0xff] %vm1146, %v1125
      %1191 = vst.msk [vmem:[%s230 + $0x160] sm:$0xff] %vm1146, %v1126
      %1192 = vst.msk [vmem:[%s230 + $0x168] sm:$0xff] %vm1146, %v1127
      %1193 = vst.msk [vmem:[%s230 + $0x170] sm:$0xff] %vm1146, %v1128
      %1194 = vst.msk [vmem:[%s230 + $0x178] sm:$0xff] %vm1146, %v1129
      %1195 = vst.msk [vmem:[%s230 + $0x180] sm:$0xff] %vm1146, %v1130
      %1196 = vst.msk [vmem:[%s230 + $0x188] sm:$0xff] %vm1146, %v1131
      %1197 = vst.msk [vmem:[%s230 + $0x190] sm:$0xff] %vm1146, %v1132
      %1198 = vst.msk [vmem:[%s230 + $0x198] sm:$0xff] %vm1146, %v1133
      %1199 = vst.msk [vmem:[%s230 + $0x1a0] sm:$0xff] %vm1146, %v1134
      %1200 = vst.msk [vmem:[%s230 + $0x1a8] sm:$0xff] %vm1146, %v1135
      %1201 = vst.msk [vmem:[%s230 + $0x1b0] sm:$0xff] %vm1146, %v1136
      %1202 = vst.msk [vmem:[%s230 + $0x1b8] sm:$0xff] %vm1146, %v1137
      %1203 = vst.msk [vmem:[%s230 + $0x1c0] sm:$0xff] %vm1146, %v1138
      %1204 = vst.msk [vmem:[%s230 + $0x1c8] sm:$0xff] %vm1146, %v1139
      %1205 = vst.msk [vmem:[%s230 + $0x1d0] sm:$0xff] %vm1146, %v1140
      %1206 = vst.msk [vmem:[%s230 + $0x1d8] sm:$0xff] %vm1146, %v1141
      %1207 = vst.msk [vmem:[%s230 + $0x1e0] sm:$0xff] %vm1146, %v1142
      %1208 = vst.msk [vmem:[%s230 + $0x1e8] sm:$0xff] %vm1146, %v1143
      %1209 = vst.msk [vmem:[%s230 + $0x1f0] sm:$0xff] %vm1146, %v1144
      %1210 = vst.msk [vmem:[%s230 + $0x1f8] sm:$0xff] %vm1146, %v1145
      %s1211 = smul.u32 64, %s19
      %p1212 = scmp.lt.s32.totalorder %s18, 3
      %s1213 = scalar_select %p1212, %s18, 3
      %p1214 = scmp.lt.s32.totalorder %s1211, 255
      %s1215 = scalar_select %p1214, %s1211, 255
      %p1216 = scmp.lt.s32.totalorder %s20, 0
      %s1217 = scalar_select %p1216, %s20, 0
      %s1218 = sadd.s32 %s1217, %s1215
      %s1219 = smul.addr %s1213, 256
      %s1220 = sadd.s32 %s1218, %s1219
      %s1221 = smul.addr %s1220, 8
      %s1222 = scalar_lea.vmem %s2, %s1221
      // Predicated region
      $region29: #{generator_forward.25} parent=27 // pred_check
        %p1223 = pneg %p110
      $region30: #{generator_forward.25} parent=27 // pred_check_branch
        %1225 = sbr.rel (%p1223) target = $region32
      $region31: #{generator_forward.25} parent=27 // pred_region
        %s1226 = smul.u32 64, %s19
      $region32: #{generator_forward.25} parent=27 // pred_fallthru
        _
    $region28: #{generator_forward.25} parent=5 // pred_fallthru
      _
    %p1227 = scmp.le.s32.totalorder 2, %s8
    // Predicated region
    $region33: #{generator_forward.25} parent=5 // pred_check
      %p1228 = pneg %p1227
    $region34: #{generator_forward.25} parent=5 // pred_check_branch
      %1230 = sbr.rel (%p1228) target = $region36
    $region35: #{generator_forward.25} parent=5 // pred_region
      %s1231 = ssub.s32 %s8, 2
      // Predicated region
      $region37: #{generator_forward.25} parent=35 // pred_check
        %p1232 = pneg %p116
      $region38: #{generator_forward.25} parent=35 // pred_check_branch
        %1234 = sbr.rel (%p1232) target = $region40
      $region39: #{generator_forward.25} parent=35 // pred_region
        %s1235 = smul.u32 64, %s22
        %p1236 = scmp.lt.s32.totalorder %s21, 3
        %s1237 = scalar_select %p1236, %s21, 3
        %p1238 = scmp.lt.s32.totalorder %s1235, 255
        %s1239 = scalar_select %p1238, %s1235, 255
        %p1240 = scmp.lt.s32.totalorder %s23, 0
        %s1241 = scalar_select %p1240, %s23, 0
        %s1242 = sadd.s32 %s1241, %s1239
        %s1243 = smul.addr %s1237, 256
        %s1244 = sadd.s32 %s1242, %s1243
        %s1245 = smul.addr %s1244, 8
        %s1246 = scalar_lea.vmem %s2, %s1245
      $region40: #{generator_forward.25} parent=35 // pred_fallthru
        _
    $region36: #{generator_forward.25} parent=5 // pred_fallthru
      _
  $region6: #{generator_forward.25} parent=0 // loop_footer
    %s12 = sadd.s32 1, %s8
  $region7: #{generator_forward.25} parent=0 // loop_footer_branch
    %7 = sbr.rel target = $region3
  $region8: #{generator_forward.25} parent=0 // loop_exit
    _

</llo_original>
